<compile_context>
chip_gen: v5e
topology: v5e:2x2
jax: 0.10.0
libtpu: 0.0.40
codegen_flags: <defaults>
</compile_context>

<pallas_src>
import functools

import numpy as np
import jax
import jax.numpy as jnp
from jax.experimental import pallas as pl
from jax.experimental.pallas import tpu as pltpu

EPS = 1e-5
HIDDEN = 2          # hidden_size in the PyTorch script
K = 3               # all conv-transpose kernels are 3x3

# Static geometry of the decoder conv stack (from the PyTorch module).
CONV_CFG = (
    dict(ci=32, co=16, hin=7,  win=7,  hout=14, wout=14, s=2, lo=1, hi=2, relu=True),
    dict(ci=16, co=8,  hin=14, win=14, hout=28, wout=28, s=2, lo=1, hi=2, relu=True),
    dict(ci=8,  co=1,  hin=28, win=28, hout=28, wout=28, s=1, lo=1, hi=1, relu=False),
)
HOUT = CONV_CFG[-1]["hout"]
WOUT = CONV_CFG[-1]["wout"]


# ----------------------------------------------------------------------------
# Fused Pallas kernel: fc1 -> (ConvT+ReLU+BN2d) x2 -> ConvT+BN2d -> sigmoid
# ----------------------------------------------------------------------------
def _decoder_kernel(x_ref, w1_ref, b1_ref, g1_ref, be1_ref, w2_ref, b2_ref,
                    m1_ref, c1b_ref, c1g_ref, c1be_ref, t1_ref, tt1_ref,
                    m2_ref, c2b_ref, c2g_ref, c2be_ref, t2_ref, tt2_ref,
                    m3_ref, c3b_ref, c3g_ref, c3be_ref,
                    o_ref, *, batch):
    f32 = jnp.float32
    B = batch

    # ---- fc1: Linear(2,800) -> BatchNorm1d -> ReLU -> Linear(800,1568) -> ReLU ----
    h = jnp.dot(x_ref[...], w1_ref[...], preferred_element_type=f32) + b1_ref[...]
    mu = jnp.mean(h, axis=0, keepdims=True)
    var = jnp.mean((h - mu) ** 2, axis=0, keepdims=True)          # biased (train-mode)
    h = (h - mu) * jax.lax.rsqrt(var + EPS) * g1_ref[...] + be1_ref[...]
    h = jnp.maximum(h, 0.0)
    f = jnp.dot(h, w2_ref[...], preferred_element_type=f32) + b2_ref[...]
    f = jnp.maximum(f, 0.0)     # fc1's ReLU + the extra self.relu(out) (idempotent)

    # ---- [B, (h,w,c)] -> slab [(h,b), (w,c)] = [7B, 224] (w2 was column-permuted) ----
    cfg0 = CONV_CFG[0]
    lane0 = cfg0["win"] * cfg0["ci"]
    act = jnp.concatenate(
        [f[:, hh * lane0:(hh + 1) * lane0] for hh in range(cfg0["hin"])], axis=0)

    def conv_layer(x_slab, cfg, m_ref, bias_ref):
        """ConvTranspose2d (+ bias, + optional ReLU) as one deep MXU matmul."""
        hin, win, ci = cfg["hin"], cfg["win"], cfg["ci"]
        hout = cfg["hout"]
        s, lo, hi = cfg["s"], cfg["lo"], cfg["hi"]
        hp = (hin - 1) * s + 1 + lo + hi
        lane_in = win * ci
        zero_blk = jnp.zeros((B, lane_in), f32)
        # H-direction zero-upsample + pad: sublane concat of B-row blocks.
        rows = []
        for r in range(hp):
            src = r - lo
            if src >= 0 and src % s == 0 and (src // s) < hin:
                hh = src // s
                rows.append(x_slab[hh * B:(hh + 1) * B, :])
            else:
                rows.append(zero_blk)
        padded = jnp.concatenate(rows, axis=0)                       # [(hp,b), (w,ci)]
        # The 3 kh taps are contiguous row shifts; lane-concat them so the whole 3x3
        # conv (W shifts folded into m_ref on the host) is a single contraction of
        # depth 3*Win*Ci.
        a = jnp.concatenate(
            [padded[kh * B: kh * B + hout * B, :] for kh in range(K)], axis=1)
        acc = jnp.dot(a, m_ref[...], preferred_element_type=f32) + bias_ref[...]
        if cfg["relu"]:
            acc = jnp.maximum(acc, 0.0)      # torch order: ConvT -> ReLU -> BN
        return acc                                                    # [(ho,b), (wo,co)]

    def bn2d(acc, cfg, g_ref, be_ref, t_ref, tt_ref):
        """Train-mode BatchNorm2d on the [(ho,b),(wo,co)] slab (per-channel stats)."""
        count = float(acc.shape[0] * cfg["wout"])                     # B*Hout*Wout
        rowsum = jnp.sum(acc, axis=0, keepdims=True)                  # [1, Wout*Co]
        mu_c = jnp.dot(rowsum, t_ref[...], preferred_element_type=f32) / count
        mu_l = jnp.dot(mu_c, tt_ref[...], preferred_element_type=f32)
        d = acc - mu_l
        sq = jnp.sum(d * d, axis=0, keepdims=True)
        var_c = jnp.dot(sq, t_ref[...], preferred_element_type=f32) / count
        a_c = g_ref[...] * jax.lax.rsqrt(var_c + EPS)                 # [1, Co]
        b_c = be_ref[...] - mu_c * a_c
        a_l = jnp.dot(a_c, tt_ref[...], preferred_element_type=f32)   # [1, Wout*Co]
        b_l = jnp.dot(b_c, tt_ref[...], preferred_element_type=f32)
        return acc * a_l + b_l

    act = bn2d(conv_layer(act, CONV_CFG[0], m1_ref, c1b_ref),
               CONV_CFG[0], c1g_ref, c1be_ref, t1_ref, tt1_ref)       # [14B, 14*16]
    act = bn2d(conv_layer(act, CONV_CFG[1], m2_ref, c2b_ref),
               CONV_CFG[1], c2g_ref, c2be_ref, t2_ref, tt2_ref)       # [28B, 28*8]

    # Last layer: ConvT(8->1) -> BatchNorm2d(1) -> sigmoid.  Co == 1, so BN statistics
    # are a full-slab mean/var.  Repack to a lane-dense [B, H*W] slab FIRST so the
    # reduction, affine, sigmoid and the output store all run on dense vregs.
    acc = conv_layer(act, CONV_CFG[2], m3_ref, c3b_ref)               # [(ho,b), wo]
    accd = jnp.concatenate(
        [acc[hh * B:(hh + 1) * B, :] for hh in range(HOUT)], axis=1)  # [B, H*W]
    count3 = float(B * HOUT * WOUT)
    mu3 = jnp.sum(jnp.sum(accd, axis=1, keepdims=True), axis=0, keepdims=True) / count3
    d3 = accd - mu3
    var3 = jnp.sum(jnp.sum(d3 * d3, axis=1, keepdims=True),
                   axis=0, keepdims=True) / count3
    y = d3 * (c3g_ref[...] * jax.lax.rsqrt(var3 + EPS)) + c3be_ref[...]
    o_ref[...] = jax.nn.sigmoid(y)


# ----------------------------------------------------------------------------
# Host-side (one-time) parameter repacking
# ----------------------------------------------------------------------------
def _lane_conv_matrix(w_pt, cfg):
    """Fold W-direction zero-upsample + pad + flipped 3x3 kernel of a ConvTranspose2d
    into a block-banded lane matrix [K*Win*Ci, Wout*Co] (built once on the host)."""
    ci, co = cfg["ci"], cfg["co"]
    win, wout, s, lo = cfg["win"], cfg["wout"], cfg["s"], cfg["lo"]
    w_flip = np.asarray(w_pt)[:, :, ::-1, ::-1]          # [Ci, Co, kh, kw], flipped
    m = np.zeros((K, win * ci, wout * co), np.float32)
    for kh in range(K):
        for wi in range(win):
            wp = s * wi + lo                              # lane position after upsample+pad
            for wo in range(wout):
                kw = wp - wo
                if 0 <= kw < K:
                    m[kh, wi * ci:(wi + 1) * ci, wo * co:(wo + 1) * co] = \
                        w_flip[:, :, kh, kw]
    return m.reshape(K * win * ci, wout * co)


def prepare_params(p):
    """Repack PyTorch-layout params into the fused-kernel layout (run once, on host)."""
    # Permute fc2 columns so the fc output is already NHWC-flattened:
    #   new index h*224 + w*32 + c  <-  old index c*49 + h*7 + w
    perm = np.arange(1568).reshape(32, 7, 7).transpose(1, 2, 0).reshape(-1)
    prep = [
        jnp.asarray(p["w1"], jnp.float32),
        jnp.asarray(p["b1"], jnp.float32).reshape(1, -1),
        jnp.asarray(p["g_bn1"], jnp.float32).reshape(1, -1),
        jnp.asarray(p["be_bn1"], jnp.float32).reshape(1, -1),
        jnp.asarray(p["w2"], jnp.float32)[:, perm],
        jnp.asarray(p["b2"], jnp.float32)[perm].reshape(1, -1),
    ]
    names = (("w_ct1", "b_ct1", "g_bn2d1", "be_bn2d1"),
             ("w_ct2", "b_ct2", "g_bn2d2", "be_bn2d2"),
             ("w_ct3", "b_ct3", "g_bn2d3", "be_bn2d3"))
    for cfg, (wk, bk, gk, bek) in zip(CONV_CFG, names):
        prep.append(jnp.asarray(_lane_conv_matrix(p[wk], cfg)))      # [3*Win*Ci, Wout*Co]
        bias_lane = np.tile(np.asarray(p[bk], np.float32), cfg["wout"]).reshape(1, -1)
        prep.append(jnp.asarray(bias_lane))                          # [1, Wout*Co]
        prep.append(jnp.asarray(p[gk], jnp.float32).reshape(1, -1))  # [1, Co]
        prep.append(jnp.asarray(p[bek], jnp.float32).reshape(1, -1))
        if cfg["co"] > 1:
            t = np.tile(np.eye(cfg["co"], dtype=np.float32), (cfg["wout"], 1))
            prep.append(jnp.asarray(t))          # [Wout*Co, Co]  per-channel reduce
            prep.append(jnp.asarray(t.T.copy())) # [Co, Wout*Co]  per-channel broadcast
    return tuple(prep)


def _full_spec(shape):
    return pl.BlockSpec(shape, lambda i: (0,) * len(shape))


@jax.jit
def decoder_forward(x, prep):
    B = x.shape[0]
    args = (x,) + tuple(prep)
    out = pl.pallas_call(
        functools.partial(_decoder_kernel, batch=B),
        grid=(1,),
        out_shape=jax.ShapeDtypeStruct((B, HOUT * WOUT), jnp.float32),
        in_specs=[_full_spec(a.shape) for a in args],
        out_specs=_full_spec((B, HOUT * WOUT)),
        compiler_params=pltpu.CompilerParams(
            dimension_semantics=("arbitrary",),
            vmem_limit_bytes=32 * 1024 * 1024),
    )(*args)
    # kernel output rows are b, lanes are (h, w)  ->  [B, 28, 28, 1]
    return out.reshape(B, HOUT, WOUT, 1)


# ----------------------------------------------------------------------------
# Pure-JAX reference (straight port of the PyTorch math; no Pallas) for checking
# ----------------------------------------------------------------------------
def _upsample_pad_taps(x_nhwc, stride, padding, out_pad):
    B, H, W, Ci = x_nhwc.shape
    Ho = (H - 1) * stride - 2 * padding + K + out_pad
    Wo = (W - 1) * stride - 2 * padding + K + out_pad
    if stride > 1:
        up = jnp.zeros((B, (H - 1) * stride + 1, (W - 1) * stride + 1, Ci),
                       x_nhwc.dtype)
        up = up.at[:, ::stride, ::stride, :].set(x_nhwc)
    else:
        up = x_nhwc
    lo = K - 1 - padding
    hi = K - 1 - padding + out_pad
    padded = jnp.pad(up, ((0, 0), (lo, hi), (lo, hi), (0, 0)))
    taps = jnp.stack(
        [padded[:, kh:kh + Ho, kw:kw + Wo, :].reshape(B * Ho * Wo, Ci)
         for kh in range(K) for kw in range(K)], axis=0)
    return taps, (Ho, Wo)


def _convt_weight_as_taps(w_pt):
    w = jnp.transpose(w_pt[:, :, ::-1, ::-1], (2, 3, 0, 1))
    return w.reshape(K * K, w_pt.shape[0], w_pt.shape[1])


def decoder_reference(x, p):
    B = x.shape[0]
    h = jnp.dot(x, p["w1"]) + p["b1"]
    mu = jnp.mean(h, 0, keepdims=True)
    var = jnp.mean((h - mu) ** 2, 0, keepdims=True)
    h = (h - mu) * jax.lax.rsqrt(var + EPS) * p["g_bn1"] + p["be_bn1"]
    h = jnp.maximum(h, 0.0)
    h = jnp.maximum(jnp.dot(h, p["w2"]) + p["b2"], 0.0)
    h = h.reshape(B, 32, 7, 7).transpose(0, 2, 3, 1)

    def ct(h, w_pt, b, g, be, stride, padding, out_pad, relu, sig):
        Bc = h.shape[0]
        Co = w_pt.shape[1]
        taps, (Ho, Wo) = _upsample_pad_taps(h, stride, padding, out_pad)
        w9 = _convt_weight_as_taps(w_pt)
        acc = sum(jnp.dot(taps[k], w9[k]) for k in range(K * K)) + b
        if relu:
            acc = jnp.maximum(acc, 0.0)
        mu = jnp.mean(acc, 0, keepdims=True)
        var = jnp.mean((acc - mu) ** 2, 0, keepdims=True)
        acc = (acc - mu) * jax.lax.rsqrt(var + EPS) * g + be
        if sig:
            acc = jax.nn.sigmoid(acc)
        return acc.reshape(Bc, Ho, Wo, Co)

    h = ct(h, p["w_ct1"], p["b_ct1"], p["g_bn2d1"], p["be_bn2d1"], 2, 1, 1, True, False)
    h = ct(h, p["w_ct2"], p["b_ct2"], p["g_bn2d2"], p["be_bn2d2"], 2, 1, 1, True, False)
    h = ct(h, p["w_ct3"], p["b_ct3"], p["g_bn2d3"], p["be_bn2d3"], 1, 1, 0, False, True)
    return h


# ----------------------------------------------------------------------------
# Main
# ----------------------------------------------------------------------------
if __name__ == "__main__":
    B = 8  # original script hardcodes batch_size=128; B=8 keeps the demo small
    key = jax.random.PRNGKey(0)
    ks = jax.random.split(key, 20)

    def nrm(k, shape, scale=1.0):
        return scale * jax.random.normal(k, shape, dtype=jnp.float32)

    params = {
        # fc1
        "w1":      nrm(ks[0], (HIDDEN, 800), 2 ** -0.5),
        "b1":      nrm(ks[1], (800,), 0.1),
        "g_bn1":   1.0 + nrm(ks[2], (800,), 0.1),
        "be_bn1":  nrm(ks[3], (800,), 0.1),
        "w2":      nrm(ks[4], (800, 1568), 800 ** -0.5),
        "b2":      nrm(ks[5], (1568,), 0.1),
        # fc2 (ConvTranspose weights kept in PyTorch [Cin, Cout, K, K] layout)
        "w_ct1":    nrm(ks[6], (32, 16, 3, 3), (32 * 9) ** -0.5),
        "b_ct1":    nrm(ks[7], (16,), 0.1),
        "g_bn2d1":  1.0 + nrm(ks[8], (16,), 0.1),
        "be_bn2d1": nrm(ks[9], (16,), 0.1),
        "w_ct2":    nrm(ks[10], (16, 8, 3, 3), (16 * 9) ** -0.5),
        "b_ct2":    nrm(ks[11], (8,), 0.1),
        "g_bn2d2":  1.0 + nrm(ks[12], (8,), 0.1),
        "be_bn2d2": nrm(ks[13], (8,), 0.1),
        "w_ct3":    nrm(ks[14], (8, 1, 3, 3), (8 * 9) ** -0.5),
        "b_ct3":    nrm(ks[15], (1,), 0.1),
        "g_bn2d3":  1.0 + nrm(ks[16], (1,), 0.1),
        "be_bn2d3": nrm(ks[17], (1,), 0.1),
    }

    x = nrm(ks[18], (B, HIDDEN), 1.0)

    prep = prepare_params(params)
    y = jax.block_until_ready(decoder_forward(x, prep))

    assert y.shape == (B, 28, 28, 1), y.shape
    assert bool(jnp.all(jnp.isfinite(y)))

    y_ref = decoder_reference(x, params)
    err = float(jnp.max(jnp.abs(y - y_ref)))
    assert err < 2e-2, err

    print("KERNEL_OK")
</pallas_src>

<mosaic_0001>
module attributes {stable_mosaic.version = 11 : i64} {
  func.func @_decoder_kernel(%arg0: i32, %arg1: memref<8x2xf32, #tpu.memory_space<vmem>>, %arg2: memref<2x800xf32, #tpu.memory_space<vmem>>, %arg3: memref<1x800xf32, #tpu.memory_space<vmem>>, %arg4: memref<1x800xf32, #tpu.memory_space<vmem>>, %arg5: memref<1x800xf32, #tpu.memory_space<vmem>>, %arg6: memref<800x1568xf32, #tpu.memory_space<vmem>>, %arg7: memref<1x1568xf32, #tpu.memory_space<vmem>>, %arg8: memref<672x224xf32, #tpu.memory_space<vmem>>, %arg9: memref<1x224xf32, #tpu.memory_space<vmem>>, %arg10: memref<1x16xf32, #tpu.memory_space<vmem>>, %arg11: memref<1x16xf32, #tpu.memory_space<vmem>>, %arg12: memref<224x16xf32, #tpu.memory_space<vmem>>, %arg13: memref<16x224xf32, #tpu.memory_space<vmem>>, %arg14: memref<672x224xf32, #tpu.memory_space<vmem>>, %arg15: memref<1x224xf32, #tpu.memory_space<vmem>>, %arg16: memref<1x8xf32, #tpu.memory_space<vmem>>, %arg17: memref<1x8xf32, #tpu.memory_space<vmem>>, %arg18: memref<224x8xf32, #tpu.memory_space<vmem>>, %arg19: memref<8x224xf32, #tpu.memory_space<vmem>>, %arg20: memref<672x28xf32, #tpu.memory_space<vmem>>, %arg21: memref<1x28xf32, #tpu.memory_space<vmem>>, %arg22: memref<1x1xf32, #tpu.memory_space<vmem>>, %arg23: memref<1x1xf32, #tpu.memory_space<vmem>>, %arg24: memref<8x784xf32, #tpu.memory_space<vmem>>) attributes {dimension_semantics = [#tpu.dimension_semantics<arbitrary>], iteration_bounds = array<i64: 1>, scalar_prefetch = 0 : i64, scratch_operands = 0 : i64, tpu.core_type = #tpu.core_type<tc>, window_params = [{pipeline_mode = #tpu.pipeline_mode<synchronous>, transform_indices = @transform_0, window_bounds = array<i64: 8, 2>}, {pipeline_mode = #tpu.pipeline_mode<synchronous>, transform_indices = @transform_1, window_bounds = array<i64: 2, 800>}, {pipeline_mode = #tpu.pipeline_mode<synchronous>, transform_indices = @transform_2, window_bounds = array<i64: 1, 800>}, {pipeline_mode = #tpu.pipeline_mode<synchronous>, transform_indices = @transform_3, window_bounds = array<i64: 1, 800>}, {pipeline_mode = #tpu.pipeline_mode<synchronous>, transform_indices = @transform_4, window_bounds = array<i64: 1, 800>}, {pipeline_mode = #tpu.pipeline_mode<synchronous>, transform_indices = @transform_5, window_bounds = array<i64: 800, 1568>}, {pipeline_mode = #tpu.pipeline_mode<synchronous>, transform_indices = @transform_6, window_bounds = array<i64: 1, 1568>}, {pipeline_mode = #tpu.pipeline_mode<synchronous>, transform_indices = @transform_7, window_bounds = array<i64: 672, 224>}, {pipeline_mode = #tpu.pipeline_mode<synchronous>, transform_indices = @transform_8, window_bounds = array<i64: 1, 224>}, {pipeline_mode = #tpu.pipeline_mode<synchronous>, transform_indices = @transform_9, window_bounds = array<i64: 1, 16>}, {pipeline_mode = #tpu.pipeline_mode<synchronous>, transform_indices = @transform_10, window_bounds = array<i64: 1, 16>}, {pipeline_mode = #tpu.pipeline_mode<synchronous>, transform_indices = @transform_11, window_bounds = array<i64: 224, 16>}, {pipeline_mode = #tpu.pipeline_mode<synchronous>, transform_indices = @transform_12, window_bounds = array<i64: 16, 224>}, {pipeline_mode = #tpu.pipeline_mode<synchronous>, transform_indices = @transform_13, window_bounds = array<i64: 672, 224>}, {pipeline_mode = #tpu.pipeline_mode<synchronous>, transform_indices = @transform_14, window_bounds = array<i64: 1, 224>}, {pipeline_mode = #tpu.pipeline_mode<synchronous>, transform_indices = @transform_15, window_bounds = array<i64: 1, 8>}, {pipeline_mode = #tpu.pipeline_mode<synchronous>, transform_indices = @transform_16, window_bounds = array<i64: 1, 8>}, {pipeline_mode = #tpu.pipeline_mode<synchronous>, transform_indices = @transform_17, window_bounds = array<i64: 224, 8>}, {pipeline_mode = #tpu.pipeline_mode<synchronous>, transform_indices = @transform_18, window_bounds = array<i64: 8, 224>}, {pipeline_mode = #tpu.pipeline_mode<synchronous>, transform_indices = @transform_19, window_bounds = array<i64: 672, 28>}, {pipeline_mode = #tpu.pipeline_mode<synchronous>, transform_indices = @transform_20, window_bounds = array<i64: 1, 28>}, {pipeline_mode = #tpu.pipeline_mode<synchronous>, transform_indices = @transform_21, window_bounds = array<i64: 1, 1>}, {pipeline_mode = #tpu.pipeline_mode<synchronous>, transform_indices = @transform_22, window_bounds = array<i64: 1, 1>}, {pipeline_mode = #tpu.pipeline_mode<synchronous>, transform_indices = @transform_23, window_bounds = array<i64: 8, 784>}]} {
    %c0 = arith.constant 0 : index
    %c0_0 = arith.constant 0 : index
    %0 = vector.load %arg1[%c0, %c0_0] : memref<8x2xf32, #tpu.memory_space<vmem>>, vector<8x2xf32>
    %c0_1 = arith.constant 0 : index
    %c0_2 = arith.constant 0 : index
    %1 = vector.load %arg2[%c0_1, %c0_2] : memref<2x800xf32, #tpu.memory_space<vmem>>, vector<2x800xf32>
    %cst = arith.constant dense<0.000000e+00> : vector<8x800xf32>
    %2 = tpu.matmul %0, %1, %cst {dimension_numbers = #tpu.dot_dimension_numbers<[1], [0], [0], [1], [0, 0, 1, 1], [], []>} : vector<8x2xf32>, vector<2x800xf32>, vector<8x800xf32> -> vector<8x800xf32>
    %c0_3 = arith.constant 0 : index
    %c0_4 = arith.constant 0 : index
    %3 = vector.load %arg3[%c0_3, %c0_4] : memref<1x800xf32, #tpu.memory_space<vmem>>, vector<1x800xf32>
    %4 = vector.broadcast %3 : vector<1x800xf32> to vector<8x800xf32>
    %5 = arith.addf %2, %4 : vector<8x800xf32>
    %cst_5 = arith.constant dense<0.000000e+00> : vector<800xf32>
    %6 = vector.multi_reduction <add>, %5, %cst_5 [0] : vector<8x800xf32> to vector<800xf32>
    %7 = vector.shape_cast %6 : vector<800xf32> to vector<1x800xf32>
    %cst_6 = arith.constant 8.000000e+00 : f32
    %8 = vector.broadcast %cst_6 : f32 to vector<1x800xf32>
    %9 = arith.divf %7, %8 : vector<1x800xf32>
    %10 = vector.broadcast %9 : vector<1x800xf32> to vector<8x800xf32>
    %11 = arith.subf %5, %10 : vector<8x800xf32>
    %12 = arith.mulf %11, %11 : vector<8x800xf32>
    %cst_7 = arith.constant dense<0.000000e+00> : vector<800xf32>
    %13 = vector.multi_reduction <add>, %12, %cst_7 [0] : vector<8x800xf32> to vector<800xf32>
    %14 = vector.shape_cast %13 : vector<800xf32> to vector<1x800xf32>
    %cst_8 = arith.constant 8.000000e+00 : f32
    %15 = vector.broadcast %cst_8 : f32 to vector<1x800xf32>
    %16 = arith.divf %14, %15 : vector<1x800xf32>
    %17 = vector.broadcast %9 : vector<1x800xf32> to vector<8x800xf32>
    %18 = arith.subf %5, %17 : vector<8x800xf32>
    %cst_9 = arith.constant 9.99999974E-6 : f32
    %19 = vector.broadcast %cst_9 : f32 to vector<1x800xf32>
    %20 = arith.addf %16, %19 : vector<1x800xf32>
    %21 = math.rsqrt %20 : vector<1x800xf32>
    %22 = vector.broadcast %21 : vector<1x800xf32> to vector<8x800xf32>
    %23 = arith.mulf %18, %22 : vector<8x800xf32>
    %c0_10 = arith.constant 0 : index
    %c0_11 = arith.constant 0 : index
    %24 = vector.load %arg4[%c0_10, %c0_11] : memref<1x800xf32, #tpu.memory_space<vmem>>, vector<1x800xf32>
    %25 = vector.broadcast %24 : vector<1x800xf32> to vector<8x800xf32>
    %26 = arith.mulf %23, %25 : vector<8x800xf32>
    %c0_12 = arith.constant 0 : index
    %c0_13 = arith.constant 0 : index
    %27 = vector.load %arg5[%c0_12, %c0_13] : memref<1x800xf32, #tpu.memory_space<vmem>>, vector<1x800xf32>
    %28 = vector.broadcast %27 : vector<1x800xf32> to vector<8x800xf32>
    %29 = arith.addf %26, %28 : vector<8x800xf32>
    %cst_14 = arith.constant 0.000000e+00 : f32
    %30 = vector.broadcast %cst_14 : f32 to vector<8x800xf32>
    %31 = arith.maximumf %29, %30 : vector<8x800xf32>
    %c0_15 = arith.constant 0 : index
    %c0_16 = arith.constant 0 : index
    %32 = vector.load %arg6[%c0_15, %c0_16] : memref<800x1568xf32, #tpu.memory_space<vmem>>, vector<800x1568xf32>
    %cst_17 = arith.constant dense<0.000000e+00> : vector<8x1568xf32>
    %33 = tpu.matmul %31, %32, %cst_17 {dimension_numbers = #tpu.dot_dimension_numbers<[1], [0], [0], [1], [0, 0, 1, 1], [], []>} : vector<8x800xf32>, vector<800x1568xf32>, vector<8x1568xf32> -> vector<8x1568xf32>
    %c0_18 = arith.constant 0 : index
    %c0_19 = arith.constant 0 : index
    %34 = vector.load %arg7[%c0_18, %c0_19] : memref<1x1568xf32, #tpu.memory_space<vmem>>, vector<1x1568xf32>
    %35 = vector.broadcast %34 : vector<1x1568xf32> to vector<8x1568xf32>
    %36 = arith.addf %33, %35 : vector<8x1568xf32>
    %cst_20 = arith.constant 0.000000e+00 : f32
    %37 = vector.broadcast %cst_20 : f32 to vector<8x1568xf32>
    %38 = arith.maximumf %36, %37 : vector<8x1568xf32>
    %39 = vector.extract_strided_slice %38 {offsets = [0, 0], sizes = [8, 224], strides = [1, 1]} : vector<8x1568xf32> to vector<8x224xf32>
    %40 = vector.extract_strided_slice %38 {offsets = [0, 224], sizes = [8, 224], strides = [1, 1]} : vector<8x1568xf32> to vector<8x224xf32>
    %41 = vector.extract_strided_slice %38 {offsets = [0, 448], sizes = [8, 224], strides = [1, 1]} : vector<8x1568xf32> to vector<8x224xf32>
    %42 = vector.extract_strided_slice %38 {offsets = [0, 672], sizes = [8, 224], strides = [1, 1]} : vector<8x1568xf32> to vector<8x224xf32>
    %43 = vector.extract_strided_slice %38 {offsets = [0, 896], sizes = [8, 224], strides = [1, 1]} : vector<8x1568xf32> to vector<8x224xf32>
    %44 = vector.extract_strided_slice %38 {offsets = [0, 1120], sizes = [8, 224], strides = [1, 1]} : vector<8x1568xf32> to vector<8x224xf32>
    %45 = vector.extract_strided_slice %38 {offsets = [0, 1344], sizes = [8, 224], strides = [1, 1]} : vector<8x1568xf32> to vector<8x224xf32>
    %46 = tpu.concatenate %39, %40, %41, %42, %43, %44, %45 in 0 : vector<8x224xf32>, vector<8x224xf32>, vector<8x224xf32>, vector<8x224xf32>, vector<8x224xf32>, vector<8x224xf32>, vector<8x224xf32> -> vector<56x224xf32>
    %cst_21 = arith.constant 0.000000e+00 : f32
    %47 = vector.broadcast %cst_21 : f32 to vector<8x224xf32>
    %48 = vector.extract_strided_slice %46 {offsets = [0, 0], sizes = [8, 224], strides = [1, 1]} : vector<56x224xf32> to vector<8x224xf32>
    %49 = vector.extract_strided_slice %46 {offsets = [8, 0], sizes = [8, 224], strides = [1, 1]} : vector<56x224xf32> to vector<8x224xf32>
    %50 = vector.extract_strided_slice %46 {offsets = [16, 0], sizes = [8, 224], strides = [1, 1]} : vector<56x224xf32> to vector<8x224xf32>
    %51 = vector.extract_strided_slice %46 {offsets = [24, 0], sizes = [8, 224], strides = [1, 1]} : vector<56x224xf32> to vector<8x224xf32>
    %52 = vector.extract_strided_slice %46 {offsets = [32, 0], sizes = [8, 224], strides = [1, 1]} : vector<56x224xf32> to vector<8x224xf32>
    %53 = vector.extract_strided_slice %46 {offsets = [40, 0], sizes = [8, 224], strides = [1, 1]} : vector<56x224xf32> to vector<8x224xf32>
    %54 = vector.extract_strided_slice %46 {offsets = [48, 0], sizes = [8, 224], strides = [1, 1]} : vector<56x224xf32> to vector<8x224xf32>
    %55 = tpu.concatenate %47, %48, %47, %49, %47, %50, %47, %51, %47, %52, %47, %53, %47, %54, %47, %47 in 0 : vector<8x224xf32>, vector<8x224xf32>, vector<8x224xf32>, vector<8x224xf32>, vector<8x224xf32>, vector<8x224xf32>, vector<8x224xf32>, vector<8x224xf32>, vector<8x224xf32>, vector<8x224xf32>, vector<8x224xf32>, vector<8x224xf32>, vector<8x224xf32>, vector<8x224xf32>, vector<8x224xf32>, vector<8x224xf32> -> vector<128x224xf32>
    %56 = vector.extract_strided_slice %55 {offsets = [0, 0], sizes = [112, 224], strides = [1, 1]} : vector<128x224xf32> to vector<112x224xf32>
    %57 = vector.extract_strided_slice %55 {offsets = [8, 0], sizes = [112, 224], strides = [1, 1]} : vector<128x224xf32> to vector<112x224xf32>
    %58 = vector.extract_strided_slice %55 {offsets = [16, 0], sizes = [112, 224], strides = [1, 1]} : vector<128x224xf32> to vector<112x224xf32>
    %59 = tpu.concatenate %56, %57, %58 in 1 : vector<112x224xf32>, vector<112x224xf32>, vector<112x224xf32> -> vector<112x672xf32>
    %c0_22 = arith.constant 0 : index
    %c0_23 = arith.constant 0 : index
    %60 = vector.load %arg8[%c0_22, %c0_23] : memref<672x224xf32, #tpu.memory_space<vmem>>, vector<672x224xf32>
    %cst_24 = arith.constant dense<0.000000e+00> : vector<112x224xf32>
    %61 = tpu.matmul %59, %60, %cst_24 {dimension_numbers = #tpu.dot_dimension_numbers<[1], [0], [0], [1], [0, 0, 1, 1], [], []>} : vector<112x672xf32>, vector<672x224xf32>, vector<112x224xf32> -> vector<112x224xf32>
    %c0_25 = arith.constant 0 : index
    %c0_26 = arith.constant 0 : index
    %62 = vector.load %arg9[%c0_25, %c0_26] : memref<1x224xf32, #tpu.memory_space<vmem>>, vector<1x224xf32>
    %63 = vector.broadcast %62 : vector<1x224xf32> to vector<112x224xf32>
    %64 = arith.addf %61, %63 : vector<112x224xf32>
    %cst_27 = arith.constant 0.000000e+00 : f32
    %65 = vector.broadcast %cst_27 : f32 to vector<112x224xf32>
    %66 = arith.maximumf %64, %65 : vector<112x224xf32>
    %cst_28 = arith.constant dense<0.000000e+00> : vector<224xf32>
    %67 = vector.multi_reduction <add>, %66, %cst_28 [0] : vector<112x224xf32> to vector<224xf32>
    %68 = vector.shape_cast %67 : vector<224xf32> to vector<1x224xf32>
    %c0_29 = arith.constant 0 : index
    %c0_30 = arith.constant 0 : index
    %69 = vector.load %arg12[%c0_29, %c0_30] : memref<224x16xf32, #tpu.memory_space<vmem>>, vector<224x16xf32>
    %cst_31 = arith.constant dense<0.000000e+00> : vector<1x16xf32>
    %70 = tpu.matmul %68, %69, %cst_31 {dimension_numbers = #tpu.dot_dimension_numbers<[1], [0], [0], [1], [0, 0, 1, 1], [], []>} : vector<1x224xf32>, vector<224x16xf32>, vector<1x16xf32> -> vector<1x16xf32>
    %cst_32 = arith.constant 1.568000e+03 : f32
    %71 = vector.broadcast %cst_32 : f32 to vector<1x16xf32>
    %72 = arith.divf %70, %71 : vector<1x16xf32>
    %c0_33 = arith.constant 0 : index
    %c0_34 = arith.constant 0 : index
    %73 = vector.load %arg13[%c0_33, %c0_34] : memref<16x224xf32, #tpu.memory_space<vmem>>, vector<16x224xf32>
    %cst_35 = arith.constant dense<0.000000e+00> : vector<1x224xf32>
    %74 = tpu.matmul %72, %73, %cst_35 {dimension_numbers = #tpu.dot_dimension_numbers<[1], [0], [0], [1], [0, 0, 1, 1], [], []>} : vector<1x16xf32>, vector<16x224xf32>, vector<1x224xf32> -> vector<1x224xf32>
    %75 = vector.broadcast %74 : vector<1x224xf32> to vector<112x224xf32>
    %76 = arith.subf %66, %75 : vector<112x224xf32>
    %77 = arith.mulf %76, %76 : vector<112x224xf32>
    %cst_36 = arith.constant dense<0.000000e+00> : vector<224xf32>
    %78 = vector.multi_reduction <add>, %77, %cst_36 [0] : vector<112x224xf32> to vector<224xf32>
    %79 = vector.shape_cast %78 : vector<224xf32> to vector<1x224xf32>
    %c0_37 = arith.constant 0 : index
    %c0_38 = arith.constant 0 : index
    %80 = vector.load %arg12[%c0_37, %c0_38] : memref<224x16xf32, #tpu.memory_space<vmem>>, vector<224x16xf32>
    %cst_39 = arith.constant dense<0.000000e+00> : vector<1x16xf32>
    %81 = tpu.matmul %79, %80, %cst_39 {dimension_numbers = #tpu.dot_dimension_numbers<[1], [0], [0], [1], [0, 0, 1, 1], [], []>} : vector<1x224xf32>, vector<224x16xf32>, vector<1x16xf32> -> vector<1x16xf32>
    %cst_40 = arith.constant 1.568000e+03 : f32
    %82 = vector.broadcast %cst_40 : f32 to vector<1x16xf32>
    %83 = arith.divf %81, %82 : vector<1x16xf32>
    %c0_41 = arith.constant 0 : index
    %c0_42 = arith.constant 0 : index
    %84 = vector.load %arg10[%c0_41, %c0_42] : memref<1x16xf32, #tpu.memory_space<vmem>>, vector<1x16xf32>
    %cst_43 = arith.constant 9.99999974E-6 : f32
    %85 = vector.broadcast %cst_43 : f32 to vector<1x16xf32>
    %86 = arith.addf %83, %85 : vector<1x16xf32>
    %87 = math.rsqrt %86 : vector<1x16xf32>
    %88 = arith.mulf %84, %87 : vector<1x16xf32>
    %c0_44 = arith.constant 0 : index
    %c0_45 = arith.constant 0 : index
    %89 = vector.load %arg11[%c0_44, %c0_45] : memref<1x16xf32, #tpu.memory_space<vmem>>, vector<1x16xf32>
    %90 = arith.mulf %72, %88 : vector<1x16xf32>
    %91 = arith.subf %89, %90 : vector<1x16xf32>
    %c0_46 = arith.constant 0 : index
    %c0_47 = arith.constant 0 : index
    %92 = vector.load %arg13[%c0_46, %c0_47] : memref<16x224xf32, #tpu.memory_space<vmem>>, vector<16x224xf32>
    %cst_48 = arith.constant dense<0.000000e+00> : vector<1x224xf32>
    %93 = tpu.matmul %88, %92, %cst_48 {dimension_numbers = #tpu.dot_dimension_numbers<[1], [0], [0], [1], [0, 0, 1, 1], [], []>} : vector<1x16xf32>, vector<16x224xf32>, vector<1x224xf32> -> vector<1x224xf32>
    %c0_49 = arith.constant 0 : index
    %c0_50 = arith.constant 0 : index
    %94 = vector.load %arg13[%c0_49, %c0_50] : memref<16x224xf32, #tpu.memory_space<vmem>>, vector<16x224xf32>
    %cst_51 = arith.constant dense<0.000000e+00> : vector<1x224xf32>
    %95 = tpu.matmul %91, %94, %cst_51 {dimension_numbers = #tpu.dot_dimension_numbers<[1], [0], [0], [1], [0, 0, 1, 1], [], []>} : vector<1x16xf32>, vector<16x224xf32>, vector<1x224xf32> -> vector<1x224xf32>
    %96 = vector.broadcast %93 : vector<1x224xf32> to vector<112x224xf32>
    %97 = arith.mulf %66, %96 : vector<112x224xf32>
    %98 = vector.broadcast %95 : vector<1x224xf32> to vector<112x224xf32>
    %99 = arith.addf %97, %98 : vector<112x224xf32>
    %cst_52 = arith.constant 0.000000e+00 : f32
    %100 = vector.broadcast %cst_52 : f32 to vector<8x224xf32>
    %101 = vector.extract_strided_slice %99 {offsets = [0, 0], sizes = [8, 224], strides = [1, 1]} : vector<112x224xf32> to vector<8x224xf32>
    %102 = vector.extract_strided_slice %99 {offsets = [8, 0], sizes = [8, 224], strides = [1, 1]} : vector<112x224xf32> to vector<8x224xf32>
    %103 = vector.extract_strided_slice %99 {offsets = [16, 0], sizes = [8, 224], strides = [1, 1]} : vector<112x224xf32> to vector<8x224xf32>
    %104 = vector.extract_strided_slice %99 {offsets = [24, 0], sizes = [8, 224], strides = [1, 1]} : vector<112x224xf32> to vector<8x224xf32>
    %105 = vector.extract_strided_slice %99 {offsets = [32, 0], sizes = [8, 224], strides = [1, 1]} : vector<112x224xf32> to vector<8x224xf32>
    %106 = vector.extract_strided_slice %99 {offsets = [40, 0], sizes = [8, 224], strides = [1, 1]} : vector<112x224xf32> to vector<8x224xf32>
    %107 = vector.extract_strided_slice %99 {offsets = [48, 0], sizes = [8, 224], strides = [1, 1]} : vector<112x224xf32> to vector<8x224xf32>
    %108 = vector.extract_strided_slice %99 {offsets = [56, 0], sizes = [8, 224], strides = [1, 1]} : vector<112x224xf32> to vector<8x224xf32>
    %109 = vector.extract_strided_slice %99 {offsets = [64, 0], sizes = [8, 224], strides = [1, 1]} : vector<112x224xf32> to vector<8x224xf32>
    %110 = vector.extract_strided_slice %99 {offsets = [72, 0], sizes = [8, 224], strides = [1, 1]} : vector<112x224xf32> to vector<8x224xf32>
    %111 = vector.extract_strided_slice %99 {offsets = [80, 0], sizes = [8, 224], strides = [1, 1]} : vector<112x224xf32> to vector<8x224xf32>
    %112 = vector.extract_strided_slice %99 {offsets = [88, 0], sizes = [8, 224], strides = [1, 1]} : vector<112x224xf32> to vector<8x224xf32>
    %113 = vector.extract_strided_slice %99 {offsets = [96, 0], sizes = [8, 224], strides = [1, 1]} : vector<112x224xf32> to vector<8x224xf32>
    %114 = vector.extract_strided_slice %99 {offsets = [104, 0], sizes = [8, 224], strides = [1, 1]} : vector<112x224xf32> to vector<8x224xf32>
    %115 = tpu.concatenate %100, %101, %100, %102, %100, %103, %100, %104, %100, %105, %100, %106, %100, %107, %100, %108 in 0 : vector<8x224xf32>, vector<8x224xf32>, vector<8x224xf32>, vector<8x224xf32>, vector<8x224xf32>, vector<8x224xf32>, vector<8x224xf32>, vector<8x224xf32>, vector<8x224xf32>, vector<8x224xf32>, vector<8x224xf32>, vector<8x224xf32>, vector<8x224xf32>, vector<8x224xf32>, vector<8x224xf32>, vector<8x224xf32> -> vector<128x224xf32>
    %116 = tpu.concatenate %100, %109, %100, %110, %100, %111, %100, %112, %100, %113, %100, %114, %100, %100 in 0 : vector<8x224xf32>, vector<8x224xf32>, vector<8x224xf32>, vector<8x224xf32>, vector<8x224xf32>, vector<8x224xf32>, vector<8x224xf32>, vector<8x224xf32>, vector<8x224xf32>, vector<8x224xf32>, vector<8x224xf32>, vector<8x224xf32>, vector<8x224xf32>, vector<8x224xf32> -> vector<112x224xf32>
    %117 = tpu.concatenate %115, %116 in 0 : vector<128x224xf32>, vector<112x224xf32> -> vector<240x224xf32>
    %118 = vector.extract_strided_slice %117 {offsets = [0, 0], sizes = [224, 224], strides = [1, 1]} : vector<240x224xf32> to vector<224x224xf32>
    %119 = vector.extract_strided_slice %117 {offsets = [8, 0], sizes = [224, 224], strides = [1, 1]} : vector<240x224xf32> to vector<224x224xf32>
    %120 = vector.extract_strided_slice %117 {offsets = [16, 0], sizes = [224, 224], strides = [1, 1]} : vector<240x224xf32> to vector<224x224xf32>
    %121 = tpu.concatenate %118, %119, %120 in 1 : vector<224x224xf32>, vector<224x224xf32>, vector<224x224xf32> -> vector<224x672xf32>
    %c0_53 = arith.constant 0 : index
    %c0_54 = arith.constant 0 : index
    %122 = vector.load %arg14[%c0_53, %c0_54] : memref<672x224xf32, #tpu.memory_space<vmem>>, vector<672x224xf32>
    %cst_55 = arith.constant dense<0.000000e+00> : vector<224x224xf32>
    %123 = tpu.matmul %121, %122, %cst_55 {dimension_numbers = #tpu.dot_dimension_numbers<[1], [0], [0], [1], [0, 0, 1, 1], [], []>} : vector<224x672xf32>, vector<672x224xf32>, vector<224x224xf32> -> vector<224x224xf32>
    %c0_56 = arith.constant 0 : index
    %c0_57 = arith.constant 0 : index
    %124 = vector.load %arg15[%c0_56, %c0_57] : memref<1x224xf32, #tpu.memory_space<vmem>>, vector<1x224xf32>
    %125 = vector.broadcast %124 : vector<1x224xf32> to vector<224x224xf32>
    %126 = arith.addf %123, %125 : vector<224x224xf32>
    %cst_58 = arith.constant 0.000000e+00 : f32
    %127 = vector.broadcast %cst_58 : f32 to vector<224x224xf32>
    %128 = arith.maximumf %126, %127 : vector<224x224xf32>
    %cst_59 = arith.constant dense<0.000000e+00> : vector<224xf32>
    %129 = vector.multi_reduction <add>, %128, %cst_59 [0] : vector<224x224xf32> to vector<224xf32>
    %130 = vector.shape_cast %129 : vector<224xf32> to vector<1x224xf32>
    %c0_60 = arith.constant 0 : index
    %c0_61 = arith.constant 0 : index
    %131 = vector.load %arg18[%c0_60, %c0_61] : memref<224x8xf32, #tpu.memory_space<vmem>>, vector<224x8xf32>
    %cst_62 = arith.constant dense<0.000000e+00> : vector<1x8xf32>
    %132 = tpu.matmul %130, %131, %cst_62 {dimension_numbers = #tpu.dot_dimension_numbers<[1], [0], [0], [1], [0, 0, 1, 1], [], []>} : vector<1x224xf32>, vector<224x8xf32>, vector<1x8xf32> -> vector<1x8xf32>
    %cst_63 = arith.constant 6.272000e+03 : f32
    %133 = vector.broadcast %cst_63 : f32 to vector<1x8xf32>
    %134 = arith.divf %132, %133 : vector<1x8xf32>
    %c0_64 = arith.constant 0 : index
    %c0_65 = arith.constant 0 : index
    %135 = vector.load %arg19[%c0_64, %c0_65] : memref<8x224xf32, #tpu.memory_space<vmem>>, vector<8x224xf32>
    %cst_66 = arith.constant dense<0.000000e+00> : vector<1x224xf32>
    %136 = tpu.matmul %134, %135, %cst_66 {dimension_numbers = #tpu.dot_dimension_numbers<[1], [0], [0], [1], [0, 0, 1, 1], [], []>} : vector<1x8xf32>, vector<8x224xf32>, vector<1x224xf32> -> vector<1x224xf32>
    %137 = vector.broadcast %136 : vector<1x224xf32> to vector<224x224xf32>
    %138 = arith.subf %128, %137 : vector<224x224xf32>
    %139 = arith.mulf %138, %138 : vector<224x224xf32>
    %cst_67 = arith.constant dense<0.000000e+00> : vector<224xf32>
    %140 = vector.multi_reduction <add>, %139, %cst_67 [0] : vector<224x224xf32> to vector<224xf32>
    %141 = vector.shape_cast %140 : vector<224xf32> to vector<1x224xf32>
    %c0_68 = arith.constant 0 : index
    %c0_69 = arith.constant 0 : index
    %142 = vector.load %arg18[%c0_68, %c0_69] : memref<224x8xf32, #tpu.memory_space<vmem>>, vector<224x8xf32>
    %cst_70 = arith.constant dense<0.000000e+00> : vector<1x8xf32>
    %143 = tpu.matmul %141, %142, %cst_70 {dimension_numbers = #tpu.dot_dimension_numbers<[1], [0], [0], [1], [0, 0, 1, 1], [], []>} : vector<1x224xf32>, vector<224x8xf32>, vector<1x8xf32> -> vector<1x8xf32>
    %cst_71 = arith.constant 6.272000e+03 : f32
    %144 = vector.broadcast %cst_71 : f32 to vector<1x8xf32>
    %145 = arith.divf %143, %144 : vector<1x8xf32>
    %c0_72 = arith.constant 0 : index
    %c0_73 = arith.constant 0 : index
    %146 = vector.load %arg16[%c0_72, %c0_73] : memref<1x8xf32, #tpu.memory_space<vmem>>, vector<1x8xf32>
    %cst_74 = arith.constant 9.99999974E-6 : f32
    %147 = vector.broadcast %cst_74 : f32 to vector<1x8xf32>
    %148 = arith.addf %145, %147 : vector<1x8xf32>
    %149 = math.rsqrt %148 : vector<1x8xf32>
    %150 = arith.mulf %146, %149 : vector<1x8xf32>
    %c0_75 = arith.constant 0 : index
    %c0_76 = arith.constant 0 : index
    %151 = vector.load %arg17[%c0_75, %c0_76] : memref<1x8xf32, #tpu.memory_space<vmem>>, vector<1x8xf32>
    %152 = arith.mulf %134, %150 : vector<1x8xf32>
    %153 = arith.subf %151, %152 : vector<1x8xf32>
    %c0_77 = arith.constant 0 : index
    %c0_78 = arith.constant 0 : index
    %154 = vector.load %arg19[%c0_77, %c0_78] : memref<8x224xf32, #tpu.memory_space<vmem>>, vector<8x224xf32>
    %cst_79 = arith.constant dense<0.000000e+00> : vector<1x224xf32>
    %155 = tpu.matmul %150, %154, %cst_79 {dimension_numbers = #tpu.dot_dimension_numbers<[1], [0], [0], [1], [0, 0, 1, 1], [], []>} : vector<1x8xf32>, vector<8x224xf32>, vector<1x224xf32> -> vector<1x224xf32>
    %c0_80 = arith.constant 0 : index
    %c0_81 = arith.constant 0 : index
    %156 = vector.load %arg19[%c0_80, %c0_81] : memref<8x224xf32, #tpu.memory_space<vmem>>, vector<8x224xf32>
    %cst_82 = arith.constant dense<0.000000e+00> : vector<1x224xf32>
    %157 = tpu.matmul %153, %156, %cst_82 {dimension_numbers = #tpu.dot_dimension_numbers<[1], [0], [0], [1], [0, 0, 1, 1], [], []>} : vector<1x8xf32>, vector<8x224xf32>, vector<1x224xf32> -> vector<1x224xf32>
    %158 = vector.broadcast %155 : vector<1x224xf32> to vector<224x224xf32>
    %159 = arith.mulf %128, %158 : vector<224x224xf32>
    %160 = vector.broadcast %157 : vector<1x224xf32> to vector<224x224xf32>
    %161 = arith.addf %159, %160 : vector<224x224xf32>
    %cst_83 = arith.constant 0.000000e+00 : f32
    %162 = vector.broadcast %cst_83 : f32 to vector<8x224xf32>
    %163 = vector.extract_strided_slice %161 {offsets = [0, 0], sizes = [8, 224], strides = [1, 1]} : vector<224x224xf32> to vector<8x224xf32>
    %164 = vector.extract_strided_slice %161 {offsets = [8, 0], sizes = [8, 224], strides = [1, 1]} : vector<224x224xf32> to vector<8x224xf32>
    %165 = vector.extract_strided_slice %161 {offsets = [16, 0], sizes = [8, 224], strides = [1, 1]} : vector<224x224xf32> to vector<8x224xf32>
    %166 = vector.extract_strided_slice %161 {offsets = [24, 0], sizes = [8, 224], strides = [1, 1]} : vector<224x224xf32> to vector<8x224xf32>
    %167 = vector.extract_strided_slice %161 {offsets = [32, 0], sizes = [8, 224], strides = [1, 1]} : vector<224x224xf32> to vector<8x224xf32>
    %168 = vector.extract_strided_slice %161 {offsets = [40, 0], sizes = [8, 224], strides = [1, 1]} : vector<224x224xf32> to vector<8x224xf32>
    %169 = vector.extract_strided_slice %161 {offsets = [48, 0], sizes = [8, 224], strides = [1, 1]} : vector<224x224xf32> to vector<8x224xf32>
    %170 = vector.extract_strided_slice %161 {offsets = [56, 0], sizes = [8, 224], strides = [1, 1]} : vector<224x224xf32> to vector<8x224xf32>
    %171 = vector.extract_strided_slice %161 {offsets = [64, 0], sizes = [8, 224], strides = [1, 1]} : vector<224x224xf32> to vector<8x224xf32>
    %172 = vector.extract_strided_slice %161 {offsets = [72, 0], sizes = [8, 224], strides = [1, 1]} : vector<224x224xf32> to vector<8x224xf32>
    %173 = vector.extract_strided_slice %161 {offsets = [80, 0], sizes = [8, 224], strides = [1, 1]} : vector<224x224xf32> to vector<8x224xf32>
    %174 = vector.extract_strided_slice %161 {offsets = [88, 0], sizes = [8, 224], strides = [1, 1]} : vector<224x224xf32> to vector<8x224xf32>
    %175 = vector.extract_strided_slice %161 {offsets = [96, 0], sizes = [8, 224], strides = [1, 1]} : vector<224x224xf32> to vector<8x224xf32>
    %176 = vector.extract_strided_slice %161 {offsets = [104, 0], sizes = [8, 224], strides = [1, 1]} : vector<224x224xf32> to vector<8x224xf32>
    %177 = vector.extract_strided_slice %161 {offsets = [112, 0], sizes = [8, 224], strides = [1, 1]} : vector<224x224xf32> to vector<8x224xf32>
    %178 = vector.extract_strided_slice %161 {offsets = [120, 0], sizes = [8, 224], strides = [1, 1]} : vector<224x224xf32> to vector<8x224xf32>
    %179 = vector.extract_strided_slice %161 {offsets = [128, 0], sizes = [8, 224], strides = [1, 1]} : vector<224x224xf32> to vector<8x224xf32>
    %180 = vector.extract_strided_slice %161 {offsets = [136, 0], sizes = [8, 224], strides = [1, 1]} : vector<224x224xf32> to vector<8x224xf32>
    %181 = vector.extract_strided_slice %161 {offsets = [144, 0], sizes = [8, 224], strides = [1, 1]} : vector<224x224xf32> to vector<8x224xf32>
    %182 = vector.extract_strided_slice %161 {offsets = [152, 0], sizes = [8, 224], strides = [1, 1]} : vector<224x224xf32> to vector<8x224xf32>
    %183 = vector.extract_strided_slice %161 {offsets = [160, 0], sizes = [8, 224], strides = [1, 1]} : vector<224x224xf32> to vector<8x224xf32>
    %184 = vector.extract_strided_slice %161 {offsets = [168, 0], sizes = [8, 224], strides = [1, 1]} : vector<224x224xf32> to vector<8x224xf32>
    %185 = vector.extract_strided_slice %161 {offsets = [176, 0], sizes = [8, 224], strides = [1, 1]} : vector<224x224xf32> to vector<8x224xf32>
    %186 = vector.extract_strided_slice %161 {offsets = [184, 0], sizes = [8, 224], strides = [1, 1]} : vector<224x224xf32> to vector<8x224xf32>
    %187 = vector.extract_strided_slice %161 {offsets = [192, 0], sizes = [8, 224], strides = [1, 1]} : vector<224x224xf32> to vector<8x224xf32>
    %188 = vector.extract_strided_slice %161 {offsets = [200, 0], sizes = [8, 224], strides = [1, 1]} : vector<224x224xf32> to vector<8x224xf32>
    %189 = vector.extract_strided_slice %161 {offsets = [208, 0], sizes = [8, 224], strides = [1, 1]} : vector<224x224xf32> to vector<8x224xf32>
    %190 = vector.extract_strided_slice %161 {offsets = [216, 0], sizes = [8, 224], strides = [1, 1]} : vector<224x224xf32> to vector<8x224xf32>
    %191 = tpu.concatenate %162, %163, %164, %165, %166, %167, %168, %169, %170, %171, %172, %173, %174, %175, %176, %177 in 0 : vector<8x224xf32>, vector<8x224xf32>, vector<8x224xf32>, vector<8x224xf32>, vector<8x224xf32>, vector<8x224xf32>, vector<8x224xf32>, vector<8x224xf32>, vector<8x224xf32>, vector<8x224xf32>, vector<8x224xf32>, vector<8x224xf32>, vector<8x224xf32>, vector<8x224xf32>, vector<8x224xf32>, vector<8x224xf32> -> vector<128x224xf32>
    %192 = tpu.concatenate %178, %179, %180, %181, %182, %183, %184, %185, %186, %187, %188, %189, %190, %162 in 0 : vector<8x224xf32>, vector<8x224xf32>, vector<8x224xf32>, vector<8x224xf32>, vector<8x224xf32>, vector<8x224xf32>, vector<8x224xf32>, vector<8x224xf32>, vector<8x224xf32>, vector<8x224xf32>, vector<8x224xf32>, vector<8x224xf32>, vector<8x224xf32>, vector<8x224xf32> -> vector<112x224xf32>
    %193 = tpu.concatenate %191, %192 in 0 : vector<128x224xf32>, vector<112x224xf32> -> vector<240x224xf32>
    %194 = vector.extract_strided_slice %193 {offsets = [0, 0], sizes = [224, 224], strides = [1, 1]} : vector<240x224xf32> to vector<224x224xf32>
    %195 = vector.extract_strided_slice %193 {offsets = [8, 0], sizes = [224, 224], strides = [1, 1]} : vector<240x224xf32> to vector<224x224xf32>
    %196 = vector.extract_strided_slice %193 {offsets = [16, 0], sizes = [224, 224], strides = [1, 1]} : vector<240x224xf32> to vector<224x224xf32>
    %197 = tpu.concatenate %194, %195, %196 in 1 : vector<224x224xf32>, vector<224x224xf32>, vector<224x224xf32> -> vector<224x672xf32>
    %c0_84 = arith.constant 0 : index
    %c0_85 = arith.constant 0 : index
    %198 = vector.load %arg20[%c0_84, %c0_85] : memref<672x28xf32, #tpu.memory_space<vmem>>, vector<672x28xf32>
    %cst_86 = arith.constant dense<0.000000e+00> : vector<224x28xf32>
    %199 = tpu.matmul %197, %198, %cst_86 {dimension_numbers = #tpu.dot_dimension_numbers<[1], [0], [0], [1], [0, 0, 1, 1], [], []>} : vector<224x672xf32>, vector<672x28xf32>, vector<224x28xf32> -> vector<224x28xf32>
    %c0_87 = arith.constant 0 : index
    %c0_88 = arith.constant 0 : index
    %200 = vector.load %arg21[%c0_87, %c0_88] : memref<1x28xf32, #tpu.memory_space<vmem>>, vector<1x28xf32>
    %201 = vector.broadcast %200 : vector<1x28xf32> to vector<224x28xf32>
    %202 = arith.addf %199, %201 : vector<224x28xf32>
    %203 = vector.extract_strided_slice %202 {offsets = [0, 0], sizes = [8, 28], strides = [1, 1]} : vector<224x28xf32> to vector<8x28xf32>
    %204 = vector.extract_strided_slice %202 {offsets = [8, 0], sizes = [8, 28], strides = [1, 1]} : vector<224x28xf32> to vector<8x28xf32>
    %205 = vector.extract_strided_slice %202 {offsets = [16, 0], sizes = [8, 28], strides = [1, 1]} : vector<224x28xf32> to vector<8x28xf32>
    %206 = vector.extract_strided_slice %202 {offsets = [24, 0], sizes = [8, 28], strides = [1, 1]} : vector<224x28xf32> to vector<8x28xf32>
    %207 = vector.extract_strided_slice %202 {offsets = [32, 0], sizes = [8, 28], strides = [1, 1]} : vector<224x28xf32> to vector<8x28xf32>
    %208 = vector.extract_strided_slice %202 {offsets = [40, 0], sizes = [8, 28], strides = [1, 1]} : vector<224x28xf32> to vector<8x28xf32>
    %209 = vector.extract_strided_slice %202 {offsets = [48, 0], sizes = [8, 28], strides = [1, 1]} : vector<224x28xf32> to vector<8x28xf32>
    %210 = vector.extract_strided_slice %202 {offsets = [56, 0], sizes = [8, 28], strides = [1, 1]} : vector<224x28xf32> to vector<8x28xf32>
    %211 = vector.extract_strided_slice %202 {offsets = [64, 0], sizes = [8, 28], strides = [1, 1]} : vector<224x28xf32> to vector<8x28xf32>
    %212 = vector.extract_strided_slice %202 {offsets = [72, 0], sizes = [8, 28], strides = [1, 1]} : vector<224x28xf32> to vector<8x28xf32>
    %213 = vector.extract_strided_slice %202 {offsets = [80, 0], sizes = [8, 28], strides = [1, 1]} : vector<224x28xf32> to vector<8x28xf32>
    %214 = vector.extract_strided_slice %202 {offsets = [88, 0], sizes = [8, 28], strides = [1, 1]} : vector<224x28xf32> to vector<8x28xf32>
    %215 = vector.extract_strided_slice %202 {offsets = [96, 0], sizes = [8, 28], strides = [1, 1]} : vector<224x28xf32> to vector<8x28xf32>
    %216 = vector.extract_strided_slice %202 {offsets = [104, 0], sizes = [8, 28], strides = [1, 1]} : vector<224x28xf32> to vector<8x28xf32>
    %217 = vector.extract_strided_slice %202 {offsets = [112, 0], sizes = [8, 28], strides = [1, 1]} : vector<224x28xf32> to vector<8x28xf32>
    %218 = vector.extract_strided_slice %202 {offsets = [120, 0], sizes = [8, 28], strides = [1, 1]} : vector<224x28xf32> to vector<8x28xf32>
    %219 = vector.extract_strided_slice %202 {offsets = [128, 0], sizes = [8, 28], strides = [1, 1]} : vector<224x28xf32> to vector<8x28xf32>
    %220 = vector.extract_strided_slice %202 {offsets = [136, 0], sizes = [8, 28], strides = [1, 1]} : vector<224x28xf32> to vector<8x28xf32>
    %221 = vector.extract_strided_slice %202 {offsets = [144, 0], sizes = [8, 28], strides = [1, 1]} : vector<224x28xf32> to vector<8x28xf32>
    %222 = vector.extract_strided_slice %202 {offsets = [152, 0], sizes = [8, 28], strides = [1, 1]} : vector<224x28xf32> to vector<8x28xf32>
    %223 = vector.extract_strided_slice %202 {offsets = [160, 0], sizes = [8, 28], strides = [1, 1]} : vector<224x28xf32> to vector<8x28xf32>
    %224 = vector.extract_strided_slice %202 {offsets = [168, 0], sizes = [8, 28], strides = [1, 1]} : vector<224x28xf32> to vector<8x28xf32>
    %225 = vector.extract_strided_slice %202 {offsets = [176, 0], sizes = [8, 28], strides = [1, 1]} : vector<224x28xf32> to vector<8x28xf32>
    %226 = vector.extract_strided_slice %202 {offsets = [184, 0], sizes = [8, 28], strides = [1, 1]} : vector<224x28xf32> to vector<8x28xf32>
    %227 = vector.extract_strided_slice %202 {offsets = [192, 0], sizes = [8, 28], strides = [1, 1]} : vector<224x28xf32> to vector<8x28xf32>
    %228 = vector.extract_strided_slice %202 {offsets = [200, 0], sizes = [8, 28], strides = [1, 1]} : vector<224x28xf32> to vector<8x28xf32>
    %229 = vector.extract_strided_slice %202 {offsets = [208, 0], sizes = [8, 28], strides = [1, 1]} : vector<224x28xf32> to vector<8x28xf32>
    %230 = vector.extract_strided_slice %202 {offsets = [216, 0], sizes = [8, 28], strides = [1, 1]} : vector<224x28xf32> to vector<8x28xf32>
    %231 = tpu.concatenate %203, %204, %205, %206, %207, %208, %209, %210, %211, %212, %213, %214, %215, %216, %217, %218 in 1 : vector<8x28xf32>, vector<8x28xf32>, vector<8x28xf32>, vector<8x28xf32>, vector<8x28xf32>, vector<8x28xf32>, vector<8x28xf32>, vector<8x28xf32>, vector<8x28xf32>, vector<8x28xf32>, vector<8x28xf32>, vector<8x28xf32>, vector<8x28xf32>, vector<8x28xf32>, vector<8x28xf32>, vector<8x28xf32> -> vector<8x448xf32>
    %232 = tpu.concatenate %219, %220, %221, %222, %223, %224, %225, %226, %227, %228, %229, %230 in 1 : vector<8x28xf32>, vector<8x28xf32>, vector<8x28xf32>, vector<8x28xf32>, vector<8x28xf32>, vector<8x28xf32>, vector<8x28xf32>, vector<8x28xf32>, vector<8x28xf32>, vector<8x28xf32>, vector<8x28xf32>, vector<8x28xf32> -> vector<8x336xf32>
    %233 = tpu.concatenate %231, %232 in 1 : vector<8x448xf32>, vector<8x336xf32> -> vector<8x784xf32>
    %cst_89 = arith.constant dense<0.000000e+00> : vector<8xf32>
    %234 = vector.multi_reduction <add>, %233, %cst_89 [1] : vector<8x784xf32> to vector<8xf32>
    %235 = vector.shape_cast %234 : vector<8xf32> to vector<8x1xf32>
    %cst_90 = arith.constant dense<0.000000e+00> : vector<1xf32>
    %236 = vector.multi_reduction <add>, %235, %cst_90 [0] : vector<8x1xf32> to vector<1xf32>
    %237 = vector.shape_cast %236 : vector<1xf32> to vector<1x1xf32>
    %cst_91 = arith.constant 6.272000e+03 : f32
    %238 = vector.broadcast %cst_91 : f32 to vector<1x1xf32>
    %239 = arith.divf %237, %238 : vector<1x1xf32>
    %240 = vector.broadcast %239 : vector<1x1xf32> to vector<8x784xf32>
    %241 = arith.subf %233, %240 : vector<8x784xf32>
    %242 = arith.mulf %241, %241 : vector<8x784xf32>
    %cst_92 = arith.constant dense<0.000000e+00> : vector<8xf32>
    %243 = vector.multi_reduction <add>, %242, %cst_92 [1] : vector<8x784xf32> to vector<8xf32>
    %244 = vector.shape_cast %243 : vector<8xf32> to vector<8x1xf32>
    %cst_93 = arith.constant dense<0.000000e+00> : vector<1xf32>
    %245 = vector.multi_reduction <add>, %244, %cst_93 [0] : vector<8x1xf32> to vector<1xf32>
    %246 = vector.shape_cast %245 : vector<1xf32> to vector<1x1xf32>
    %cst_94 = arith.constant 6.272000e+03 : f32
    %247 = vector.broadcast %cst_94 : f32 to vector<1x1xf32>
    %248 = arith.divf %246, %247 : vector<1x1xf32>
    %c0_95 = arith.constant 0 : index
    %c0_96 = arith.constant 0 : index
    %249 = vector.load %arg22[%c0_95, %c0_96] : memref<1x1xf32, #tpu.memory_space<vmem>>, vector<1x1xf32>
    %cst_97 = arith.constant 9.99999974E-6 : f32
    %250 = vector.broadcast %cst_97 : f32 to vector<1x1xf32>
    %251 = arith.addf %248, %250 : vector<1x1xf32>
    %252 = math.rsqrt %251 : vector<1x1xf32>
    %253 = arith.mulf %249, %252 : vector<1x1xf32>
    %254 = vector.broadcast %253 : vector<1x1xf32> to vector<8x784xf32>
    %255 = arith.mulf %241, %254 : vector<8x784xf32>
    %c0_98 = arith.constant 0 : index
    %c0_99 = arith.constant 0 : index
    %256 = vector.load %arg23[%c0_98, %c0_99] : memref<1x1xf32, #tpu.memory_space<vmem>>, vector<1x1xf32>
    %257 = vector.broadcast %256 : vector<1x1xf32> to vector<8x784xf32>
    %258 = arith.addf %255, %257 : vector<8x784xf32>
    %259 = arith.negf %258 : vector<8x784xf32>
    %260 = math.exp %259 : vector<8x784xf32>
    %cst_100 = arith.constant 1.000000e+00 : f32
    %261 = vector.broadcast %cst_100 : f32 to vector<8x784xf32>
    %262 = arith.addf %261, %260 : vector<8x784xf32>
    %263 = arith.divf %261, %262 : vector<8x784xf32>
    %c0_101 = arith.constant 0 : index
    %c0_102 = arith.constant 0 : index
    %264 = vector.load %arg24[%c0_101, %c0_102] : memref<8x784xf32, #tpu.memory_space<vmem>>, vector<8x784xf32>
    tpu.vector_store %arg24[%c0_101, %c0_102], %263 {strides = array<i32>} : memref<8x784xf32, #tpu.memory_space<vmem>>, vector<8x784xf32>,
    return
  }
  func.func @transform_0(%arg0: i32) -> (i32, i32) {
    %c0_i32 = arith.constant 0 : i32
    %c0_i32_0 = arith.constant 0 : i32
    %c0_i32_1 = arith.constant 0 : i32
    return %c0_i32, %c0_i32_0 : i32, i32
  }
  func.func @transform_1(%arg0: i32) -> (i32, i32) {
    %c0_i32 = arith.constant 0 : i32
    %c0_i32_0 = arith.constant 0 : i32
    %c0_i32_1 = arith.constant 0 : i32
    return %c0_i32, %c0_i32_0 : i32, i32
  }
  func.func @transform_2(%arg0: i32) -> (i32, i32) {
    %c0_i32 = arith.constant 0 : i32
    %c0_i32_0 = arith.constant 0 : i32
    %c0_i32_1 = arith.constant 0 : i32
    return %c0_i32, %c0_i32_0 : i32, i32
  }
  func.func @transform_3(%arg0: i32) -> (i32, i32) {
    %c0_i32 = arith.constant 0 : i32
    %c0_i32_0 = arith.constant 0 : i32
    %c0_i32_1 = arith.constant 0 : i32
    return %c0_i32, %c0_i32_0 : i32, i32
  }
  func.func @transform_4(%arg0: i32) -> (i32, i32) {
    %c0_i32 = arith.constant 0 : i32
    %c0_i32_0 = arith.constant 0 : i32
    %c0_i32_1 = arith.constant 0 : i32
    return %c0_i32, %c0_i32_0 : i32, i32
  }
  func.func @transform_5(%arg0: i32) -> (i32, i32) {
    %c0_i32 = arith.constant 0 : i32
    %c0_i32_0 = arith.constant 0 : i32
    %c0_i32_1 = arith.constant 0 : i32
    return %c0_i32, %c0_i32_0 : i32, i32
  }
  func.func @transform_6(%arg0: i32) -> (i32, i32) {
    %c0_i32 = arith.constant 0 : i32
    %c0_i32_0 = arith.constant 0 : i32
    %c0_i32_1 = arith.constant 0 : i32
    return %c0_i32, %c0_i32_0 : i32, i32
  }
  func.func @transform_7(%arg0: i32) -> (i32, i32) {
    %c0_i32 = arith.constant 0 : i32
    %c0_i32_0 = arith.constant 0 : i32
    %c0_i32_1 = arith.constant 0 : i32
    return %c0_i32, %c0_i32_0 : i32, i32
  }
  func.func @transform_8(%arg0: i32) -> (i32, i32) {
    %c0_i32 = arith.constant 0 : i32
    %c0_i32_0 = arith.constant 0 : i32
    %c0_i32_1 = arith.constant 0 : i32
    return %c0_i32, %c0_i32_0 : i32, i32
  }
  func.func @transform_9(%arg0: i32) -> (i32, i32) {
    %c0_i32 = arith.constant 0 : i32
    %c0_i32_0 = arith.constant 0 : i32
    %c0_i32_1 = arith.constant 0 : i32
    return %c0_i32, %c0_i32_0 : i32, i32
  }
  func.func @transform_10(%arg0: i32) -> (i32, i32) {
    %c0_i32 = arith.constant 0 : i32
    %c0_i32_0 = arith.constant 0 : i32
    %c0_i32_1 = arith.constant 0 : i32
    return %c0_i32, %c0_i32_0 : i32, i32
  }
  func.func @transform_11(%arg0: i32) -> (i32, i32) {
    %c0_i32 = arith.constant 0 : i32
    %c0_i32_0 = arith.constant 0 : i32
    %c0_i32_1 = arith.constant 0 : i32
    return %c0_i32, %c0_i32_0 : i32, i32
  }
  func.func @transform_12(%arg0: i32) -> (i32, i32) {
    %c0_i32 = arith.constant 0 : i32
    %c0_i32_0 = arith.constant 0 : i32
    %c0_i32_1 = arith.constant 0 : i32
    return %c0_i32, %c0_i32_0 : i32, i32
  }
  func.func @transform_13(%arg0: i32) -> (i32, i32) {
    %c0_i32 = arith.constant 0 : i32
    %c0_i32_0 = arith.constant 0 : i32
    %c0_i32_1 = arith.constant 0 : i32
    return %c0_i32, %c0_i32_0 : i32, i32
  }
  func.func @transform_14(%arg0: i32) -> (i32, i32) {
    %c0_i32 = arith.constant 0 : i32
    %c0_i32_0 = arith.constant 0 : i32
    %c0_i32_1 = arith.constant 0 : i32
    return %c0_i32, %c0_i32_0 : i32, i32
  }
  func.func @transform_15(%arg0: i32) -> (i32, i32) {
    %c0_i32 = arith.constant 0 : i32
    %c0_i32_0 = arith.constant 0 : i32
    %c0_i32_1 = arith.constant 0 : i32
    return %c0_i32, %c0_i32_0 : i32, i32
  }
  func.func @transform_16(%arg0: i32) -> (i32, i32) {
    %c0_i32 = arith.constant 0 : i32
    %c0_i32_0 = arith.constant 0 : i32
    %c0_i32_1 = arith.constant 0 : i32
    return %c0_i32, %c0_i32_0 : i32, i32
  }
  func.func @transform_17(%arg0: i32) -> (i32, i32) {
    %c0_i32 = arith.constant 0 : i32
    %c0_i32_0 = arith.constant 0 : i32
    %c0_i32_1 = arith.constant 0 : i32
    return %c0_i32, %c0_i32_0 : i32, i32
  }
  func.func @transform_18(%arg0: i32) -> (i32, i32) {
    %c0_i32 = arith.constant 0 : i32
    %c0_i32_0 = arith.constant 0 : i32
    %c0_i32_1 = arith.constant 0 : i32
    return %c0_i32, %c0_i32_0 : i32, i32
  }
  func.func @transform_19(%arg0: i32) -> (i32, i32) {
    %c0_i32 = arith.constant 0 : i32
    %c0_i32_0 = arith.constant 0 : i32
    %c0_i32_1 = arith.constant 0 : i32
    return %c0_i32, %c0_i32_0 : i32, i32
  }
  func.func @transform_20(%arg0: i32) -> (i32, i32) {
    %c0_i32 = arith.constant 0 : i32
    %c0_i32_0 = arith.constant 0 : i32
    %c0_i32_1 = arith.constant 0 : i32
    return %c0_i32, %c0_i32_0 : i32, i32
  }
  func.func @transform_21(%arg0: i32) -> (i32, i32) {
    %c0_i32 = arith.constant 0 : i32
    %c0_i32_0 = arith.constant 0 : i32
    %c0_i32_1 = arith.constant 0 : i32
    return %c0_i32, %c0_i32_0 : i32, i32
  }
  func.func @transform_22(%arg0: i32) -> (i32, i32) {
    %c0_i32 = arith.constant 0 : i32
    %c0_i32_0 = arith.constant 0 : i32
    %c0_i32_1 = arith.constant 0 : i32
    return %c0_i32, %c0_i32_0 : i32, i32
  }
  func.func @transform_23(%arg0: i32) -> (i32, i32) {
    %c0_i32 = arith.constant 0 : i32
    %c0_i32_0 = arith.constant 0 : i32
    %c0_i32_1 = arith.constant 0 : i32
    return %c0_i32, %c0_i32_0 : i32, i32
  }
}

</mosaic_0001>

<llo_original>
// kernel: decoder_forward.1
$region0: #{decoder_forward.1}
  #allocation0 [shape = 'u32[]', space=smem, size = 0x4, offset = 0x4, fixed_abs, tag = 'smem constant byte address 0x4 - core index']
  #allocation1 [shape = 'u32[72,128]{1,0:T(1,128)}', space=vmem, size = 0x9000, scoped, tag = 'internal scratch']
  #allocation2 [shape = 'f32[1,1]{1,0:T(1,128)S(1)}', space=vmem, size = 0x200, scoped, tag = 'scoped memory for decoder_forward.1']
  #allocation3 [shape = 'f32[1,1]{1,0:T(1,128)S(1)}', space=vmem, size = 0x200, scoped, tag = 'scoped memory for decoder_forward.1']
  %s0 = inlined_call_operand.vmem [shape: f32[8,2], index: 0, kind: input, shape index: {}]
  %s1 = inlined_call_operand.hbm [shape: f32[2,800], index: 1, kind: input, shape index: {}]
  %s2 = inlined_call_operand.hbm [shape: f32[1,800], index: 2, kind: input, shape index: {}]
  %s3 = inlined_call_operand.hbm [shape: f32[1,800], index: 3, kind: input, shape index: {}]
  %s4 = inlined_call_operand.hbm [shape: f32[1,800], index: 4, kind: input, shape index: {}]
  %s5 = inlined_call_operand.hbm [shape: f32[800,1568], index: 5, kind: input, shape index: {}]
  %s6 = inlined_call_operand.hbm [shape: f32[1,1568], index: 6, kind: input, shape index: {}]
  %s7 = inlined_call_operand.hbm [shape: f32[672,224], index: 7, kind: input, shape index: {}]
  %s8 = inlined_call_operand.hbm [shape: f32[1,224], index: 8, kind: input, shape index: {}]
  %s9 = inlined_call_operand.hbm [shape: f32[1,16], index: 9, kind: input, shape index: {}]
  %s10 = inlined_call_operand.hbm [shape: f32[1,16], index: 10, kind: input, shape index: {}]
  %s11 = inlined_call_operand.vmem [shape: f32[224,16], index: 11, kind: input, shape index: {}]
  %s12 = inlined_call_operand.hbm [shape: f32[16,224], index: 12, kind: input, shape index: {}]
  %s13 = inlined_call_operand.hbm [shape: f32[672,224], index: 13, kind: input, shape index: {}]
  %s14 = inlined_call_operand.hbm [shape: f32[1,224], index: 14, kind: input, shape index: {}]
  %s15 = inlined_call_operand.hbm [shape: f32[1,8], index: 15, kind: input, shape index: {}]
  %s16 = inlined_call_operand.hbm [shape: f32[1,8], index: 16, kind: input, shape index: {}]
  %s17 = inlined_call_operand.vmem [shape: f32[224,8], index: 17, kind: input, shape index: {}]
  %s18 = inlined_call_operand.hbm [shape: f32[8,224], index: 18, kind: input, shape index: {}]
  %s19 = inlined_call_operand.vmem [shape: f32[672,28], index: 19, kind: input, shape index: {}]
  %s20 = inlined_call_operand.hbm [shape: f32[1,28], index: 20, kind: input, shape index: {}]
  %s21 = inlined_call_operand.<no memory space> [shape: f32[1,1], index: 21, kind: input, shape index: {}]
  %s22 = inlined_call_operand.<no memory space> [shape: f32[1,1], index: 22, kind: input, shape index: {}]
  %s23 = inlined_call_operand.vmem [shape: f32[8,784], index: 23, kind: output, shape index: {}]
  %s24 = sld [smem:[#allocation0]]
  $region170: #{decoder_forward.1} parent=0
    _
  %s26 = ssub.s32 1, %s24
  %s27 = scalar_select 0, %s26, %s24
  %v28 = vstv %s21
  %29 = vst [vmem:[#allocation2] sm:$0x1] %v28
  %v30 = vstv %s22
  %31 = vst [vmem:[#allocation3] sm:$0x1] %v30
  $region1: #{decoder_forward.1} parent=0
    #allocation4 [shape = 'u8[7168]{0}', space=vmem, size = 0x1c00, scoped, tag = 'input window, operand 1, single buffered']
    #allocation5 [shape = 's32[1]{0}', space=sflag, size = 0x4, scoped, tag = 'scoped memory for decoder_forward.1']
    #allocation6 [shape = 'u8[3584]{0}', space=vmem, size = 0x1000, scoped, tag = 'input window, operand 2, single buffered']
    #allocation7 [shape = 's32[1]{0}', space=sflag, size = 0x4, scoped, tag = 'scoped memory for decoder_forward.1']
    #allocation8 [shape = 'u8[3584]{0}', space=vmem, size = 0x1000, scoped, tag = 'input window, operand 3, single buffered']
    #allocation9 [shape = 'u8[3584]{0}', space=vmem, size = 0x1000, scoped, tag = 'input window, operand 4, single buffered']
    #allocation10 [shape = 's32[1]{0}', space=sflag, size = 0x4, scoped, tag = 'scoped memory for decoder_forward.1']
    #allocation11 [shape = 'u8[5324800]{0}', space=vmem, size = 0x514000, scoped, tag = 'input window, operand 5, single buffered']
    #allocation12 [shape = 'u8[6656]{0}', space=vmem, size = 0x1c00, scoped, tag = 'input window, operand 6, single buffered']
    #allocation13 [shape = 's32[1]{0}', space=sflag, size = 0x4, scoped, tag = 'scoped memory for decoder_forward.1']
    #allocation14 [shape = 'u8[688128]{0}', space=vmem, size = 0xa8000, scoped, tag = 'input window, operand 7, single buffered']
    #allocation15 [shape = 'u8[1024]{0}', space=vmem, size = 0x400, scoped, tag = 'input window, operand 8, single buffered']
    #allocation16 [shape = 's32[1]{0}', space=sflag, size = 0x4, scoped, tag = 'scoped memory for decoder_forward.1']
    #allocation17 [shape = 'u8[512]{0}', space=vmem, size = 0x400, scoped, tag = 'input window, operand 9, single buffered']
    #allocation18 [shape = 'u8[512]{0}', space=vmem, size = 0x400, scoped, tag = 'input window, operand 10, single buffered']
    #allocation19 [shape = 's32[1]{0}', space=sflag, size = 0x4, scoped, tag = 'scoped memory for decoder_forward.1']
    #allocation20 [shape = 'u8[16384]{0}', space=vmem, size = 0x4000, scoped, tag = 'input window, operand 12, single buffered']
    #allocation21 [shape = 'u8[688128]{0}', space=vmem, size = 0xa8000, scoped, tag = 'input window, operand 13, single buffered']
    #allocation22 [shape = 's32[1]{0}', space=sflag, size = 0x4, scoped, tag = 'scoped memory for decoder_forward.1']
    #allocation23 [shape = 'u8[1024]{0}', space=vmem, size = 0x400, scoped, tag = 'input window, operand 14, single buffered']
    #allocation24 [shape = 'u8[512]{0}', space=vmem, size = 0x400, scoped, tag = 'input window, operand 15, single buffered']
    #allocation25 [shape = 's32[1]{0}', space=sflag, size = 0x4, scoped, tag = 'scoped memory for decoder_forward.1']
    #allocation26 [shape = 'u8[512]{0}', space=vmem, size = 0x400, scoped, tag = 'input window, operand 16, single buffered']
    #allocation27 [shape = 'u8[8192]{0}', space=vmem, size = 0x2000, scoped, tag = 'input window, operand 18, single buffered']
    #allocation28 [shape = 's32[1]{0}', space=sflag, size = 0x4, scoped, tag = 'scoped memory for decoder_forward.1']
    #allocation29 [shape = 'u8[512]{0}', space=vmem, size = 0x400, scoped, tag = 'input window, operand 20, single buffered']
    %32 = vsyncpa [#allocation5], 0
    %33 = vsyncpa [#allocation7], 0
    %34 = vsyncpa [#allocation10], 0
    %35 = vsyncpa [#allocation13], 0
    %36 = vsyncpa [#allocation16], 0
    %37 = vsyncpa [#allocation19], 0
    %38 = vsyncpa [#allocation22], 0
    %39 = vsyncpa [#allocation25], 0
    %40 = vsyncpa [#allocation28], 0
    // Predicated region
    $region2: #{decoder_forward.1} parent=1 // pred_check
      _
    $region3: #{decoder_forward.1} parent=1 // pred_check_branch
      %42 = sbr.rel (0) target = $region5
    $region4: #{decoder_forward.1} parent=1 // pred_region
      _
    $region5: #{decoder_forward.1} parent=1 // pred_fallthru
      _
    // Predicated region
    $region6: #{decoder_forward.1} parent=1 // pred_check
      _
    $region7: #{decoder_forward.1} parent=1 // pred_check_branch
      %44 = sbr.rel (0) target = $region9
    $region8: #{decoder_forward.1} parent=1 // pred_region
      %46 = vsyncadd [#allocation5], 0
      %s48 = sshll.u32 %s1, 4
      %s49 = int_to_ptr.hbm [resolvable:$true] %s48
      %s50 = sshll.u32 [#allocation4], 4
      %s51 = int_to_ptr.vmem [resolvable:$true] %s50
      %53 = dma.hbm_to_vmem [thread:$0]  %s49, 224, %s51, [#allocation5]
    $region9: #{decoder_forward.1} parent=1 // pred_fallthru
      _
    // Predicated region
    $region10: #{decoder_forward.1} parent=1 // pred_check
      _
    $region11: #{decoder_forward.1} parent=1 // pred_check_branch
      %55 = sbr.rel (0) target = $region13
    $region12: #{decoder_forward.1} parent=1 // pred_region
      %57 = vsyncadd [#allocation7], 0
      %s59 = sshll.u32 %s2, 4
      %s60 = int_to_ptr.hbm [resolvable:$true] %s59
      %s61 = sshll.u32 [#allocation6], 4
      %s62 = int_to_ptr.vmem [resolvable:$true] %s61
      %64 = dma.hbm_to_vmem [thread:$0]  %s60, 112, %s62, [#allocation7]
    $region13: #{decoder_forward.1} parent=1 // pred_fallthru
      _
    // Predicated region
    $region14: #{decoder_forward.1} parent=1 // pred_check
      _
    $region15: #{decoder_forward.1} parent=1 // pred_check_branch
      %66 = sbr.rel (0) target = $region17
    $region16: #{decoder_forward.1} parent=1 // pred_region
      %68 = vsyncadd [#allocation7], 0
      %s70 = sshll.u32 %s3, 4
      %s71 = int_to_ptr.hbm [resolvable:$true] %s70
      %s72 = sshll.u32 [#allocation8], 4
      %s73 = int_to_ptr.vmem [resolvable:$true] %s72
      %75 = dma.hbm_to_vmem [thread:$0]  %s71, 112, %s73, [#allocation7]
    $region17: #{decoder_forward.1} parent=1 // pred_fallthru
      _
    // Predicated region
    $region18: #{decoder_forward.1} parent=1 // pred_check
      _
    $region19: #{decoder_forward.1} parent=1 // pred_check_branch
      %77 = sbr.rel (0) target = $region21
    $region20: #{decoder_forward.1} parent=1 // pred_region
      %79 = vsyncadd [#allocation10], 0
      %s81 = sshll.u32 %s4, 4
      %s82 = int_to_ptr.hbm [resolvable:$true] %s81
      %s83 = sshll.u32 [#allocation9], 4
      %s84 = int_to_ptr.vmem [resolvable:$true] %s83
      %86 = dma.hbm_to_vmem [thread:$0]  %s82, 112, %s84, [#allocation10]
    $region21: #{decoder_forward.1} parent=1 // pred_fallthru
      _
    // Predicated region
    $region22: #{decoder_forward.1} parent=1 // pred_check
      _
    $region23: #{decoder_forward.1} parent=1 // pred_check_branch
      %88 = sbr.rel (0) target = $region25
    $region24: #{decoder_forward.1} parent=1 // pred_region
      %90 = vsyncadd [#allocation10], 0
      %s91 = sshll.u32 %s5, 4
      %s92 = int_to_ptr.hbm [resolvable:$true] %s91
      %s93 = sshll.u32 [#allocation11], 4
      %s94 = int_to_ptr.vmem [resolvable:$true] %s93
      %99 = dma.hbm_to_vmem [thread:$0]  %s92, 166400, %s94, [#allocation10], 1664, 1664, 104
    $region25: #{decoder_forward.1} parent=1 // pred_fallthru
      _
    // Predicated region
    $region26: #{decoder_forward.1} parent=1 // pred_check
      _
    $region27: #{decoder_forward.1} parent=1 // pred_check_branch
      %101 = sbr.rel (0) target = $region29
    $region28: #{decoder_forward.1} parent=1 // pred_region
      %103 = vsyncadd [#allocation13], 0
      %s105 = sshll.u32 %s6, 4
      %s106 = int_to_ptr.hbm [resolvable:$true] %s105
      %s107 = sshll.u32 [#allocation12], 4
      %s108 = int_to_ptr.vmem [resolvable:$true] %s107
      %110 = dma.hbm_to_vmem [thread:$0]  %s106, 208, %s108, [#allocation13]
    $region29: #{decoder_forward.1} parent=1 // pred_fallthru
      _
    // Predicated region
    $region30: #{decoder_forward.1} parent=1 // pred_check
      _
    $region31: #{decoder_forward.1} parent=1 // pred_check_branch
      %112 = sbr.rel (0) target = $region33
    $region32: #{decoder_forward.1} parent=1 // pred_region
      %114 = vsyncadd [#allocation13], 0
      %s115 = sshll.u32 %s7, 4
      %s116 = int_to_ptr.hbm [resolvable:$true] %s115
      %s117 = sshll.u32 [#allocation14], 4
      %s118 = int_to_ptr.vmem [resolvable:$true] %s117
      %123 = dma.hbm_to_vmem [thread:$0]  %s116, 21504, %s118, [#allocation13], 256, 256, 16
    $region33: #{decoder_forward.1} parent=1 // pred_fallthru
      _
    // Predicated region
    $region34: #{decoder_forward.1} parent=1 // pred_check
      _
    $region35: #{decoder_forward.1} parent=1 // pred_check_branch
      %125 = sbr.rel (0) target = $region37
    $region36: #{decoder_forward.1} parent=1 // pred_region
      %127 = vsyncadd [#allocation16], 0
      %s129 = sshll.u32 %s8, 4
      %s130 = int_to_ptr.hbm [resolvable:$true] %s129
      %s131 = sshll.u32 [#allocation15], 4
      %s132 = int_to_ptr.vmem [resolvable:$true] %s131
      %134 = dma.hbm_to_vmem [thread:$0]  %s130, 32, %s132, [#allocation16]
    $region37: #{decoder_forward.1} parent=1 // pred_fallthru
      _
    // Predicated region
    $region38: #{decoder_forward.1} parent=1 // pred_check
      _
    $region39: #{decoder_forward.1} parent=1 // pred_check_branch
      %136 = sbr.rel (0) target = $region41
    $region40: #{decoder_forward.1} parent=1 // pred_region
      %138 = vsyncadd [#allocation16], 0
      %s140 = sshll.u32 %s9, 4
      %s141 = int_to_ptr.hbm [resolvable:$true] %s140
      %s142 = sshll.u32 [#allocation17], 4
      %s143 = int_to_ptr.vmem [resolvable:$true] %s142
      %145 = dma.hbm_to_vmem [thread:$0]  %s141, 16, %s143, [#allocation16]
    $region41: #{decoder_forward.1} parent=1 // pred_fallthru
      _
    // Predicated region
    $region42: #{decoder_forward.1} parent=1 // pred_check
      _
    $region43: #{decoder_forward.1} parent=1 // pred_check_branch
      %147 = sbr.rel (0) target = $region45
    $region44: #{decoder_forward.1} parent=1 // pred_region
      %149 = vsyncadd [#allocation19], 0
      %s151 = sshll.u32 %s10, 4
      %s152 = int_to_ptr.hbm [resolvable:$true] %s151
      %s153 = sshll.u32 [#allocation18], 4
      %s154 = int_to_ptr.vmem [resolvable:$true] %s153
      %156 = dma.hbm_to_vmem [thread:$0]  %s152, 16, %s154, [#allocation19]
    $region45: #{decoder_forward.1} parent=1 // pred_fallthru
      _
    // Predicated region
    $region46: #{decoder_forward.1} parent=1 // pred_check
      _
    $region47: #{decoder_forward.1} parent=1 // pred_check_branch
      %158 = sbr.rel (0) target = $region49
    $region48: #{decoder_forward.1} parent=1 // pred_region
      _
    $region49: #{decoder_forward.1} parent=1 // pred_fallthru
      _
    // Predicated region
    $region50: #{decoder_forward.1} parent=1 // pred_check
      _
    $region51: #{decoder_forward.1} parent=1 // pred_check_branch
      %160 = sbr.rel (0) target = $region53
    $region52: #{decoder_forward.1} parent=1 // pred_region
      %162 = vsyncadd [#allocation19], 0
      %s163 = sshll.u32 %s12, 4
      %s164 = int_to_ptr.hbm [resolvable:$true] %s163
      %s165 = sshll.u32 [#allocation20], 4
      %s166 = int_to_ptr.vmem [resolvable:$true] %s165
      %171 = dma.hbm_to_vmem [thread:$0]  %s164, 512, %s166, [#allocation19], 256, 256, 16
    $region53: #{decoder_forward.1} parent=1 // pred_fallthru
      _
    // Predicated region
    $region54: #{decoder_forward.1} parent=1 // pred_check
      _
    $region55: #{decoder_forward.1} parent=1 // pred_check_branch
      %173 = sbr.rel (0) target = $region57
    $region56: #{decoder_forward.1} parent=1 // pred_region
      %175 = vsyncadd [#allocation22], 0
      %s176 = sshll.u32 %s13, 4
      %s177 = int_to_ptr.hbm [resolvable:$true] %s176
      %s178 = sshll.u32 [#allocation21], 4
      %s179 = int_to_ptr.vmem [resolvable:$true] %s178
      %184 = dma.hbm_to_vmem [thread:$0]  %s177, 21504, %s179, [#allocation22], 256, 256, 16
    $region57: #{decoder_forward.1} parent=1 // pred_fallthru
      _
    // Predicated region
    $region58: #{decoder_forward.1} parent=1 // pred_check
      _
    $region59: #{decoder_forward.1} parent=1 // pred_check_branch
      %186 = sbr.rel (0) target = $region61
    $region60: #{decoder_forward.1} parent=1 // pred_region
      %188 = vsyncadd [#allocation22], 0
      %s190 = sshll.u32 %s14, 4
      %s191 = int_to_ptr.hbm [resolvable:$true] %s190
      %s192 = sshll.u32 [#allocation23], 4
      %s193 = int_to_ptr.vmem [resolvable:$true] %s192
      %195 = dma.hbm_to_vmem [thread:$0]  %s191, 32, %s193, [#allocation22]
    $region61: #{decoder_forward.1} parent=1 // pred_fallthru
      _
    // Predicated region
    $region62: #{decoder_forward.1} parent=1 // pred_check
      _
    $region63: #{decoder_forward.1} parent=1 // pred_check_branch
      %197 = sbr.rel (0) target = $region65
    $region64: #{decoder_forward.1} parent=1 // pred_region
      %199 = vsyncadd [#allocation25], 0
      %s201 = sshll.u32 %s15, 4
      %s202 = int_to_ptr.hbm [resolvable:$true] %s201
      %s203 = sshll.u32 [#allocation24], 4
      %s204 = int_to_ptr.vmem [resolvable:$true] %s203
      %206 = dma.hbm_to_vmem [thread:$0]  %s202, 16, %s204, [#allocation25]
    $region65: #{decoder_forward.1} parent=1 // pred_fallthru
      _
    // Predicated region
    $region66: #{decoder_forward.1} parent=1 // pred_check
      _
    $region67: #{decoder_forward.1} parent=1 // pred_check_branch
      %208 = sbr.rel (0) target = $region69
    $region68: #{decoder_forward.1} parent=1 // pred_region
      %210 = vsyncadd [#allocation25], 0
      %s212 = sshll.u32 %s16, 4
      %s213 = int_to_ptr.hbm [resolvable:$true] %s212
      %s214 = sshll.u32 [#allocation26], 4
      %s215 = int_to_ptr.vmem [resolvable:$true] %s214
      %217 = dma.hbm_to_vmem [thread:$0]  %s213, 16, %s215, [#allocation25]
    $region69: #{decoder_forward.1} parent=1 // pred_fallthru
      _
    // Predicated region
    $region70: #{decoder_forward.1} parent=1 // pred_check
      _
    $region71: #{decoder_forward.1} parent=1 // pred_check_branch
      %219 = sbr.rel (0) target = $region73
    $region72: #{decoder_forward.1} parent=1 // pred_region
      _
    $region73: #{decoder_forward.1} parent=1 // pred_fallthru
      _
    // Predicated region
    $region74: #{decoder_forward.1} parent=1 // pred_check
      _
    $region75: #{decoder_forward.1} parent=1 // pred_check_branch
      %221 = sbr.rel (0) target = $region77
    $region76: #{decoder_forward.1} parent=1 // pred_region
      %223 = vsyncadd [#allocation28], 0
      %s225 = sshll.u32 %s18, 4
      %s226 = int_to_ptr.hbm [resolvable:$true] %s225
      %s227 = sshll.u32 [#allocation27], 4
      %s228 = int_to_ptr.vmem [resolvable:$true] %s227
      %230 = dma.hbm_to_vmem [thread:$0]  %s226, 256, %s228, [#allocation28]
    $region77: #{decoder_forward.1} parent=1 // pred_fallthru
      _
    // Predicated region
    $region78: #{decoder_forward.1} parent=1 // pred_check
      _
    $region79: #{decoder_forward.1} parent=1 // pred_check_branch
      %232 = sbr.rel (0) target = $region81
    $region80: #{decoder_forward.1} parent=1 // pred_region
      _
    $region81: #{decoder_forward.1} parent=1 // pred_fallthru
      _
    // Predicated region
    $region82: #{decoder_forward.1} parent=1 // pred_check
      _
    $region83: #{decoder_forward.1} parent=1 // pred_check_branch
      %234 = sbr.rel (0) target = $region85
    $region84: #{decoder_forward.1} parent=1 // pred_region
      %236 = vsyncadd [#allocation28], 0
      %s238 = sshll.u32 %s20, 4
      %s239 = int_to_ptr.hbm [resolvable:$true] %s238
      %s240 = sshll.u32 [#allocation29], 4
      %s241 = int_to_ptr.vmem [resolvable:$true] %s240
      %243 = dma.hbm_to_vmem [thread:$0]  %s239, 16, %s241, [#allocation28]
    $region85: #{decoder_forward.1} parent=1 // pred_fallthru
      _
    // Predicated region
    $region86: #{decoder_forward.1} parent=1 // pred_check
      _
    $region87: #{decoder_forward.1} parent=1 // pred_check_branch
      %245 = sbr.rel (0) target = $region89
    $region88: #{decoder_forward.1} parent=1 // pred_region
      _
    $region89: #{decoder_forward.1} parent=1 // pred_fallthru
      _
    // Predicated region
    $region90: #{decoder_forward.1} parent=1 // pred_check
      _
    $region91: #{decoder_forward.1} parent=1 // pred_check_branch
      %247 = sbr.rel (0) target = $region93
    $region92: #{decoder_forward.1} parent=1 // pred_region
      _
    $region93: #{decoder_forward.1} parent=1 // pred_fallthru
      _
    // Predicated region
    $region94: #{decoder_forward.1} parent=1 // pred_check
      _
    $region95: #{decoder_forward.1} parent=1 // pred_check_branch
      %249 = sbr.rel (0) target = $region97
    $region96: #{decoder_forward.1} parent=1 // pred_region
      %251 = dma.done [#allocation5], 224
    $region97: #{decoder_forward.1} parent=1 // pred_fallthru
      _
    // Predicated region
    $region98: #{decoder_forward.1} parent=1 // pred_check
      _
    $region99: #{decoder_forward.1} parent=1 // pred_check_branch
      %253 = sbr.rel (0) target = $region101
    $region100: #{decoder_forward.1} parent=1 // pred_region
      %255 = dma.done [#allocation7], 112
    $region101: #{decoder_forward.1} parent=1 // pred_fallthru
      _
    // Predicated region
    $region102: #{decoder_forward.1} parent=1 // pred_check
      _
    $region103: #{decoder_forward.1} parent=1 // pred_check_branch
      %257 = sbr.rel (0) target = $region105
    $region104: #{decoder_forward.1} parent=1 // pred_region
      %259 = dma.done [#allocation7], 112
    $region105: #{decoder_forward.1} parent=1 // pred_fallthru
      _
    // Predicated region
    $region106: #{decoder_forward.1} parent=1 // pred_check
      _
    $region107: #{decoder_forward.1} parent=1 // pred_check_branch
      %261 = sbr.rel (0) target = $region109
    $region108: #{decoder_forward.1} parent=1 // pred_region
      %263 = dma.done [#allocation10], 112
    $region109: #{decoder_forward.1} parent=1 // pred_fallthru
      _
    // Predicated region
    $region110: #{decoder_forward.1} parent=1 // pred_check
      _
    $region111: #{decoder_forward.1} parent=1 // pred_check_branch
      %265 = sbr.rel (0) target = $region113
    $region112: #{decoder_forward.1} parent=1 // pred_region
      %267 = dma.done [#allocation10], 166400
    $region113: #{decoder_forward.1} parent=1 // pred_fallthru
      _
    // Predicated region
    $region114: #{decoder_forward.1} parent=1 // pred_check
      _
    $region115: #{decoder_forward.1} parent=1 // pred_check_branch
      %269 = sbr.rel (0) target = $region117
    $region116: #{decoder_forward.1} parent=1 // pred_region
      %271 = dma.done [#allocation13], 208
    $region117: #{decoder_forward.1} parent=1 // pred_fallthru
      _
    // Predicated region
    $region118: #{decoder_forward.1} parent=1 // pred_check
      _
    $region119: #{decoder_forward.1} parent=1 // pred_check_branch
      %273 = sbr.rel (0) target = $region121
    $region120: #{decoder_forward.1} parent=1 // pred_region
      %275 = dma.done [#allocation13], 21504
    $region121: #{decoder_forward.1} parent=1 // pred_fallthru
      _
    // Predicated region
    $region122: #{decoder_forward.1} parent=1 // pred_check
      _
    $region123: #{decoder_forward.1} parent=1 // pred_check_branch
      %277 = sbr.rel (0) target = $region125
    $region124: #{decoder_forward.1} parent=1 // pred_region
      %279 = dma.done [#allocation16], 32
    $region125: #{decoder_forward.1} parent=1 // pred_fallthru
      _
    // Predicated region
    $region126: #{decoder_forward.1} parent=1 // pred_check
      _
    $region127: #{decoder_forward.1} parent=1 // pred_check_branch
      %281 = sbr.rel (0) target = $region129
    $region128: #{decoder_forward.1} parent=1 // pred_region
      %283 = dma.done [#allocation16], 16
    $region129: #{decoder_forward.1} parent=1 // pred_fallthru
      _
    // Predicated region
    $region130: #{decoder_forward.1} parent=1 // pred_check
      _
    $region131: #{decoder_forward.1} parent=1 // pred_check_branch
      %285 = sbr.rel (0) target = $region133
    $region132: #{decoder_forward.1} parent=1 // pred_region
      %287 = dma.done [#allocation19], 16
    $region133: #{decoder_forward.1} parent=1 // pred_fallthru
      _
    // Predicated region
    $region134: #{decoder_forward.1} parent=1 // pred_check
      _
    $region135: #{decoder_forward.1} parent=1 // pred_check_branch
      %289 = sbr.rel (0) target = $region137
    $region136: #{decoder_forward.1} parent=1 // pred_region
      %291 = dma.done [#allocation19], 512
    $region137: #{decoder_forward.1} parent=1 // pred_fallthru
      _
    // Predicated region
    $region138: #{decoder_forward.1} parent=1 // pred_check
      _
    $region139: #{decoder_forward.1} parent=1 // pred_check_branch
      %293 = sbr.rel (0) target = $region141
    $region140: #{decoder_forward.1} parent=1 // pred_region
      %295 = dma.done [#allocation22], 21504
    $region141: #{decoder_forward.1} parent=1 // pred_fallthru
      _
    // Predicated region
    $region142: #{decoder_forward.1} parent=1 // pred_check
      _
    $region143: #{decoder_forward.1} parent=1 // pred_check_branch
      %297 = sbr.rel (0) target = $region145
    $region144: #{decoder_forward.1} parent=1 // pred_region
      %299 = dma.done [#allocation22], 32
    $region145: #{decoder_forward.1} parent=1 // pred_fallthru
      _
    // Predicated region
    $region146: #{decoder_forward.1} parent=1 // pred_check
      _
    $region147: #{decoder_forward.1} parent=1 // pred_check_branch
      %301 = sbr.rel (0) target = $region149
    $region148: #{decoder_forward.1} parent=1 // pred_region
      %303 = dma.done [#allocation25], 16
    $region149: #{decoder_forward.1} parent=1 // pred_fallthru
      _
    // Predicated region
    $region150: #{decoder_forward.1} parent=1 // pred_check
      _
    $region151: #{decoder_forward.1} parent=1 // pred_check_branch
      %305 = sbr.rel (0) target = $region153
    $region152: #{decoder_forward.1} parent=1 // pred_region
      %307 = dma.done [#allocation25], 16
    $region153: #{decoder_forward.1} parent=1 // pred_fallthru
      _
    // Predicated region
    $region154: #{decoder_forward.1} parent=1 // pred_check
      _
    $region155: #{decoder_forward.1} parent=1 // pred_check_branch
      %309 = sbr.rel (0) target = $region157
    $region156: #{decoder_forward.1} parent=1 // pred_region
      %311 = dma.done [#allocation28], 256
    $region157: #{decoder_forward.1} parent=1 // pred_fallthru
      _
    // Predicated region
    $region158: #{decoder_forward.1} parent=1 // pred_check
      _
    $region159: #{decoder_forward.1} parent=1 // pred_check_branch
      %313 = sbr.rel (0) target = $region161
    $region160: #{decoder_forward.1} parent=1 // pred_region
      %315 = dma.done [#allocation28], 16
    $region161: #{decoder_forward.1} parent=1 // pred_fallthru
      _
    %v316 = vld [vmem:[%s0] sm:$0xff]
    %v317 = vld [vmem:[#allocation4] sm:$0xff]
    %v318 = vld [vmem:[#allocation4 + $0x8] sm:$0x3f]
    %v319 = vld [vmem:[#allocation6] sm:$0x7f]
    %v321 = vperm.slane %v319, 0
    %v322 = vperm.slane %v319, 1
    %v323 = vperm.slane %v319, 2
    %v324 = vperm.slane %v319, 3
    %v325 = vperm.slane %v319, 4
    %v326 = vperm.slane %v319, 5
    %v327 = vperm.slane %v319, 6
    %337 = vst [vmem:[#allocation1] ss:$4 sm:$0xff] %v317
    %s338 = scalar_lea.vmem [#allocation1], 32
    %339 = vst [vmem:[%s338] ss:$4 sm:$0xff] %v318
    %v340 = vld.sshfl [vmem:[#allocation1] sm:$0xff pattern:$0x73625140]
    %v341 = vld.sshfl [vmem:[#allocation1 + $0x8] sm:$0xff pattern:$0x73625140]
    %v342 = vld.sshfl [vmem:[#allocation1 + $0x10] sm:$0xff pattern:$0x73625140]
    %v343 = vld.sshfl [vmem:[#allocation1 + $0x18] sm:$0xff pattern:$0x73625140]
    %v344 = vld.sshfl [vmem:[#allocation1 + $0x20] sm:$0xff pattern:$0x73625140]
    %v345 = vld.sshfl [vmem:[#allocation1 + $0x28] sm:$0xff pattern:$0x73625140]
    %v346 = vld.sshfl [vmem:[#allocation1 + $0x30] sm:$0xff pattern:$0x73625140]
    %vm347 = vcmask 15360
    %v349 = vsel %vm347, %v316, 0
    %vm351 = vcmask 1041408
    %v352 = vsel %vm351, %v340, 0
    %v354 = vsel %vm351, %v341, 0
    %v356 = vsel %vm351, %v342, 0
    %v358 = vsel %vm351, %v343, 0
    %v360 = vsel %vm351, %v344, 0
    %v362 = vsel %vm351, %v345, 0
    %v364 = vsel %vm351, %v346, 0
    %366 = vmatpush.msra.mxu0 0.0
    %367 = vmatpush.msra.mxu0 0.0
    %368 = vmatpush.msra.mxu0 0.0
    %369 = vmatpush.msra.mxu0 0.0
    %370 = vmatpush.msra.mxu0 0.0
    %371 = vmatpush.msra.mxu0 0.0
    %372 = vmatpush.msra.mxu0 0.0
    %373 = vmatpush.msra.mxu0 0.0
    %374 = vmatpush.msra.mxu0 0.0
    %375 = vmatpush.msra.mxu0 0.0
    %376 = vmatpush.msra.mxu0 0.0
    %377 = vmatpush.msra.mxu0 0.0
    %378 = vmatpush.msra.mxu0 0.0
    %379 = vmatpush.msra.mxu0 0.0
    %380 = vmatpush.msra.mxu0 0.0
    %381 = vmatpush.msra.mxu0 %v352
    %382 = vmatmul.f32.gmra.mxu0 %v349
    %v383 = vpop.f32.mrf.mxu0
    %v384 = vadd.f32 %v321, %v383
    %385 = vdwg.mxu0
    %386 = vmatpush.msra.mxu0 0.0
    %387 = vmatpush.msra.mxu0 0.0
    %388 = vmatpush.msra.mxu0 0.0
    %389 = vmatpush.msra.mxu0 0.0
    %390 = vmatpush.msra.mxu0 0.0
    %391 = vmatpush.msra.mxu0 0.0
    %392 = vmatpush.msra.mxu0 0.0
    %393 = vmatpush.msra.mxu0 0.0
    %394 = vmatpush.msra.mxu0 0.0
    %395 = vmatpush.msra.mxu0 0.0
    %396 = vmatpush.msra.mxu0 0.0
    %397 = vmatpush.msra.mxu0 0.0
    %398 = vmatpush.msra.mxu0 0.0
    %399 = vmatpush.msra.mxu0 0.0
    %400 = vmatpush.msra.mxu0 0.0
    %401 = vmatpush.msra.mxu0 %v354
    %402 = vmatmul.f32.gmra.mxu0 %v349
    %v403 = vpop.f32.mrf.mxu0
    %v404 = vadd.f32 %v322, %v403
    %405 = vdwg.mxu0
    %406 = vmatpush.msra.mxu0 0.0
    %407 = vmatpush.msra.mxu0 0.0
    %408 = vmatpush.msra.mxu0 0.0
    %409 = vmatpush.msra.mxu0 0.0
    %410 = vmatpush.msra.mxu0 0.0
    %411 = vmatpush.msra.mxu0 0.0
    %412 = vmatpush.msra.mxu0 0.0
    %413 = vmatpush.msra.mxu0 0.0
    %414 = vmatpush.msra.mxu0 0.0
    %415 = vmatpush.msra.mxu0 0.0
    %416 = vmatpush.msra.mxu0 0.0
    %417 = vmatpush.msra.mxu0 0.0
    %418 = vmatpush.msra.mxu0 0.0
    %419 = vmatpush.msra.mxu0 0.0
    %420 = vmatpush.msra.mxu0 0.0
    %421 = vmatpush.msra.mxu0 %v356
    %422 = vmatmul.f32.gmra.mxu0 %v349
    %v423 = vpop.f32.mrf.mxu0
    %v424 = vadd.f32 %v323, %v423
    %425 = vdwg.mxu0
    %426 = vmatpush.msra.mxu0 0.0
    %427 = vmatpush.msra.mxu0 0.0
    %428 = vmatpush.msra.mxu0 0.0
    %429 = vmatpush.msra.mxu0 0.0
    %430 = vmatpush.msra.mxu0 0.0
    %431 = vmatpush.msra.mxu0 0.0
    %432 = vmatpush.msra.mxu0 0.0
    %433 = vmatpush.msra.mxu0 0.0
    %434 = vmatpush.msra.mxu0 0.0
    %435 = vmatpush.msra.mxu0 0.0
    %436 = vmatpush.msra.mxu0 0.0
    %437 = vmatpush.msra.mxu0 0.0
    %438 = vmatpush.msra.mxu0 0.0
    %439 = vmatpush.msra.mxu0 0.0
    %440 = vmatpush.msra.mxu0 0.0
    %441 = vmatpush.msra.mxu0 %v358
    %442 = vmatmul.f32.gmra.mxu0 %v349
    %v443 = vpop.f32.mrf.mxu0
    %v444 = vadd.f32 %v324, %v443
    %445 = vdwg.mxu0
    %446 = vmatpush.msra.mxu0 0.0
    %447 = vmatpush.msra.mxu0 0.0
    %448 = vmatpush.msra.mxu0 0.0
    %449 = vmatpush.msra.mxu0 0.0
    %450 = vmatpush.msra.mxu0 0.0
    %451 = vmatpush.msra.mxu0 0.0
    %452 = vmatpush.msra.mxu0 0.0
    %453 = vmatpush.msra.mxu0 0.0
    %454 = vmatpush.msra.mxu0 0.0
    %455 = vmatpush.msra.mxu0 0.0
    %456 = vmatpush.msra.mxu0 0.0
    %457 = vmatpush.msra.mxu0 0.0
    %458 = vmatpush.msra.mxu0 0.0
    %459 = vmatpush.msra.mxu0 0.0
    %460 = vmatpush.msra.mxu0 0.0
    %461 = vmatpush.msra.mxu0 %v360
    %462 = vmatmul.f32.gmra.mxu0 %v349
    %v463 = vpop.f32.mrf.mxu0
    %v464 = vadd.f32 %v325, %v463
    %465 = vdwg.mxu0
    %466 = vmatpush.msra.mxu0 0.0
    %467 = vmatpush.msra.mxu0 0.0
    %468 = vmatpush.msra.mxu0 0.0
    %469 = vmatpush.msra.mxu0 0.0
    %470 = vmatpush.msra.mxu0 0.0
    %471 = vmatpush.msra.mxu0 0.0
    %472 = vmatpush.msra.mxu0 0.0
    %473 = vmatpush.msra.mxu0 0.0
    %474 = vmatpush.msra.mxu0 0.0
    %475 = vmatpush.msra.mxu0 0.0
    %476 = vmatpush.msra.mxu0 0.0
    %477 = vmatpush.msra.mxu0 0.0
    %478 = vmatpush.msra.mxu0 0.0
    %479 = vmatpush.msra.mxu0 0.0
    %480 = vmatpush.msra.mxu0 0.0
    %481 = vmatpush.msra.mxu0 %v362
    %482 = vmatmul.f32.gmra.mxu0 %v349
    %v483 = vpop.f32.mrf.mxu0
    %v484 = vadd.f32 %v326, %v483
    %485 = vdwg.mxu0
    %486 = vmatpush.msra.mxu0 0.0
    %487 = vmatpush.msra.mxu0 0.0
    %488 = vmatpush.msra.mxu0 0.0
    %489 = vmatpush.msra.mxu0 0.0
    %490 = vmatpush.msra.mxu0 0.0
    %491 = vmatpush.msra.mxu0 0.0
    %492 = vmatpush.msra.mxu0 0.0
    %493 = vmatpush.msra.mxu0 0.0
    %494 = vmatpush.msra.mxu0 0.0
    %495 = vmatpush.msra.mxu0 0.0
    %496 = vmatpush.msra.mxu0 0.0
    %497 = vmatpush.msra.mxu0 0.0
    %498 = vmatpush.msra.mxu0 0.0
    %499 = vmatpush.msra.mxu0 0.0
    %500 = vmatpush.msra.mxu0 0.0
    %501 = vmatpush.msra.mxu0 %v364
    %502 = vmatmul.f32.gmra.mxu0 %v349
    %v503 = vpop.f32.mrf.mxu0
    %v504 = vadd.f32 %v327, %v503
    %505 = vdwg.mxu0
    %v506 = vrot.slane %v384, 4
    %v507 = vadd.f32 %v384, %v506
    %v508 = vrot.slane %v507, 2
    %v509 = vadd.f32 %v507, %v508
    %v510 = vrot.slane %v509, 1
    %v511 = vadd.f32 %v509, %v510
    %v512 = vrot.slane %v404, 4
    %v513 = vadd.f32 %v404, %v512
    %v514 = vrot.slane %v513, 2
    %v515 = vadd.f32 %v513, %v514
    %v516 = vrot.slane %v515, 1
    %v517 = vadd.f32 %v515, %v516
    %v518 = vrot.slane %v424, 4
    %v519 = vadd.f32 %v424, %v518
    %v520 = vrot.slane %v519, 2
    %v521 = vadd.f32 %v519, %v520
    %v522 = vrot.slane %v521, 1
    %v523 = vadd.f32 %v521, %v522
    %v524 = vrot.slane %v444, 4
    %v525 = vadd.f32 %v444, %v524
    %v526 = vrot.slane %v525, 2
    %v527 = vadd.f32 %v525, %v526
    %v528 = vrot.slane %v527, 1
    %v529 = vadd.f32 %v527, %v528
    %v530 = vrot.slane %v464, 4
    %v531 = vadd.f32 %v464, %v530
    %v532 = vrot.slane %v531, 2
    %v533 = vadd.f32 %v531, %v532
    %v534 = vrot.slane %v533, 1
    %v535 = vadd.f32 %v533, %v534
    %v536 = vrot.slane %v484, 4
    %v537 = vadd.f32 %v484, %v536
    %v538 = vrot.slane %v537, 2
    %v539 = vadd.f32 %v537, %v538
    %v540 = vrot.slane %v539, 1
    %v541 = vadd.f32 %v539, %v540
    %vm542 = vcmask 261120
    %v543 = vsel %vm542, %v504, 0.0
    %v544 = vrot.slane %v543, 4
    %v545 = vadd.f32 %v543, %v544
    %v546 = vrot.slane %v545, 2
    %v547 = vadd.f32 %v545, %v546
    %v548 = vrot.slane %v547, 1
    %v549 = vadd.f32 %v547, %v548
    %v550 = vrcp.pop 8.0
    %v551 = vmul.f32 8.0, %v550
    %v552 = vsub.f32 1.0, %v551
    %v553 = vmul.f32 %v550, %v552
    %v554 = vadd.f32 %v550, %v553
    %vm555 = vweird.f32 %v550
    %v556 = vsel %vm555, %v550, %v554
    %v557 = vmul.f32 %v511, %v556
    %v558 = vmul.f32 %v517, %v556
    %v559 = vmul.f32 %v523, %v556
    %v560 = vmul.f32 %v529, %v556
    %v561 = vmul.f32 %v535, %v556
    %v562 = vmul.f32 %v541, %v556
    %v563 = vmul.f32 %v549, %v556
    %v564 = vsub.f32 %v384, %v557
    %v565 = vsub.f32 %v404, %v558
    %v566 = vsub.f32 %v424, %v559
    %v567 = vsub.f32 %v444, %v560
    %v568 = vsub.f32 %v464, %v561
    %v569 = vsub.f32 %v484, %v562
    %v570 = vsub.f32 %v504, %v563
    %v571 = vmul.f32 %v564, %v564
    %v572 = vmul.f32 %v565, %v565
    %v573 = vmul.f32 %v566, %v566
    %v574 = vmul.f32 %v567, %v567
    %v575 = vmul.f32 %v568, %v568
    %v576 = vmul.f32 %v569, %v569
    %v577 = vmul.f32 %v570, %v570
    %v578 = vrot.slane %v571, 4
    %v579 = vadd.f32 %v571, %v578
    %v580 = vrot.slane %v579, 2
    %v581 = vadd.f32 %v579, %v580
    %v582 = vrot.slane %v581, 1
    %v583 = vadd.f32 %v581, %v582
    %v584 = vrot.slane %v572, 4
    %v585 = vadd.f32 %v572, %v584
    %v586 = vrot.slane %v585, 2
    %v587 = vadd.f32 %v585, %v586
    %v588 = vrot.slane %v587, 1
    %v589 = vadd.f32 %v587, %v588
    %v590 = vrot.slane %v573, 4
    %v591 = vadd.f32 %v573, %v590
    %v592 = vrot.slane %v591, 2
    %v593 = vadd.f32 %v591, %v592
    %v594 = vrot.slane %v593, 1
    %v595 = vadd.f32 %v593, %v594
    %v596 = vrot.slane %v574, 4
    %v597 = vadd.f32 %v574, %v596
    %v598 = vrot.slane %v597, 2
    %v599 = vadd.f32 %v597, %v598
    %v600 = vrot.slane %v599, 1
    %v601 = vadd.f32 %v599, %v600
    %v602 = vrot.slane %v575, 4
    %v603 = vadd.f32 %v575, %v602
    %v604 = vrot.slane %v603, 2
    %v605 = vadd.f32 %v603, %v604
    %v606 = vrot.slane %v605, 1
    %v607 = vadd.f32 %v605, %v606
    %v608 = vrot.slane %v576, 4
    %v609 = vadd.f32 %v576, %v608
    %v610 = vrot.slane %v609, 2
    %v611 = vadd.f32 %v609, %v610
    %v612 = vrot.slane %v611, 1
    %v613 = vadd.f32 %v611, %v612
    %v614 = vsel %vm542, %v577, 0.0
    %v615 = vrot.slane %v614, 4
    %v616 = vadd.f32 %v614, %v615
    %v617 = vrot.slane %v616, 2
    %v618 = vadd.f32 %v616, %v617
    %v619 = vrot.slane %v618, 1
    %v620 = vadd.f32 %v618, %v619
    %v621 = vmul.f32 %v583, %v556
    %v622 = vmul.f32 %v589, %v556
    %v623 = vmul.f32 %v595, %v556
    %v624 = vmul.f32 %v601, %v556
    %v625 = vmul.f32 %v607, %v556
    %v626 = vmul.f32 %v613, %v556
    %v627 = vmul.f32 %v620, %v556
    %v628 = vadd.f32 %v621, 1e-05
    %v629 = vadd.f32 %v622, 1e-05
    %v630 = vadd.f32 %v623, 1e-05
    %v631 = vadd.f32 %v624, 1e-05
    %v632 = vadd.f32 %v625, 1e-05
    %v633 = vadd.f32 %v626, 1e-05
    %v634 = vadd.f32 %v627, 1e-05
    %v635 = vrsqrt.pop %v628
    %v636 = vmul.f32 %v635, %v628
    %v637 = vmul.f32 %v636, %v635
    %v638 = vmul.f32 0.5, %v637
    %v639 = vsub.f32 1.5, %v638
    %v640 = vmul.f32 %v635, %v639
    %vm641 = vweird.f32 %v628
    %vm642 = vweird.f32 %v635
    %vm643 = vmor %vm641, %vm642
    %v644 = vsel %vm643, %v635, %v640
    %v645 = vrsqrt.pop %v629
    %v646 = vmul.f32 %v645, %v629
    %v647 = vmul.f32 %v646, %v645
    %v648 = vmul.f32 0.5, %v647
    %v649 = vsub.f32 1.5, %v648
    %v650 = vmul.f32 %v645, %v649
    %vm651 = vweird.f32 %v629
    %vm652 = vweird.f32 %v645
    %vm653 = vmor %vm651, %vm652
    %v654 = vsel %vm653, %v645, %v650
    %v655 = vrsqrt.pop %v630
    %v656 = vmul.f32 %v655, %v630
    %v657 = vmul.f32 %v656, %v655
    %v658 = vmul.f32 0.5, %v657
    %v659 = vsub.f32 1.5, %v658
    %v660 = vmul.f32 %v655, %v659
    %vm661 = vweird.f32 %v630
    %vm662 = vweird.f32 %v655
    %vm663 = vmor %vm661, %vm662
    %v664 = vsel %vm663, %v655, %v660
    %v665 = vrsqrt.pop %v631
    %v666 = vmul.f32 %v665, %v631
    %v667 = vmul.f32 %v666, %v665
    %v668 = vmul.f32 0.5, %v667
    %v669 = vsub.f32 1.5, %v668
    %v670 = vmul.f32 %v665, %v669
    %vm671 = vweird.f32 %v631
    %vm672 = vweird.f32 %v665
    %vm673 = vmor %vm671, %vm672
    %v674 = vsel %vm673, %v665, %v670
    %v675 = vrsqrt.pop %v632
    %v676 = vmul.f32 %v675, %v632
    %v677 = vmul.f32 %v676, %v675
    %v678 = vmul.f32 0.5, %v677
    %v679 = vsub.f32 1.5, %v678
    %v680 = vmul.f32 %v675, %v679
    %vm681 = vweird.f32 %v632
    %vm682 = vweird.f32 %v675
    %vm683 = vmor %vm681, %vm682
    %v684 = vsel %vm683, %v675, %v680
    %v685 = vrsqrt.pop %v633
    %v686 = vmul.f32 %v685, %v633
    %v687 = vmul.f32 %v686, %v685
    %v688 = vmul.f32 0.5, %v687
    %v689 = vsub.f32 1.5, %v688
    %v690 = vmul.f32 %v685, %v689
    %vm691 = vweird.f32 %v633
    %vm692 = vweird.f32 %v685
    %vm693 = vmor %vm691, %vm692
    %v694 = vsel %vm693, %v685, %v690
    %v695 = vrsqrt.pop %v634
    %v696 = vmul.f32 %v695, %v634
    %v697 = vmul.f32 %v696, %v695
    %v698 = vmul.f32 0.5, %v697
    %v699 = vsub.f32 1.5, %v698
    %v700 = vmul.f32 %v695, %v699
    %vm701 = vweird.f32 %v634
    %vm702 = vweird.f32 %v695
    %vm703 = vmor %vm701, %vm702
    %v704 = vsel %vm703, %v695, %v700
    %v705 = vmul.f32 %v564, %v644
    %v706 = vmul.f32 %v565, %v654
    %v707 = vmul.f32 %v566, %v664
    %v708 = vmul.f32 %v567, %v674
    %v709 = vmul.f32 %v568, %v684
    %v710 = vmul.f32 %v569, %v694
    %v711 = vmul.f32 %v570, %v704
    %v712 = vld [vmem:[#allocation8] sm:$0x7f]
    %v714 = vperm.slane %v712, 0
    %v715 = vperm.slane %v712, 1
    %v716 = vperm.slane %v712, 2
    %v717 = vperm.slane %v712, 3
    %v718 = vperm.slane %v712, 4
    %v719 = vperm.slane %v712, 5
    %v720 = vperm.slane %v712, 6
    %v728 = vmul.f32 %v705, %v714
    %v729 = vmul.f32 %v706, %v715
    %v730 = vmul.f32 %v707, %v716
    %v731 = vmul.f32 %v708, %v717
    %v732 = vmul.f32 %v709, %v718
    %v733 = vmul.f32 %v710, %v719
    %v734 = vmul.f32 %v711, %v720
    %v735 = vld [vmem:[#allocation9] sm:$0x7f]
    %v737 = vperm.slane %v735, 0
    %v738 = vperm.slane %v735, 1
    %v739 = vperm.slane %v735, 2
    %v740 = vperm.slane %v735, 3
    %v741 = vperm.slane %v735, 4
    %v742 = vperm.slane %v735, 5
    %v743 = vperm.slane %v735, 6
    %v751 = vadd.f32 %v728, %v737
    %v752 = vadd.f32 %v729, %v738
    %v753 = vadd.f32 %v730, %v739
    %v754 = vadd.f32 %v731, %v740
    %v755 = vadd.f32 %v732, %v741
    %v756 = vadd.f32 %v733, %v742
    %v757 = vadd.f32 %v734, %v743
    %v758 = vmax.f32 %v751, 0.0
    %v759 = vmax.f32 %v752, 0.0
    %v760 = vmax.f32 %v753, 0.0
    %v761 = vmax.f32 %v754, 0.0
    %v762 = vmax.f32 %v755, 0.0
    %v763 = vmax.f32 %v756, 0.0
    %v764 = vmax.f32 %v757, 0.0
    %v765 = vld [vmem:[#allocation11] sm:$0xff]
    %v766 = vld [vmem:[#allocation11 + $0x8] sm:$0xff]
    %v767 = vld [vmem:[#allocation11 + $0x10] sm:$0xff]
    %v768 = vld [vmem:[#allocation11 + $0x18] sm:$0xff]
    %v769 = vld [vmem:[#allocation11 + $0x20] sm:$0xff]
    %v770 = vld [vmem:[#allocation11 + $0x28] sm:$0xff]
    %v771 = vld [vmem:[#allocation11 + $0x30] sm:$0xff]
    %v772 = vld [vmem:[#allocation11 + $0x38] sm:$0xff]
    %v773 = vld [vmem:[#allocation11 + $0x40] sm:$0xff]
    %v774 = vld [vmem:[#allocation11 + $0x48] sm:$0xff]
    %v775 = vld [vmem:[#allocation11 + $0x50] sm:$0xff]
    %v776 = vld [vmem:[#allocation11 + $0x58] sm:$0xff]
    %v777 = vld [vmem:[#allocation11 + $0x60] sm:$0xff]
    %v778 = vld [vmem:[#allocation11 + $0x68] sm:$0xff]
    %v779 = vld [vmem:[#allocation11 + $0x70] sm:$0xff]
    %v780 = vld [vmem:[#allocation11 + $0x78] sm:$0xff]
    %v781 = vld [vmem:[#allocation11 + $0x80] sm:$0xff]
    %v782 = vld [vmem:[#allocation11 + $0x88] sm:$0xff]
    %v783 = vld [vmem:[#allocation11 + $0x90] sm:$0xff]
    %v784 = vld [vmem:[#allocation11 + $0x98] sm:$0xff]
    %v785 = vld [vmem:[#allocation11 + $0xa0] sm:$0xff]
    %v786 = vld [vmem:[#allocation11 + $0xa8] sm:$0xff]
    %v787 = vld [vmem:[#allocation11 + $0xb0] sm:$0xff]
    %v788 = vld [vmem:[#allocation11 + $0xb8] sm:$0xff]
    %v789 = vld [vmem:[#allocation11 + $0xc0] sm:$0xff]
    %v790 = vld [vmem:[#allocation11 + $0xc8] sm:$0xff]
    %v791 = vld [vmem:[#allocation11 + $0xd0] sm:$0xff]
    %v792 = vld [vmem:[#allocation11 + $0xd8] sm:$0xff]
    %v793 = vld [vmem:[#allocation11 + $0xe0] sm:$0xff]
    %v794 = vld [vmem:[#allocation11 + $0xe8] sm:$0xff]
    %v795 = vld [vmem:[#allocation11 + $0xf0] sm:$0xff]
    %v796 = vld [vmem:[#allocation11 + $0xf8] sm:$0xff]
    %v797 = vld [vmem:[#allocation11 + $0x100] sm:$0xff]
    %v798 = vld [vmem:[#allocation11 + $0x108] sm:$0xff]
    %v799 = vld [vmem:[#allocation11 + $0x110] sm:$0xff]
    %v800 = vld [vmem:[#allocation11 + $0x118] sm:$0xff]
    %v801 = vld [vmem:[#allocation11 + $0x120] sm:$0xff]
    %v802 = vld [vmem:[#allocation11 + $0x128] sm:$0xff]
    %v803 = vld [vmem:[#allocation11 + $0x130] sm:$0xff]
    %v804 = vld [vmem:[#allocation11 + $0x138] sm:$0xff]
    %v805 = vld [vmem:[#allocation11 + $0x140] sm:$0xff]
    %v806 = vld [vmem:[#allocation11 + $0x148] sm:$0xff]
    %v807 = vld [vmem:[#allocation11 + $0x150] sm:$0xff]
    %v808 = vld [vmem:[#allocation11 + $0x158] sm:$0xff]
    %v809 = vld [vmem:[#allocation11 + $0x160] sm:$0xff]
    %v810 = vld [vmem:[#allocation11 + $0x168] sm:$0xff]
    %v811 = vld [vmem:[#allocation11 + $0x170] sm:$0xff]
    %v812 = vld [vmem:[#allocation11 + $0x178] sm:$0xff]
    %v813 = vld [vmem:[#allocation11 + $0x180] sm:$0xff]
    %v814 = vld [vmem:[#allocation11 + $0x188] sm:$0xff]
    %v815 = vld [vmem:[#allocation11 + $0x190] sm:$0xff]
    %v816 = vld [vmem:[#allocation11 + $0x198] sm:$0xff]
    %v817 = vld [vmem:[#allocation11 + $0x1a0] sm:$0xff]
    %v818 = vld [vmem:[#allocation11 + $0x1a8] sm:$0xff]
    %v819 = vld [vmem:[#allocation11 + $0x1b0] sm:$0xff]
    %v820 = vld [vmem:[#allocation11 + $0x1b8] sm:$0xff]
    %v821 = vld [vmem:[#allocation11 + $0x1c0] sm:$0xff]
    %v822 = vld [vmem:[#allocation11 + $0x1c8] sm:$0xff]
    %v823 = vld [vmem:[#allocation11 + $0x1d0] sm:$0xff]
    %v824 = vld [vmem:[#allocation11 + $0x1d8] sm:$0xff]
    %v825 = vld [vmem:[#allocation11 + $0x1e0] sm:$0xff]
    %v826 = vld [vmem:[#allocation11 + $0x1e8] sm:$0xff]
    %v827 = vld [vmem:[#allocation11 + $0x1f0] sm:$0xff]
    %v828 = vld [vmem:[#allocation11 + $0x1f8] sm:$0xff]
    %v829 = vld [vmem:[#allocation11 + $0x200] sm:$0xff]
    %v830 = vld [vmem:[#allocation11 + $0x208] sm:$0xff]
    %v831 = vld [vmem:[#allocation11 + $0x210] sm:$0xff]
    %v832 = vld [vmem:[#allocation11 + $0x218] sm:$0xff]
    %v833 = vld [vmem:[#allocation11 + $0x220] sm:$0xff]
    %v834 = vld [vmem:[#allocation11 + $0x228] sm:$0xff]
    %v835 = vld [vmem:[#allocation11 + $0x230] sm:$0xff]
    %v836 = vld [vmem:[#allocation11 + $0x238] sm:$0xff]
    %v837 = vld [vmem:[#allocation11 + $0x240] sm:$0xff]
    %v838 = vld [vmem:[#allocation11 + $0x248] sm:$0xff]
    %v839 = vld [vmem:[#allocation11 + $0x250] sm:$0xff]
    %v840 = vld [vmem:[#allocation11 + $0x258] sm:$0xff]
    %v841 = vld [vmem:[#allocation11 + $0x260] sm:$0xff]
    %v842 = vld [vmem:[#allocation11 + $0x268] sm:$0xff]
    %v843 = vld [vmem:[#allocation11 + $0x270] sm:$0xff]
    %v844 = vld [vmem:[#allocation11 + $0x278] sm:$0xff]
    %v845 = vld [vmem:[#allocation11 + $0x280] sm:$0xff]
    %v846 = vld [vmem:[#allocation11 + $0x288] sm:$0xff]
    %v847 = vld [vmem:[#allocation11 + $0x290] sm:$0xff]
    %v848 = vld [vmem:[#allocation11 + $0x298] sm:$0xff]
    %v849 = vld [vmem:[#allocation11 + $0x2a0] sm:$0xff]
    %v850 = vld [vmem:[#allocation11 + $0x2a8] sm:$0xff]
    %v851 = vld [vmem:[#allocation11 + $0x2b0] sm:$0xff]
    %v852 = vld [vmem:[#allocation11 + $0x2b8] sm:$0xff]
    %v853 = vld [vmem:[#allocation11 + $0x2c0] sm:$0xff]
    %v854 = vld [vmem:[#allocation11 + $0x2c8] sm:$0xff]
    %v855 = vld [vmem:[#allocation11 + $0x2d0] sm:$0xff]
    %v856 = vld [vmem:[#allocation11 + $0x2d8] sm:$0xff]
    %v857 = vld [vmem:[#allocation11 + $0x2e0] sm:$0xff]
    %v858 = vld [vmem:[#allocation11 + $0x2e8] sm:$0xff]
    %v859 = vld [vmem:[#allocation11 + $0x2f0] sm:$0xff]
    %v860 = vld [vmem:[#allocation11 + $0x2f8] sm:$0xff]
    %v861 = vld [vmem:[#allocation11 + $0x300] sm:$0xff]
    %v862 = vld [vmem:[#allocation11 + $0x308] sm:$0xff]
    %v863 = vld [vmem:[#allocation11 + $0x310] sm:$0xff]
    %v864 = vld [vmem:[#allocation11 + $0x318] sm:$0xff]
    %v865 = vld [vmem:[#allocation11 + $0x320] sm:$0xff]
    %v866 = vld [vmem:[#allocation11 + $0x328] sm:$0xff]
    %v867 = vld [vmem:[#allocation11 + $0x330] sm:$0xff]
    %v868 = vld [vmem:[#allocation11 + $0x338] sm:$0xff]
    %v869 = vld [vmem:[#allocation11 + $0x340] sm:$0xff]
    %v870 = vld [vmem:[#allocation11 + $0x348] sm:$0xff]
    %v871 = vld [vmem:[#allocation11 + $0x350] sm:$0xff]
    %v872 = vld [vmem:[#allocation11 + $0x358] sm:$0xff]
    %v873 = vld [vmem:[#allocation11 + $0x360] sm:$0xff]
    %v874 = vld [vmem:[#allocation11 + $0x368] sm:$0xff]
    %v875 = vld [vmem:[#allocation11 + $0x370] sm:$0xff]
    %v876 = vld [vmem:[#allocation11 + $0x378] sm:$0xff]
    %v877 = vld [vmem:[#allocation11 + $0x380] sm:$0xff]
    %v878 = vld [vmem:[#allocation11 + $0x388] sm:$0xff]
    %v879 = vld [vmem:[#allocation11 + $0x390] sm:$0xff]
    %v880 = vld [vmem:[#allocation11 + $0x398] sm:$0xff]
    %v881 = vld [vmem:[#allocation11 + $0x3a0] sm:$0xff]
    %v882 = vld [vmem:[#allocation11 + $0x3a8] sm:$0xff]
    %v883 = vld [vmem:[#allocation11 + $0x3b0] sm:$0xff]
    %v884 = vld [vmem:[#allocation11 + $0x3b8] sm:$0xff]
    %v885 = vld [vmem:[#allocation11 + $0x3c0] sm:$0xff]
    %v886 = vld [vmem:[#allocation11 + $0x3c8] sm:$0xff]
    %v887 = vld [vmem:[#allocation11 + $0x3d0] sm:$0xff]
    %v888 = vld [vmem:[#allocation11 + $0x3d8] sm:$0xff]
    %v889 = vld [vmem:[#allocation11 + $0x3e0] sm:$0xff]
    %v890 = vld [vmem:[#allocation11 + $0x3e8] sm:$0xff]
    %v891 = vld [vmem:[#allocation11 + $0x3f0] sm:$0xff]
    %v892 = vld [vmem:[#allocation11 + $0x3f8] sm:$0xff]
    %v893 = vld [vmem:[#allocation11 + $0x400] sm:$0xff]
    %v894 = vld [vmem:[#allocation11 + $0x408] sm:$0xff]
    %v895 = vld [vmem:[#allocation11 + $0x410] sm:$0xff]
    %v896 = vld [vmem:[#allocation11 + $0x418] sm:$0xff]
    %v897 = vld [vmem:[#allocation11 + $0x420] sm:$0xff]
    %v898 = vld [vmem:[#allocation11 + $0x428] sm:$0xff]
    %v899 = vld [vmem:[#allocation11 + $0x430] sm:$0xff]
    %v900 = vld [vmem:[#allocation11 + $0x438] sm:$0xff]
    %v901 = vld [vmem:[#allocation11 + $0x440] sm:$0xff]
    %v902 = vld [vmem:[#allocation11 + $0x448] sm:$0xff]
    %v903 = vld [vmem:[#allocation11 + $0x450] sm:$0xff]
    %v904 = vld [vmem:[#allocation11 + $0x458] sm:$0xff]
    %v905 = vld [vmem:[#allocation11 + $0x460] sm:$0xff]
    %v906 = vld [vmem:[#allocation11 + $0x468] sm:$0xff]
    %v907 = vld [vmem:[#allocation11 + $0x470] sm:$0xff]
    %v908 = vld [vmem:[#allocation11 + $0x478] sm:$0xff]
    %v909 = vld [vmem:[#allocation11 + $0x480] sm:$0xff]
    %v910 = vld [vmem:[#allocation11 + $0x488] sm:$0xff]
    %v911 = vld [vmem:[#allocation11 + $0x490] sm:$0xff]
    %v912 = vld [vmem:[#allocation11 + $0x498] sm:$0xff]
    %v913 = vld [vmem:[#allocation11 + $0x4a0] sm:$0xff]
    %v914 = vld [vmem:[#allocation11 + $0x4a8] sm:$0xff]
    %v915 = vld [vmem:[#allocation11 + $0x4b0] sm:$0xff]
    %v916 = vld [vmem:[#allocation11 + $0x4b8] sm:$0xff]
    %v917 = vld [vmem:[#allocation11 + $0x4c0] sm:$0xff]
    %v918 = vld [vmem:[#allocation11 + $0x4c8] sm:$0xff]
    %v919 = vld [vmem:[#allocation11 + $0x4d0] sm:$0xff]
    %v920 = vld [vmem:[#allocation11 + $0x4d8] sm:$0xff]
    %v921 = vld [vmem:[#allocation11 + $0x4e0] sm:$0xff]
    %v922 = vld [vmem:[#allocation11 + $0x4e8] sm:$0xff]
    %v923 = vld [vmem:[#allocation11 + $0x4f0] sm:$0xff]
    %v924 = vld [vmem:[#allocation11 + $0x4f8] sm:$0xff]
    %v925 = vld [vmem:[#allocation11 + $0x500] sm:$0xff]
    %v926 = vld [vmem:[#allocation11 + $0x508] sm:$0xff]
    %v927 = vld [vmem:[#allocation11 + $0x510] sm:$0xff]
    %v928 = vld [vmem:[#allocation11 + $0x518] sm:$0xff]
    %v929 = vld [vmem:[#allocation11 + $0x520] sm:$0xff]
    %v930 = vld [vmem:[#allocation11 + $0x528] sm:$0xff]
    %v931 = vld [vmem:[#allocation11 + $0x530] sm:$0xff]
    %v932 = vld [vmem:[#allocation11 + $0x538] sm:$0xff]
    %v933 = vld [vmem:[#allocation11 + $0x540] sm:$0xff]
    %v934 = vld [vmem:[#allocation11 + $0x548] sm:$0xff]
    %v935 = vld [vmem:[#allocation11 + $0x550] sm:$0xff]
    %v936 = vld [vmem:[#allocation11 + $0x558] sm:$0xff]
    %v937 = vld [vmem:[#allocation11 + $0x560] sm:$0xff]
    %v938 = vld [vmem:[#allocation11 + $0x568] sm:$0xff]
    %v939 = vld [vmem:[#allocation11 + $0x570] sm:$0xff]
    %v940 = vld [vmem:[#allocation11 + $0x578] sm:$0xff]
    %v941 = vld [vmem:[#allocation11 + $0x580] sm:$0xff]
    %v942 = vld [vmem:[#allocation11 + $0x588] sm:$0xff]
    %v943 = vld [vmem:[#allocation11 + $0x590] sm:$0xff]
    %v944 = vld [vmem:[#allocation11 + $0x598] sm:$0xff]
    %v945 = vld [vmem:[#allocation11 + $0x5a0] sm:$0xff]
    %v946 = vld [vmem:[#allocation11 + $0x5a8] sm:$0xff]
    %v947 = vld [vmem:[#allocation11 + $0x5b0] sm:$0xff]
    %v948 = vld [vmem:[#allocation11 + $0x5b8] sm:$0xff]
    %v949 = vld [vmem:[#allocation11 + $0x5c0] sm:$0xff]
    %v950 = vld [vmem:[#allocation11 + $0x5c8] sm:$0xff]
    %v951 = vld [vmem:[#allocation11 + $0x5d0] sm:$0xff]
    %v952 = vld [vmem:[#allocation11 + $0x5d8] sm:$0xff]
    %v953 = vld [vmem:[#allocation11 + $0x5e0] sm:$0xff]
    %v954 = vld [vmem:[#allocation11 + $0x5e8] sm:$0xff]
    %v955 = vld [vmem:[#allocation11 + $0x5f0] sm:$0xff]
    %v956 = vld [vmem:[#allocation11 + $0x5f8] sm:$0xff]
    %v957 = vld [vmem:[#allocation11 + $0x600] sm:$0xff]
    %v958 = vld [vmem:[#allocation11 + $0x608] sm:$0xff]
    %v959 = vld [vmem:[#allocation11 + $0x610] sm:$0xff]
    %v960 = vld [vmem:[#allocation11 + $0x618] sm:$0xff]
    %v961 = vld [vmem:[#allocation11 + $0x620] sm:$0xff]
    %v962 = vld [vmem:[#allocation11 + $0x628] sm:$0xff]
    %v963 = vld [vmem:[#allocation11 + $0x630] sm:$0xff]
    %v964 = vld [vmem:[#allocation11 + $0x638] sm:$0xff]
    %v965 = vld [vmem:[#allocation11 + $0x640] sm:$0xff]
    %v966 = vld [vmem:[#allocation11 + $0x648] sm:$0xff]
    %v967 = vld [vmem:[#allocation11 + $0x650] sm:$0xff]
    %v968 = vld [vmem:[#allocation11 + $0x658] sm:$0xff]
    %v969 = vld [vmem:[#allocation11 + $0x660] sm:$0xff]
    %v970 = vld [vmem:[#allocation11 + $0x668] sm:$0xff]
    %v971 = vld [vmem:[#allocation11 + $0x670] sm:$0xff]
    %v972 = vld [vmem:[#allocation11 + $0x678] sm:$0xff]
    %v973 = vld [vmem:[#allocation11 + $0x680] sm:$0xff]
    %v974 = vld [vmem:[#allocation11 + $0x688] sm:$0xff]
    %v975 = vld [vmem:[#allocation11 + $0x690] sm:$0xff]
    %v976 = vld [vmem:[#allocation11 + $0x698] sm:$0xff]
    %v977 = vld [vmem:[#allocation11 + $0x6a0] sm:$0xff]
    %v978 = vld [vmem:[#allocation11 + $0x6a8] sm:$0xff]
    %v979 = vld [vmem:[#allocation11 + $0x6b0] sm:$0xff]
    %v980 = vld [vmem:[#allocation11 + $0x6b8] sm:$0xff]
    %v981 = vld [vmem:[#allocation11 + $0x6c0] sm:$0xff]
    %v982 = vld [vmem:[#allocation11 + $0x6c8] sm:$0xff]
    %v983 = vld [vmem:[#allocation11 + $0x6d0] sm:$0xff]
    %v984 = vld [vmem:[#allocation11 + $0x6d8] sm:$0xff]
    %v985 = vld [vmem:[#allocation11 + $0x6e0] sm:$0xff]
    %v986 = vld [vmem:[#allocation11 + $0x6e8] sm:$0xff]
    %v987 = vld [vmem:[#allocation11 + $0x6f0] sm:$0xff]
    %v988 = vld [vmem:[#allocation11 + $0x6f8] sm:$0xff]
    %v989 = vld [vmem:[#allocation11 + $0x700] sm:$0xff]
    %v990 = vld [vmem:[#allocation11 + $0x708] sm:$0xff]
    %v991 = vld [vmem:[#allocation11 + $0x710] sm:$0xff]
    %v992 = vld [vmem:[#allocation11 + $0x718] sm:$0xff]
    %v993 = vld [vmem:[#allocation11 + $0x720] sm:$0xff]
    %v994 = vld [vmem:[#allocation11 + $0x728] sm:$0xff]
    %v995 = vld [vmem:[#allocation11 + $0x730] sm:$0xff]
    %v996 = vld [vmem:[#allocation11 + $0x738] sm:$0xff]
    %v997 = vld [vmem:[#allocation11 + $0x740] sm:$0xff]
    %v998 = vld [vmem:[#allocation11 + $0x748] sm:$0xff]
    %v999 = vld [vmem:[#allocation11 + $0x750] sm:$0xff]
    %v1000 = vld [vmem:[#allocation11 + $0x758] sm:$0xff]
    %v1001 = vld [vmem:[#allocation11 + $0x760] sm:$0xff]
    %v1002 = vld [vmem:[#allocation11 + $0x768] sm:$0xff]
    %v1003 = vld [vmem:[#allocation11 + $0x770] sm:$0xff]
    %v1004 = vld [vmem:[#allocation11 + $0x778] sm:$0xff]
    %v1005 = vld [vmem:[#allocation11 + $0x780] sm:$0xff]
    %v1006 = vld [vmem:[#allocation11 + $0x788] sm:$0xff]
    %v1007 = vld [vmem:[#allocation11 + $0x790] sm:$0xff]
    %v1008 = vld [vmem:[#allocation11 + $0x798] sm:$0xff]
    %v1009 = vld [vmem:[#allocation11 + $0x7a0] sm:$0xff]
    %v1010 = vld [vmem:[#allocation11 + $0x7a8] sm:$0xff]
    %v1011 = vld [vmem:[#allocation11 + $0x7b0] sm:$0xff]
    %v1012 = vld [vmem:[#allocation11 + $0x7b8] sm:$0xff]
    %v1013 = vld [vmem:[#allocation11 + $0x7c0] sm:$0xff]
    %v1014 = vld [vmem:[#allocation11 + $0x7c8] sm:$0xff]
    %v1015 = vld [vmem:[#allocation11 + $0x7d0] sm:$0xff]
    %v1016 = vld [vmem:[#allocation11 + $0x7d8] sm:$0xff]
    %v1017 = vld [vmem:[#allocation11 + $0x7e0] sm:$0xff]
    %v1018 = vld [vmem:[#allocation11 + $0x7e8] sm:$0xff]
    %v1019 = vld [vmem:[#allocation11 + $0x7f0] sm:$0xff]
    %v1020 = vld [vmem:[#allocation11 + $0x7f8] sm:$0xff]
    %v1021 = vld [vmem:[#allocation11 + $0x800] sm:$0xff]
    %v1022 = vld [vmem:[#allocation11 + $0x808] sm:$0xff]
    %v1023 = vld [vmem:[#allocation11 + $0x810] sm:$0xff]
    %v1024 = vld [vmem:[#allocation11 + $0x818] sm:$0xff]
    %v1025 = vld [vmem:[#allocation11 + $0x820] sm:$0xff]
    %v1026 = vld [vmem:[#allocation11 + $0x828] sm:$0xff]
    %v1027 = vld [vmem:[#allocation11 + $0x830] sm:$0xff]
    %v1028 = vld [vmem:[#allocation11 + $0x838] sm:$0xff]
    %v1029 = vld [vmem:[#allocation11 + $0x840] sm:$0xff]
    %v1030 = vld [vmem:[#allocation11 + $0x848] sm:$0xff]
    %v1031 = vld [vmem:[#allocation11 + $0x850] sm:$0xff]
    %v1032 = vld [vmem:[#allocation11 + $0x858] sm:$0xff]
    %v1033 = vld [vmem:[#allocation11 + $0x860] sm:$0xff]
    %v1034 = vld [vmem:[#allocation11 + $0x868] sm:$0xff]
    %v1035 = vld [vmem:[#allocation11 + $0x870] sm:$0xff]
    %v1036 = vld [vmem:[#allocation11 + $0x878] sm:$0xff]
    %v1037 = vld [vmem:[#allocation11 + $0x880] sm:$0xff]
    %v1038 = vld [vmem:[#allocation11 + $0x888] sm:$0xff]
    %v1039 = vld [vmem:[#allocation11 + $0x890] sm:$0xff]
    %v1040 = vld [vmem:[#allocation11 + $0x898] sm:$0xff]
    %v1041 = vld [vmem:[#allocation11 + $0x8a0] sm:$0xff]
    %v1042 = vld [vmem:[#allocation11 + $0x8a8] sm:$0xff]
    %v1043 = vld [vmem:[#allocation11 + $0x8b0] sm:$0xff]
    %v1044 = vld [vmem:[#allocation11 + $0x8b8] sm:$0xff]
    %v1045 = vld [vmem:[#allocation11 + $0x8c0] sm:$0xff]
    %v1046 = vld [vmem:[#allocation11 + $0x8c8] sm:$0xff]
    %v1047 = vld [vmem:[#allocation11 + $0x8d0] sm:$0xff]
    %v1048 = vld [vmem:[#allocation11 + $0x8d8] sm:$0xff]
    %v1049 = vld [vmem:[#allocation11 + $0x8e0] sm:$0xff]
    %v1050 = vld [vmem:[#allocation11 + $0x8e8] sm:$0xff]
    %v1051 = vld [vmem:[#allocation11 + $0x8f0] sm:$0xff]
    %v1052 = vld [vmem:[#allocation11 + $0x8f8] sm:$0xff]
    %v1053 = vld [vmem:[#allocation11 + $0x900] sm:$0xff]
    %v1054 = vld [vmem:[#allocation11 + $0x908] sm:$0xff]
    %v1055 = vld [vmem:[#allocation11 + $0x910] sm:$0xff]
    %v1056 = vld [vmem:[#allocation11 + $0x918] sm:$0xff]
    %v1057 = vld [vmem:[#allocation11 + $0x920] sm:$0xff]
    %v1058 = vld [vmem:[#allocation11 + $0x928] sm:$0xff]
    %v1059 = vld [vmem:[#allocation11 + $0x930] sm:$0xff]
    %v1060 = vld [vmem:[#allocation11 + $0x938] sm:$0xff]
    %v1061 = vld [vmem:[#allocation11 + $0x940] sm:$0xff]
    %v1062 = vld [vmem:[#allocation11 + $0x948] sm:$0xff]
    %v1063 = vld [vmem:[#allocation11 + $0x950] sm:$0xff]
    %v1064 = vld [vmem:[#allocation11 + $0x958] sm:$0xff]
    %v1065 = vld [vmem:[#allocation11 + $0x960] sm:$0xff]
    %v1066 = vld [vmem:[#allocation11 + $0x968] sm:$0xff]
    %v1067 = vld [vmem:[#allocation11 + $0x970] sm:$0xff]
    %v1068 = vld [vmem:[#allocation11 + $0x978] sm:$0xff]
    %v1069 = vld [vmem:[#allocation11 + $0x980] sm:$0xff]
    %v1070 = vld [vmem:[#allocation11 + $0x988] sm:$0xff]
    %v1071 = vld [vmem:[#allocation11 + $0x990] sm:$0xff]
    %v1072 = vld [vmem:[#allocation11 + $0x998] sm:$0xff]
    %v1073 = vld [vmem:[#allocation11 + $0x9a0] sm:$0xff]
    %v1074 = vld [vmem:[#allocation11 + $0x9a8] sm:$0xff]
    %v1075 = vld [vmem:[#allocation11 + $0x9b0] sm:$0xff]
    %v1076 = vld [vmem:[#allocation11 + $0x9b8] sm:$0xff]
    %v1077 = vld [vmem:[#allocation11 + $0x9c0] sm:$0xff]
    %v1078 = vld [vmem:[#allocation11 + $0x9c8] sm:$0xff]
    %v1079 = vld [vmem:[#allocation11 + $0x9d0] sm:$0xff]
    %v1080 = vld [vmem:[#allocation11 + $0x9d8] sm:$0xff]
    %v1081 = vld [vmem:[#allocation11 + $0x9e0] sm:$0xff]
    %v1082 = vld [vmem:[#allocation11 + $0x9e8] sm:$0xff]
    %v1083 = vld [vmem:[#allocation11 + $0x9f0] sm:$0xff]
    %v1084 = vld [vmem:[#allocation11 + $0x9f8] sm:$0xff]
    %v1085 = vld [vmem:[#allocation11 + $0xa00] sm:$0xff]
    %v1086 = vld [vmem:[#allocation11 + $0xa08] sm:$0xff]
    %v1087 = vld [vmem:[#allocation11 + $0xa10] sm:$0xff]
    %v1088 = vld [vmem:[#allocation11 + $0xa18] sm:$0xff]
    %v1089 = vld [vmem:[#allocation11 + $0xa20] sm:$0xff]
    %v1090 = vld [vmem:[#allocation11 + $0xa28] sm:$0xff]
    %v1091 = vld [vmem:[#allocation11 + $0xa30] sm:$0xff]
    %v1092 = vld [vmem:[#allocation11 + $0xa38] sm:$0xff]
    %v1093 = vld [vmem:[#allocation11 + $0xa40] sm:$0xff]
    %v1094 = vld [vmem:[#allocation11 + $0xa48] sm:$0xff]
    %v1095 = vld [vmem:[#allocation11 + $0xa50] sm:$0xff]
    %v1096 = vld [vmem:[#allocation11 + $0xa58] sm:$0xff]
    %v1097 = vld [vmem:[#allocation11 + $0xa60] sm:$0xff]
    %v1098 = vld [vmem:[#allocation11 + $0xa68] sm:$0xff]
    %v1099 = vld [vmem:[#allocation11 + $0xa70] sm:$0xff]
    %v1100 = vld [vmem:[#allocation11 + $0xa78] sm:$0xff]
    %v1101 = vld [vmem:[#allocation11 + $0xa80] sm:$0xff]
    %v1102 = vld [vmem:[#allocation11 + $0xa88] sm:$0xff]
    %v1103 = vld [vmem:[#allocation11 + $0xa90] sm:$0xff]
    %v1104 = vld [vmem:[#allocation11 + $0xa98] sm:$0xff]
    %v1105 = vld [vmem:[#allocation11 + $0xaa0] sm:$0xff]
    %v1106 = vld [vmem:[#allocation11 + $0xaa8] sm:$0xff]
    %v1107 = vld [vmem:[#allocation11 + $0xab0] sm:$0xff]
    %v1108 = vld [vmem:[#allocation11 + $0xab8] sm:$0xff]
    %v1109 = vld [vmem:[#allocation11 + $0xac0] sm:$0xff]
    %v1110 = vld [vmem:[#allocation11 + $0xac8] sm:$0xff]
    %v1111 = vld [vmem:[#allocation11 + $0xad0] sm:$0xff]
    %v1112 = vld [vmem:[#allocation11 + $0xad8] sm:$0xff]
    %v1113 = vld [vmem:[#allocation11 + $0xae0] sm:$0xff]
    %v1114 = vld [vmem:[#allocation11 + $0xae8] sm:$0xff]
    %v1115 = vld [vmem:[#allocation11 + $0xaf0] sm:$0xff]
    %v1116 = vld [vmem:[#allocation11 + $0xaf8] sm:$0xff]
    %v1117 = vld [vmem:[#allocation11 + $0xb00] sm:$0xff]
    %v1118 = vld [vmem:[#allocation11 + $0xb08] sm:$0xff]
    %v1119 = vld [vmem:[#allocation11 + $0xb10] sm:$0xff]
    %v1120 = vld [vmem:[#allocation11 + $0xb18] sm:$0xff]
    %v1121 = vld [vmem:[#allocation11 + $0xb20] sm:$0xff]
    %v1122 = vld [vmem:[#allocation11 + $0xb28] sm:$0xff]
    %v1123 = vld [vmem:[#allocation11 + $0xb30] sm:$0xff]
    %v1124 = vld [vmem:[#allocation11 + $0xb38] sm:$0xff]
    %v1125 = vld [vmem:[#allocation11 + $0xb40] sm:$0xff]
    %v1126 = vld [vmem:[#allocation11 + $0xb48] sm:$0xff]
    %v1127 = vld [vmem:[#allocation11 + $0xb50] sm:$0xff]
    %v1128 = vld [vmem:[#allocation11 + $0xb58] sm:$0xff]
    %v1129 = vld [vmem:[#allocation11 + $0xb60] sm:$0xff]
    %v1130 = vld [vmem:[#allocation11 + $0xb68] sm:$0xff]
    %v1131 = vld [vmem:[#allocation11 + $0xb70] sm:$0xff]
    %v1132 = vld [vmem:[#allocation11 + $0xb78] sm:$0xff]
    %v1133 = vld [vmem:[#allocation11 + $0xb80] sm:$0xff]
    %v1134 = vld [vmem:[#allocation11 + $0xb88] sm:$0xff]
    %v1135 = vld [vmem:[#allocation11 + $0xb90] sm:$0xff]
    %v1136 = vld [vmem:[#allocation11 + $0xb98] sm:$0xff]
    %v1137 = vld [vmem:[#allocation11 + $0xba0] sm:$0xff]
    %v1138 = vld [vmem:[#allocation11 + $0xba8] sm:$0xff]
    %v1139 = vld [vmem:[#allocation11 + $0xbb0] sm:$0xff]
    %v1140 = vld [vmem:[#allocation11 + $0xbb8] sm:$0xff]
    %v1141 = vld [vmem:[#allocation11 + $0xbc0] sm:$0xff]
    %v1142 = vld [vmem:[#allocation11 + $0xbc8] sm:$0xff]
    %v1143 = vld [vmem:[#allocation11 + $0xbd0] sm:$0xff]
    %v1144 = vld [vmem:[#allocation11 + $0xbd8] sm:$0xff]
    %v1145 = vld [vmem:[#allocation11 + $0xbe0] sm:$0xff]
    %v1146 = vld [vmem:[#allocation11 + $0xbe8] sm:$0xff]
    %v1147 = vld [vmem:[#allocation11 + $0xbf0] sm:$0xff]
    %v1148 = vld [vmem:[#allocation11 + $0xbf8] sm:$0xff]
    %v1149 = vld [vmem:[#allocation11 + $0xc00] sm:$0xff]
    %v1150 = vld [vmem:[#allocation11 + $0xc08] sm:$0xff]
    %v1151 = vld [vmem:[#allocation11 + $0xc10] sm:$0xff]
    %v1152 = vld [vmem:[#allocation11 + $0xc18] sm:$0xff]
    %v1153 = vld [vmem:[#allocation11 + $0xc20] sm:$0xff]
    %v1154 = vld [vmem:[#allocation11 + $0xc28] sm:$0xff]
    %v1155 = vld [vmem:[#allocation11 + $0xc30] sm:$0xff]
    %v1156 = vld [vmem:[#allocation11 + $0xc38] sm:$0xff]
    %v1157 = vld [vmem:[#allocation11 + $0xc40] sm:$0xff]
    %v1158 = vld [vmem:[#allocation11 + $0xc48] sm:$0xff]
    %v1159 = vld [vmem:[#allocation11 + $0xc50] sm:$0xff]
    %v1160 = vld [vmem:[#allocation11 + $0xc58] sm:$0xff]
    %v1161 = vld [vmem:[#allocation11 + $0xc60] sm:$0xff]
    %v1162 = vld [vmem:[#allocation11 + $0xc68] sm:$0xff]
    %v1163 = vld [vmem:[#allocation11 + $0xc70] sm:$0xff]
    %v1164 = vld [vmem:[#allocation11 + $0xc78] sm:$0xff]
    %v1165 = vld [vmem:[#allocation11 + $0xc80] sm:$0xff]
    %v1166 = vld [vmem:[#allocation11 + $0xc88] sm:$0xff]
    %v1167 = vld [vmem:[#allocation11 + $0xc90] sm:$0xff]
    %v1168 = vld [vmem:[#allocation11 + $0xc98] sm:$0xff]
    %v1169 = vld [vmem:[#allocation11 + $0xca0] sm:$0xff]
    %v1170 = vld [vmem:[#allocation11 + $0xca8] sm:$0xff]
    %v1171 = vld [vmem:[#allocation11 + $0xcb0] sm:$0xff]
    %v1172 = vld [vmem:[#allocation11 + $0xcb8] sm:$0xff]
    %v1173 = vld [vmem:[#allocation11 + $0xcc0] sm:$0xff]
    %v1174 = vld [vmem:[#allocation11 + $0xcc8] sm:$0xff]
    %v1175 = vld [vmem:[#allocation11 + $0xcd0] sm:$0xff]
    %v1176 = vld [vmem:[#allocation11 + $0xcd8] sm:$0xff]
    %v1177 = vld [vmem:[#allocation11 + $0xce0] sm:$0xff]
    %v1178 = vld [vmem:[#allocation11 + $0xce8] sm:$0xff]
    %v1179 = vld [vmem:[#allocation11 + $0xcf0] sm:$0xff]
    %v1180 = vld [vmem:[#allocation11 + $0xcf8] sm:$0xff]
    %v1181 = vld [vmem:[#allocation11 + $0xd00] sm:$0xff]
    %v1182 = vld [vmem:[#allocation11 + $0xd08] sm:$0xff]
    %v1183 = vld [vmem:[#allocation11 + $0xd10] sm:$0xff]
    %v1184 = vld [vmem:[#allocation11 + $0xd18] sm:$0xff]
    %v1185 = vld [vmem:[#allocation11 + $0xd20] sm:$0xff]
    %v1186 = vld [vmem:[#allocation11 + $0xd28] sm:$0xff]
    %v1187 = vld [vmem:[#allocation11 + $0xd30] sm:$0xff]
    %v1188 = vld [vmem:[#allocation11 + $0xd38] sm:$0xff]
    %v1189 = vld [vmem:[#allocation11 + $0xd40] sm:$0xff]
    %v1190 = vld [vmem:[#allocation11 + $0xd48] sm:$0xff]
    %v1191 = vld [vmem:[#allocation11 + $0xd50] sm:$0xff]
    %v1192 = vld [vmem:[#allocation11 + $0xd58] sm:$0xff]
    %v1193 = vld [vmem:[#allocation11 + $0xd60] sm:$0xff]
    %v1194 = vld [vmem:[#allocation11 + $0xd68] sm:$0xff]
    %v1195 = vld [vmem:[#allocation11 + $0xd70] sm:$0xff]
    %v1196 = vld [vmem:[#allocation11 + $0xd78] sm:$0xff]
    %v1197 = vld [vmem:[#allocation11 + $0xd80] sm:$0xff]
    %v1198 = vld [vmem:[#allocation11 + $0xd88] sm:$0xff]
    %v1199 = vld [vmem:[#allocation11 + $0xd90] sm:$0xff]
    %v1200 = vld [vmem:[#allocation11 + $0xd98] sm:$0xff]
    %v1201 = vld [vmem:[#allocation11 + $0xda0] sm:$0xff]
    %v1202 = vld [vmem:[#allocation11 + $0xda8] sm:$0xff]
    %v1203 = vld [vmem:[#allocation11 + $0xdb0] sm:$0xff]
    %v1204 = vld [vmem:[#allocation11 + $0xdb8] sm:$0xff]
    %v1205 = vld [vmem:[#allocation11 + $0xdc0] sm:$0xff]
    %v1206 = vld [vmem:[#allocation11 + $0xdc8] sm:$0xff]
    %v1207 = vld [vmem:[#allocation11 + $0xdd0] sm:$0xff]
    %v1208 = vld [vmem:[#allocation11 + $0xdd8] sm:$0xff]
    %v1209 = vld [vmem:[#allocation11 + $0xde0] sm:$0xff]
    %v1210 = vld [vmem:[#allocation11 + $0xde8] sm:$0xff]
    %v1211 = vld [vmem:[#allocation11 + $0xdf0] sm:$0xff]
    %v1212 = vld [vmem:[#allocation11 + $0xdf8] sm:$0xff]
    %v1213 = vld [vmem:[#allocation11 + $0xe00] sm:$0xff]
    %v1214 = vld [vmem:[#allocation11 + $0xe08] sm:$0xff]
    %v1215 = vld [vmem:[#allocation11 + $0xe10] sm:$0xff]
    %v1216 = vld [vmem:[#allocation11 + $0xe18] sm:$0xff]
    %v1217 = vld [vmem:[#allocation11 + $0xe20] sm:$0xff]
    %v1218 = vld [vmem:[#allocation11 + $0xe28] sm:$0xff]
    %v1219 = vld [vmem:[#allocation11 + $0xe30] sm:$0xff]
    %v1220 = vld [vmem:[#allocation11 + $0xe38] sm:$0xff]
    %v1221 = vld [vmem:[#allocation11 + $0xe40] sm:$0xff]
    %v1222 = vld [vmem:[#allocation11 + $0xe48] sm:$0xff]
    %v1223 = vld [vmem:[#allocation11 + $0xe50] sm:$0xff]
    %v1224 = vld [vmem:[#allocation11 + $0xe58] sm:$0xff]
    %v1225 = vld [vmem:[#allocation11 + $0xe60] sm:$0xff]
    %v1226 = vld [vmem:[#allocation11 + $0xe68] sm:$0xff]
    %v1227 = vld [vmem:[#allocation11 + $0xe70] sm:$0xff]
    %v1228 = vld [vmem:[#allocation11 + $0xe78] sm:$0xff]
    %v1229 = vld [vmem:[#allocation11 + $0xe80] sm:$0xff]
    %v1230 = vld [vmem:[#allocation11 + $0xe88] sm:$0xff]
    %v1231 = vld [vmem:[#allocation11 + $0xe90] sm:$0xff]
    %v1232 = vld [vmem:[#allocation11 + $0xe98] sm:$0xff]
    %v1233 = vld [vmem:[#allocation11 + $0xea0] sm:$0xff]
    %v1234 = vld [vmem:[#allocation11 + $0xea8] sm:$0xff]
    %v1235 = vld [vmem:[#allocation11 + $0xeb0] sm:$0xff]
    %v1236 = vld [vmem:[#allocation11 + $0xeb8] sm:$0xff]
    %v1237 = vld [vmem:[#allocation11 + $0xec0] sm:$0xff]
    %v1238 = vld [vmem:[#allocation11 + $0xec8] sm:$0xff]
    %v1239 = vld [vmem:[#allocation11 + $0xed0] sm:$0xff]
    %v1240 = vld [vmem:[#allocation11 + $0xed8] sm:$0xff]
    %v1241 = vld [vmem:[#allocation11 + $0xee0] sm:$0xff]
    %v1242 = vld [vmem:[#allocation11 + $0xee8] sm:$0xff]
    %v1243 = vld [vmem:[#allocation11 + $0xef0] sm:$0xff]
    %v1244 = vld [vmem:[#allocation11 + $0xef8] sm:$0xff]
    %v1245 = vld [vmem:[#allocation11 + $0xf00] sm:$0xff]
    %v1246 = vld [vmem:[#allocation11 + $0xf08] sm:$0xff]
    %v1247 = vld [vmem:[#allocation11 + $0xf10] sm:$0xff]
    %v1248 = vld [vmem:[#allocation11 + $0xf18] sm:$0xff]
    %v1249 = vld [vmem:[#allocation11 + $0xf20] sm:$0xff]
    %v1250 = vld [vmem:[#allocation11 + $0xf28] sm:$0xff]
    %v1251 = vld [vmem:[#allocation11 + $0xf30] sm:$0xff]
    %v1252 = vld [vmem:[#allocation11 + $0xf38] sm:$0xff]
    %v1253 = vld [vmem:[#allocation11 + $0xf40] sm:$0xff]
    %v1254 = vld [vmem:[#allocation11 + $0xf48] sm:$0xff]
    %v1255 = vld [vmem:[#allocation11 + $0xf50] sm:$0xff]
    %v1256 = vld [vmem:[#allocation11 + $0xf58] sm:$0xff]
    %v1257 = vld [vmem:[#allocation11 + $0xf60] sm:$0xff]
    %v1258 = vld [vmem:[#allocation11 + $0xf68] sm:$0xff]
    %v1259 = vld [vmem:[#allocation11 + $0xf70] sm:$0xff]
    %v1260 = vld [vmem:[#allocation11 + $0xf78] sm:$0xff]
    %v1261 = vld [vmem:[#allocation11 + $0xf80] sm:$0xff]
    %v1262 = vld [vmem:[#allocation11 + $0xf88] sm:$0xff]
    %v1263 = vld [vmem:[#allocation11 + $0xf90] sm:$0xff]
    %v1264 = vld [vmem:[#allocation11 + $0xf98] sm:$0xff]
    %v1265 = vld [vmem:[#allocation11 + $0xfa0] sm:$0xff]
    %v1266 = vld [vmem:[#allocation11 + $0xfa8] sm:$0xff]
    %v1267 = vld [vmem:[#allocation11 + $0xfb0] sm:$0xff]
    %v1268 = vld [vmem:[#allocation11 + $0xfb8] sm:$0xff]
    %v1269 = vld [vmem:[#allocation11 + $0xfc0] sm:$0xff]
    %v1270 = vld [vmem:[#allocation11 + $0xfc8] sm:$0xff]
    %v1271 = vld [vmem:[#allocation11 + $0xfd0] sm:$0xff]
    %v1272 = vld [vmem:[#allocation11 + $0xfd8] sm:$0xff]
    %v1273 = vld [vmem:[#allocation11 + $0xfe0] sm:$0xff]
    %v1274 = vld [vmem:[#allocation11 + $0xfe8] sm:$0xff]
    %v1275 = vld [vmem:[#allocation11 + $0xff0] sm:$0xff]
    %v1276 = vld [vmem:[#allocation11 + $0xff8] sm:$0xff]
    %v1277 = vld [vmem:[#allocation11 + $0x1000] sm:$0xff]
    %v1278 = vld [vmem:[#allocation11 + $0x1008] sm:$0xff]
    %v1279 = vld [vmem:[#allocation11 + $0x1010] sm:$0xff]
    %v1280 = vld [vmem:[#allocation11 + $0x1018] sm:$0xff]
    %v1281 = vld [vmem:[#allocation11 + $0x1020] sm:$0xff]
    %v1282 = vld [vmem:[#allocation11 + $0x1028] sm:$0xff]
    %v1283 = vld [vmem:[#allocation11 + $0x1030] sm:$0xff]
    %v1284 = vld [vmem:[#allocation11 + $0x1038] sm:$0xff]
    %v1285 = vld [vmem:[#allocation11 + $0x1040] sm:$0xff]
    %v1286 = vld [vmem:[#allocation11 + $0x1048] sm:$0xff]
    %v1287 = vld [vmem:[#allocation11 + $0x1050] sm:$0xff]
    %v1288 = vld [vmem:[#allocation11 + $0x1058] sm:$0xff]
    %v1289 = vld [vmem:[#allocation11 + $0x1060] sm:$0xff]
    %v1290 = vld [vmem:[#allocation11 + $0x1068] sm:$0xff]
    %v1291 = vld [vmem:[#allocation11 + $0x1070] sm:$0xff]
    %v1292 = vld [vmem:[#allocation11 + $0x1078] sm:$0xff]
    %v1293 = vld [vmem:[#allocation11 + $0x1080] sm:$0xff]
    %v1294 = vld [vmem:[#allocation11 + $0x1088] sm:$0xff]
    %v1295 = vld [vmem:[#allocation11 + $0x1090] sm:$0xff]
    %v1296 = vld [vmem:[#allocation11 + $0x1098] sm:$0xff]
    %v1297 = vld [vmem:[#allocation11 + $0x10a0] sm:$0xff]
    %v1298 = vld [vmem:[#allocation11 + $0x10a8] sm:$0xff]
    %v1299 = vld [vmem:[#allocation11 + $0x10b0] sm:$0xff]
    %v1300 = vld [vmem:[#allocation11 + $0x10b8] sm:$0xff]
    %v1301 = vld [vmem:[#allocation11 + $0x10c0] sm:$0xff]
    %v1302 = vld [vmem:[#allocation11 + $0x10c8] sm:$0xff]
    %v1303 = vld [vmem:[#allocation11 + $0x10d0] sm:$0xff]
    %v1304 = vld [vmem:[#allocation11 + $0x10d8] sm:$0xff]
    %v1305 = vld [vmem:[#allocation11 + $0x10e0] sm:$0xff]
    %v1306 = vld [vmem:[#allocation11 + $0x10e8] sm:$0xff]
    %v1307 = vld [vmem:[#allocation11 + $0x10f0] sm:$0xff]
    %v1308 = vld [vmem:[#allocation11 + $0x10f8] sm:$0xff]
    %v1309 = vld [vmem:[#allocation11 + $0x1100] sm:$0xff]
    %v1310 = vld [vmem:[#allocation11 + $0x1108] sm:$0xff]
    %v1311 = vld [vmem:[#allocation11 + $0x1110] sm:$0xff]
    %v1312 = vld [vmem:[#allocation11 + $0x1118] sm:$0xff]
    %v1313 = vld [vmem:[#allocation11 + $0x1120] sm:$0xff]
    %v1314 = vld [vmem:[#allocation11 + $0x1128] sm:$0xff]
    %v1315 = vld [vmem:[#allocation11 + $0x1130] sm:$0xff]
    %v1316 = vld [vmem:[#allocation11 + $0x1138] sm:$0xff]
    %v1317 = vld [vmem:[#allocation11 + $0x1140] sm:$0xff]
    %v1318 = vld [vmem:[#allocation11 + $0x1148] sm:$0xff]
    %v1319 = vld [vmem:[#allocation11 + $0x1150] sm:$0xff]
    %v1320 = vld [vmem:[#allocation11 + $0x1158] sm:$0xff]
    %v1321 = vld [vmem:[#allocation11 + $0x1160] sm:$0xff]
    %v1322 = vld [vmem:[#allocation11 + $0x1168] sm:$0xff]
    %v1323 = vld [vmem:[#allocation11 + $0x1170] sm:$0xff]
    %v1324 = vld [vmem:[#allocation11 + $0x1178] sm:$0xff]
    %v1325 = vld [vmem:[#allocation11 + $0x1180] sm:$0xff]
    %v1326 = vld [vmem:[#allocation11 + $0x1188] sm:$0xff]
    %v1327 = vld [vmem:[#allocation11 + $0x1190] sm:$0xff]
    %v1328 = vld [vmem:[#allocation11 + $0x1198] sm:$0xff]
    %v1329 = vld [vmem:[#allocation11 + $0x11a0] sm:$0xff]
    %v1330 = vld [vmem:[#allocation11 + $0x11a8] sm:$0xff]
    %v1331 = vld [vmem:[#allocation11 + $0x11b0] sm:$0xff]
    %v1332 = vld [vmem:[#allocation11 + $0x11b8] sm:$0xff]
    %v1333 = vld [vmem:[#allocation11 + $0x11c0] sm:$0xff]
    %v1334 = vld [vmem:[#allocation11 + $0x11c8] sm:$0xff]
    %v1335 = vld [vmem:[#allocation11 + $0x11d0] sm:$0xff]
    %v1336 = vld [vmem:[#allocation11 + $0x11d8] sm:$0xff]
    %v1337 = vld [vmem:[#allocation11 + $0x11e0] sm:$0xff]
    %v1338 = vld [vmem:[#allocation11 + $0x11e8] sm:$0xff]
    %v1339 = vld [vmem:[#allocation11 + $0x11f0] sm:$0xff]
    %v1340 = vld [vmem:[#allocation11 + $0x11f8] sm:$0xff]
    %v1341 = vld [vmem:[#allocation11 + $0x1200] sm:$0xff]
    %v1342 = vld [vmem:[#allocation11 + $0x1208] sm:$0xff]
    %v1343 = vld [vmem:[#allocation11 + $0x1210] sm:$0xff]
    %v1344 = vld [vmem:[#allocation11 + $0x1218] sm:$0xff]
    %v1345 = vld [vmem:[#allocation11 + $0x1220] sm:$0xff]
    %v1346 = vld [vmem:[#allocation11 + $0x1228] sm:$0xff]
    %v1347 = vld [vmem:[#allocation11 + $0x1230] sm:$0xff]
    %v1348 = vld [vmem:[#allocation11 + $0x1238] sm:$0xff]
    %v1349 = vld [vmem:[#allocation11 + $0x1240] sm:$0xff]
    %v1350 = vld [vmem:[#allocation11 + $0x1248] sm:$0xff]
    %v1351 = vld [vmem:[#allocation11 + $0x1250] sm:$0xff]
    %v1352 = vld [vmem:[#allocation11 + $0x1258] sm:$0xff]
    %v1353 = vld [vmem:[#allocation11 + $0x1260] sm:$0xff]
    %v1354 = vld [vmem:[#allocation11 + $0x1268] sm:$0xff]
    %v1355 = vld [vmem:[#allocation11 + $0x1270] sm:$0xff]
    %v1356 = vld [vmem:[#allocation11 + $0x1278] sm:$0xff]
    %v1357 = vld [vmem:[#allocation11 + $0x1280] sm:$0xff]
    %v1358 = vld [vmem:[#allocation11 + $0x1288] sm:$0xff]
    %v1359 = vld [vmem:[#allocation11 + $0x1290] sm:$0xff]
    %v1360 = vld [vmem:[#allocation11 + $0x1298] sm:$0xff]
    %v1361 = vld [vmem:[#allocation11 + $0x12a0] sm:$0xff]
    %v1362 = vld [vmem:[#allocation11 + $0x12a8] sm:$0xff]
    %v1363 = vld [vmem:[#allocation11 + $0x12b0] sm:$0xff]
    %v1364 = vld [vmem:[#allocation11 + $0x12b8] sm:$0xff]
    %v1365 = vld [vmem:[#allocation11 + $0x12c0] sm:$0xff]
    %v1366 = vld [vmem:[#allocation11 + $0x12c8] sm:$0xff]
    %v1367 = vld [vmem:[#allocation11 + $0x12d0] sm:$0xff]
    %v1368 = vld [vmem:[#allocation11 + $0x12d8] sm:$0xff]
    %v1369 = vld [vmem:[#allocation11 + $0x12e0] sm:$0xff]
    %v1370 = vld [vmem:[#allocation11 + $0x12e8] sm:$0xff]
    %v1371 = vld [vmem:[#allocation11 + $0x12f0] sm:$0xff]
    %v1372 = vld [vmem:[#allocation11 + $0x12f8] sm:$0xff]
    %v1373 = vld [vmem:[#allocation11 + $0x1300] sm:$0xff]
    %v1374 = vld [vmem:[#allocation11 + $0x1308] sm:$0xff]
    %v1375 = vld [vmem:[#allocation11 + $0x1310] sm:$0xff]
    %v1376 = vld [vmem:[#allocation11 + $0x1318] sm:$0xff]
    %v1377 = vld [vmem:[#allocation11 + $0x1320] sm:$0xff]
    %v1378 = vld [vmem:[#allocation11 + $0x1328] sm:$0xff]
    %v1379 = vld [vmem:[#allocation11 + $0x1330] sm:$0xff]
    %v1380 = vld [vmem:[#allocation11 + $0x1338] sm:$0xff]
    %v1381 = vld [vmem:[#allocation11 + $0x1340] sm:$0xff]
    %v1382 = vld [vmem:[#allocation11 + $0x1348] sm:$0xff]
    %v1383 = vld [vmem:[#allocation11 + $0x1350] sm:$0xff]
    %v1384 = vld [vmem:[#allocation11 + $0x1358] sm:$0xff]
    %v1385 = vld [vmem:[#allocation11 + $0x1360] sm:$0xff]
    %v1386 = vld [vmem:[#allocation11 + $0x1368] sm:$0xff]
    %v1387 = vld [vmem:[#allocation11 + $0x1370] sm:$0xff]
    %v1388 = vld [vmem:[#allocation11 + $0x1378] sm:$0xff]
    %v1389 = vld [vmem:[#allocation11 + $0x1380] sm:$0xff]
    %v1390 = vld [vmem:[#allocation11 + $0x1388] sm:$0xff]
    %v1391 = vld [vmem:[#allocation11 + $0x1390] sm:$0xff]
    %v1392 = vld [vmem:[#allocation11 + $0x1398] sm:$0xff]
    %v1393 = vld [vmem:[#allocation11 + $0x13a0] sm:$0xff]
    %v1394 = vld [vmem:[#allocation11 + $0x13a8] sm:$0xff]
    %v1395 = vld [vmem:[#allocation11 + $0x13b0] sm:$0xff]
    %v1396 = vld [vmem:[#allocation11 + $0x13b8] sm:$0xff]
    %v1397 = vld [vmem:[#allocation11 + $0x13c0] sm:$0xff]
    %v1398 = vld [vmem:[#allocation11 + $0x13c8] sm:$0xff]
    %v1399 = vld [vmem:[#allocation11 + $0x13d0] sm:$0xff]
    %v1400 = vld [vmem:[#allocation11 + $0x13d8] sm:$0xff]
    %v1401 = vld [vmem:[#allocation11 + $0x13e0] sm:$0xff]
    %v1402 = vld [vmem:[#allocation11 + $0x13e8] sm:$0xff]
    %v1403 = vld [vmem:[#allocation11 + $0x13f0] sm:$0xff]
    %v1404 = vld [vmem:[#allocation11 + $0x13f8] sm:$0xff]
    %v1405 = vld [vmem:[#allocation11 + $0x1400] sm:$0xff]
    %v1406 = vld [vmem:[#allocation11 + $0x1408] sm:$0xff]
    %v1407 = vld [vmem:[#allocation11 + $0x1410] sm:$0xff]
    %v1408 = vld [vmem:[#allocation11 + $0x1418] sm:$0xff]
    %v1409 = vld [vmem:[#allocation11 + $0x1420] sm:$0xff]
    %v1410 = vld [vmem:[#allocation11 + $0x1428] sm:$0xff]
    %v1411 = vld [vmem:[#allocation11 + $0x1430] sm:$0xff]
    %v1412 = vld [vmem:[#allocation11 + $0x1438] sm:$0xff]
    %v1413 = vld [vmem:[#allocation11 + $0x1440] sm:$0xff]
    %v1414 = vld [vmem:[#allocation11 + $0x1448] sm:$0xff]
    %v1415 = vld [vmem:[#allocation11 + $0x1450] sm:$0xff]
    %v1416 = vld [vmem:[#allocation11 + $0x1458] sm:$0xff]
    %v1417 = vld [vmem:[#allocation11 + $0x1460] sm:$0xff]
    %v1418 = vld [vmem:[#allocation11 + $0x1468] sm:$0xff]
    %v1419 = vld [vmem:[#allocation11 + $0x1470] sm:$0xff]
    %v1420 = vld [vmem:[#allocation11 + $0x1478] sm:$0xff]
    %v1421 = vld [vmem:[#allocation11 + $0x1480] sm:$0xff]
    %v1422 = vld [vmem:[#allocation11 + $0x1488] sm:$0xff]
    %v1423 = vld [vmem:[#allocation11 + $0x1490] sm:$0xff]
    %v1424 = vld [vmem:[#allocation11 + $0x1498] sm:$0xff]
    %v1425 = vld [vmem:[#allocation11 + $0x14a0] sm:$0xff]
    %v1426 = vld [vmem:[#allocation11 + $0x14a8] sm:$0xff]
    %v1427 = vld [vmem:[#allocation11 + $0x14b0] sm:$0xff]
    %v1428 = vld [vmem:[#allocation11 + $0x14b8] sm:$0xff]
    %v1429 = vld [vmem:[#allocation11 + $0x14c0] sm:$0xff]
    %v1430 = vld [vmem:[#allocation11 + $0x14c8] sm:$0xff]
    %v1431 = vld [vmem:[#allocation11 + $0x14d0] sm:$0xff]
    %v1432 = vld [vmem:[#allocation11 + $0x14d8] sm:$0xff]
    %v1433 = vld [vmem:[#allocation11 + $0x14e0] sm:$0xff]
    %v1434 = vld [vmem:[#allocation11 + $0x14e8] sm:$0xff]
    %v1435 = vld [vmem:[#allocation11 + $0x14f0] sm:$0xff]
    %v1436 = vld [vmem:[#allocation11 + $0x14f8] sm:$0xff]
    %v1437 = vld [vmem:[#allocation11 + $0x1500] sm:$0xff]
    %v1438 = vld [vmem:[#allocation11 + $0x1508] sm:$0xff]
    %v1439 = vld [vmem:[#allocation11 + $0x1510] sm:$0xff]
    %v1440 = vld [vmem:[#allocation11 + $0x1518] sm:$0xff]
    %v1441 = vld [vmem:[#allocation11 + $0x1520] sm:$0xff]
    %v1442 = vld [vmem:[#allocation11 + $0x1528] sm:$0xff]
    %v1443 = vld [vmem:[#allocation11 + $0x1530] sm:$0xff]
    %v1444 = vld [vmem:[#allocation11 + $0x1538] sm:$0xff]
    %v1445 = vld [vmem:[#allocation11 + $0x1540] sm:$0xff]
    %v1446 = vld [vmem:[#allocation11 + $0x1548] sm:$0xff]
    %v1447 = vld [vmem:[#allocation11 + $0x1550] sm:$0xff]
    %v1448 = vld [vmem:[#allocation11 + $0x1558] sm:$0xff]
    %v1449 = vld [vmem:[#allocation11 + $0x1560] sm:$0xff]
    %v1450 = vld [vmem:[#allocation11 + $0x1568] sm:$0xff]
    %v1451 = vld [vmem:[#allocation11 + $0x1570] sm:$0xff]
    %v1452 = vld [vmem:[#allocation11 + $0x1578] sm:$0xff]
    %v1453 = vld [vmem:[#allocation11 + $0x1580] sm:$0xff]
    %v1454 = vld [vmem:[#allocation11 + $0x1588] sm:$0xff]
    %v1455 = vld [vmem:[#allocation11 + $0x1590] sm:$0xff]
    %v1456 = vld [vmem:[#allocation11 + $0x1598] sm:$0xff]
    %v1457 = vld [vmem:[#allocation11 + $0x15a0] sm:$0xff]
    %v1458 = vld [vmem:[#allocation11 + $0x15a8] sm:$0xff]
    %v1459 = vld [vmem:[#allocation11 + $0x15b0] sm:$0xff]
    %v1460 = vld [vmem:[#allocation11 + $0x15b8] sm:$0xff]
    %v1461 = vld [vmem:[#allocation11 + $0x15c0] sm:$0xff]
    %v1462 = vld [vmem:[#allocation11 + $0x15c8] sm:$0xff]
    %v1463 = vld [vmem:[#allocation11 + $0x15d0] sm:$0xff]
    %v1464 = vld [vmem:[#allocation11 + $0x15d8] sm:$0xff]
    %v1465 = vld [vmem:[#allocation11 + $0x15e0] sm:$0xff]
    %v1466 = vld [vmem:[#allocation11 + $0x15e8] sm:$0xff]
    %v1467 = vld [vmem:[#allocation11 + $0x15f0] sm:$0xff]
    %v1468 = vld [vmem:[#allocation11 + $0x15f8] sm:$0xff]
    %v1469 = vld [vmem:[#allocation11 + $0x1600] sm:$0xff]
    %v1470 = vld [vmem:[#allocation11 + $0x1608] sm:$0xff]
    %v1471 = vld [vmem:[#allocation11 + $0x1610] sm:$0xff]
    %v1472 = vld [vmem:[#allocation11 + $0x1618] sm:$0xff]
    %v1473 = vld [vmem:[#allocation11 + $0x1620] sm:$0xff]
    %v1474 = vld [vmem:[#allocation11 + $0x1628] sm:$0xff]
    %v1475 = vld [vmem:[#allocation11 + $0x1630] sm:$0xff]
    %v1476 = vld [vmem:[#allocation11 + $0x1638] sm:$0xff]
    %v1477 = vld [vmem:[#allocation11 + $0x1640] sm:$0xff]
    %v1478 = vld [vmem:[#allocation11 + $0x1648] sm:$0xff]
    %v1479 = vld [vmem:[#allocation11 + $0x1650] sm:$0xff]
    %v1480 = vld [vmem:[#allocation11 + $0x1658] sm:$0xff]
    %v1481 = vld [vmem:[#allocation11 + $0x1660] sm:$0xff]
    %v1482 = vld [vmem:[#allocation11 + $0x1668] sm:$0xff]
    %v1483 = vld [vmem:[#allocation11 + $0x1670] sm:$0xff]
    %v1484 = vld [vmem:[#allocation11 + $0x1678] sm:$0xff]
    %v1485 = vld [vmem:[#allocation11 + $0x1680] sm:$0xff]
    %v1486 = vld [vmem:[#allocation11 + $0x1688] sm:$0xff]
    %v1487 = vld [vmem:[#allocation11 + $0x1690] sm:$0xff]
    %v1488 = vld [vmem:[#allocation11 + $0x1698] sm:$0xff]
    %v1489 = vld [vmem:[#allocation11 + $0x16a0] sm:$0xff]
    %v1490 = vld [vmem:[#allocation11 + $0x16a8] sm:$0xff]
    %v1491 = vld [vmem:[#allocation11 + $0x16b0] sm:$0xff]
    %v1492 = vld [vmem:[#allocation11 + $0x16b8] sm:$0xff]
    %v1493 = vld [vmem:[#allocation11 + $0x16c0] sm:$0xff]
    %v1494 = vld [vmem:[#allocation11 + $0x16c8] sm:$0xff]
    %v1495 = vld [vmem:[#allocation11 + $0x16d0] sm:$0xff]
    %v1496 = vld [vmem:[#allocation11 + $0x16d8] sm:$0xff]
    %v1497 = vld [vmem:[#allocation11 + $0x16e0] sm:$0xff]
    %v1498 = vld [vmem:[#allocation11 + $0x16e8] sm:$0xff]
    %v1499 = vld [vmem:[#allocation11 + $0x16f0] sm:$0xff]
    %v1500 = vld [vmem:[#allocation11 + $0x16f8] sm:$0xff]
    %v1501 = vld [vmem:[#allocation11 + $0x1700] sm:$0xff]
    %v1502 = vld [vmem:[#allocation11 + $0x1708] sm:$0xff]
    %v1503 = vld [vmem:[#allocation11 + $0x1710] sm:$0xff]
    %v1504 = vld [vmem:[#allocation11 + $0x1718] sm:$0xff]
    %v1505 = vld [vmem:[#allocation11 + $0x1720] sm:$0xff]
    %v1506 = vld [vmem:[#allocation11 + $0x1728] sm:$0xff]
    %v1507 = vld [vmem:[#allocation11 + $0x1730] sm:$0xff]
    %v1508 = vld [vmem:[#allocation11 + $0x1738] sm:$0xff]
    %v1509 = vld [vmem:[#allocation11 + $0x1740] sm:$0xff]
    %v1510 = vld [vmem:[#allocation11 + $0x1748] sm:$0xff]
    %v1511 = vld [vmem:[#allocation11 + $0x1750] sm:$0xff]
    %v1512 = vld [vmem:[#allocation11 + $0x1758] sm:$0xff]
    %v1513 = vld [vmem:[#allocation11 + $0x1760] sm:$0xff]
    %v1514 = vld [vmem:[#allocation11 + $0x1768] sm:$0xff]
    %v1515 = vld [vmem:[#allocation11 + $0x1770] sm:$0xff]
    %v1516 = vld [vmem:[#allocation11 + $0x1778] sm:$0xff]
    %v1517 = vld [vmem:[#allocation11 + $0x1780] sm:$0xff]
    %v1518 = vld [vmem:[#allocation11 + $0x1788] sm:$0xff]
    %v1519 = vld [vmem:[#allocation11 + $0x1790] sm:$0xff]
    %v1520 = vld [vmem:[#allocation11 + $0x1798] sm:$0xff]
    %v1521 = vld [vmem:[#allocation11 + $0x17a0] sm:$0xff]
    %v1522 = vld [vmem:[#allocation11 + $0x17a8] sm:$0xff]
    %v1523 = vld [vmem:[#allocation11 + $0x17b0] sm:$0xff]
    %v1524 = vld [vmem:[#allocation11 + $0x17b8] sm:$0xff]
    %v1525 = vld [vmem:[#allocation11 + $0x17c0] sm:$0xff]
    %v1526 = vld [vmem:[#allocation11 + $0x17c8] sm:$0xff]
    %v1527 = vld [vmem:[#allocation11 + $0x17d0] sm:$0xff]
    %v1528 = vld [vmem:[#allocation11 + $0x17d8] sm:$0xff]
    %v1529 = vld [vmem:[#allocation11 + $0x17e0] sm:$0xff]
    %v1530 = vld [vmem:[#allocation11 + $0x17e8] sm:$0xff]
    %v1531 = vld [vmem:[#allocation11 + $0x17f0] sm:$0xff]
    %v1532 = vld [vmem:[#allocation11 + $0x17f8] sm:$0xff]
    %v1533 = vld [vmem:[#allocation11 + $0x1800] sm:$0xff]
    %v1534 = vld [vmem:[#allocation11 + $0x1808] sm:$0xff]
    %v1535 = vld [vmem:[#allocation11 + $0x1810] sm:$0xff]
    %v1536 = vld [vmem:[#allocation11 + $0x1818] sm:$0xff]
    %v1537 = vld [vmem:[#allocation11 + $0x1820] sm:$0xff]
    %v1538 = vld [vmem:[#allocation11 + $0x1828] sm:$0xff]
    %v1539 = vld [vmem:[#allocation11 + $0x1830] sm:$0xff]
    %v1540 = vld [vmem:[#allocation11 + $0x1838] sm:$0xff]
    %v1541 = vld [vmem:[#allocation11 + $0x1840] sm:$0xff]
    %v1542 = vld [vmem:[#allocation11 + $0x1848] sm:$0xff]
    %v1543 = vld [vmem:[#allocation11 + $0x1850] sm:$0xff]
    %v1544 = vld [vmem:[#allocation11 + $0x1858] sm:$0xff]
    %v1545 = vld [vmem:[#allocation11 + $0x1860] sm:$0xff]
    %v1546 = vld [vmem:[#allocation11 + $0x1868] sm:$0xff]
    %v1547 = vld [vmem:[#allocation11 + $0x1870] sm:$0xff]
    %v1548 = vld [vmem:[#allocation11 + $0x1878] sm:$0xff]
    %v1549 = vld [vmem:[#allocation11 + $0x1880] sm:$0xff]
    %v1550 = vld [vmem:[#allocation11 + $0x1888] sm:$0xff]
    %v1551 = vld [vmem:[#allocation11 + $0x1890] sm:$0xff]
    %v1552 = vld [vmem:[#allocation11 + $0x1898] sm:$0xff]
    %v1553 = vld [vmem:[#allocation11 + $0x18a0] sm:$0xff]
    %v1554 = vld [vmem:[#allocation11 + $0x18a8] sm:$0xff]
    %v1555 = vld [vmem:[#allocation11 + $0x18b0] sm:$0xff]
    %v1556 = vld [vmem:[#allocation11 + $0x18b8] sm:$0xff]
    %v1557 = vld [vmem:[#allocation11 + $0x18c0] sm:$0xff]
    %v1558 = vld [vmem:[#allocation11 + $0x18c8] sm:$0xff]
    %v1559 = vld [vmem:[#allocation11 + $0x18d0] sm:$0xff]
    %v1560 = vld [vmem:[#allocation11 + $0x18d8] sm:$0xff]
    %v1561 = vld [vmem:[#allocation11 + $0x18e0] sm:$0xff]
    %v1562 = vld [vmem:[#allocation11 + $0x18e8] sm:$0xff]
    %v1563 = vld [vmem:[#allocation11 + $0x18f0] sm:$0xff]
    %v1564 = vld [vmem:[#allocation11 + $0x18f8] sm:$0xff]
    %v1565 = vld [vmem:[#allocation11 + $0x1900] sm:$0xff]
    %v1566 = vld [vmem:[#allocation11 + $0x1908] sm:$0xff]
    %v1567 = vld [vmem:[#allocation11 + $0x1910] sm:$0xff]
    %v1568 = vld [vmem:[#allocation11 + $0x1918] sm:$0xff]
    %v1569 = vld [vmem:[#allocation11 + $0x1920] sm:$0xff]
    %v1570 = vld [vmem:[#allocation11 + $0x1928] sm:$0xff]
    %v1571 = vld [vmem:[#allocation11 + $0x1930] sm:$0xff]
    %v1572 = vld [vmem:[#allocation11 + $0x1938] sm:$0xff]
    %v1573 = vld [vmem:[#allocation11 + $0x1940] sm:$0xff]
    %v1574 = vld [vmem:[#allocation11 + $0x1948] sm:$0xff]
    %v1575 = vld [vmem:[#allocation11 + $0x1950] sm:$0xff]
    %v1576 = vld [vmem:[#allocation11 + $0x1958] sm:$0xff]
    %v1577 = vld [vmem:[#allocation11 + $0x1960] sm:$0xff]
    %v1578 = vld [vmem:[#allocation11 + $0x1968] sm:$0xff]
    %v1579 = vld [vmem:[#allocation11 + $0x1970] sm:$0xff]
    %v1580 = vld [vmem:[#allocation11 + $0x1978] sm:$0xff]
    %v1581 = vld [vmem:[#allocation11 + $0x1980] sm:$0xff]
    %v1582 = vld [vmem:[#allocation11 + $0x1988] sm:$0xff]
    %v1583 = vld [vmem:[#allocation11 + $0x1990] sm:$0xff]
    %v1584 = vld [vmem:[#allocation11 + $0x1998] sm:$0xff]
    %v1585 = vld [vmem:[#allocation11 + $0x19a0] sm:$0xff]
    %v1586 = vld [vmem:[#allocation11 + $0x19a8] sm:$0xff]
    %v1587 = vld [vmem:[#allocation11 + $0x19b0] sm:$0xff]
    %v1588 = vld [vmem:[#allocation11 + $0x19b8] sm:$0xff]
    %v1589 = vld [vmem:[#allocation11 + $0x19c0] sm:$0xff]
    %v1590 = vld [vmem:[#allocation11 + $0x19c8] sm:$0xff]
    %v1591 = vld [vmem:[#allocation11 + $0x19d0] sm:$0xff]
    %v1592 = vld [vmem:[#allocation11 + $0x19d8] sm:$0xff]
    %v1593 = vld [vmem:[#allocation11 + $0x19e0] sm:$0xff]
    %v1594 = vld [vmem:[#allocation11 + $0x19e8] sm:$0xff]
    %v1595 = vld [vmem:[#allocation11 + $0x19f0] sm:$0xff]
    %v1596 = vld [vmem:[#allocation11 + $0x19f8] sm:$0xff]
    %v1597 = vld [vmem:[#allocation11 + $0x1a00] sm:$0xff]
    %v1598 = vld [vmem:[#allocation11 + $0x1a08] sm:$0xff]
    %v1599 = vld [vmem:[#allocation11 + $0x1a10] sm:$0xff]
    %v1600 = vld [vmem:[#allocation11 + $0x1a18] sm:$0xff]
    %v1601 = vld [vmem:[#allocation11 + $0x1a20] sm:$0xff]
    %v1602 = vld [vmem:[#allocation11 + $0x1a28] sm:$0xff]
    %v1603 = vld [vmem:[#allocation11 + $0x1a30] sm:$0xff]
    %v1604 = vld [vmem:[#allocation11 + $0x1a38] sm:$0xff]
    %v1605 = vld [vmem:[#allocation11 + $0x1a40] sm:$0xff]
    %v1606 = vld [vmem:[#allocation11 + $0x1a48] sm:$0xff]
    %v1607 = vld [vmem:[#allocation11 + $0x1a50] sm:$0xff]
    %v1608 = vld [vmem:[#allocation11 + $0x1a58] sm:$0xff]
    %v1609 = vld [vmem:[#allocation11 + $0x1a60] sm:$0xff]
    %v1610 = vld [vmem:[#allocation11 + $0x1a68] sm:$0xff]
    %v1611 = vld [vmem:[#allocation11 + $0x1a70] sm:$0xff]
    %v1612 = vld [vmem:[#allocation11 + $0x1a78] sm:$0xff]
    %v1613 = vld [vmem:[#allocation11 + $0x1a80] sm:$0xff]
    %v1614 = vld [vmem:[#allocation11 + $0x1a88] sm:$0xff]
    %v1615 = vld [vmem:[#allocation11 + $0x1a90] sm:$0xff]
    %v1616 = vld [vmem:[#allocation11 + $0x1a98] sm:$0xff]
    %v1617 = vld [vmem:[#allocation11 + $0x1aa0] sm:$0xff]
    %v1618 = vld [vmem:[#allocation11 + $0x1aa8] sm:$0xff]
    %v1619 = vld [vmem:[#allocation11 + $0x1ab0] sm:$0xff]
    %v1620 = vld [vmem:[#allocation11 + $0x1ab8] sm:$0xff]
    %v1621 = vld [vmem:[#allocation11 + $0x1ac0] sm:$0xff]
    %v1622 = vld [vmem:[#allocation11 + $0x1ac8] sm:$0xff]
    %v1623 = vld [vmem:[#allocation11 + $0x1ad0] sm:$0xff]
    %v1624 = vld [vmem:[#allocation11 + $0x1ad8] sm:$0xff]
    %v1625 = vld [vmem:[#allocation11 + $0x1ae0] sm:$0xff]
    %v1626 = vld [vmem:[#allocation11 + $0x1ae8] sm:$0xff]
    %v1627 = vld [vmem:[#allocation11 + $0x1af0] sm:$0xff]
    %v1628 = vld [vmem:[#allocation11 + $0x1af8] sm:$0xff]
    %v1629 = vld [vmem:[#allocation11 + $0x1b00] sm:$0xff]
    %v1630 = vld [vmem:[#allocation11 + $0x1b08] sm:$0xff]
    %v1631 = vld [vmem:[#allocation11 + $0x1b10] sm:$0xff]
    %v1632 = vld [vmem:[#allocation11 + $0x1b18] sm:$0xff]
    %v1633 = vld [vmem:[#allocation11 + $0x1b20] sm:$0xff]
    %v1634 = vld [vmem:[#allocation11 + $0x1b28] sm:$0xff]
    %v1635 = vld [vmem:[#allocation11 + $0x1b30] sm:$0xff]
    %v1636 = vld [vmem:[#allocation11 + $0x1b38] sm:$0xff]
    %v1637 = vld [vmem:[#allocation11 + $0x1b40] sm:$0xff]
    %v1638 = vld [vmem:[#allocation11 + $0x1b48] sm:$0xff]
    %v1639 = vld [vmem:[#allocation11 + $0x1b50] sm:$0xff]
    %v1640 = vld [vmem:[#allocation11 + $0x1b58] sm:$0xff]
    %v1641 = vld [vmem:[#allocation11 + $0x1b60] sm:$0xff]
    %v1642 = vld [vmem:[#allocation11 + $0x1b68] sm:$0xff]
    %v1643 = vld [vmem:[#allocation11 + $0x1b70] sm:$0xff]
    %v1644 = vld [vmem:[#allocation11 + $0x1b78] sm:$0xff]
    %v1645 = vld [vmem:[#allocation11 + $0x1b80] sm:$0xff]
    %v1646 = vld [vmem:[#allocation11 + $0x1b88] sm:$0xff]
    %v1647 = vld [vmem:[#allocation11 + $0x1b90] sm:$0xff]
    %v1648 = vld [vmem:[#allocation11 + $0x1b98] sm:$0xff]
    %v1649 = vld [vmem:[#allocation11 + $0x1ba0] sm:$0xff]
    %v1650 = vld [vmem:[#allocation11 + $0x1ba8] sm:$0xff]
    %v1651 = vld [vmem:[#allocation11 + $0x1bb0] sm:$0xff]
    %v1652 = vld [vmem:[#allocation11 + $0x1bb8] sm:$0xff]
    %v1653 = vld [vmem:[#allocation11 + $0x1bc0] sm:$0xff]
    %v1654 = vld [vmem:[#allocation11 + $0x1bc8] sm:$0xff]
    %v1655 = vld [vmem:[#allocation11 + $0x1bd0] sm:$0xff]
    %v1656 = vld [vmem:[#allocation11 + $0x1bd8] sm:$0xff]
    %v1657 = vld [vmem:[#allocation11 + $0x1be0] sm:$0xff]
    %v1658 = vld [vmem:[#allocation11 + $0x1be8] sm:$0xff]
    %v1659 = vld [vmem:[#allocation11 + $0x1bf0] sm:$0xff]
    %v1660 = vld [vmem:[#allocation11 + $0x1bf8] sm:$0xff]
    %v1661 = vld [vmem:[#allocation11 + $0x1c00] sm:$0xff]
    %v1662 = vld [vmem:[#allocation11 + $0x1c08] sm:$0xff]
    %v1663 = vld [vmem:[#allocation11 + $0x1c10] sm:$0xff]
    %v1664 = vld [vmem:[#allocation11 + $0x1c18] sm:$0xff]
    %v1665 = vld [vmem:[#allocation11 + $0x1c20] sm:$0xff]
    %v1666 = vld [vmem:[#allocation11 + $0x1c28] sm:$0xff]
    %v1667 = vld [vmem:[#allocation11 + $0x1c30] sm:$0xff]
    %v1668 = vld [vmem:[#allocation11 + $0x1c38] sm:$0xff]
    %v1669 = vld [vmem:[#allocation11 + $0x1c40] sm:$0xff]
    %v1670 = vld [vmem:[#allocation11 + $0x1c48] sm:$0xff]
    %v1671 = vld [vmem:[#allocation11 + $0x1c50] sm:$0xff]
    %v1672 = vld [vmem:[#allocation11 + $0x1c58] sm:$0xff]
    %v1673 = vld [vmem:[#allocation11 + $0x1c60] sm:$0xff]
    %v1674 = vld [vmem:[#allocation11 + $0x1c68] sm:$0xff]
    %v1675 = vld [vmem:[#allocation11 + $0x1c70] sm:$0xff]
    %v1676 = vld [vmem:[#allocation11 + $0x1c78] sm:$0xff]
    %v1677 = vld [vmem:[#allocation11 + $0x1c80] sm:$0xff]
    %v1678 = vld [vmem:[#allocation11 + $0x1c88] sm:$0xff]
    %v1679 = vld [vmem:[#allocation11 + $0x1c90] sm:$0xff]
    %v1680 = vld [vmem:[#allocation11 + $0x1c98] sm:$0xff]
    %v1681 = vld [vmem:[#allocation11 + $0x1ca0] sm:$0xff]
    %v1682 = vld [vmem:[#allocation11 + $0x1ca8] sm:$0xff]
    %v1683 = vld [vmem:[#allocation11 + $0x1cb0] sm:$0xff]
    %v1684 = vld [vmem:[#allocation11 + $0x1cb8] sm:$0xff]
    %v1685 = vld [vmem:[#allocation11 + $0x1cc0] sm:$0xff]
    %v1686 = vld [vmem:[#allocation11 + $0x1cc8] sm:$0xff]
    %v1687 = vld [vmem:[#allocation11 + $0x1cd0] sm:$0xff]
    %v1688 = vld [vmem:[#allocation11 + $0x1cd8] sm:$0xff]
    %v1689 = vld [vmem:[#allocation11 + $0x1ce0] sm:$0xff]
    %v1690 = vld [vmem:[#allocation11 + $0x1ce8] sm:$0xff]
    %v1691 = vld [vmem:[#allocation11 + $0x1cf0] sm:$0xff]
    %v1692 = vld [vmem:[#allocation11 + $0x1cf8] sm:$0xff]
    %v1693 = vld [vmem:[#allocation11 + $0x1d00] sm:$0xff]
    %v1694 = vld [vmem:[#allocation11 + $0x1d08] sm:$0xff]
    %v1695 = vld [vmem:[#allocation11 + $0x1d10] sm:$0xff]
    %v1696 = vld [vmem:[#allocation11 + $0x1d18] sm:$0xff]
    %v1697 = vld [vmem:[#allocation11 + $0x1d20] sm:$0xff]
    %v1698 = vld [vmem:[#allocation11 + $0x1d28] sm:$0xff]
    %v1699 = vld [vmem:[#allocation11 + $0x1d30] sm:$0xff]
    %v1700 = vld [vmem:[#allocation11 + $0x1d38] sm:$0xff]
    %v1701 = vld [vmem:[#allocation11 + $0x1d40] sm:$0xff]
    %v1702 = vld [vmem:[#allocation11 + $0x1d48] sm:$0xff]
    %v1703 = vld [vmem:[#allocation11 + $0x1d50] sm:$0xff]
    %v1704 = vld [vmem:[#allocation11 + $0x1d58] sm:$0xff]
    %v1705 = vld [vmem:[#allocation11 + $0x1d60] sm:$0xff]
    %v1706 = vld [vmem:[#allocation11 + $0x1d68] sm:$0xff]
    %v1707 = vld [vmem:[#allocation11 + $0x1d70] sm:$0xff]
    %v1708 = vld [vmem:[#allocation11 + $0x1d78] sm:$0xff]
    %v1709 = vld [vmem:[#allocation11 + $0x1d80] sm:$0xff]
    %v1710 = vld [vmem:[#allocation11 + $0x1d88] sm:$0xff]
    %v1711 = vld [vmem:[#allocation11 + $0x1d90] sm:$0xff]
    %v1712 = vld [vmem:[#allocation11 + $0x1d98] sm:$0xff]
    %v1713 = vld [vmem:[#allocation11 + $0x1da0] sm:$0xff]
    %v1714 = vld [vmem:[#allocation11 + $0x1da8] sm:$0xff]
    %v1715 = vld [vmem:[#allocation11 + $0x1db0] sm:$0xff]
    %v1716 = vld [vmem:[#allocation11 + $0x1db8] sm:$0xff]
    %v1717 = vld [vmem:[#allocation11 + $0x1dc0] sm:$0xff]
    %v1718 = vld [vmem:[#allocation11 + $0x1dc8] sm:$0xff]
    %v1719 = vld [vmem:[#allocation11 + $0x1dd0] sm:$0xff]
    %v1720 = vld [vmem:[#allocation11 + $0x1dd8] sm:$0xff]
    %v1721 = vld [vmem:[#allocation11 + $0x1de0] sm:$0xff]
    %v1722 = vld [vmem:[#allocation11 + $0x1de8] sm:$0xff]
    %v1723 = vld [vmem:[#allocation11 + $0x1df0] sm:$0xff]
    %v1724 = vld [vmem:[#allocation11 + $0x1df8] sm:$0xff]
    %v1725 = vld [vmem:[#allocation11 + $0x1e00] sm:$0xff]
    %v1726 = vld [vmem:[#allocation11 + $0x1e08] sm:$0xff]
    %v1727 = vld [vmem:[#allocation11 + $0x1e10] sm:$0xff]
    %v1728 = vld [vmem:[#allocation11 + $0x1e18] sm:$0xff]
    %v1729 = vld [vmem:[#allocation11 + $0x1e20] sm:$0xff]
    %v1730 = vld [vmem:[#allocation11 + $0x1e28] sm:$0xff]
    %v1731 = vld [vmem:[#allocation11 + $0x1e30] sm:$0xff]
    %v1732 = vld [vmem:[#allocation11 + $0x1e38] sm:$0xff]
    %v1733 = vld [vmem:[#allocation11 + $0x1e40] sm:$0xff]
    %v1734 = vld [vmem:[#allocation11 + $0x1e48] sm:$0xff]
    %v1735 = vld [vmem:[#allocation11 + $0x1e50] sm:$0xff]
    %v1736 = vld [vmem:[#allocation11 + $0x1e58] sm:$0xff]
    %v1737 = vld [vmem:[#allocation11 + $0x1e60] sm:$0xff]
    %v1738 = vld [vmem:[#allocation11 + $0x1e68] sm:$0xff]
    %v1739 = vld [vmem:[#allocation11 + $0x1e70] sm:$0xff]
    %v1740 = vld [vmem:[#allocation11 + $0x1e78] sm:$0xff]
    %v1741 = vld [vmem:[#allocation11 + $0x1e80] sm:$0xff]
    %v1742 = vld [vmem:[#allocation11 + $0x1e88] sm:$0xff]
    %v1743 = vld [vmem:[#allocation11 + $0x1e90] sm:$0xff]
    %v1744 = vld [vmem:[#allocation11 + $0x1e98] sm:$0xff]
    %v1745 = vld [vmem:[#allocation11 + $0x1ea0] sm:$0xff]
    %v1746 = vld [vmem:[#allocation11 + $0x1ea8] sm:$0xff]
    %v1747 = vld [vmem:[#allocation11 + $0x1eb0] sm:$0xff]
    %v1748 = vld [vmem:[#allocation11 + $0x1eb8] sm:$0xff]
    %v1749 = vld [vmem:[#allocation11 + $0x1ec0] sm:$0xff]
    %v1750 = vld [vmem:[#allocation11 + $0x1ec8] sm:$0xff]
    %v1751 = vld [vmem:[#allocation11 + $0x1ed0] sm:$0xff]
    %v1752 = vld [vmem:[#allocation11 + $0x1ed8] sm:$0xff]
    %v1753 = vld [vmem:[#allocation11 + $0x1ee0] sm:$0xff]
    %v1754 = vld [vmem:[#allocation11 + $0x1ee8] sm:$0xff]
    %v1755 = vld [vmem:[#allocation11 + $0x1ef0] sm:$0xff]
    %v1756 = vld [vmem:[#allocation11 + $0x1ef8] sm:$0xff]
    %v1757 = vld [vmem:[#allocation11 + $0x1f00] sm:$0xff]
    %v1758 = vld [vmem:[#allocation11 + $0x1f08] sm:$0xff]
    %v1759 = vld [vmem:[#allocation11 + $0x1f10] sm:$0xff]
    %v1760 = vld [vmem:[#allocation11 + $0x1f18] sm:$0xff]
    %v1761 = vld [vmem:[#allocation11 + $0x1f20] sm:$0xff]
    %v1762 = vld [vmem:[#allocation11 + $0x1f28] sm:$0xff]
    %v1763 = vld [vmem:[#allocation11 + $0x1f30] sm:$0xff]
    %v1764 = vld [vmem:[#allocation11 + $0x1f38] sm:$0xff]
    %v1765 = vld [vmem:[#allocation11 + $0x1f40] sm:$0xff]
    %v1766 = vld [vmem:[#allocation11 + $0x1f48] sm:$0xff]
    %v1767 = vld [vmem:[#allocation11 + $0x1f50] sm:$0xff]
    %v1768 = vld [vmem:[#allocation11 + $0x1f58] sm:$0xff]
    %v1769 = vld [vmem:[#allocation11 + $0x1f60] sm:$0xff]
    %v1770 = vld [vmem:[#allocation11 + $0x1f68] sm:$0xff]
    %v1771 = vld [vmem:[#allocation11 + $0x1f70] sm:$0xff]
    %v1772 = vld [vmem:[#allocation11 + $0x1f78] sm:$0xff]
    %v1773 = vld [vmem:[#allocation11 + $0x1f80] sm:$0xff]
    %v1774 = vld [vmem:[#allocation11 + $0x1f88] sm:$0xff]
    %v1775 = vld [vmem:[#allocation11 + $0x1f90] sm:$0xff]
    %v1776 = vld [vmem:[#allocation11 + $0x1f98] sm:$0xff]
    %v1777 = vld [vmem:[#allocation11 + $0x1fa0] sm:$0xff]
    %v1778 = vld [vmem:[#allocation11 + $0x1fa8] sm:$0xff]
    %v1779 = vld [vmem:[#allocation11 + $0x1fb0] sm:$0xff]
    %v1780 = vld [vmem:[#allocation11 + $0x1fb8] sm:$0xff]
    %v1781 = vld [vmem:[#allocation11 + $0x1fc0] sm:$0xff]
    %v1782 = vld [vmem:[#allocation11 + $0x1fc8] sm:$0xff]
    %v1783 = vld [vmem:[#allocation11 + $0x1fd0] sm:$0xff]
    %v1784 = vld [vmem:[#allocation11 + $0x1fd8] sm:$0xff]
    %v1785 = vld [vmem:[#allocation11 + $0x1fe0] sm:$0xff]
    %v1786 = vld [vmem:[#allocation11 + $0x1fe8] sm:$0xff]
    %v1787 = vld [vmem:[#allocation11 + $0x1ff0] sm:$0xff]
    %v1788 = vld [vmem:[#allocation11 + $0x1ff8] sm:$0xff]
    %v1789 = vld [vmem:[#allocation11 + $0x2000] sm:$0xff]
    %v1790 = vld [vmem:[#allocation11 + $0x2008] sm:$0xff]
    %v1791 = vld [vmem:[#allocation11 + $0x2010] sm:$0xff]
    %v1792 = vld [vmem:[#allocation11 + $0x2018] sm:$0xff]
    %v1793 = vld [vmem:[#allocation11 + $0x2020] sm:$0xff]
    %v1794 = vld [vmem:[#allocation11 + $0x2028] sm:$0xff]
    %v1795 = vld [vmem:[#allocation11 + $0x2030] sm:$0xff]
    %v1796 = vld [vmem:[#allocation11 + $0x2038] sm:$0xff]
    %v1797 = vld [vmem:[#allocation11 + $0x2040] sm:$0xff]
    %v1798 = vld [vmem:[#allocation11 + $0x2048] sm:$0xff]
    %v1799 = vld [vmem:[#allocation11 + $0x2050] sm:$0xff]
    %v1800 = vld [vmem:[#allocation11 + $0x2058] sm:$0xff]
    %v1801 = vld [vmem:[#allocation11 + $0x2060] sm:$0xff]
    %v1802 = vld [vmem:[#allocation11 + $0x2068] sm:$0xff]
    %v1803 = vld [vmem:[#allocation11 + $0x2070] sm:$0xff]
    %v1804 = vld [vmem:[#allocation11 + $0x2078] sm:$0xff]
    %v1805 = vld [vmem:[#allocation11 + $0x2080] sm:$0xff]
    %v1806 = vld [vmem:[#allocation11 + $0x2088] sm:$0xff]
    %v1807 = vld [vmem:[#allocation11 + $0x2090] sm:$0xff]
    %v1808 = vld [vmem:[#allocation11 + $0x2098] sm:$0xff]
    %v1809 = vld [vmem:[#allocation11 + $0x20a0] sm:$0xff]
    %v1810 = vld [vmem:[#allocation11 + $0x20a8] sm:$0xff]
    %v1811 = vld [vmem:[#allocation11 + $0x20b0] sm:$0xff]
    %v1812 = vld [vmem:[#allocation11 + $0x20b8] sm:$0xff]
    %v1813 = vld [vmem:[#allocation11 + $0x20c0] sm:$0xff]
    %v1814 = vld [vmem:[#allocation11 + $0x20c8] sm:$0xff]
    %v1815 = vld [vmem:[#allocation11 + $0x20d0] sm:$0xff]
    %v1816 = vld [vmem:[#allocation11 + $0x20d8] sm:$0xff]
    %v1817 = vld [vmem:[#allocation11 + $0x20e0] sm:$0xff]
    %v1818 = vld [vmem:[#allocation11 + $0x20e8] sm:$0xff]
    %v1819 = vld [vmem:[#allocation11 + $0x20f0] sm:$0xff]
    %v1820 = vld [vmem:[#allocation11 + $0x20f8] sm:$0xff]
    %v1821 = vld [vmem:[#allocation11 + $0x2100] sm:$0xff]
    %v1822 = vld [vmem:[#allocation11 + $0x2108] sm:$0xff]
    %v1823 = vld [vmem:[#allocation11 + $0x2110] sm:$0xff]
    %v1824 = vld [vmem:[#allocation11 + $0x2118] sm:$0xff]
    %v1825 = vld [vmem:[#allocation11 + $0x2120] sm:$0xff]
    %v1826 = vld [vmem:[#allocation11 + $0x2128] sm:$0xff]
    %v1827 = vld [vmem:[#allocation11 + $0x2130] sm:$0xff]
    %v1828 = vld [vmem:[#allocation11 + $0x2138] sm:$0xff]
    %v1829 = vld [vmem:[#allocation11 + $0x2140] sm:$0xff]
    %v1830 = vld [vmem:[#allocation11 + $0x2148] sm:$0xff]
    %v1831 = vld [vmem:[#allocation11 + $0x2150] sm:$0xff]
    %v1832 = vld [vmem:[#allocation11 + $0x2158] sm:$0xff]
    %v1833 = vld [vmem:[#allocation11 + $0x2160] sm:$0xff]
    %v1834 = vld [vmem:[#allocation11 + $0x2168] sm:$0xff]
    %v1835 = vld [vmem:[#allocation11 + $0x2170] sm:$0xff]
    %v1836 = vld [vmem:[#allocation11 + $0x2178] sm:$0xff]
    %v1837 = vld [vmem:[#allocation11 + $0x2180] sm:$0xff]
    %v1838 = vld [vmem:[#allocation11 + $0x2188] sm:$0xff]
    %v1839 = vld [vmem:[#allocation11 + $0x2190] sm:$0xff]
    %v1840 = vld [vmem:[#allocation11 + $0x2198] sm:$0xff]
    %v1841 = vld [vmem:[#allocation11 + $0x21a0] sm:$0xff]
    %v1842 = vld [vmem:[#allocation11 + $0x21a8] sm:$0xff]
    %v1843 = vld [vmem:[#allocation11 + $0x21b0] sm:$0xff]
    %v1844 = vld [vmem:[#allocation11 + $0x21b8] sm:$0xff]
    %v1845 = vld [vmem:[#allocation11 + $0x21c0] sm:$0xff]
    %v1846 = vld [vmem:[#allocation11 + $0x21c8] sm:$0xff]
    %v1847 = vld [vmem:[#allocation11 + $0x21d0] sm:$0xff]
    %v1848 = vld [vmem:[#allocation11 + $0x21d8] sm:$0xff]
    %v1849 = vld [vmem:[#allocation11 + $0x21e0] sm:$0xff]
    %v1850 = vld [vmem:[#allocation11 + $0x21e8] sm:$0xff]
    %v1851 = vld [vmem:[#allocation11 + $0x21f0] sm:$0xff]
    %v1852 = vld [vmem:[#allocation11 + $0x21f8] sm:$0xff]
    %v1853 = vld [vmem:[#allocation11 + $0x2200] sm:$0xff]
    %v1854 = vld [vmem:[#allocation11 + $0x2208] sm:$0xff]
    %v1855 = vld [vmem:[#allocation11 + $0x2210] sm:$0xff]
    %v1856 = vld [vmem:[#allocation11 + $0x2218] sm:$0xff]
    %v1857 = vld [vmem:[#allocation11 + $0x2220] sm:$0xff]
    %v1858 = vld [vmem:[#allocation11 + $0x2228] sm:$0xff]
    %v1859 = vld [vmem:[#allocation11 + $0x2230] sm:$0xff]
    %v1860 = vld [vmem:[#allocation11 + $0x2238] sm:$0xff]
    %v1861 = vld [vmem:[#allocation11 + $0x2240] sm:$0xff]
    %v1862 = vld [vmem:[#allocation11 + $0x2248] sm:$0xff]
    %v1863 = vld [vmem:[#allocation11 + $0x2250] sm:$0xff]
    %v1864 = vld [vmem:[#allocation11 + $0x2258] sm:$0xff]
    %v1865 = vld [vmem:[#allocation11 + $0x2260] sm:$0xff]
    %v1866 = vld [vmem:[#allocation11 + $0x2268] sm:$0xff]
    %v1867 = vld [vmem:[#allocation11 + $0x2270] sm:$0xff]
    %v1868 = vld [vmem:[#allocation11 + $0x2278] sm:$0xff]
    %v1869 = vld [vmem:[#allocation11 + $0x2280] sm:$0xff]
    %v1870 = vld [vmem:[#allocation11 + $0x2288] sm:$0xff]
    %v1871 = vld [vmem:[#allocation11 + $0x2290] sm:$0xff]
    %v1872 = vld [vmem:[#allocation11 + $0x2298] sm:$0xff]
    %v1873 = vld [vmem:[#allocation11 + $0x22a0] sm:$0xff]
    %v1874 = vld [vmem:[#allocation11 + $0x22a8] sm:$0xff]
    %v1875 = vld [vmem:[#allocation11 + $0x22b0] sm:$0xff]
    %v1876 = vld [vmem:[#allocation11 + $0x22b8] sm:$0xff]
    %v1877 = vld [vmem:[#allocation11 + $0x22c0] sm:$0xff]
    %v1878 = vld [vmem:[#allocation11 + $0x22c8] sm:$0xff]
    %v1879 = vld [vmem:[#allocation11 + $0x22d0] sm:$0xff]
    %v1880 = vld [vmem:[#allocation11 + $0x22d8] sm:$0xff]
    %v1881 = vld [vmem:[#allocation11 + $0x22e0] sm:$0xff]
    %v1882 = vld [vmem:[#allocation11 + $0x22e8] sm:$0xff]
    %v1883 = vld [vmem:[#allocation11 + $0x22f0] sm:$0xff]
    %v1884 = vld [vmem:[#allocation11 + $0x22f8] sm:$0xff]
    %v1885 = vld [vmem:[#allocation11 + $0x2300] sm:$0xff]
    %v1886 = vld [vmem:[#allocation11 + $0x2308] sm:$0xff]
    %v1887 = vld [vmem:[#allocation11 + $0x2310] sm:$0xff]
    %v1888 = vld [vmem:[#allocation11 + $0x2318] sm:$0xff]
    %v1889 = vld [vmem:[#allocation11 + $0x2320] sm:$0xff]
    %v1890 = vld [vmem:[#allocation11 + $0x2328] sm:$0xff]
    %v1891 = vld [vmem:[#allocation11 + $0x2330] sm:$0xff]
    %v1892 = vld [vmem:[#allocation11 + $0x2338] sm:$0xff]
    %v1893 = vld [vmem:[#allocation11 + $0x2340] sm:$0xff]
    %v1894 = vld [vmem:[#allocation11 + $0x2348] sm:$0xff]
    %v1895 = vld [vmem:[#allocation11 + $0x2350] sm:$0xff]
    %v1896 = vld [vmem:[#allocation11 + $0x2358] sm:$0xff]
    %v1897 = vld [vmem:[#allocation11 + $0x2360] sm:$0xff]
    %v1898 = vld [vmem:[#allocation11 + $0x2368] sm:$0xff]
    %v1899 = vld [vmem:[#allocation11 + $0x2370] sm:$0xff]
    %v1900 = vld [vmem:[#allocation11 + $0x2378] sm:$0xff]
    %v1901 = vld [vmem:[#allocation11 + $0x2380] sm:$0xff]
    %v1902 = vld [vmem:[#allocation11 + $0x2388] sm:$0xff]
    %v1903 = vld [vmem:[#allocation11 + $0x2390] sm:$0xff]
    %v1904 = vld [vmem:[#allocation11 + $0x2398] sm:$0xff]
    %v1905 = vld [vmem:[#allocation11 + $0x23a0] sm:$0xff]
    %v1906 = vld [vmem:[#allocation11 + $0x23a8] sm:$0xff]
    %v1907 = vld [vmem:[#allocation11 + $0x23b0] sm:$0xff]
    %v1908 = vld [vmem:[#allocation11 + $0x23b8] sm:$0xff]
    %v1909 = vld [vmem:[#allocation11 + $0x23c0] sm:$0xff]
    %v1910 = vld [vmem:[#allocation11 + $0x23c8] sm:$0xff]
    %v1911 = vld [vmem:[#allocation11 + $0x23d0] sm:$0xff]
    %v1912 = vld [vmem:[#allocation11 + $0x23d8] sm:$0xff]
    %v1913 = vld [vmem:[#allocation11 + $0x23e0] sm:$0xff]
    %v1914 = vld [vmem:[#allocation11 + $0x23e8] sm:$0xff]
    %v1915 = vld [vmem:[#allocation11 + $0x23f0] sm:$0xff]
    %v1916 = vld [vmem:[#allocation11 + $0x23f8] sm:$0xff]
    %v1917 = vld [vmem:[#allocation11 + $0x2400] sm:$0xff]
    %v1918 = vld [vmem:[#allocation11 + $0x2408] sm:$0xff]
    %v1919 = vld [vmem:[#allocation11 + $0x2410] sm:$0xff]
    %v1920 = vld [vmem:[#allocation11 + $0x2418] sm:$0xff]
    %v1921 = vld [vmem:[#allocation11 + $0x2420] sm:$0xff]
    %v1922 = vld [vmem:[#allocation11 + $0x2428] sm:$0xff]
    %v1923 = vld [vmem:[#allocation11 + $0x2430] sm:$0xff]
    %v1924 = vld [vmem:[#allocation11 + $0x2438] sm:$0xff]
    %v1925 = vld [vmem:[#allocation11 + $0x2440] sm:$0xff]
    %v1926 = vld [vmem:[#allocation11 + $0x2448] sm:$0xff]
    %v1927 = vld [vmem:[#allocation11 + $0x2450] sm:$0xff]
    %v1928 = vld [vmem:[#allocation11 + $0x2458] sm:$0xff]
    %v1929 = vld [vmem:[#allocation11 + $0x2460] sm:$0xff]
    %v1930 = vld [vmem:[#allocation11 + $0x2468] sm:$0xff]
    %v1931 = vld [vmem:[#allocation11 + $0x2470] sm:$0xff]
    %v1932 = vld [vmem:[#allocation11 + $0x2478] sm:$0xff]
    %v1933 = vld [vmem:[#allocation11 + $0x2480] sm:$0xff]
    %v1934 = vld [vmem:[#allocation11 + $0x2488] sm:$0xff]
    %v1935 = vld [vmem:[#allocation11 + $0x2490] sm:$0xff]
    %v1936 = vld [vmem:[#allocation11 + $0x2498] sm:$0xff]
    %v1937 = vld [vmem:[#allocation11 + $0x24a0] sm:$0xff]
    %v1938 = vld [vmem:[#allocation11 + $0x24a8] sm:$0xff]
    %v1939 = vld [vmem:[#allocation11 + $0x24b0] sm:$0xff]
    %v1940 = vld [vmem:[#allocation11 + $0x24b8] sm:$0xff]
    %v1941 = vld [vmem:[#allocation11 + $0x24c0] sm:$0xff]
    %v1942 = vld [vmem:[#allocation11 + $0x24c8] sm:$0xff]
    %v1943 = vld [vmem:[#allocation11 + $0x24d0] sm:$0xff]
    %v1944 = vld [vmem:[#allocation11 + $0x24d8] sm:$0xff]
    %v1945 = vld [vmem:[#allocation11 + $0x24e0] sm:$0xff]
    %v1946 = vld [vmem:[#allocation11 + $0x24e8] sm:$0xff]
    %v1947 = vld [vmem:[#allocation11 + $0x24f0] sm:$0xff]
    %v1948 = vld [vmem:[#allocation11 + $0x24f8] sm:$0xff]
    %v1949 = vld [vmem:[#allocation11 + $0x2500] sm:$0xff]
    %v1950 = vld [vmem:[#allocation11 + $0x2508] sm:$0xff]
    %v1951 = vld [vmem:[#allocation11 + $0x2510] sm:$0xff]
    %v1952 = vld [vmem:[#allocation11 + $0x2518] sm:$0xff]
    %v1953 = vld [vmem:[#allocation11 + $0x2520] sm:$0xff]
    %v1954 = vld [vmem:[#allocation11 + $0x2528] sm:$0xff]
    %v1955 = vld [vmem:[#allocation11 + $0x2530] sm:$0xff]
    %v1956 = vld [vmem:[#allocation11 + $0x2538] sm:$0xff]
    %v1957 = vld [vmem:[#allocation11 + $0x2540] sm:$0xff]
    %v1958 = vld [vmem:[#allocation11 + $0x2548] sm:$0xff]
    %v1959 = vld [vmem:[#allocation11 + $0x2550] sm:$0xff]
    %v1960 = vld [vmem:[#allocation11 + $0x2558] sm:$0xff]
    %v1961 = vld [vmem:[#allocation11 + $0x2560] sm:$0xff]
    %v1962 = vld [vmem:[#allocation11 + $0x2568] sm:$0xff]
    %v1963 = vld [vmem:[#allocation11 + $0x2570] sm:$0xff]
    %v1964 = vld [vmem:[#allocation11 + $0x2578] sm:$0xff]
    %v1965 = vld [vmem:[#allocation11 + $0x2580] sm:$0xff]
    %v1966 = vld [vmem:[#allocation11 + $0x2588] sm:$0xff]
    %v1967 = vld [vmem:[#allocation11 + $0x2590] sm:$0xff]
    %v1968 = vld [vmem:[#allocation11 + $0x2598] sm:$0xff]
    %v1969 = vld [vmem:[#allocation11 + $0x25a0] sm:$0xff]
    %v1970 = vld [vmem:[#allocation11 + $0x25a8] sm:$0xff]
    %v1971 = vld [vmem:[#allocation11 + $0x25b0] sm:$0xff]
    %v1972 = vld [vmem:[#allocation11 + $0x25b8] sm:$0xff]
    %v1973 = vld [vmem:[#allocation11 + $0x25c0] sm:$0xff]
    %v1974 = vld [vmem:[#allocation11 + $0x25c8] sm:$0xff]
    %v1975 = vld [vmem:[#allocation11 + $0x25d0] sm:$0xff]
    %v1976 = vld [vmem:[#allocation11 + $0x25d8] sm:$0xff]
    %v1977 = vld [vmem:[#allocation11 + $0x25e0] sm:$0xff]
    %v1978 = vld [vmem:[#allocation11 + $0x25e8] sm:$0xff]
    %v1979 = vld [vmem:[#allocation11 + $0x25f0] sm:$0xff]
    %v1980 = vld [vmem:[#allocation11 + $0x25f8] sm:$0xff]
    %v1981 = vld [vmem:[#allocation11 + $0x2600] sm:$0xff]
    %v1982 = vld [vmem:[#allocation11 + $0x2608] sm:$0xff]
    %v1983 = vld [vmem:[#allocation11 + $0x2610] sm:$0xff]
    %v1984 = vld [vmem:[#allocation11 + $0x2618] sm:$0xff]
    %v1985 = vld [vmem:[#allocation11 + $0x2620] sm:$0xff]
    %v1986 = vld [vmem:[#allocation11 + $0x2628] sm:$0xff]
    %v1987 = vld [vmem:[#allocation11 + $0x2630] sm:$0xff]
    %v1988 = vld [vmem:[#allocation11 + $0x2638] sm:$0xff]
    %v1989 = vld [vmem:[#allocation11 + $0x2640] sm:$0xff]
    %v1990 = vld [vmem:[#allocation11 + $0x2648] sm:$0xff]
    %v1991 = vld [vmem:[#allocation11 + $0x2650] sm:$0xff]
    %v1992 = vld [vmem:[#allocation11 + $0x2658] sm:$0xff]
    %v1993 = vld [vmem:[#allocation11 + $0x2660] sm:$0xff]
    %v1994 = vld [vmem:[#allocation11 + $0x2668] sm:$0xff]
    %v1995 = vld [vmem:[#allocation11 + $0x2670] sm:$0xff]
    %v1996 = vld [vmem:[#allocation11 + $0x2678] sm:$0xff]
    %v1997 = vld [vmem:[#allocation11 + $0x2680] sm:$0xff]
    %v1998 = vld [vmem:[#allocation11 + $0x2688] sm:$0xff]
    %v1999 = vld [vmem:[#allocation11 + $0x2690] sm:$0xff]
    %v2000 = vld [vmem:[#allocation11 + $0x2698] sm:$0xff]
    %v2001 = vld [vmem:[#allocation11 + $0x26a0] sm:$0xff]
    %v2002 = vld [vmem:[#allocation11 + $0x26a8] sm:$0xff]
    %v2003 = vld [vmem:[#allocation11 + $0x26b0] sm:$0xff]
    %v2004 = vld [vmem:[#allocation11 + $0x26b8] sm:$0xff]
    %v2005 = vld [vmem:[#allocation11 + $0x26c0] sm:$0xff]
    %v2006 = vld [vmem:[#allocation11 + $0x26c8] sm:$0xff]
    %v2007 = vld [vmem:[#allocation11 + $0x26d0] sm:$0xff]
    %v2008 = vld [vmem:[#allocation11 + $0x26d8] sm:$0xff]
    %v2009 = vld [vmem:[#allocation11 + $0x26e0] sm:$0xff]
    %v2010 = vld [vmem:[#allocation11 + $0x26e8] sm:$0xff]
    %v2011 = vld [vmem:[#allocation11 + $0x26f0] sm:$0xff]
    %v2012 = vld [vmem:[#allocation11 + $0x26f8] sm:$0xff]
    %v2013 = vld [vmem:[#allocation11 + $0x2700] sm:$0xff]
    %v2014 = vld [vmem:[#allocation11 + $0x2708] sm:$0xff]
    %v2015 = vld [vmem:[#allocation11 + $0x2710] sm:$0xff]
    %v2016 = vld [vmem:[#allocation11 + $0x2718] sm:$0xff]
    %v2017 = vld [vmem:[#allocation11 + $0x2720] sm:$0xff]
    %v2018 = vld [vmem:[#allocation11 + $0x2728] sm:$0xff]
    %v2019 = vld [vmem:[#allocation11 + $0x2730] sm:$0xff]
    %v2020 = vld [vmem:[#allocation11 + $0x2738] sm:$0xff]
    %v2021 = vld [vmem:[#allocation11 + $0x2740] sm:$0xff]
    %v2022 = vld [vmem:[#allocation11 + $0x2748] sm:$0xff]
    %v2023 = vld [vmem:[#allocation11 + $0x2750] sm:$0xff]
    %v2024 = vld [vmem:[#allocation11 + $0x2758] sm:$0xff]
    %v2025 = vld [vmem:[#allocation11 + $0x2760] sm:$0xff]
    %v2026 = vld [vmem:[#allocation11 + $0x2768] sm:$0xff]
    %v2027 = vld [vmem:[#allocation11 + $0x2770] sm:$0xff]
    %v2028 = vld [vmem:[#allocation11 + $0x2778] sm:$0xff]
    %v2029 = vld [vmem:[#allocation11 + $0x2780] sm:$0xff]
    %v2030 = vld [vmem:[#allocation11 + $0x2788] sm:$0xff]
    %v2031 = vld [vmem:[#allocation11 + $0x2790] sm:$0xff]
    %v2032 = vld [vmem:[#allocation11 + $0x2798] sm:$0xff]
    %v2033 = vld [vmem:[#allocation11 + $0x27a0] sm:$0xff]
    %v2034 = vld [vmem:[#allocation11 + $0x27a8] sm:$0xff]
    %v2035 = vld [vmem:[#allocation11 + $0x27b0] sm:$0xff]
    %v2036 = vld [vmem:[#allocation11 + $0x27b8] sm:$0xff]
    %v2037 = vld [vmem:[#allocation11 + $0x27c0] sm:$0xff]
    %v2038 = vld [vmem:[#allocation11 + $0x27c8] sm:$0xff]
    %v2039 = vld [vmem:[#allocation11 + $0x27d0] sm:$0xff]
    %v2040 = vld [vmem:[#allocation11 + $0x27d8] sm:$0xff]
    %v2041 = vld [vmem:[#allocation11 + $0x27e0] sm:$0xff]
    %v2042 = vld [vmem:[#allocation11 + $0x27e8] sm:$0xff]
    %v2043 = vld [vmem:[#allocation11 + $0x27f0] sm:$0xff]
    %v2044 = vld [vmem:[#allocation11 + $0x27f8] sm:$0xff]
    %v2045 = vld [vmem:[#allocation11 + $0x2800] sm:$0xff]
    %v2046 = vld [vmem:[#allocation11 + $0x2808] sm:$0xff]
    %v2047 = vld [vmem:[#allocation11 + $0x2810] sm:$0xff]
    %v2048 = vld [vmem:[#allocation11 + $0x2818] sm:$0xff]
    %v2049 = vld [vmem:[#allocation11 + $0x2820] sm:$0xff]
    %v2050 = vld [vmem:[#allocation11 + $0x2828] sm:$0xff]
    %v2051 = vld [vmem:[#allocation11 + $0x2830] sm:$0xff]
    %v2052 = vld [vmem:[#allocation11 + $0x2838] sm:$0xff]
    %v2053 = vld [vmem:[#allocation11 + $0x2840] sm:$0xff]
    %v2054 = vld [vmem:[#allocation11 + $0x2848] sm:$0xff]
    %v2055 = vld [vmem:[#allocation11 + $0x2850] sm:$0xff]
    %v2056 = vld [vmem:[#allocation11 + $0x2858] sm:$0xff]
    %v2057 = vld [vmem:[#allocation11 + $0x2860] sm:$0xff]
    %v2058 = vld [vmem:[#allocation11 + $0x2868] sm:$0xff]
    %v2059 = vld [vmem:[#allocation11 + $0x2870] sm:$0xff]
    %v2060 = vld [vmem:[#allocation11 + $0x2878] sm:$0xff]
    %v2061 = vld [vmem:[#allocation11 + $0x2880] sm:$0xff]
    %v2062 = vld [vmem:[#allocation11 + $0x2888] sm:$0xff]
    %v2063 = vld [vmem:[#allocation11 + $0x2890] sm:$0xff]
    %v2064 = vld [vmem:[#allocation11 + $0x2898] sm:$0xff]
    %v2065 = vld [vmem:[#allocation12] sm:$0xff]
    %v2066 = vld [vmem:[#allocation12 + $0x8] sm:$0x1f]
    %v2069 = vperm.slane %v2065, 0
    %v2070 = vperm.slane %v2065, 1
    %v2071 = vperm.slane %v2065, 2
    %v2072 = vperm.slane %v2065, 3
    %v2073 = vperm.slane %v2065, 4
    %v2074 = vperm.slane %v2065, 5
    %v2075 = vperm.slane %v2065, 6
    %v2076 = vperm.slane %v2065, 7
    %v2077 = vperm.slane %v2066, 0
    %v2078 = vperm.slane %v2066, 1
    %v2079 = vperm.slane %v2066, 2
    %v2080 = vperm.slane %v2066, 3
    %v2081 = vperm.slane %v2066, 4
    %v2096 = vsel %vm542, %v764, 0
    %2098 = vmatpush.msra.mxu0 %v960
    %2099 = vmatpush.msra.mxu0 %v947
    %2100 = vmatpush.msra.mxu0 %v934
    %2101 = vmatpush.msra.mxu0 %v921
    %2102 = vmatpush.msra.mxu0 %v908
    %2103 = vmatpush.msra.mxu0 %v895
    %2104 = vmatpush.msra.mxu0 %v882
    %2105 = vmatpush.msra.mxu0 %v869
    %2106 = vmatpush.msra.mxu0 %v856
    %2107 = vmatpush.msra.mxu0 %v843
    %2108 = vmatpush.msra.mxu0 %v830
    %2109 = vmatpush.msra.mxu0 %v817
    %2110 = vmatpush.msra.mxu0 %v804
    %2111 = vmatpush.msra.mxu0 %v791
    %2112 = vmatpush.msra.mxu0 %v778
    %2113 = vmatpush.msra.mxu0 %v765
    %2114 = vmatmul.f32.gmra.mxu0 %v758
    %v2115 = vpop.f32.mrf.mxu0
    %v2116 = vadd.f32 %v2069, %v2115
    %2117 = vdwg.mxu0
    %2118 = vmatpush.msra.mxu0 %v1168
    %2119 = vmatpush.msra.mxu0 %v1155
    %2120 = vmatpush.msra.mxu0 %v1142
    %2121 = vmatpush.msra.mxu0 %v1129
    %2122 = vmatpush.msra.mxu0 %v1116
    %2123 = vmatpush.msra.mxu0 %v1103
    %2124 = vmatpush.msra.mxu0 %v1090
    %2125 = vmatpush.msra.mxu0 %v1077
    %2126 = vmatpush.msra.mxu0 %v1064
    %2127 = vmatpush.msra.mxu0 %v1051
    %2128 = vmatpush.msra.mxu0 %v1038
    %2129 = vmatpush.msra.mxu0 %v1025
    %2130 = vmatpush.msra.mxu0 %v1012
    %2131 = vmatpush.msra.mxu0 %v999
    %2132 = vmatpush.msra.mxu0 %v986
    %2133 = vmatpush.msra.mxu0 %v973
    %2134 = vmatmul.f32.gmra.mxu0 %v759
    %v2135 = vpop.f32.mrf.mxu0
    %v2136 = vadd.f32 %v2116, %v2135
    %2137 = vdwg.mxu0
    %2138 = vmatpush.msra.mxu0 %v1376
    %2139 = vmatpush.msra.mxu0 %v1363
    %2140 = vmatpush.msra.mxu0 %v1350
    %2141 = vmatpush.msra.mxu0 %v1337
    %2142 = vmatpush.msra.mxu0 %v1324
    %2143 = vmatpush.msra.mxu0 %v1311
    %2144 = vmatpush.msra.mxu0 %v1298
    %2145 = vmatpush.msra.mxu0 %v1285
    %2146 = vmatpush.msra.mxu0 %v1272
    %2147 = vmatpush.msra.mxu0 %v1259
    %2148 = vmatpush.msra.mxu0 %v1246
    %2149 = vmatpush.msra.mxu0 %v1233
    %2150 = vmatpush.msra.mxu0 %v1220
    %2151 = vmatpush.msra.mxu0 %v1207
    %2152 = vmatpush.msra.mxu0 %v1194
    %2153 = vmatpush.msra.mxu0 %v1181
    %2154 = vmatmul.f32.gmra.mxu0 %v760
    %v2155 = vpop.f32.mrf.mxu0
    %v2156 = vadd.f32 %v2136, %v2155
    %2157 = vdwg.mxu0
    %2158 = vmatpush.msra.mxu0 %v1584
    %2159 = vmatpush.msra.mxu0 %v1571
    %2160 = vmatpush.msra.mxu0 %v1558
    %2161 = vmatpush.msra.mxu0 %v1545
    %2162 = vmatpush.msra.mxu0 %v1532
    %2163 = vmatpush.msra.mxu0 %v1519
    %2164 = vmatpush.msra.mxu0 %v1506
    %2165 = vmatpush.msra.mxu0 %v1493
    %2166 = vmatpush.msra.mxu0 %v1480
    %2167 = vmatpush.msra.mxu0 %v1467
    %2168 = vmatpush.msra.mxu0 %v1454
    %2169 = vmatpush.msra.mxu0 %v1441
    %2170 = vmatpush.msra.mxu0 %v1428
    %2171 = vmatpush.msra.mxu0 %v1415
    %2172 = vmatpush.msra.mxu0 %v1402
    %2173 = vmatpush.msra.mxu0 %v1389
    %2174 = vmatmul.f32.gmra.mxu0 %v761
    %v2175 = vpop.f32.mrf.mxu0
    %v2176 = vadd.f32 %v2156, %v2175
    %2177 = vdwg.mxu0
    %2178 = vmatpush.msra.mxu0 %v1792
    %2179 = vmatpush.msra.mxu0 %v1779
    %2180 = vmatpush.msra.mxu0 %v1766
    %2181 = vmatpush.msra.mxu0 %v1753
    %2182 = vmatpush.msra.mxu0 %v1740
    %2183 = vmatpush.msra.mxu0 %v1727
    %2184 = vmatpush.msra.mxu0 %v1714
    %2185 = vmatpush.msra.mxu0 %v1701
    %2186 = vmatpush.msra.mxu0 %v1688
    %2187 = vmatpush.msra.mxu0 %v1675
    %2188 = vmatpush.msra.mxu0 %v1662
    %2189 = vmatpush.msra.mxu0 %v1649
    %2190 = vmatpush.msra.mxu0 %v1636
    %2191 = vmatpush.msra.mxu0 %v1623
    %2192 = vmatpush.msra.mxu0 %v1610
    %2193 = vmatpush.msra.mxu0 %v1597
    %2194 = vmatmul.f32.gmra.mxu0 %v762
    %v2195 = vpop.f32.mrf.mxu0
    %v2196 = vadd.f32 %v2176, %v2195
    %2197 = vdwg.mxu0
    %2198 = vmatpush.msra.mxu0 %v2000
    %2199 = vmatpush.msra.mxu0 %v1987
    %2200 = vmatpush.msra.mxu0 %v1974
    %2201 = vmatpush.msra.mxu0 %v1961
    %2202 = vmatpush.msra.mxu0 %v1948
    %2203 = vmatpush.msra.mxu0 %v1935
    %2204 = vmatpush.msra.mxu0 %v1922
    %2205 = vmatpush.msra.mxu0 %v1909
    %2206 = vmatpush.msra.mxu0 %v1896
    %2207 = vmatpush.msra.mxu0 %v1883
    %2208 = vmatpush.msra.mxu0 %v1870
    %2209 = vmatpush.msra.mxu0 %v1857
    %2210 = vmatpush.msra.mxu0 %v1844
    %2211 = vmatpush.msra.mxu0 %v1831
    %2212 = vmatpush.msra.mxu0 %v1818
    %2213 = vmatpush.msra.mxu0 %v1805
    %2214 = vmatmul.f32.gmra.mxu0 %v763
    %v2215 = vpop.f32.mrf.mxu0
    %v2216 = vadd.f32 %v2196, %v2215
    %2217 = vdwg.mxu0
    %2218 = vmatpush.msra.mxu0 0.0
    %2219 = vmatpush.msra.mxu0 0.0
    %2220 = vmatpush.msra.mxu0 0.0
    %2221 = vmatpush.msra.mxu0 0.0
    %2222 = vmatpush.msra.mxu0 0.0
    %2223 = vmatpush.msra.mxu0 0.0
    %2224 = vmatpush.msra.mxu0 0.0
    %2225 = vmatpush.msra.mxu0 0.0
    %2226 = vmatpush.msra.mxu0 0.0
    %2227 = vmatpush.msra.mxu0 0.0
    %2228 = vmatpush.msra.mxu0 0.0
    %2229 = vmatpush.msra.mxu0 0.0
    %2230 = vmatpush.msra.mxu0 %v2052
    %2231 = vmatpush.msra.mxu0 %v2039
    %2232 = vmatpush.msra.mxu0 %v2026
    %2233 = vmatpush.msra.mxu0 %v2013
    %2234 = vmatmul.f32.gmra.mxu0 %v2096
    %v2235 = vpop.f32.mrf.mxu0
    %v2236 = vadd.f32 %v2216, %v2235
    %2237 = vdwg.mxu0
    %2238 = vmatpush.msra.mxu0 %v961
    %2239 = vmatpush.msra.mxu0 %v948
    %2240 = vmatpush.msra.mxu0 %v935
    %2241 = vmatpush.msra.mxu0 %v922
    %2242 = vmatpush.msra.mxu0 %v909
    %2243 = vmatpush.msra.mxu0 %v896
    %2244 = vmatpush.msra.mxu0 %v883
    %2245 = vmatpush.msra.mxu0 %v870
    %2246 = vmatpush.msra.mxu0 %v857
    %2247 = vmatpush.msra.mxu0 %v844
    %2248 = vmatpush.msra.mxu0 %v831
    %2249 = vmatpush.msra.mxu0 %v818
    %2250 = vmatpush.msra.mxu0 %v805
    %2251 = vmatpush.msra.mxu0 %v792
    %2252 = vmatpush.msra.mxu0 %v779
    %2253 = vmatpush.msra.mxu0 %v766
    %2254 = vmatmul.f32.gmra.mxu0 %v758
    %v2255 = vpop.f32.mrf.mxu0
    %v2256 = vadd.f32 %v2070, %v2255
    %2257 = vdwg.mxu0
    %2258 = vmatpush.msra.mxu0 %v1169
    %2259 = vmatpush.msra.mxu0 %v1156
    %2260 = vmatpush.msra.mxu0 %v1143
    %2261 = vmatpush.msra.mxu0 %v1130
    %2262 = vmatpush.msra.mxu0 %v1117
    %2263 = vmatpush.msra.mxu0 %v1104
    %2264 = vmatpush.msra.mxu0 %v1091
    %2265 = vmatpush.msra.mxu0 %v1078
    %2266 = vmatpush.msra.mxu0 %v1065
    %2267 = vmatpush.msra.mxu0 %v1052
    %2268 = vmatpush.msra.mxu0 %v1039
    %2269 = vmatpush.msra.mxu0 %v1026
    %2270 = vmatpush.msra.mxu0 %v1013
    %2271 = vmatpush.msra.mxu0 %v1000
    %2272 = vmatpush.msra.mxu0 %v987
    %2273 = vmatpush.msra.mxu0 %v974
    %2274 = vmatmul.f32.gmra.mxu0 %v759
    %v2275 = vpop.f32.mrf.mxu0
    %v2276 = vadd.f32 %v2256, %v2275
    %2277 = vdwg.mxu0
    %2278 = vmatpush.msra.mxu0 %v1377
    %2279 = vmatpush.msra.mxu0 %v1364
    %2280 = vmatpush.msra.mxu0 %v1351
    %2281 = vmatpush.msra.mxu0 %v1338
    %2282 = vmatpush.msra.mxu0 %v1325
    %2283 = vmatpush.msra.mxu0 %v1312
    %2284 = vmatpush.msra.mxu0 %v1299
    %2285 = vmatpush.msra.mxu0 %v1286
    %2286 = vmatpush.msra.mxu0 %v1273
    %2287 = vmatpush.msra.mxu0 %v1260
    %2288 = vmatpush.msra.mxu0 %v1247
    %2289 = vmatpush.msra.mxu0 %v1234
    %2290 = vmatpush.msra.mxu0 %v1221
    %2291 = vmatpush.msra.mxu0 %v1208
    %2292 = vmatpush.msra.mxu0 %v1195
    %2293 = vmatpush.msra.mxu0 %v1182
    %2294 = vmatmul.f32.gmra.mxu0 %v760
    %v2295 = vpop.f32.mrf.mxu0
    %v2296 = vadd.f32 %v2276, %v2295
    %2297 = vdwg.mxu0
    %2298 = vmatpush.msra.mxu0 %v1585
    %2299 = vmatpush.msra.mxu0 %v1572
    %2300 = vmatpush.msra.mxu0 %v1559
    %2301 = vmatpush.msra.mxu0 %v1546
    %2302 = vmatpush.msra.mxu0 %v1533
    %2303 = vmatpush.msra.mxu0 %v1520
    %2304 = vmatpush.msra.mxu0 %v1507
    %2305 = vmatpush.msra.mxu0 %v1494
    %2306 = vmatpush.msra.mxu0 %v1481
    %2307 = vmatpush.msra.mxu0 %v1468
    %2308 = vmatpush.msra.mxu0 %v1455
    %2309 = vmatpush.msra.mxu0 %v1442
    %2310 = vmatpush.msra.mxu0 %v1429
    %2311 = vmatpush.msra.mxu0 %v1416
    %2312 = vmatpush.msra.mxu0 %v1403
    %2313 = vmatpush.msra.mxu0 %v1390
    %2314 = vmatmul.f32.gmra.mxu0 %v761
    %v2315 = vpop.f32.mrf.mxu0
    %v2316 = vadd.f32 %v2296, %v2315
    %2317 = vdwg.mxu0
    %2318 = vmatpush.msra.mxu0 %v1793
    %2319 = vmatpush.msra.mxu0 %v1780
    %2320 = vmatpush.msra.mxu0 %v1767
    %2321 = vmatpush.msra.mxu0 %v1754
    %2322 = vmatpush.msra.mxu0 %v1741
    %2323 = vmatpush.msra.mxu0 %v1728
    %2324 = vmatpush.msra.mxu0 %v1715
    %2325 = vmatpush.msra.mxu0 %v1702
    %2326 = vmatpush.msra.mxu0 %v1689
    %2327 = vmatpush.msra.mxu0 %v1676
    %2328 = vmatpush.msra.mxu0 %v1663
    %2329 = vmatpush.msra.mxu0 %v1650
    %2330 = vmatpush.msra.mxu0 %v1637
    %2331 = vmatpush.msra.mxu0 %v1624
    %2332 = vmatpush.msra.mxu0 %v1611
    %2333 = vmatpush.msra.mxu0 %v1598
    %2334 = vmatmul.f32.gmra.mxu0 %v762
    %v2335 = vpop.f32.mrf.mxu0
    %v2336 = vadd.f32 %v2316, %v2335
    %2337 = vdwg.mxu0
    %2338 = vmatpush.msra.mxu0 %v2001
    %2339 = vmatpush.msra.mxu0 %v1988
    %2340 = vmatpush.msra.mxu0 %v1975
    %2341 = vmatpush.msra.mxu0 %v1962
    %2342 = vmatpush.msra.mxu0 %v1949
    %2343 = vmatpush.msra.mxu0 %v1936
    %2344 = vmatpush.msra.mxu0 %v1923
    %2345 = vmatpush.msra.mxu0 %v1910
    %2346 = vmatpush.msra.mxu0 %v1897
    %2347 = vmatpush.msra.mxu0 %v1884
    %2348 = vmatpush.msra.mxu0 %v1871
    %2349 = vmatpush.msra.mxu0 %v1858
    %2350 = vmatpush.msra.mxu0 %v1845
    %2351 = vmatpush.msra.mxu0 %v1832
    %2352 = vmatpush.msra.mxu0 %v1819
    %2353 = vmatpush.msra.mxu0 %v1806
    %2354 = vmatmul.f32.gmra.mxu0 %v763
    %v2355 = vpop.f32.mrf.mxu0
    %v2356 = vadd.f32 %v2336, %v2355
    %2357 = vdwg.mxu0
    %2358 = vmatpush.msra.mxu0 0.0
    %2359 = vmatpush.msra.mxu0 0.0
    %2360 = vmatpush.msra.mxu0 0.0
    %2361 = vmatpush.msra.mxu0 0.0
    %2362 = vmatpush.msra.mxu0 0.0
    %2363 = vmatpush.msra.mxu0 0.0
    %2364 = vmatpush.msra.mxu0 0.0
    %2365 = vmatpush.msra.mxu0 0.0
    %2366 = vmatpush.msra.mxu0 0.0
    %2367 = vmatpush.msra.mxu0 0.0
    %2368 = vmatpush.msra.mxu0 0.0
    %2369 = vmatpush.msra.mxu0 0.0
    %2370 = vmatpush.msra.mxu0 %v2053
    %2371 = vmatpush.msra.mxu0 %v2040
    %2372 = vmatpush.msra.mxu0 %v2027
    %2373 = vmatpush.msra.mxu0 %v2014
    %2374 = vmatmul.f32.gmra.mxu0 %v2096
    %v2375 = vpop.f32.mrf.mxu0
    %v2376 = vadd.f32 %v2356, %v2375
    %2377 = vdwg.mxu0
    %2378 = vmatpush.msra.mxu0 %v962
    %2379 = vmatpush.msra.mxu0 %v949
    %2380 = vmatpush.msra.mxu0 %v936
    %2381 = vmatpush.msra.mxu0 %v923
    %2382 = vmatpush.msra.mxu0 %v910
    %2383 = vmatpush.msra.mxu0 %v897
    %2384 = vmatpush.msra.mxu0 %v884
    %2385 = vmatpush.msra.mxu0 %v871
    %2386 = vmatpush.msra.mxu0 %v858
    %2387 = vmatpush.msra.mxu0 %v845
    %2388 = vmatpush.msra.mxu0 %v832
    %2389 = vmatpush.msra.mxu0 %v819
    %2390 = vmatpush.msra.mxu0 %v806
    %2391 = vmatpush.msra.mxu0 %v793
    %2392 = vmatpush.msra.mxu0 %v780
    %2393 = vmatpush.msra.mxu0 %v767
    %2394 = vmatmul.f32.gmra.mxu0 %v758
    %v2395 = vpop.f32.mrf.mxu0
    %v2396 = vadd.f32 %v2071, %v2395
    %2397 = vdwg.mxu0
    %2398 = vmatpush.msra.mxu0 %v1170
    %2399 = vmatpush.msra.mxu0 %v1157
    %2400 = vmatpush.msra.mxu0 %v1144
    %2401 = vmatpush.msra.mxu0 %v1131
    %2402 = vmatpush.msra.mxu0 %v1118
    %2403 = vmatpush.msra.mxu0 %v1105
    %2404 = vmatpush.msra.mxu0 %v1092
    %2405 = vmatpush.msra.mxu0 %v1079
    %2406 = vmatpush.msra.mxu0 %v1066
    %2407 = vmatpush.msra.mxu0 %v1053
    %2408 = vmatpush.msra.mxu0 %v1040
    %2409 = vmatpush.msra.mxu0 %v1027
    %2410 = vmatpush.msra.mxu0 %v1014
    %2411 = vmatpush.msra.mxu0 %v1001
    %2412 = vmatpush.msra.mxu0 %v988
    %2413 = vmatpush.msra.mxu0 %v975
    %2414 = vmatmul.f32.gmra.mxu0 %v759
    %v2415 = vpop.f32.mrf.mxu0
    %v2416 = vadd.f32 %v2396, %v2415
    %2417 = vdwg.mxu0
    %2418 = vmatpush.msra.mxu0 %v1378
    %2419 = vmatpush.msra.mxu0 %v1365
    %2420 = vmatpush.msra.mxu0 %v1352
    %2421 = vmatpush.msra.mxu0 %v1339
    %2422 = vmatpush.msra.mxu0 %v1326
    %2423 = vmatpush.msra.mxu0 %v1313
    %2424 = vmatpush.msra.mxu0 %v1300
    %2425 = vmatpush.msra.mxu0 %v1287
    %2426 = vmatpush.msra.mxu0 %v1274
    %2427 = vmatpush.msra.mxu0 %v1261
    %2428 = vmatpush.msra.mxu0 %v1248
    %2429 = vmatpush.msra.mxu0 %v1235
    %2430 = vmatpush.msra.mxu0 %v1222
    %2431 = vmatpush.msra.mxu0 %v1209
    %2432 = vmatpush.msra.mxu0 %v1196
    %2433 = vmatpush.msra.mxu0 %v1183
    %2434 = vmatmul.f32.gmra.mxu0 %v760
    %v2435 = vpop.f32.mrf.mxu0
    %v2436 = vadd.f32 %v2416, %v2435
    %2437 = vdwg.mxu0
    %2438 = vmatpush.msra.mxu0 %v1586
    %2439 = vmatpush.msra.mxu0 %v1573
    %2440 = vmatpush.msra.mxu0 %v1560
    %2441 = vmatpush.msra.mxu0 %v1547
    %2442 = vmatpush.msra.mxu0 %v1534
    %2443 = vmatpush.msra.mxu0 %v1521
    %2444 = vmatpush.msra.mxu0 %v1508
    %2445 = vmatpush.msra.mxu0 %v1495
    %2446 = vmatpush.msra.mxu0 %v1482
    %2447 = vmatpush.msra.mxu0 %v1469
    %2448 = vmatpush.msra.mxu0 %v1456
    %2449 = vmatpush.msra.mxu0 %v1443
    %2450 = vmatpush.msra.mxu0 %v1430
    %2451 = vmatpush.msra.mxu0 %v1417
    %2452 = vmatpush.msra.mxu0 %v1404
    %2453 = vmatpush.msra.mxu0 %v1391
    %2454 = vmatmul.f32.gmra.mxu0 %v761
    %v2455 = vpop.f32.mrf.mxu0
    %v2456 = vadd.f32 %v2436, %v2455
    %2457 = vdwg.mxu0
    %2458 = vmatpush.msra.mxu0 %v1794
    %2459 = vmatpush.msra.mxu0 %v1781
    %2460 = vmatpush.msra.mxu0 %v1768
    %2461 = vmatpush.msra.mxu0 %v1755
    %2462 = vmatpush.msra.mxu0 %v1742
    %2463 = vmatpush.msra.mxu0 %v1729
    %2464 = vmatpush.msra.mxu0 %v1716
    %2465 = vmatpush.msra.mxu0 %v1703
    %2466 = vmatpush.msra.mxu0 %v1690
    %2467 = vmatpush.msra.mxu0 %v1677
    %2468 = vmatpush.msra.mxu0 %v1664
    %2469 = vmatpush.msra.mxu0 %v1651
    %2470 = vmatpush.msra.mxu0 %v1638
    %2471 = vmatpush.msra.mxu0 %v1625
    %2472 = vmatpush.msra.mxu0 %v1612
    %2473 = vmatpush.msra.mxu0 %v1599
    %2474 = vmatmul.f32.gmra.mxu0 %v762
    %v2475 = vpop.f32.mrf.mxu0
    %v2476 = vadd.f32 %v2456, %v2475
    %2477 = vdwg.mxu0
    %2478 = vmatpush.msra.mxu0 %v2002
    %2479 = vmatpush.msra.mxu0 %v1989
    %2480 = vmatpush.msra.mxu0 %v1976
    %2481 = vmatpush.msra.mxu0 %v1963
    %2482 = vmatpush.msra.mxu0 %v1950
    %2483 = vmatpush.msra.mxu0 %v1937
    %2484 = vmatpush.msra.mxu0 %v1924
    %2485 = vmatpush.msra.mxu0 %v1911
    %2486 = vmatpush.msra.mxu0 %v1898
    %2487 = vmatpush.msra.mxu0 %v1885
    %2488 = vmatpush.msra.mxu0 %v1872
    %2489 = vmatpush.msra.mxu0 %v1859
    %2490 = vmatpush.msra.mxu0 %v1846
    %2491 = vmatpush.msra.mxu0 %v1833
    %2492 = vmatpush.msra.mxu0 %v1820
    %2493 = vmatpush.msra.mxu0 %v1807
    %2494 = vmatmul.f32.gmra.mxu0 %v763
    %v2495 = vpop.f32.mrf.mxu0
    %v2496 = vadd.f32 %v2476, %v2495
    %2497 = vdwg.mxu0
    %2498 = vmatpush.msra.mxu0 0.0
    %2499 = vmatpush.msra.mxu0 0.0
    %2500 = vmatpush.msra.mxu0 0.0
    %2501 = vmatpush.msra.mxu0 0.0
    %2502 = vmatpush.msra.mxu0 0.0
    %2503 = vmatpush.msra.mxu0 0.0
    %2504 = vmatpush.msra.mxu0 0.0
    %2505 = vmatpush.msra.mxu0 0.0
    %2506 = vmatpush.msra.mxu0 0.0
    %2507 = vmatpush.msra.mxu0 0.0
    %2508 = vmatpush.msra.mxu0 0.0
    %2509 = vmatpush.msra.mxu0 0.0
    %2510 = vmatpush.msra.mxu0 %v2054
    %2511 = vmatpush.msra.mxu0 %v2041
    %2512 = vmatpush.msra.mxu0 %v2028
    %2513 = vmatpush.msra.mxu0 %v2015
    %2514 = vmatmul.f32.gmra.mxu0 %v2096
    %v2515 = vpop.f32.mrf.mxu0
    %v2516 = vadd.f32 %v2496, %v2515
    %2517 = vdwg.mxu0
    %2518 = vmatpush.msra.mxu0 %v963
    %2519 = vmatpush.msra.mxu0 %v950
    %2520 = vmatpush.msra.mxu0 %v937
    %2521 = vmatpush.msra.mxu0 %v924
    %2522 = vmatpush.msra.mxu0 %v911
    %2523 = vmatpush.msra.mxu0 %v898
    %2524 = vmatpush.msra.mxu0 %v885
    %2525 = vmatpush.msra.mxu0 %v872
    %2526 = vmatpush.msra.mxu0 %v859
    %2527 = vmatpush.msra.mxu0 %v846
    %2528 = vmatpush.msra.mxu0 %v833
    %2529 = vmatpush.msra.mxu0 %v820
    %2530 = vmatpush.msra.mxu0 %v807
    %2531 = vmatpush.msra.mxu0 %v794
    %2532 = vmatpush.msra.mxu0 %v781
    %2533 = vmatpush.msra.mxu0 %v768
    %2534 = vmatmul.f32.gmra.mxu0 %v758
    %v2535 = vpop.f32.mrf.mxu0
    %v2536 = vadd.f32 %v2072, %v2535
    %2537 = vdwg.mxu0
    %2538 = vmatpush.msra.mxu0 %v1171
    %2539 = vmatpush.msra.mxu0 %v1158
    %2540 = vmatpush.msra.mxu0 %v1145
    %2541 = vmatpush.msra.mxu0 %v1132
    %2542 = vmatpush.msra.mxu0 %v1119
    %2543 = vmatpush.msra.mxu0 %v1106
    %2544 = vmatpush.msra.mxu0 %v1093
    %2545 = vmatpush.msra.mxu0 %v1080
    %2546 = vmatpush.msra.mxu0 %v1067
    %2547 = vmatpush.msra.mxu0 %v1054
    %2548 = vmatpush.msra.mxu0 %v1041
    %2549 = vmatpush.msra.mxu0 %v1028
    %2550 = vmatpush.msra.mxu0 %v1015
    %2551 = vmatpush.msra.mxu0 %v1002
    %2552 = vmatpush.msra.mxu0 %v989
    %2553 = vmatpush.msra.mxu0 %v976
    %2554 = vmatmul.f32.gmra.mxu0 %v759
    %v2555 = vpop.f32.mrf.mxu0
    %v2556 = vadd.f32 %v2536, %v2555
    %2557 = vdwg.mxu0
    %2558 = vmatpush.msra.mxu0 %v1379
    %2559 = vmatpush.msra.mxu0 %v1366
    %2560 = vmatpush.msra.mxu0 %v1353
    %2561 = vmatpush.msra.mxu0 %v1340
    %2562 = vmatpush.msra.mxu0 %v1327
    %2563 = vmatpush.msra.mxu0 %v1314
    %2564 = vmatpush.msra.mxu0 %v1301
    %2565 = vmatpush.msra.mxu0 %v1288
    %2566 = vmatpush.msra.mxu0 %v1275
    %2567 = vmatpush.msra.mxu0 %v1262
    %2568 = vmatpush.msra.mxu0 %v1249
    %2569 = vmatpush.msra.mxu0 %v1236
    %2570 = vmatpush.msra.mxu0 %v1223
    %2571 = vmatpush.msra.mxu0 %v1210
    %2572 = vmatpush.msra.mxu0 %v1197
    %2573 = vmatpush.msra.mxu0 %v1184
    %2574 = vmatmul.f32.gmra.mxu0 %v760
    %v2575 = vpop.f32.mrf.mxu0
    %v2576 = vadd.f32 %v2556, %v2575
    %2577 = vdwg.mxu0
    %2578 = vmatpush.msra.mxu0 %v1587
    %2579 = vmatpush.msra.mxu0 %v1574
    %2580 = vmatpush.msra.mxu0 %v1561
    %2581 = vmatpush.msra.mxu0 %v1548
    %2582 = vmatpush.msra.mxu0 %v1535
    %2583 = vmatpush.msra.mxu0 %v1522
    %2584 = vmatpush.msra.mxu0 %v1509
    %2585 = vmatpush.msra.mxu0 %v1496
    %2586 = vmatpush.msra.mxu0 %v1483
    %2587 = vmatpush.msra.mxu0 %v1470
    %2588 = vmatpush.msra.mxu0 %v1457
    %2589 = vmatpush.msra.mxu0 %v1444
    %2590 = vmatpush.msra.mxu0 %v1431
    %2591 = vmatpush.msra.mxu0 %v1418
    %2592 = vmatpush.msra.mxu0 %v1405
    %2593 = vmatpush.msra.mxu0 %v1392
    %2594 = vmatmul.f32.gmra.mxu0 %v761
    %v2595 = vpop.f32.mrf.mxu0
    %v2596 = vadd.f32 %v2576, %v2595
    %2597 = vdwg.mxu0
    %2598 = vmatpush.msra.mxu0 %v1795
    %2599 = vmatpush.msra.mxu0 %v1782
    %2600 = vmatpush.msra.mxu0 %v1769
    %2601 = vmatpush.msra.mxu0 %v1756
    %2602 = vmatpush.msra.mxu0 %v1743
    %2603 = vmatpush.msra.mxu0 %v1730
    %2604 = vmatpush.msra.mxu0 %v1717
    %2605 = vmatpush.msra.mxu0 %v1704
    %2606 = vmatpush.msra.mxu0 %v1691
    %2607 = vmatpush.msra.mxu0 %v1678
    %2608 = vmatpush.msra.mxu0 %v1665
    %2609 = vmatpush.msra.mxu0 %v1652
    %2610 = vmatpush.msra.mxu0 %v1639
    %2611 = vmatpush.msra.mxu0 %v1626
    %2612 = vmatpush.msra.mxu0 %v1613
    %2613 = vmatpush.msra.mxu0 %v1600
    %2614 = vmatmul.f32.gmra.mxu0 %v762
    %v2615 = vpop.f32.mrf.mxu0
    %v2616 = vadd.f32 %v2596, %v2615
    %2617 = vdwg.mxu0
    %2618 = vmatpush.msra.mxu0 %v2003
    %2619 = vmatpush.msra.mxu0 %v1990
    %2620 = vmatpush.msra.mxu0 %v1977
    %2621 = vmatpush.msra.mxu0 %v1964
    %2622 = vmatpush.msra.mxu0 %v1951
    %2623 = vmatpush.msra.mxu0 %v1938
    %2624 = vmatpush.msra.mxu0 %v1925
    %2625 = vmatpush.msra.mxu0 %v1912
    %2626 = vmatpush.msra.mxu0 %v1899
    %2627 = vmatpush.msra.mxu0 %v1886
    %2628 = vmatpush.msra.mxu0 %v1873
    %2629 = vmatpush.msra.mxu0 %v1860
    %2630 = vmatpush.msra.mxu0 %v1847
    %2631 = vmatpush.msra.mxu0 %v1834
    %2632 = vmatpush.msra.mxu0 %v1821
    %2633 = vmatpush.msra.mxu0 %v1808
    %2634 = vmatmul.f32.gmra.mxu0 %v763
    %v2635 = vpop.f32.mrf.mxu0
    %v2636 = vadd.f32 %v2616, %v2635
    %2637 = vdwg.mxu0
    %2638 = vmatpush.msra.mxu0 0.0
    %2639 = vmatpush.msra.mxu0 0.0
    %2640 = vmatpush.msra.mxu0 0.0
    %2641 = vmatpush.msra.mxu0 0.0
    %2642 = vmatpush.msra.mxu0 0.0
    %2643 = vmatpush.msra.mxu0 0.0
    %2644 = vmatpush.msra.mxu0 0.0
    %2645 = vmatpush.msra.mxu0 0.0
    %2646 = vmatpush.msra.mxu0 0.0
    %2647 = vmatpush.msra.mxu0 0.0
    %2648 = vmatpush.msra.mxu0 0.0
    %2649 = vmatpush.msra.mxu0 0.0
    %2650 = vmatpush.msra.mxu0 %v2055
    %2651 = vmatpush.msra.mxu0 %v2042
    %2652 = vmatpush.msra.mxu0 %v2029
    %2653 = vmatpush.msra.mxu0 %v2016
    %2654 = vmatmul.f32.gmra.mxu0 %v2096
    %v2655 = vpop.f32.mrf.mxu0
    %v2656 = vadd.f32 %v2636, %v2655
    %2657 = vdwg.mxu0
    %2658 = vmatpush.msra.mxu0 %v964
    %2659 = vmatpush.msra.mxu0 %v951
    %2660 = vmatpush.msra.mxu0 %v938
    %2661 = vmatpush.msra.mxu0 %v925
    %2662 = vmatpush.msra.mxu0 %v912
    %2663 = vmatpush.msra.mxu0 %v899
    %2664 = vmatpush.msra.mxu0 %v886
    %2665 = vmatpush.msra.mxu0 %v873
    %2666 = vmatpush.msra.mxu0 %v860
    %2667 = vmatpush.msra.mxu0 %v847
    %2668 = vmatpush.msra.mxu0 %v834
    %2669 = vmatpush.msra.mxu0 %v821
    %2670 = vmatpush.msra.mxu0 %v808
    %2671 = vmatpush.msra.mxu0 %v795
    %2672 = vmatpush.msra.mxu0 %v782
    %2673 = vmatpush.msra.mxu0 %v769
    %2674 = vmatmul.f32.gmra.mxu0 %v758
    %v2675 = vpop.f32.mrf.mxu0
    %v2676 = vadd.f32 %v2073, %v2675
    %2677 = vdwg.mxu0
    %2678 = vmatpush.msra.mxu0 %v1172
    %2679 = vmatpush.msra.mxu0 %v1159
    %2680 = vmatpush.msra.mxu0 %v1146
    %2681 = vmatpush.msra.mxu0 %v1133
    %2682 = vmatpush.msra.mxu0 %v1120
    %2683 = vmatpush.msra.mxu0 %v1107
    %2684 = vmatpush.msra.mxu0 %v1094
    %2685 = vmatpush.msra.mxu0 %v1081
    %2686 = vmatpush.msra.mxu0 %v1068
    %2687 = vmatpush.msra.mxu0 %v1055
    %2688 = vmatpush.msra.mxu0 %v1042
    %2689 = vmatpush.msra.mxu0 %v1029
    %2690 = vmatpush.msra.mxu0 %v1016
    %2691 = vmatpush.msra.mxu0 %v1003
    %2692 = vmatpush.msra.mxu0 %v990
    %2693 = vmatpush.msra.mxu0 %v977
    %2694 = vmatmul.f32.gmra.mxu0 %v759
    %v2695 = vpop.f32.mrf.mxu0
    %v2696 = vadd.f32 %v2676, %v2695
    %2697 = vdwg.mxu0
    %2698 = vmatpush.msra.mxu0 %v1380
    %2699 = vmatpush.msra.mxu0 %v1367
    %2700 = vmatpush.msra.mxu0 %v1354
    %2701 = vmatpush.msra.mxu0 %v1341
    %2702 = vmatpush.msra.mxu0 %v1328
    %2703 = vmatpush.msra.mxu0 %v1315
    %2704 = vmatpush.msra.mxu0 %v1302
    %2705 = vmatpush.msra.mxu0 %v1289
    %2706 = vmatpush.msra.mxu0 %v1276
    %2707 = vmatpush.msra.mxu0 %v1263
    %2708 = vmatpush.msra.mxu0 %v1250
    %2709 = vmatpush.msra.mxu0 %v1237
    %2710 = vmatpush.msra.mxu0 %v1224
    %2711 = vmatpush.msra.mxu0 %v1211
    %2712 = vmatpush.msra.mxu0 %v1198
    %2713 = vmatpush.msra.mxu0 %v1185
    %2714 = vmatmul.f32.gmra.mxu0 %v760
    %v2715 = vpop.f32.mrf.mxu0
    %v2716 = vadd.f32 %v2696, %v2715
    %2717 = vdwg.mxu0
    %2718 = vmatpush.msra.mxu0 %v1588
    %2719 = vmatpush.msra.mxu0 %v1575
    %2720 = vmatpush.msra.mxu0 %v1562
    %2721 = vmatpush.msra.mxu0 %v1549
    %2722 = vmatpush.msra.mxu0 %v1536
    %2723 = vmatpush.msra.mxu0 %v1523
    %2724 = vmatpush.msra.mxu0 %v1510
    %2725 = vmatpush.msra.mxu0 %v1497
    %2726 = vmatpush.msra.mxu0 %v1484
    %2727 = vmatpush.msra.mxu0 %v1471
    %2728 = vmatpush.msra.mxu0 %v1458
    %2729 = vmatpush.msra.mxu0 %v1445
    %2730 = vmatpush.msra.mxu0 %v1432
    %2731 = vmatpush.msra.mxu0 %v1419
    %2732 = vmatpush.msra.mxu0 %v1406
    %2733 = vmatpush.msra.mxu0 %v1393
    %2734 = vmatmul.f32.gmra.mxu0 %v761
    %v2735 = vpop.f32.mrf.mxu0
    %v2736 = vadd.f32 %v2716, %v2735
    %2737 = vdwg.mxu0
    %2738 = vmatpush.msra.mxu0 %v1796
    %2739 = vmatpush.msra.mxu0 %v1783
    %2740 = vmatpush.msra.mxu0 %v1770
    %2741 = vmatpush.msra.mxu0 %v1757
    %2742 = vmatpush.msra.mxu0 %v1744
    %2743 = vmatpush.msra.mxu0 %v1731
    %2744 = vmatpush.msra.mxu0 %v1718
    %2745 = vmatpush.msra.mxu0 %v1705
    %2746 = vmatpush.msra.mxu0 %v1692
    %2747 = vmatpush.msra.mxu0 %v1679
    %2748 = vmatpush.msra.mxu0 %v1666
    %2749 = vmatpush.msra.mxu0 %v1653
    %2750 = vmatpush.msra.mxu0 %v1640
    %2751 = vmatpush.msra.mxu0 %v1627
    %2752 = vmatpush.msra.mxu0 %v1614
    %2753 = vmatpush.msra.mxu0 %v1601
    %2754 = vmatmul.f32.gmra.mxu0 %v762
    %v2755 = vpop.f32.mrf.mxu0
    %v2756 = vadd.f32 %v2736, %v2755
    %2757 = vdwg.mxu0
    %2758 = vmatpush.msra.mxu0 %v2004
    %2759 = vmatpush.msra.mxu0 %v1991
    %2760 = vmatpush.msra.mxu0 %v1978
    %2761 = vmatpush.msra.mxu0 %v1965
    %2762 = vmatpush.msra.mxu0 %v1952
    %2763 = vmatpush.msra.mxu0 %v1939
    %2764 = vmatpush.msra.mxu0 %v1926
    %2765 = vmatpush.msra.mxu0 %v1913
    %2766 = vmatpush.msra.mxu0 %v1900
    %2767 = vmatpush.msra.mxu0 %v1887
    %2768 = vmatpush.msra.mxu0 %v1874
    %2769 = vmatpush.msra.mxu0 %v1861
    %2770 = vmatpush.msra.mxu0 %v1848
    %2771 = vmatpush.msra.mxu0 %v1835
    %2772 = vmatpush.msra.mxu0 %v1822
    %2773 = vmatpush.msra.mxu0 %v1809
    %2774 = vmatmul.f32.gmra.mxu0 %v763
    %v2775 = vpop.f32.mrf.mxu0
    %v2776 = vadd.f32 %v2756, %v2775
    %2777 = vdwg.mxu0
    %2778 = vmatpush.msra.mxu0 0.0
    %2779 = vmatpush.msra.mxu0 0.0
    %2780 = vmatpush.msra.mxu0 0.0
    %2781 = vmatpush.msra.mxu0 0.0
    %2782 = vmatpush.msra.mxu0 0.0
    %2783 = vmatpush.msra.mxu0 0.0
    %2784 = vmatpush.msra.mxu0 0.0
    %2785 = vmatpush.msra.mxu0 0.0
    %2786 = vmatpush.msra.mxu0 0.0
    %2787 = vmatpush.msra.mxu0 0.0
    %2788 = vmatpush.msra.mxu0 0.0
    %2789 = vmatpush.msra.mxu0 0.0
    %2790 = vmatpush.msra.mxu0 %v2056
    %2791 = vmatpush.msra.mxu0 %v2043
    %2792 = vmatpush.msra.mxu0 %v2030
    %2793 = vmatpush.msra.mxu0 %v2017
    %2794 = vmatmul.f32.gmra.mxu0 %v2096
    %v2795 = vpop.f32.mrf.mxu0
    %v2796 = vadd.f32 %v2776, %v2795
    %2797 = vdwg.mxu0
    %2798 = vmatpush.msra.mxu0 %v965
    %2799 = vmatpush.msra.mxu0 %v952
    %2800 = vmatpush.msra.mxu0 %v939
    %2801 = vmatpush.msra.mxu0 %v926
    %2802 = vmatpush.msra.mxu0 %v913
    %2803 = vmatpush.msra.mxu0 %v900
    %2804 = vmatpush.msra.mxu0 %v887
    %2805 = vmatpush.msra.mxu0 %v874
    %2806 = vmatpush.msra.mxu0 %v861
    %2807 = vmatpush.msra.mxu0 %v848
    %2808 = vmatpush.msra.mxu0 %v835
    %2809 = vmatpush.msra.mxu0 %v822
    %2810 = vmatpush.msra.mxu0 %v809
    %2811 = vmatpush.msra.mxu0 %v796
    %2812 = vmatpush.msra.mxu0 %v783
    %2813 = vmatpush.msra.mxu0 %v770
    %2814 = vmatmul.f32.gmra.mxu0 %v758
    %v2815 = vpop.f32.mrf.mxu0
    %v2816 = vadd.f32 %v2074, %v2815
    %2817 = vdwg.mxu0
    %2818 = vmatpush.msra.mxu0 %v1173
    %2819 = vmatpush.msra.mxu0 %v1160
    %2820 = vmatpush.msra.mxu0 %v1147
    %2821 = vmatpush.msra.mxu0 %v1134
    %2822 = vmatpush.msra.mxu0 %v1121
    %2823 = vmatpush.msra.mxu0 %v1108
    %2824 = vmatpush.msra.mxu0 %v1095
    %2825 = vmatpush.msra.mxu0 %v1082
    %2826 = vmatpush.msra.mxu0 %v1069
    %2827 = vmatpush.msra.mxu0 %v1056
    %2828 = vmatpush.msra.mxu0 %v1043
    %2829 = vmatpush.msra.mxu0 %v1030
    %2830 = vmatpush.msra.mxu0 %v1017
    %2831 = vmatpush.msra.mxu0 %v1004
    %2832 = vmatpush.msra.mxu0 %v991
    %2833 = vmatpush.msra.mxu0 %v978
    %2834 = vmatmul.f32.gmra.mxu0 %v759
    %v2835 = vpop.f32.mrf.mxu0
    %v2836 = vadd.f32 %v2816, %v2835
    %2837 = vdwg.mxu0
    %2838 = vmatpush.msra.mxu0 %v1381
    %2839 = vmatpush.msra.mxu0 %v1368
    %2840 = vmatpush.msra.mxu0 %v1355
    %2841 = vmatpush.msra.mxu0 %v1342
    %2842 = vmatpush.msra.mxu0 %v1329
    %2843 = vmatpush.msra.mxu0 %v1316
    %2844 = vmatpush.msra.mxu0 %v1303
    %2845 = vmatpush.msra.mxu0 %v1290
    %2846 = vmatpush.msra.mxu0 %v1277
    %2847 = vmatpush.msra.mxu0 %v1264
    %2848 = vmatpush.msra.mxu0 %v1251
    %2849 = vmatpush.msra.mxu0 %v1238
    %2850 = vmatpush.msra.mxu0 %v1225
    %2851 = vmatpush.msra.mxu0 %v1212
    %2852 = vmatpush.msra.mxu0 %v1199
    %2853 = vmatpush.msra.mxu0 %v1186
    %2854 = vmatmul.f32.gmra.mxu0 %v760
    %v2855 = vpop.f32.mrf.mxu0
    %v2856 = vadd.f32 %v2836, %v2855
    %2857 = vdwg.mxu0
    %2858 = vmatpush.msra.mxu0 %v1589
    %2859 = vmatpush.msra.mxu0 %v1576
    %2860 = vmatpush.msra.mxu0 %v1563
    %2861 = vmatpush.msra.mxu0 %v1550
    %2862 = vmatpush.msra.mxu0 %v1537
    %2863 = vmatpush.msra.mxu0 %v1524
    %2864 = vmatpush.msra.mxu0 %v1511
    %2865 = vmatpush.msra.mxu0 %v1498
    %2866 = vmatpush.msra.mxu0 %v1485
    %2867 = vmatpush.msra.mxu0 %v1472
    %2868 = vmatpush.msra.mxu0 %v1459
    %2869 = vmatpush.msra.mxu0 %v1446
    %2870 = vmatpush.msra.mxu0 %v1433
    %2871 = vmatpush.msra.mxu0 %v1420
    %2872 = vmatpush.msra.mxu0 %v1407
    %2873 = vmatpush.msra.mxu0 %v1394
    %2874 = vmatmul.f32.gmra.mxu0 %v761
    %v2875 = vpop.f32.mrf.mxu0
    %v2876 = vadd.f32 %v2856, %v2875
    %2877 = vdwg.mxu0
    %2878 = vmatpush.msra.mxu0 %v1797
    %2879 = vmatpush.msra.mxu0 %v1784
    %2880 = vmatpush.msra.mxu0 %v1771
    %2881 = vmatpush.msra.mxu0 %v1758
    %2882 = vmatpush.msra.mxu0 %v1745
    %2883 = vmatpush.msra.mxu0 %v1732
    %2884 = vmatpush.msra.mxu0 %v1719
    %2885 = vmatpush.msra.mxu0 %v1706
    %2886 = vmatpush.msra.mxu0 %v1693
    %2887 = vmatpush.msra.mxu0 %v1680
    %2888 = vmatpush.msra.mxu0 %v1667
    %2889 = vmatpush.msra.mxu0 %v1654
    %2890 = vmatpush.msra.mxu0 %v1641
    %2891 = vmatpush.msra.mxu0 %v1628
    %2892 = vmatpush.msra.mxu0 %v1615
    %2893 = vmatpush.msra.mxu0 %v1602
    %2894 = vmatmul.f32.gmra.mxu0 %v762
    %v2895 = vpop.f32.mrf.mxu0
    %v2896 = vadd.f32 %v2876, %v2895
    %2897 = vdwg.mxu0
    %2898 = vmatpush.msra.mxu0 %v2005
    %2899 = vmatpush.msra.mxu0 %v1992
    %2900 = vmatpush.msra.mxu0 %v1979
    %2901 = vmatpush.msra.mxu0 %v1966
    %2902 = vmatpush.msra.mxu0 %v1953
    %2903 = vmatpush.msra.mxu0 %v1940
    %2904 = vmatpush.msra.mxu0 %v1927
    %2905 = vmatpush.msra.mxu0 %v1914
    %2906 = vmatpush.msra.mxu0 %v1901
    %2907 = vmatpush.msra.mxu0 %v1888
    %2908 = vmatpush.msra.mxu0 %v1875
    %2909 = vmatpush.msra.mxu0 %v1862
    %2910 = vmatpush.msra.mxu0 %v1849
    %2911 = vmatpush.msra.mxu0 %v1836
    %2912 = vmatpush.msra.mxu0 %v1823
    %2913 = vmatpush.msra.mxu0 %v1810
    %2914 = vmatmul.f32.gmra.mxu0 %v763
    %v2915 = vpop.f32.mrf.mxu0
    %v2916 = vadd.f32 %v2896, %v2915
    %2917 = vdwg.mxu0
    %2918 = vmatpush.msra.mxu0 0.0
    %2919 = vmatpush.msra.mxu0 0.0
    %2920 = vmatpush.msra.mxu0 0.0
    %2921 = vmatpush.msra.mxu0 0.0
    %2922 = vmatpush.msra.mxu0 0.0
    %2923 = vmatpush.msra.mxu0 0.0
    %2924 = vmatpush.msra.mxu0 0.0
    %2925 = vmatpush.msra.mxu0 0.0
    %2926 = vmatpush.msra.mxu0 0.0
    %2927 = vmatpush.msra.mxu0 0.0
    %2928 = vmatpush.msra.mxu0 0.0
    %2929 = vmatpush.msra.mxu0 0.0
    %2930 = vmatpush.msra.mxu0 %v2057
    %2931 = vmatpush.msra.mxu0 %v2044
    %2932 = vmatpush.msra.mxu0 %v2031
    %2933 = vmatpush.msra.mxu0 %v2018
    %2934 = vmatmul.f32.gmra.mxu0 %v2096
    %v2935 = vpop.f32.mrf.mxu0
    %v2936 = vadd.f32 %v2916, %v2935
    %2937 = vdwg.mxu0
    %2938 = vmatpush.msra.mxu0 %v966
    %2939 = vmatpush.msra.mxu0 %v953
    %2940 = vmatpush.msra.mxu0 %v940
    %2941 = vmatpush.msra.mxu0 %v927
    %2942 = vmatpush.msra.mxu0 %v914
    %2943 = vmatpush.msra.mxu0 %v901
    %2944 = vmatpush.msra.mxu0 %v888
    %2945 = vmatpush.msra.mxu0 %v875
    %2946 = vmatpush.msra.mxu0 %v862
    %2947 = vmatpush.msra.mxu0 %v849
    %2948 = vmatpush.msra.mxu0 %v836
    %2949 = vmatpush.msra.mxu0 %v823
    %2950 = vmatpush.msra.mxu0 %v810
    %2951 = vmatpush.msra.mxu0 %v797
    %2952 = vmatpush.msra.mxu0 %v784
    %2953 = vmatpush.msra.mxu0 %v771
    %2954 = vmatmul.f32.gmra.mxu0 %v758
    %v2955 = vpop.f32.mrf.mxu0
    %v2956 = vadd.f32 %v2075, %v2955
    %2957 = vdwg.mxu0
    %2958 = vmatpush.msra.mxu0 %v1174
    %2959 = vmatpush.msra.mxu0 %v1161
    %2960 = vmatpush.msra.mxu0 %v1148
    %2961 = vmatpush.msra.mxu0 %v1135
    %2962 = vmatpush.msra.mxu0 %v1122
    %2963 = vmatpush.msra.mxu0 %v1109
    %2964 = vmatpush.msra.mxu0 %v1096
    %2965 = vmatpush.msra.mxu0 %v1083
    %2966 = vmatpush.msra.mxu0 %v1070
    %2967 = vmatpush.msra.mxu0 %v1057
    %2968 = vmatpush.msra.mxu0 %v1044
    %2969 = vmatpush.msra.mxu0 %v1031
    %2970 = vmatpush.msra.mxu0 %v1018
    %2971 = vmatpush.msra.mxu0 %v1005
    %2972 = vmatpush.msra.mxu0 %v992
    %2973 = vmatpush.msra.mxu0 %v979
    %2974 = vmatmul.f32.gmra.mxu0 %v759
    %v2975 = vpop.f32.mrf.mxu0
    %v2976 = vadd.f32 %v2956, %v2975
    %2977 = vdwg.mxu0
    %2978 = vmatpush.msra.mxu0 %v1382
    %2979 = vmatpush.msra.mxu0 %v1369
    %2980 = vmatpush.msra.mxu0 %v1356
    %2981 = vmatpush.msra.mxu0 %v1343
    %2982 = vmatpush.msra.mxu0 %v1330
    %2983 = vmatpush.msra.mxu0 %v1317
    %2984 = vmatpush.msra.mxu0 %v1304
    %2985 = vmatpush.msra.mxu0 %v1291
    %2986 = vmatpush.msra.mxu0 %v1278
    %2987 = vmatpush.msra.mxu0 %v1265
    %2988 = vmatpush.msra.mxu0 %v1252
    %2989 = vmatpush.msra.mxu0 %v1239
    %2990 = vmatpush.msra.mxu0 %v1226
    %2991 = vmatpush.msra.mxu0 %v1213
    %2992 = vmatpush.msra.mxu0 %v1200
    %2993 = vmatpush.msra.mxu0 %v1187
    %2994 = vmatmul.f32.gmra.mxu0 %v760
    %v2995 = vpop.f32.mrf.mxu0
    %v2996 = vadd.f32 %v2976, %v2995
    %2997 = vdwg.mxu0
    %2998 = vmatpush.msra.mxu0 %v1590
    %2999 = vmatpush.msra.mxu0 %v1577
    %3000 = vmatpush.msra.mxu0 %v1564
    %3001 = vmatpush.msra.mxu0 %v1551
    %3002 = vmatpush.msra.mxu0 %v1538
    %3003 = vmatpush.msra.mxu0 %v1525
    %3004 = vmatpush.msra.mxu0 %v1512
    %3005 = vmatpush.msra.mxu0 %v1499
    %3006 = vmatpush.msra.mxu0 %v1486
    %3007 = vmatpush.msra.mxu0 %v1473
    %3008 = vmatpush.msra.mxu0 %v1460
    %3009 = vmatpush.msra.mxu0 %v1447
    %3010 = vmatpush.msra.mxu0 %v1434
    %3011 = vmatpush.msra.mxu0 %v1421
    %3012 = vmatpush.msra.mxu0 %v1408
    %3013 = vmatpush.msra.mxu0 %v1395
    %3014 = vmatmul.f32.gmra.mxu0 %v761
    %v3015 = vpop.f32.mrf.mxu0
    %v3016 = vadd.f32 %v2996, %v3015
    %3017 = vdwg.mxu0
    %3018 = vmatpush.msra.mxu0 %v1798
    %3019 = vmatpush.msra.mxu0 %v1785
    %3020 = vmatpush.msra.mxu0 %v1772
    %3021 = vmatpush.msra.mxu0 %v1759
    %3022 = vmatpush.msra.mxu0 %v1746
    %3023 = vmatpush.msra.mxu0 %v1733
    %3024 = vmatpush.msra.mxu0 %v1720
    %3025 = vmatpush.msra.mxu0 %v1707
    %3026 = vmatpush.msra.mxu0 %v1694
    %3027 = vmatpush.msra.mxu0 %v1681
    %3028 = vmatpush.msra.mxu0 %v1668
    %3029 = vmatpush.msra.mxu0 %v1655
    %3030 = vmatpush.msra.mxu0 %v1642
    %3031 = vmatpush.msra.mxu0 %v1629
    %3032 = vmatpush.msra.mxu0 %v1616
    %3033 = vmatpush.msra.mxu0 %v1603
    %3034 = vmatmul.f32.gmra.mxu0 %v762
    %v3035 = vpop.f32.mrf.mxu0
    %v3036 = vadd.f32 %v3016, %v3035
    %3037 = vdwg.mxu0
    %3038 = vmatpush.msra.mxu0 %v2006
    %3039 = vmatpush.msra.mxu0 %v1993
    %3040 = vmatpush.msra.mxu0 %v1980
    %3041 = vmatpush.msra.mxu0 %v1967
    %3042 = vmatpush.msra.mxu0 %v1954
    %3043 = vmatpush.msra.mxu0 %v1941
    %3044 = vmatpush.msra.mxu0 %v1928
    %3045 = vmatpush.msra.mxu0 %v1915
    %3046 = vmatpush.msra.mxu0 %v1902
    %3047 = vmatpush.msra.mxu0 %v1889
    %3048 = vmatpush.msra.mxu0 %v1876
    %3049 = vmatpush.msra.mxu0 %v1863
    %3050 = vmatpush.msra.mxu0 %v1850
    %3051 = vmatpush.msra.mxu0 %v1837
    %3052 = vmatpush.msra.mxu0 %v1824
    %3053 = vmatpush.msra.mxu0 %v1811
    %3054 = vmatmul.f32.gmra.mxu0 %v763
    %v3055 = vpop.f32.mrf.mxu0
    %v3056 = vadd.f32 %v3036, %v3055
    %3057 = vdwg.mxu0
    %3058 = vmatpush.msra.mxu0 0.0
    %3059 = vmatpush.msra.mxu0 0.0
    %3060 = vmatpush.msra.mxu0 0.0
    %3061 = vmatpush.msra.mxu0 0.0
    %3062 = vmatpush.msra.mxu0 0.0
    %3063 = vmatpush.msra.mxu0 0.0
    %3064 = vmatpush.msra.mxu0 0.0
    %3065 = vmatpush.msra.mxu0 0.0
    %3066 = vmatpush.msra.mxu0 0.0
    %3067 = vmatpush.msra.mxu0 0.0
    %3068 = vmatpush.msra.mxu0 0.0
    %3069 = vmatpush.msra.mxu0 0.0
    %3070 = vmatpush.msra.mxu0 %v2058
    %3071 = vmatpush.msra.mxu0 %v2045
    %3072 = vmatpush.msra.mxu0 %v2032
    %3073 = vmatpush.msra.mxu0 %v2019
    %3074 = vmatmul.f32.gmra.mxu0 %v2096
    %v3075 = vpop.f32.mrf.mxu0
    %v3076 = vadd.f32 %v3056, %v3075
    %3077 = vdwg.mxu0
    %3078 = vmatpush.msra.mxu0 %v967
    %3079 = vmatpush.msra.mxu0 %v954
    %3080 = vmatpush.msra.mxu0 %v941
    %3081 = vmatpush.msra.mxu0 %v928
    %3082 = vmatpush.msra.mxu0 %v915
    %3083 = vmatpush.msra.mxu0 %v902
    %3084 = vmatpush.msra.mxu0 %v889
    %3085 = vmatpush.msra.mxu0 %v876
    %3086 = vmatpush.msra.mxu0 %v863
    %3087 = vmatpush.msra.mxu0 %v850
    %3088 = vmatpush.msra.mxu0 %v837
    %3089 = vmatpush.msra.mxu0 %v824
    %3090 = vmatpush.msra.mxu0 %v811
    %3091 = vmatpush.msra.mxu0 %v798
    %3092 = vmatpush.msra.mxu0 %v785
    %3093 = vmatpush.msra.mxu0 %v772
    %3094 = vmatmul.f32.gmra.mxu0 %v758
    %v3095 = vpop.f32.mrf.mxu0
    %v3096 = vadd.f32 %v2076, %v3095
    %3097 = vdwg.mxu0
    %3098 = vmatpush.msra.mxu0 %v1175
    %3099 = vmatpush.msra.mxu0 %v1162
    %3100 = vmatpush.msra.mxu0 %v1149
    %3101 = vmatpush.msra.mxu0 %v1136
    %3102 = vmatpush.msra.mxu0 %v1123
    %3103 = vmatpush.msra.mxu0 %v1110
    %3104 = vmatpush.msra.mxu0 %v1097
    %3105 = vmatpush.msra.mxu0 %v1084
    %3106 = vmatpush.msra.mxu0 %v1071
    %3107 = vmatpush.msra.mxu0 %v1058
    %3108 = vmatpush.msra.mxu0 %v1045
    %3109 = vmatpush.msra.mxu0 %v1032
    %3110 = vmatpush.msra.mxu0 %v1019
    %3111 = vmatpush.msra.mxu0 %v1006
    %3112 = vmatpush.msra.mxu0 %v993
    %3113 = vmatpush.msra.mxu0 %v980
    %3114 = vmatmul.f32.gmra.mxu0 %v759
    %v3115 = vpop.f32.mrf.mxu0
    %v3116 = vadd.f32 %v3096, %v3115
    %3117 = vdwg.mxu0
    %3118 = vmatpush.msra.mxu0 %v1383
    %3119 = vmatpush.msra.mxu0 %v1370
    %3120 = vmatpush.msra.mxu0 %v1357
    %3121 = vmatpush.msra.mxu0 %v1344
    %3122 = vmatpush.msra.mxu0 %v1331
    %3123 = vmatpush.msra.mxu0 %v1318
    %3124 = vmatpush.msra.mxu0 %v1305
    %3125 = vmatpush.msra.mxu0 %v1292
    %3126 = vmatpush.msra.mxu0 %v1279
    %3127 = vmatpush.msra.mxu0 %v1266
    %3128 = vmatpush.msra.mxu0 %v1253
    %3129 = vmatpush.msra.mxu0 %v1240
    %3130 = vmatpush.msra.mxu0 %v1227
    %3131 = vmatpush.msra.mxu0 %v1214
    %3132 = vmatpush.msra.mxu0 %v1201
    %3133 = vmatpush.msra.mxu0 %v1188
    %3134 = vmatmul.f32.gmra.mxu0 %v760
    %v3135 = vpop.f32.mrf.mxu0
    %v3136 = vadd.f32 %v3116, %v3135
    %3137 = vdwg.mxu0
    %3138 = vmatpush.msra.mxu0 %v1591
    %3139 = vmatpush.msra.mxu0 %v1578
    %3140 = vmatpush.msra.mxu0 %v1565
    %3141 = vmatpush.msra.mxu0 %v1552
    %3142 = vmatpush.msra.mxu0 %v1539
    %3143 = vmatpush.msra.mxu0 %v1526
    %3144 = vmatpush.msra.mxu0 %v1513
    %3145 = vmatpush.msra.mxu0 %v1500
    %3146 = vmatpush.msra.mxu0 %v1487
    %3147 = vmatpush.msra.mxu0 %v1474
    %3148 = vmatpush.msra.mxu0 %v1461
    %3149 = vmatpush.msra.mxu0 %v1448
    %3150 = vmatpush.msra.mxu0 %v1435
    %3151 = vmatpush.msra.mxu0 %v1422
    %3152 = vmatpush.msra.mxu0 %v1409
    %3153 = vmatpush.msra.mxu0 %v1396
    %3154 = vmatmul.f32.gmra.mxu0 %v761
    %v3155 = vpop.f32.mrf.mxu0
    %v3156 = vadd.f32 %v3136, %v3155
    %3157 = vdwg.mxu0
    %3158 = vmatpush.msra.mxu0 %v1799
    %3159 = vmatpush.msra.mxu0 %v1786
    %3160 = vmatpush.msra.mxu0 %v1773
    %3161 = vmatpush.msra.mxu0 %v1760
    %3162 = vmatpush.msra.mxu0 %v1747
    %3163 = vmatpush.msra.mxu0 %v1734
    %3164 = vmatpush.msra.mxu0 %v1721
    %3165 = vmatpush.msra.mxu0 %v1708
    %3166 = vmatpush.msra.mxu0 %v1695
    %3167 = vmatpush.msra.mxu0 %v1682
    %3168 = vmatpush.msra.mxu0 %v1669
    %3169 = vmatpush.msra.mxu0 %v1656
    %3170 = vmatpush.msra.mxu0 %v1643
    %3171 = vmatpush.msra.mxu0 %v1630
    %3172 = vmatpush.msra.mxu0 %v1617
    %3173 = vmatpush.msra.mxu0 %v1604
    %3174 = vmatmul.f32.gmra.mxu0 %v762
    %v3175 = vpop.f32.mrf.mxu0
    %v3176 = vadd.f32 %v3156, %v3175
    %3177 = vdwg.mxu0
    %3178 = vmatpush.msra.mxu0 %v2007
    %3179 = vmatpush.msra.mxu0 %v1994
    %3180 = vmatpush.msra.mxu0 %v1981
    %3181 = vmatpush.msra.mxu0 %v1968
    %3182 = vmatpush.msra.mxu0 %v1955
    %3183 = vmatpush.msra.mxu0 %v1942
    %3184 = vmatpush.msra.mxu0 %v1929
    %3185 = vmatpush.msra.mxu0 %v1916
    %3186 = vmatpush.msra.mxu0 %v1903
    %3187 = vmatpush.msra.mxu0 %v1890
    %3188 = vmatpush.msra.mxu0 %v1877
    %3189 = vmatpush.msra.mxu0 %v1864
    %3190 = vmatpush.msra.mxu0 %v1851
    %3191 = vmatpush.msra.mxu0 %v1838
    %3192 = vmatpush.msra.mxu0 %v1825
    %3193 = vmatpush.msra.mxu0 %v1812
    %3194 = vmatmul.f32.gmra.mxu0 %v763
    %v3195 = vpop.f32.mrf.mxu0
    %v3196 = vadd.f32 %v3176, %v3195
    %3197 = vdwg.mxu0
    %3198 = vmatpush.msra.mxu0 0.0
    %3199 = vmatpush.msra.mxu0 0.0
    %3200 = vmatpush.msra.mxu0 0.0
    %3201 = vmatpush.msra.mxu0 0.0
    %3202 = vmatpush.msra.mxu0 0.0
    %3203 = vmatpush.msra.mxu0 0.0
    %3204 = vmatpush.msra.mxu0 0.0
    %3205 = vmatpush.msra.mxu0 0.0
    %3206 = vmatpush.msra.mxu0 0.0
    %3207 = vmatpush.msra.mxu0 0.0
    %3208 = vmatpush.msra.mxu0 0.0
    %3209 = vmatpush.msra.mxu0 0.0
    %3210 = vmatpush.msra.mxu0 %v2059
    %3211 = vmatpush.msra.mxu0 %v2046
    %3212 = vmatpush.msra.mxu0 %v2033
    %3213 = vmatpush.msra.mxu0 %v2020
    %3214 = vmatmul.f32.gmra.mxu0 %v2096
    %v3215 = vpop.f32.mrf.mxu0
    %v3216 = vadd.f32 %v3196, %v3215
    %3217 = vdwg.mxu0
    %3218 = vmatpush.msra.mxu0 %v968
    %3219 = vmatpush.msra.mxu0 %v955
    %3220 = vmatpush.msra.mxu0 %v942
    %3221 = vmatpush.msra.mxu0 %v929
    %3222 = vmatpush.msra.mxu0 %v916
    %3223 = vmatpush.msra.mxu0 %v903
    %3224 = vmatpush.msra.mxu0 %v890
    %3225 = vmatpush.msra.mxu0 %v877
    %3226 = vmatpush.msra.mxu0 %v864
    %3227 = vmatpush.msra.mxu0 %v851
    %3228 = vmatpush.msra.mxu0 %v838
    %3229 = vmatpush.msra.mxu0 %v825
    %3230 = vmatpush.msra.mxu0 %v812
    %3231 = vmatpush.msra.mxu0 %v799
    %3232 = vmatpush.msra.mxu0 %v786
    %3233 = vmatpush.msra.mxu0 %v773
    %3234 = vmatmul.f32.gmra.mxu0 %v758
    %v3235 = vpop.f32.mrf.mxu0
    %v3236 = vadd.f32 %v2077, %v3235
    %3237 = vdwg.mxu0
    %3238 = vmatpush.msra.mxu0 %v1176
    %3239 = vmatpush.msra.mxu0 %v1163
    %3240 = vmatpush.msra.mxu0 %v1150
    %3241 = vmatpush.msra.mxu0 %v1137
    %3242 = vmatpush.msra.mxu0 %v1124
    %3243 = vmatpush.msra.mxu0 %v1111
    %3244 = vmatpush.msra.mxu0 %v1098
    %3245 = vmatpush.msra.mxu0 %v1085
    %3246 = vmatpush.msra.mxu0 %v1072
    %3247 = vmatpush.msra.mxu0 %v1059
    %3248 = vmatpush.msra.mxu0 %v1046
    %3249 = vmatpush.msra.mxu0 %v1033
    %3250 = vmatpush.msra.mxu0 %v1020
    %3251 = vmatpush.msra.mxu0 %v1007
    %3252 = vmatpush.msra.mxu0 %v994
    %3253 = vmatpush.msra.mxu0 %v981
    %3254 = vmatmul.f32.gmra.mxu0 %v759
    %v3255 = vpop.f32.mrf.mxu0
    %v3256 = vadd.f32 %v3236, %v3255
    %3257 = vdwg.mxu0
    %3258 = vmatpush.msra.mxu0 %v1384
    %3259 = vmatpush.msra.mxu0 %v1371
    %3260 = vmatpush.msra.mxu0 %v1358
    %3261 = vmatpush.msra.mxu0 %v1345
    %3262 = vmatpush.msra.mxu0 %v1332
    %3263 = vmatpush.msra.mxu0 %v1319
    %3264 = vmatpush.msra.mxu0 %v1306
    %3265 = vmatpush.msra.mxu0 %v1293
    %3266 = vmatpush.msra.mxu0 %v1280
    %3267 = vmatpush.msra.mxu0 %v1267
    %3268 = vmatpush.msra.mxu0 %v1254
    %3269 = vmatpush.msra.mxu0 %v1241
    %3270 = vmatpush.msra.mxu0 %v1228
    %3271 = vmatpush.msra.mxu0 %v1215
    %3272 = vmatpush.msra.mxu0 %v1202
    %3273 = vmatpush.msra.mxu0 %v1189
    %3274 = vmatmul.f32.gmra.mxu0 %v760
    %v3275 = vpop.f32.mrf.mxu0
    %v3276 = vadd.f32 %v3256, %v3275
    %3277 = vdwg.mxu0
    %3278 = vmatpush.msra.mxu0 %v1592
    %3279 = vmatpush.msra.mxu0 %v1579
    %3280 = vmatpush.msra.mxu0 %v1566
    %3281 = vmatpush.msra.mxu0 %v1553
    %3282 = vmatpush.msra.mxu0 %v1540
    %3283 = vmatpush.msra.mxu0 %v1527
    %3284 = vmatpush.msra.mxu0 %v1514
    %3285 = vmatpush.msra.mxu0 %v1501
    %3286 = vmatpush.msra.mxu0 %v1488
    %3287 = vmatpush.msra.mxu0 %v1475
    %3288 = vmatpush.msra.mxu0 %v1462
    %3289 = vmatpush.msra.mxu0 %v1449
    %3290 = vmatpush.msra.mxu0 %v1436
    %3291 = vmatpush.msra.mxu0 %v1423
    %3292 = vmatpush.msra.mxu0 %v1410
    %3293 = vmatpush.msra.mxu0 %v1397
    %3294 = vmatmul.f32.gmra.mxu0 %v761
    %v3295 = vpop.f32.mrf.mxu0
    %v3296 = vadd.f32 %v3276, %v3295
    %3297 = vdwg.mxu0
    %3298 = vmatpush.msra.mxu0 %v1800
    %3299 = vmatpush.msra.mxu0 %v1787
    %3300 = vmatpush.msra.mxu0 %v1774
    %3301 = vmatpush.msra.mxu0 %v1761
    %3302 = vmatpush.msra.mxu0 %v1748
    %3303 = vmatpush.msra.mxu0 %v1735
    %3304 = vmatpush.msra.mxu0 %v1722
    %3305 = vmatpush.msra.mxu0 %v1709
    %3306 = vmatpush.msra.mxu0 %v1696
    %3307 = vmatpush.msra.mxu0 %v1683
    %3308 = vmatpush.msra.mxu0 %v1670
    %3309 = vmatpush.msra.mxu0 %v1657
    %3310 = vmatpush.msra.mxu0 %v1644
    %3311 = vmatpush.msra.mxu0 %v1631
    %3312 = vmatpush.msra.mxu0 %v1618
    %3313 = vmatpush.msra.mxu0 %v1605
    %3314 = vmatmul.f32.gmra.mxu0 %v762
    %v3315 = vpop.f32.mrf.mxu0
    %v3316 = vadd.f32 %v3296, %v3315
    %3317 = vdwg.mxu0
    %3318 = vmatpush.msra.mxu0 %v2008
    %3319 = vmatpush.msra.mxu0 %v1995
    %3320 = vmatpush.msra.mxu0 %v1982
    %3321 = vmatpush.msra.mxu0 %v1969
    %3322 = vmatpush.msra.mxu0 %v1956
    %3323 = vmatpush.msra.mxu0 %v1943
    %3324 = vmatpush.msra.mxu0 %v1930
    %3325 = vmatpush.msra.mxu0 %v1917
    %3326 = vmatpush.msra.mxu0 %v1904
    %3327 = vmatpush.msra.mxu0 %v1891
    %3328 = vmatpush.msra.mxu0 %v1878
    %3329 = vmatpush.msra.mxu0 %v1865
    %3330 = vmatpush.msra.mxu0 %v1852
    %3331 = vmatpush.msra.mxu0 %v1839
    %3332 = vmatpush.msra.mxu0 %v1826
    %3333 = vmatpush.msra.mxu0 %v1813
    %3334 = vmatmul.f32.gmra.mxu0 %v763
    %v3335 = vpop.f32.mrf.mxu0
    %v3336 = vadd.f32 %v3316, %v3335
    %3337 = vdwg.mxu0
    %3338 = vmatpush.msra.mxu0 0.0
    %3339 = vmatpush.msra.mxu0 0.0
    %3340 = vmatpush.msra.mxu0 0.0
    %3341 = vmatpush.msra.mxu0 0.0
    %3342 = vmatpush.msra.mxu0 0.0
    %3343 = vmatpush.msra.mxu0 0.0
    %3344 = vmatpush.msra.mxu0 0.0
    %3345 = vmatpush.msra.mxu0 0.0
    %3346 = vmatpush.msra.mxu0 0.0
    %3347 = vmatpush.msra.mxu0 0.0
    %3348 = vmatpush.msra.mxu0 0.0
    %3349 = vmatpush.msra.mxu0 0.0
    %3350 = vmatpush.msra.mxu0 %v2060
    %3351 = vmatpush.msra.mxu0 %v2047
    %3352 = vmatpush.msra.mxu0 %v2034
    %3353 = vmatpush.msra.mxu0 %v2021
    %3354 = vmatmul.f32.gmra.mxu0 %v2096
    %v3355 = vpop.f32.mrf.mxu0
    %v3356 = vadd.f32 %v3336, %v3355
    %3357 = vdwg.mxu0
    %3358 = vmatpush.msra.mxu0 %v969
    %3359 = vmatpush.msra.mxu0 %v956
    %3360 = vmatpush.msra.mxu0 %v943
    %3361 = vmatpush.msra.mxu0 %v930
    %3362 = vmatpush.msra.mxu0 %v917
    %3363 = vmatpush.msra.mxu0 %v904
    %3364 = vmatpush.msra.mxu0 %v891
    %3365 = vmatpush.msra.mxu0 %v878
    %3366 = vmatpush.msra.mxu0 %v865
    %3367 = vmatpush.msra.mxu0 %v852
    %3368 = vmatpush.msra.mxu0 %v839
    %3369 = vmatpush.msra.mxu0 %v826
    %3370 = vmatpush.msra.mxu0 %v813
    %3371 = vmatpush.msra.mxu0 %v800
    %3372 = vmatpush.msra.mxu0 %v787
    %3373 = vmatpush.msra.mxu0 %v774
    %3374 = vmatmul.f32.gmra.mxu0 %v758
    %v3375 = vpop.f32.mrf.mxu0
    %v3376 = vadd.f32 %v2078, %v3375
    %3377 = vdwg.mxu0
    %3378 = vmatpush.msra.mxu0 %v1177
    %3379 = vmatpush.msra.mxu0 %v1164
    %3380 = vmatpush.msra.mxu0 %v1151
    %3381 = vmatpush.msra.mxu0 %v1138
    %3382 = vmatpush.msra.mxu0 %v1125
    %3383 = vmatpush.msra.mxu0 %v1112
    %3384 = vmatpush.msra.mxu0 %v1099
    %3385 = vmatpush.msra.mxu0 %v1086
    %3386 = vmatpush.msra.mxu0 %v1073
    %3387 = vmatpush.msra.mxu0 %v1060
    %3388 = vmatpush.msra.mxu0 %v1047
    %3389 = vmatpush.msra.mxu0 %v1034
    %3390 = vmatpush.msra.mxu0 %v1021
    %3391 = vmatpush.msra.mxu0 %v1008
    %3392 = vmatpush.msra.mxu0 %v995
    %3393 = vmatpush.msra.mxu0 %v982
    %3394 = vmatmul.f32.gmra.mxu0 %v759
    %v3395 = vpop.f32.mrf.mxu0
    %v3396 = vadd.f32 %v3376, %v3395
    %3397 = vdwg.mxu0
    %3398 = vmatpush.msra.mxu0 %v1385
    %3399 = vmatpush.msra.mxu0 %v1372
    %3400 = vmatpush.msra.mxu0 %v1359
    %3401 = vmatpush.msra.mxu0 %v1346
    %3402 = vmatpush.msra.mxu0 %v1333
    %3403 = vmatpush.msra.mxu0 %v1320
    %3404 = vmatpush.msra.mxu0 %v1307
    %3405 = vmatpush.msra.mxu0 %v1294
    %3406 = vmatpush.msra.mxu0 %v1281
    %3407 = vmatpush.msra.mxu0 %v1268
    %3408 = vmatpush.msra.mxu0 %v1255
    %3409 = vmatpush.msra.mxu0 %v1242
    %3410 = vmatpush.msra.mxu0 %v1229
    %3411 = vmatpush.msra.mxu0 %v1216
    %3412 = vmatpush.msra.mxu0 %v1203
    %3413 = vmatpush.msra.mxu0 %v1190
    %3414 = vmatmul.f32.gmra.mxu0 %v760
    %v3415 = vpop.f32.mrf.mxu0
    %v3416 = vadd.f32 %v3396, %v3415
    %3417 = vdwg.mxu0
    %3418 = vmatpush.msra.mxu0 %v1593
    %3419 = vmatpush.msra.mxu0 %v1580
    %3420 = vmatpush.msra.mxu0 %v1567
    %3421 = vmatpush.msra.mxu0 %v1554
    %3422 = vmatpush.msra.mxu0 %v1541
    %3423 = vmatpush.msra.mxu0 %v1528
    %3424 = vmatpush.msra.mxu0 %v1515
    %3425 = vmatpush.msra.mxu0 %v1502
    %3426 = vmatpush.msra.mxu0 %v1489
    %3427 = vmatpush.msra.mxu0 %v1476
    %3428 = vmatpush.msra.mxu0 %v1463
    %3429 = vmatpush.msra.mxu0 %v1450
    %3430 = vmatpush.msra.mxu0 %v1437
    %3431 = vmatpush.msra.mxu0 %v1424
    %3432 = vmatpush.msra.mxu0 %v1411
    %3433 = vmatpush.msra.mxu0 %v1398
    %3434 = vmatmul.f32.gmra.mxu0 %v761
    %v3435 = vpop.f32.mrf.mxu0
    %v3436 = vadd.f32 %v3416, %v3435
    %3437 = vdwg.mxu0
    %3438 = vmatpush.msra.mxu0 %v1801
    %3439 = vmatpush.msra.mxu0 %v1788
    %3440 = vmatpush.msra.mxu0 %v1775
    %3441 = vmatpush.msra.mxu0 %v1762
    %3442 = vmatpush.msra.mxu0 %v1749
    %3443 = vmatpush.msra.mxu0 %v1736
    %3444 = vmatpush.msra.mxu0 %v1723
    %3445 = vmatpush.msra.mxu0 %v1710
    %3446 = vmatpush.msra.mxu0 %v1697
    %3447 = vmatpush.msra.mxu0 %v1684
    %3448 = vmatpush.msra.mxu0 %v1671
    %3449 = vmatpush.msra.mxu0 %v1658
    %3450 = vmatpush.msra.mxu0 %v1645
    %3451 = vmatpush.msra.mxu0 %v1632
    %3452 = vmatpush.msra.mxu0 %v1619
    %3453 = vmatpush.msra.mxu0 %v1606
    %3454 = vmatmul.f32.gmra.mxu0 %v762
    %v3455 = vpop.f32.mrf.mxu0
    %v3456 = vadd.f32 %v3436, %v3455
    %3457 = vdwg.mxu0
    %3458 = vmatpush.msra.mxu0 %v2009
    %3459 = vmatpush.msra.mxu0 %v1996
    %3460 = vmatpush.msra.mxu0 %v1983
    %3461 = vmatpush.msra.mxu0 %v1970
    %3462 = vmatpush.msra.mxu0 %v1957
    %3463 = vmatpush.msra.mxu0 %v1944
    %3464 = vmatpush.msra.mxu0 %v1931
    %3465 = vmatpush.msra.mxu0 %v1918
    %3466 = vmatpush.msra.mxu0 %v1905
    %3467 = vmatpush.msra.mxu0 %v1892
    %3468 = vmatpush.msra.mxu0 %v1879
    %3469 = vmatpush.msra.mxu0 %v1866
    %3470 = vmatpush.msra.mxu0 %v1853
    %3471 = vmatpush.msra.mxu0 %v1840
    %3472 = vmatpush.msra.mxu0 %v1827
    %3473 = vmatpush.msra.mxu0 %v1814
    %3474 = vmatmul.f32.gmra.mxu0 %v763
    %v3475 = vpop.f32.mrf.mxu0
    %v3476 = vadd.f32 %v3456, %v3475
    %3477 = vdwg.mxu0
    %3478 = vmatpush.msra.mxu0 0.0
    %3479 = vmatpush.msra.mxu0 0.0
    %3480 = vmatpush.msra.mxu0 0.0
    %3481 = vmatpush.msra.mxu0 0.0
    %3482 = vmatpush.msra.mxu0 0.0
    %3483 = vmatpush.msra.mxu0 0.0
    %3484 = vmatpush.msra.mxu0 0.0
    %3485 = vmatpush.msra.mxu0 0.0
    %3486 = vmatpush.msra.mxu0 0.0
    %3487 = vmatpush.msra.mxu0 0.0
    %3488 = vmatpush.msra.mxu0 0.0
    %3489 = vmatpush.msra.mxu0 0.0
    %3490 = vmatpush.msra.mxu0 %v2061
    %3491 = vmatpush.msra.mxu0 %v2048
    %3492 = vmatpush.msra.mxu0 %v2035
    %3493 = vmatpush.msra.mxu0 %v2022
    %3494 = vmatmul.f32.gmra.mxu0 %v2096
    %v3495 = vpop.f32.mrf.mxu0
    %v3496 = vadd.f32 %v3476, %v3495
    %3497 = vdwg.mxu0
    %3498 = vmatpush.msra.mxu0 %v970
    %3499 = vmatpush.msra.mxu0 %v957
    %3500 = vmatpush.msra.mxu0 %v944
    %3501 = vmatpush.msra.mxu0 %v931
    %3502 = vmatpush.msra.mxu0 %v918
    %3503 = vmatpush.msra.mxu0 %v905
    %3504 = vmatpush.msra.mxu0 %v892
    %3505 = vmatpush.msra.mxu0 %v879
    %3506 = vmatpush.msra.mxu0 %v866
    %3507 = vmatpush.msra.mxu0 %v853
    %3508 = vmatpush.msra.mxu0 %v840
    %3509 = vmatpush.msra.mxu0 %v827
    %3510 = vmatpush.msra.mxu0 %v814
    %3511 = vmatpush.msra.mxu0 %v801
    %3512 = vmatpush.msra.mxu0 %v788
    %3513 = vmatpush.msra.mxu0 %v775
    %3514 = vmatmul.f32.gmra.mxu0 %v758
    %v3515 = vpop.f32.mrf.mxu0
    %v3516 = vadd.f32 %v2079, %v3515
    %3517 = vdwg.mxu0
    %3518 = vmatpush.msra.mxu0 %v1178
    %3519 = vmatpush.msra.mxu0 %v1165
    %3520 = vmatpush.msra.mxu0 %v1152
    %3521 = vmatpush.msra.mxu0 %v1139
    %3522 = vmatpush.msra.mxu0 %v1126
    %3523 = vmatpush.msra.mxu0 %v1113
    %3524 = vmatpush.msra.mxu0 %v1100
    %3525 = vmatpush.msra.mxu0 %v1087
    %3526 = vmatpush.msra.mxu0 %v1074
    %3527 = vmatpush.msra.mxu0 %v1061
    %3528 = vmatpush.msra.mxu0 %v1048
    %3529 = vmatpush.msra.mxu0 %v1035
    %3530 = vmatpush.msra.mxu0 %v1022
    %3531 = vmatpush.msra.mxu0 %v1009
    %3532 = vmatpush.msra.mxu0 %v996
    %3533 = vmatpush.msra.mxu0 %v983
    %3534 = vmatmul.f32.gmra.mxu0 %v759
    %v3535 = vpop.f32.mrf.mxu0
    %v3536 = vadd.f32 %v3516, %v3535
    %3537 = vdwg.mxu0
    %3538 = vmatpush.msra.mxu0 %v1386
    %3539 = vmatpush.msra.mxu0 %v1373
    %3540 = vmatpush.msra.mxu0 %v1360
    %3541 = vmatpush.msra.mxu0 %v1347
    %3542 = vmatpush.msra.mxu0 %v1334
    %3543 = vmatpush.msra.mxu0 %v1321
    %3544 = vmatpush.msra.mxu0 %v1308
    %3545 = vmatpush.msra.mxu0 %v1295
    %3546 = vmatpush.msra.mxu0 %v1282
    %3547 = vmatpush.msra.mxu0 %v1269
    %3548 = vmatpush.msra.mxu0 %v1256
    %3549 = vmatpush.msra.mxu0 %v1243
    %3550 = vmatpush.msra.mxu0 %v1230
    %3551 = vmatpush.msra.mxu0 %v1217
    %3552 = vmatpush.msra.mxu0 %v1204
    %3553 = vmatpush.msra.mxu0 %v1191
    %3554 = vmatmul.f32.gmra.mxu0 %v760
    %v3555 = vpop.f32.mrf.mxu0
    %v3556 = vadd.f32 %v3536, %v3555
    %3557 = vdwg.mxu0
    %3558 = vmatpush.msra.mxu0 %v1594
    %3559 = vmatpush.msra.mxu0 %v1581
    %3560 = vmatpush.msra.mxu0 %v1568
    %3561 = vmatpush.msra.mxu0 %v1555
    %3562 = vmatpush.msra.mxu0 %v1542
    %3563 = vmatpush.msra.mxu0 %v1529
    %3564 = vmatpush.msra.mxu0 %v1516
    %3565 = vmatpush.msra.mxu0 %v1503
    %3566 = vmatpush.msra.mxu0 %v1490
    %3567 = vmatpush.msra.mxu0 %v1477
    %3568 = vmatpush.msra.mxu0 %v1464
    %3569 = vmatpush.msra.mxu0 %v1451
    %3570 = vmatpush.msra.mxu0 %v1438
    %3571 = vmatpush.msra.mxu0 %v1425
    %3572 = vmatpush.msra.mxu0 %v1412
    %3573 = vmatpush.msra.mxu0 %v1399
    %3574 = vmatmul.f32.gmra.mxu0 %v761
    %v3575 = vpop.f32.mrf.mxu0
    %v3576 = vadd.f32 %v3556, %v3575
    %3577 = vdwg.mxu0
    %3578 = vmatpush.msra.mxu0 %v1802
    %3579 = vmatpush.msra.mxu0 %v1789
    %3580 = vmatpush.msra.mxu0 %v1776
    %3581 = vmatpush.msra.mxu0 %v1763
    %3582 = vmatpush.msra.mxu0 %v1750
    %3583 = vmatpush.msra.mxu0 %v1737
    %3584 = vmatpush.msra.mxu0 %v1724
    %3585 = vmatpush.msra.mxu0 %v1711
    %3586 = vmatpush.msra.mxu0 %v1698
    %3587 = vmatpush.msra.mxu0 %v1685
    %3588 = vmatpush.msra.mxu0 %v1672
    %3589 = vmatpush.msra.mxu0 %v1659
    %3590 = vmatpush.msra.mxu0 %v1646
    %3591 = vmatpush.msra.mxu0 %v1633
    %3592 = vmatpush.msra.mxu0 %v1620
    %3593 = vmatpush.msra.mxu0 %v1607
    %3594 = vmatmul.f32.gmra.mxu0 %v762
    %v3595 = vpop.f32.mrf.mxu0
    %v3596 = vadd.f32 %v3576, %v3595
    %3597 = vdwg.mxu0
    %3598 = vmatpush.msra.mxu0 %v2010
    %3599 = vmatpush.msra.mxu0 %v1997
    %3600 = vmatpush.msra.mxu0 %v1984
    %3601 = vmatpush.msra.mxu0 %v1971
    %3602 = vmatpush.msra.mxu0 %v1958
    %3603 = vmatpush.msra.mxu0 %v1945
    %3604 = vmatpush.msra.mxu0 %v1932
    %3605 = vmatpush.msra.mxu0 %v1919
    %3606 = vmatpush.msra.mxu0 %v1906
    %3607 = vmatpush.msra.mxu0 %v1893
    %3608 = vmatpush.msra.mxu0 %v1880
    %3609 = vmatpush.msra.mxu0 %v1867
    %3610 = vmatpush.msra.mxu0 %v1854
    %3611 = vmatpush.msra.mxu0 %v1841
    %3612 = vmatpush.msra.mxu0 %v1828
    %3613 = vmatpush.msra.mxu0 %v1815
    %3614 = vmatmul.f32.gmra.mxu0 %v763
    %v3615 = vpop.f32.mrf.mxu0
    %v3616 = vadd.f32 %v3596, %v3615
    %3617 = vdwg.mxu0
    %3618 = vmatpush.msra.mxu0 0.0
    %3619 = vmatpush.msra.mxu0 0.0
    %3620 = vmatpush.msra.mxu0 0.0
    %3621 = vmatpush.msra.mxu0 0.0
    %3622 = vmatpush.msra.mxu0 0.0
    %3623 = vmatpush.msra.mxu0 0.0
    %3624 = vmatpush.msra.mxu0 0.0
    %3625 = vmatpush.msra.mxu0 0.0
    %3626 = vmatpush.msra.mxu0 0.0
    %3627 = vmatpush.msra.mxu0 0.0
    %3628 = vmatpush.msra.mxu0 0.0
    %3629 = vmatpush.msra.mxu0 0.0
    %3630 = vmatpush.msra.mxu0 %v2062
    %3631 = vmatpush.msra.mxu0 %v2049
    %3632 = vmatpush.msra.mxu0 %v2036
    %3633 = vmatpush.msra.mxu0 %v2023
    %3634 = vmatmul.f32.gmra.mxu0 %v2096
    %v3635 = vpop.f32.mrf.mxu0
    %v3636 = vadd.f32 %v3616, %v3635
    %3637 = vdwg.mxu0
    %3638 = vmatpush.msra.mxu0 %v971
    %3639 = vmatpush.msra.mxu0 %v958
    %3640 = vmatpush.msra.mxu0 %v945
    %3641 = vmatpush.msra.mxu0 %v932
    %3642 = vmatpush.msra.mxu0 %v919
    %3643 = vmatpush.msra.mxu0 %v906
    %3644 = vmatpush.msra.mxu0 %v893
    %3645 = vmatpush.msra.mxu0 %v880
    %3646 = vmatpush.msra.mxu0 %v867
    %3647 = vmatpush.msra.mxu0 %v854
    %3648 = vmatpush.msra.mxu0 %v841
    %3649 = vmatpush.msra.mxu0 %v828
    %3650 = vmatpush.msra.mxu0 %v815
    %3651 = vmatpush.msra.mxu0 %v802
    %3652 = vmatpush.msra.mxu0 %v789
    %3653 = vmatpush.msra.mxu0 %v776
    %3654 = vmatmul.f32.gmra.mxu0 %v758
    %v3655 = vpop.f32.mrf.mxu0
    %v3656 = vadd.f32 %v2080, %v3655
    %3657 = vdwg.mxu0
    %3658 = vmatpush.msra.mxu0 %v1179
    %3659 = vmatpush.msra.mxu0 %v1166
    %3660 = vmatpush.msra.mxu0 %v1153
    %3661 = vmatpush.msra.mxu0 %v1140
    %3662 = vmatpush.msra.mxu0 %v1127
    %3663 = vmatpush.msra.mxu0 %v1114
    %3664 = vmatpush.msra.mxu0 %v1101
    %3665 = vmatpush.msra.mxu0 %v1088
    %3666 = vmatpush.msra.mxu0 %v1075
    %3667 = vmatpush.msra.mxu0 %v1062
    %3668 = vmatpush.msra.mxu0 %v1049
    %3669 = vmatpush.msra.mxu0 %v1036
    %3670 = vmatpush.msra.mxu0 %v1023
    %3671 = vmatpush.msra.mxu0 %v1010
    %3672 = vmatpush.msra.mxu0 %v997
    %3673 = vmatpush.msra.mxu0 %v984
    %3674 = vmatmul.f32.gmra.mxu0 %v759
    %v3675 = vpop.f32.mrf.mxu0
    %v3676 = vadd.f32 %v3656, %v3675
    %3677 = vdwg.mxu0
    %3678 = vmatpush.msra.mxu0 %v1387
    %3679 = vmatpush.msra.mxu0 %v1374
    %3680 = vmatpush.msra.mxu0 %v1361
    %3681 = vmatpush.msra.mxu0 %v1348
    %3682 = vmatpush.msra.mxu0 %v1335
    %3683 = vmatpush.msra.mxu0 %v1322
    %3684 = vmatpush.msra.mxu0 %v1309
    %3685 = vmatpush.msra.mxu0 %v1296
    %3686 = vmatpush.msra.mxu0 %v1283
    %3687 = vmatpush.msra.mxu0 %v1270
    %3688 = vmatpush.msra.mxu0 %v1257
    %3689 = vmatpush.msra.mxu0 %v1244
    %3690 = vmatpush.msra.mxu0 %v1231
    %3691 = vmatpush.msra.mxu0 %v1218
    %3692 = vmatpush.msra.mxu0 %v1205
    %3693 = vmatpush.msra.mxu0 %v1192
    %3694 = vmatmul.f32.gmra.mxu0 %v760
    %v3695 = vpop.f32.mrf.mxu0
    %v3696 = vadd.f32 %v3676, %v3695
    %3697 = vdwg.mxu0
    %3698 = vmatpush.msra.mxu0 %v1595
    %3699 = vmatpush.msra.mxu0 %v1582
    %3700 = vmatpush.msra.mxu0 %v1569
    %3701 = vmatpush.msra.mxu0 %v1556
    %3702 = vmatpush.msra.mxu0 %v1543
    %3703 = vmatpush.msra.mxu0 %v1530
    %3704 = vmatpush.msra.mxu0 %v1517
    %3705 = vmatpush.msra.mxu0 %v1504
    %3706 = vmatpush.msra.mxu0 %v1491
    %3707 = vmatpush.msra.mxu0 %v1478
    %3708 = vmatpush.msra.mxu0 %v1465
    %3709 = vmatpush.msra.mxu0 %v1452
    %3710 = vmatpush.msra.mxu0 %v1439
    %3711 = vmatpush.msra.mxu0 %v1426
    %3712 = vmatpush.msra.mxu0 %v1413
    %3713 = vmatpush.msra.mxu0 %v1400
    %3714 = vmatmul.f32.gmra.mxu0 %v761
    %v3715 = vpop.f32.mrf.mxu0
    %v3716 = vadd.f32 %v3696, %v3715
    %3717 = vdwg.mxu0
    %3718 = vmatpush.msra.mxu0 %v1803
    %3719 = vmatpush.msra.mxu0 %v1790
    %3720 = vmatpush.msra.mxu0 %v1777
    %3721 = vmatpush.msra.mxu0 %v1764
    %3722 = vmatpush.msra.mxu0 %v1751
    %3723 = vmatpush.msra.mxu0 %v1738
    %3724 = vmatpush.msra.mxu0 %v1725
    %3725 = vmatpush.msra.mxu0 %v1712
    %3726 = vmatpush.msra.mxu0 %v1699
    %3727 = vmatpush.msra.mxu0 %v1686
    %3728 = vmatpush.msra.mxu0 %v1673
    %3729 = vmatpush.msra.mxu0 %v1660
    %3730 = vmatpush.msra.mxu0 %v1647
    %3731 = vmatpush.msra.mxu0 %v1634
    %3732 = vmatpush.msra.mxu0 %v1621
    %3733 = vmatpush.msra.mxu0 %v1608
    %3734 = vmatmul.f32.gmra.mxu0 %v762
    %v3735 = vpop.f32.mrf.mxu0
    %v3736 = vadd.f32 %v3716, %v3735
    %3737 = vdwg.mxu0
    %3738 = vmatpush.msra.mxu0 %v2011
    %3739 = vmatpush.msra.mxu0 %v1998
    %3740 = vmatpush.msra.mxu0 %v1985
    %3741 = vmatpush.msra.mxu0 %v1972
    %3742 = vmatpush.msra.mxu0 %v1959
    %3743 = vmatpush.msra.mxu0 %v1946
    %3744 = vmatpush.msra.mxu0 %v1933
    %3745 = vmatpush.msra.mxu0 %v1920
    %3746 = vmatpush.msra.mxu0 %v1907
    %3747 = vmatpush.msra.mxu0 %v1894
    %3748 = vmatpush.msra.mxu0 %v1881
    %3749 = vmatpush.msra.mxu0 %v1868
    %3750 = vmatpush.msra.mxu0 %v1855
    %3751 = vmatpush.msra.mxu0 %v1842
    %3752 = vmatpush.msra.mxu0 %v1829
    %3753 = vmatpush.msra.mxu0 %v1816
    %3754 = vmatmul.f32.gmra.mxu0 %v763
    %v3755 = vpop.f32.mrf.mxu0
    %v3756 = vadd.f32 %v3736, %v3755
    %3757 = vdwg.mxu0
    %3758 = vmatpush.msra.mxu0 0.0
    %3759 = vmatpush.msra.mxu0 0.0
    %3760 = vmatpush.msra.mxu0 0.0
    %3761 = vmatpush.msra.mxu0 0.0
    %3762 = vmatpush.msra.mxu0 0.0
    %3763 = vmatpush.msra.mxu0 0.0
    %3764 = vmatpush.msra.mxu0 0.0
    %3765 = vmatpush.msra.mxu0 0.0
    %3766 = vmatpush.msra.mxu0 0.0
    %3767 = vmatpush.msra.mxu0 0.0
    %3768 = vmatpush.msra.mxu0 0.0
    %3769 = vmatpush.msra.mxu0 0.0
    %3770 = vmatpush.msra.mxu0 %v2063
    %3771 = vmatpush.msra.mxu0 %v2050
    %3772 = vmatpush.msra.mxu0 %v2037
    %3773 = vmatpush.msra.mxu0 %v2024
    %3774 = vmatmul.f32.gmra.mxu0 %v2096
    %v3775 = vpop.f32.mrf.mxu0
    %v3776 = vadd.f32 %v3756, %v3775
    %3777 = vdwg.mxu0
    %3778 = vmatpush.msra.mxu0 %v972
    %3779 = vmatpush.msra.mxu0 %v959
    %3780 = vmatpush.msra.mxu0 %v946
    %3781 = vmatpush.msra.mxu0 %v933
    %3782 = vmatpush.msra.mxu0 %v920
    %3783 = vmatpush.msra.mxu0 %v907
    %3784 = vmatpush.msra.mxu0 %v894
    %3785 = vmatpush.msra.mxu0 %v881
    %3786 = vmatpush.msra.mxu0 %v868
    %3787 = vmatpush.msra.mxu0 %v855
    %3788 = vmatpush.msra.mxu0 %v842
    %3789 = vmatpush.msra.mxu0 %v829
    %3790 = vmatpush.msra.mxu0 %v816
    %3791 = vmatpush.msra.mxu0 %v803
    %3792 = vmatpush.msra.mxu0 %v790
    %3793 = vmatpush.msra.mxu0 %v777
    %3794 = vmatmul.f32.gmra.mxu0 %v758
    %v3795 = vpop.f32.mrf.mxu0
    %v3796 = vadd.f32 %v2081, %v3795
    %3797 = vdwg.mxu0
    %3798 = vmatpush.msra.mxu0 %v1180
    %3799 = vmatpush.msra.mxu0 %v1167
    %3800 = vmatpush.msra.mxu0 %v1154
    %3801 = vmatpush.msra.mxu0 %v1141
    %3802 = vmatpush.msra.mxu0 %v1128
    %3803 = vmatpush.msra.mxu0 %v1115
    %3804 = vmatpush.msra.mxu0 %v1102
    %3805 = vmatpush.msra.mxu0 %v1089
    %3806 = vmatpush.msra.mxu0 %v1076
    %3807 = vmatpush.msra.mxu0 %v1063
    %3808 = vmatpush.msra.mxu0 %v1050
    %3809 = vmatpush.msra.mxu0 %v1037
    %3810 = vmatpush.msra.mxu0 %v1024
    %3811 = vmatpush.msra.mxu0 %v1011
    %3812 = vmatpush.msra.mxu0 %v998
    %3813 = vmatpush.msra.mxu0 %v985
    %3814 = vmatmul.f32.gmra.mxu0 %v759
    %v3815 = vpop.f32.mrf.mxu0
    %v3816 = vadd.f32 %v3796, %v3815
    %3817 = vdwg.mxu0
    %3818 = vmatpush.msra.mxu0 %v1388
    %3819 = vmatpush.msra.mxu0 %v1375
    %3820 = vmatpush.msra.mxu0 %v1362
    %3821 = vmatpush.msra.mxu0 %v1349
    %3822 = vmatpush.msra.mxu0 %v1336
    %3823 = vmatpush.msra.mxu0 %v1323
    %3824 = vmatpush.msra.mxu0 %v1310
    %3825 = vmatpush.msra.mxu0 %v1297
    %3826 = vmatpush.msra.mxu0 %v1284
    %3827 = vmatpush.msra.mxu0 %v1271
    %3828 = vmatpush.msra.mxu0 %v1258
    %3829 = vmatpush.msra.mxu0 %v1245
    %3830 = vmatpush.msra.mxu0 %v1232
    %3831 = vmatpush.msra.mxu0 %v1219
    %3832 = vmatpush.msra.mxu0 %v1206
    %3833 = vmatpush.msra.mxu0 %v1193
    %3834 = vmatmul.f32.gmra.mxu0 %v760
    %v3835 = vpop.f32.mrf.mxu0
    %v3836 = vadd.f32 %v3816, %v3835
    %3837 = vdwg.mxu0
    %3838 = vmatpush.msra.mxu0 %v1596
    %3839 = vmatpush.msra.mxu0 %v1583
    %3840 = vmatpush.msra.mxu0 %v1570
    %3841 = vmatpush.msra.mxu0 %v1557
    %3842 = vmatpush.msra.mxu0 %v1544
    %3843 = vmatpush.msra.mxu0 %v1531
    %3844 = vmatpush.msra.mxu0 %v1518
    %3845 = vmatpush.msra.mxu0 %v1505
    %3846 = vmatpush.msra.mxu0 %v1492
    %3847 = vmatpush.msra.mxu0 %v1479
    %3848 = vmatpush.msra.mxu0 %v1466
    %3849 = vmatpush.msra.mxu0 %v1453
    %3850 = vmatpush.msra.mxu0 %v1440
    %3851 = vmatpush.msra.mxu0 %v1427
    %3852 = vmatpush.msra.mxu0 %v1414
    %3853 = vmatpush.msra.mxu0 %v1401
    %3854 = vmatmul.f32.gmra.mxu0 %v761
    %v3855 = vpop.f32.mrf.mxu0
    %v3856 = vadd.f32 %v3836, %v3855
    %3857 = vdwg.mxu0
    %3858 = vmatpush.msra.mxu0 %v1804
    %3859 = vmatpush.msra.mxu0 %v1791
    %3860 = vmatpush.msra.mxu0 %v1778
    %3861 = vmatpush.msra.mxu0 %v1765
    %3862 = vmatpush.msra.mxu0 %v1752
    %3863 = vmatpush.msra.mxu0 %v1739
    %3864 = vmatpush.msra.mxu0 %v1726
    %3865 = vmatpush.msra.mxu0 %v1713
    %3866 = vmatpush.msra.mxu0 %v1700
    %3867 = vmatpush.msra.mxu0 %v1687
    %3868 = vmatpush.msra.mxu0 %v1674
    %3869 = vmatpush.msra.mxu0 %v1661
    %3870 = vmatpush.msra.mxu0 %v1648
    %3871 = vmatpush.msra.mxu0 %v1635
    %3872 = vmatpush.msra.mxu0 %v1622
    %3873 = vmatpush.msra.mxu0 %v1609
    %3874 = vmatmul.f32.gmra.mxu0 %v762
    %v3875 = vpop.f32.mrf.mxu0
    %v3876 = vadd.f32 %v3856, %v3875
    %3877 = vdwg.mxu0
    %3878 = vmatpush.msra.mxu0 %v2012
    %3879 = vmatpush.msra.mxu0 %v1999
    %3880 = vmatpush.msra.mxu0 %v1986
    %3881 = vmatpush.msra.mxu0 %v1973
    %3882 = vmatpush.msra.mxu0 %v1960
    %3883 = vmatpush.msra.mxu0 %v1947
    %3884 = vmatpush.msra.mxu0 %v1934
    %3885 = vmatpush.msra.mxu0 %v1921
    %3886 = vmatpush.msra.mxu0 %v1908
    %3887 = vmatpush.msra.mxu0 %v1895
    %3888 = vmatpush.msra.mxu0 %v1882
    %3889 = vmatpush.msra.mxu0 %v1869
    %3890 = vmatpush.msra.mxu0 %v1856
    %3891 = vmatpush.msra.mxu0 %v1843
    %3892 = vmatpush.msra.mxu0 %v1830
    %3893 = vmatpush.msra.mxu0 %v1817
    %3894 = vmatmul.f32.gmra.mxu0 %v763
    %v3895 = vpop.f32.mrf.mxu0
    %v3896 = vadd.f32 %v3876, %v3895
    %3897 = vdwg.mxu0
    %3898 = vmatpush.msra.mxu0 0.0
    %3899 = vmatpush.msra.mxu0 0.0
    %3900 = vmatpush.msra.mxu0 0.0
    %3901 = vmatpush.msra.mxu0 0.0
    %3902 = vmatpush.msra.mxu0 0.0
    %3903 = vmatpush.msra.mxu0 0.0
    %3904 = vmatpush.msra.mxu0 0.0
    %3905 = vmatpush.msra.mxu0 0.0
    %3906 = vmatpush.msra.mxu0 0.0
    %3907 = vmatpush.msra.mxu0 0.0
    %3908 = vmatpush.msra.mxu0 0.0
    %3909 = vmatpush.msra.mxu0 0.0
    %3910 = vmatpush.msra.mxu0 %v2064
    %3911 = vmatpush.msra.mxu0 %v2051
    %3912 = vmatpush.msra.mxu0 %v2038
    %3913 = vmatpush.msra.mxu0 %v2025
    %3914 = vmatmul.f32.gmra.mxu0 %v2096
    %v3915 = vpop.f32.mrf.mxu0
    %v3916 = vadd.f32 %v3896, %v3915
    %3917 = vdwg.mxu0
    %v3918 = vmax.f32 %v2236, 0.0
    %v3919 = vmax.f32 %v2376, 0.0
    %v3920 = vmax.f32 %v2516, 0.0
    %v3921 = vmax.f32 %v2656, 0.0
    %v3922 = vmax.f32 %v2796, 0.0
    %v3923 = vmax.f32 %v2936, 0.0
    %v3924 = vmax.f32 %v3076, 0.0
    %v3925 = vmax.f32 %v3216, 0.0
    %v3926 = vmax.f32 %v3356, 0.0
    %v3927 = vmax.f32 %v3496, 0.0
    %v3928 = vmax.f32 %v3636, 0.0
    %v3929 = vmax.f32 %v3776, 0.0
    %v3930 = vmax.f32 %v3916, 0.0
    %3934 = vrot.lane.b32.xlu0 %v3919, 32
    %v3935 = vpop.permute.xlu0 %3934
    %3936 = vrot.lane.b32.xlu0 %v3920, 32
    %v3937 = vpop.permute.xlu0 %3936
    %3938 = vrot.lane.b32.xlu0 %v3921, 32
    %v3939 = vpop.permute.xlu0 %3938
    %v3940 = vsel %vm542, %v3935, %v3937
    %v3941 = vsel %vm542, %v3937, %v3939
    %3946 = vrot.lane.b32.xlu0 %v3921, 64
    %v3947 = vpop.permute.xlu0 %3946
    %3948 = vrot.lane.b32.xlu0 %v3922, 64
    %v3949 = vpop.permute.xlu0 %3948
    %3950 = vrot.lane.b32.xlu0 %v3923, 64
    %v3951 = vpop.permute.xlu0 %3950
    %vm3952 = vcmask 523264
    %v3953 = vsel %vm3952, %v3947, %v3949
    %v3954 = vsel %vm3952, %v3949, %v3951
    %3958 = vrot.lane.b32.xlu0 %v3923, 96
    %v3959 = vpop.permute.xlu0 %3958
    %3960 = vrot.lane.b32.xlu0 %v3924, 96
    %v3961 = vpop.permute.xlu0 %3960
    %vm3962 = vcmask 785408
    %v3963 = vsel %vm3962, %v3959, %v3961
    %3969 = vrot.lane.b32.xlu0 %v3926, 32
    %v3970 = vpop.permute.xlu0 %3969
    %3971 = vrot.lane.b32.xlu0 %v3927, 32
    %v3972 = vpop.permute.xlu0 %3971
    %3973 = vrot.lane.b32.xlu0 %v3928, 32
    %v3974 = vpop.permute.xlu0 %3973
    %v3975 = vsel %vm542, %v3970, %v3972
    %v3976 = vsel %vm542, %v3972, %v3974
    %3981 = vrot.lane.b32.xlu0 %v3928, 64
    %v3982 = vpop.permute.xlu0 %3981
    %3983 = vrot.lane.b32.xlu0 %v3929, 64
    %v3984 = vpop.permute.xlu0 %3983
    %3985 = vrot.lane.b32.xlu0 %v3930, 64
    %v3986 = vpop.permute.xlu0 %3985
    %v3987 = vsel %vm3952, %v3982, %v3984
    %v3988 = vsel %vm3952, %v3984, %v3986
    %3994 = vrot.lane.b32.xlu0 %v3918, 96
    %v3995 = vpop.permute.xlu0 %3994
    %3996 = vrot.lane.b32.xlu0 %v3919, 96
    %v3997 = vpop.permute.xlu0 %3996
    %3998 = vrot.lane.b32.xlu0 0.0, 96
    %v3999 = vpop.permute.xlu0 %3998
    %4000 = vrot.lane.b32.xlu0 %v3940, 96
    %v4001 = vpop.permute.xlu0 %4000
    %4002 = vrot.lane.b32.xlu0 %v3941, 96
    %v4003 = vpop.permute.xlu0 %4002
    %4004 = vrot.lane.b32.xlu0 %v3953, 96
    %v4005 = vpop.permute.xlu0 %4004
    %4006 = vrot.lane.b32.xlu0 %v3954, 96
    %v4007 = vpop.permute.xlu0 %4006
    %4008 = vrot.lane.b32.xlu0 %v3963, 96
    %v4009 = vpop.permute.xlu0 %4008
    %4010 = vrot.lane.b32.xlu0 %v3961, 96
    %v4011 = vpop.permute.xlu0 %4010
    %4012 = vrot.lane.b32.xlu0 %v3925, 96
    %v4013 = vpop.permute.xlu0 %4012
    %4014 = vrot.lane.b32.xlu0 %v3926, 96
    %v4015 = vpop.permute.xlu0 %4014
    %4016 = vrot.lane.b32.xlu0 %v3975, 96
    %v4017 = vpop.permute.xlu0 %4016
    %4018 = vrot.lane.b32.xlu0 %v3976, 96
    %v4019 = vpop.permute.xlu0 %4018
    %4020 = vrot.lane.b32.xlu0 %v3987, 96
    %v4021 = vpop.permute.xlu0 %4020
    %4022 = vrot.lane.b32.xlu0 %v3988, 96
    %v4023 = vpop.permute.xlu0 %4022
    %v4024 = vsel %vm3962, %v3995, %v3997
    %v4025 = vsel %vm3962, %v4001, %v4003
    %v4026 = vsel %vm3962, %v4005, %v4007
    %v4027 = vsel %vm3962, %v4009, %v4011
    %v4028 = vsel %vm3962, %v4013, %v4015
    %v4029 = vsel %vm3962, %v4017, %v4019
    %v4030 = vsel %vm3962, %v4021, %v4023
    %4053 = vrot.lane.b32.xlu0 0.0, 64
    %v4054 = vpop.permute.xlu0 %4053
    %4055 = vrot.lane.b32.xlu0 %v3940, 64
    %v4056 = vpop.permute.xlu0 %4055
    %4057 = vrot.lane.b32.xlu0 %v3941, 64
    %v4058 = vpop.permute.xlu0 %4057
    %4059 = vrot.lane.b32.xlu0 %v3953, 64
    %v4060 = vpop.permute.xlu0 %4059
    %4061 = vrot.lane.b32.xlu0 %v3954, 64
    %v4062 = vpop.permute.xlu0 %4061
    %4063 = vrot.lane.b32.xlu0 %v3963, 64
    %v4064 = vpop.permute.xlu0 %4063
    %4065 = vrot.lane.b32.xlu0 %v3961, 64
    %v4066 = vpop.permute.xlu0 %4065
    %4067 = vrot.lane.b32.xlu0 %v3925, 64
    %v4068 = vpop.permute.xlu0 %4067
    %4069 = vrot.lane.b32.xlu0 %v3926, 64
    %v4070 = vpop.permute.xlu0 %4069
    %4071 = vrot.lane.b32.xlu0 %v3975, 64
    %v4072 = vpop.permute.xlu0 %4071
    %4073 = vrot.lane.b32.xlu0 %v3976, 64
    %v4074 = vpop.permute.xlu0 %4073
    %4075 = vrot.lane.b32.xlu0 %v3987, 64
    %v4076 = vpop.permute.xlu0 %4075
    %4077 = vrot.lane.b32.xlu0 %v3988, 64
    %v4078 = vpop.permute.xlu0 %4077
    %v4079 = vsel %vm3952, %v4056, %v4058
    %v4080 = vsel %vm3952, %v4060, %v4062
    %v4081 = vsel %vm3952, %v4064, %v4066
    %v4082 = vsel %vm3952, %v4068, %v4070
    %v4083 = vsel %vm3952, %v4072, %v4074
    %v4084 = vsel %vm3952, %v4076, %v4078
    %v4098 = vsel %vm3962, 0.0, %v3995
    %v4099 = vsel %vm3962, %v3919, %v3999
    %v4100 = vsel %vm3962, 0.0, %v4001
    %v4101 = vsel %vm3962, %v3941, %v3999
    %v4102 = vsel %vm3962, 0.0, %v4005
    %v4103 = vsel %vm3962, %v3954, %v3999
    %v4104 = vsel %vm3962, 0.0, %v4009
    %v4105 = vsel %vm3962, %v3961, %v3999
    %v4106 = vsel %vm3962, 0.0, %v4013
    %v4107 = vsel %vm3962, %v3926, %v3999
    %v4108 = vsel %vm3962, 0.0, %v4017
    %v4109 = vsel %vm3962, %v3976, %v3999
    %v4110 = vsel %vm3962, 0.0, %v4021
    %v4111 = vsel %vm3962, %v3988, %v3999
    %v4112 = vsel %vm3952, %v3997, %v4054
    %v4113 = vsel %vm3952, %v3999, %v4056
    %v4114 = vsel %vm3952, %v4003, %v4054
    %v4115 = vsel %vm3952, %v3999, %v4060
    %v4116 = vsel %vm3952, %v4007, %v4054
    %v4117 = vsel %vm3952, %v3999, %v4064
    %v4118 = vsel %vm3952, %v4011, %v4054
    %v4119 = vsel %vm3952, %v3999, %v4068
    %v4120 = vsel %vm3952, %v4015, %v4054
    %v4121 = vsel %vm3952, %v3999, %v4072
    %v4122 = vsel %vm3952, %v4019, %v4054
    %v4123 = vsel %vm3952, %v3999, %v4076
    %v4124 = vsel %vm3952, %v4023, %v4054
    %v4125 = vsel %vm3952, %v3999, %v4054
    %v4126 = vld [vmem:[#allocation14] sm:$0xff]
    %v4127 = vld [vmem:[#allocation14 + $0x8] sm:$0xff]
    %v4128 = vld [vmem:[#allocation14 + $0x10] sm:$0xff]
    %v4129 = vld [vmem:[#allocation14 + $0x18] sm:$0xff]
    %v4130 = vld [vmem:[#allocation14 + $0x20] sm:$0xff]
    %v4131 = vld [vmem:[#allocation14 + $0x28] sm:$0xff]
    %v4132 = vld [vmem:[#allocation14 + $0x30] sm:$0xff]
    %v4133 = vld [vmem:[#allocation14 + $0x38] sm:$0xff]
    %v4134 = vld [vmem:[#allocation14 + $0x40] sm:$0xff]
    %v4135 = vld [vmem:[#allocation14 + $0x48] sm:$0xff]
    %v4136 = vld [vmem:[#allocation14 + $0x50] sm:$0xff]
    %v4137 = vld [vmem:[#allocation14 + $0x58] sm:$0xff]
    %v4138 = vld [vmem:[#allocation14 + $0x60] sm:$0xff]
    %v4139 = vld [vmem:[#allocation14 + $0x68] sm:$0xff]
    %v4140 = vld [vmem:[#allocation14 + $0x70] sm:$0xff]
    %v4141 = vld [vmem:[#allocation14 + $0x78] sm:$0xff]
    %v4142 = vld [vmem:[#allocation14 + $0x80] sm:$0xff]
    %v4143 = vld [vmem:[#allocation14 + $0x88] sm:$0xff]
    %v4144 = vld [vmem:[#allocation14 + $0x90] sm:$0xff]
    %v4145 = vld [vmem:[#allocation14 + $0x98] sm:$0xff]
    %v4146 = vld [vmem:[#allocation14 + $0xa0] sm:$0xff]
    %v4147 = vld [vmem:[#allocation14 + $0xa8] sm:$0xff]
    %v4148 = vld [vmem:[#allocation14 + $0xb0] sm:$0xff]
    %v4149 = vld [vmem:[#allocation14 + $0xb8] sm:$0xff]
    %v4150 = vld [vmem:[#allocation14 + $0xc0] sm:$0xff]
    %v4151 = vld [vmem:[#allocation14 + $0xc8] sm:$0xff]
    %v4152 = vld [vmem:[#allocation14 + $0xd0] sm:$0xff]
    %v4153 = vld [vmem:[#allocation14 + $0xd8] sm:$0xff]
    %v4154 = vld [vmem:[#allocation14 + $0xe0] sm:$0xff]
    %v4155 = vld [vmem:[#allocation14 + $0xe8] sm:$0xff]
    %v4156 = vld [vmem:[#allocation14 + $0xf0] sm:$0xff]
    %v4157 = vld [vmem:[#allocation14 + $0xf8] sm:$0xff]
    %v4158 = vld [vmem:[#allocation14 + $0x100] sm:$0xff]
    %v4159 = vld [vmem:[#allocation14 + $0x108] sm:$0xff]
    %v4160 = vld [vmem:[#allocation14 + $0x110] sm:$0xff]
    %v4161 = vld [vmem:[#allocation14 + $0x118] sm:$0xff]
    %v4162 = vld [vmem:[#allocation14 + $0x120] sm:$0xff]
    %v4163 = vld [vmem:[#allocation14 + $0x128] sm:$0xff]
    %v4164 = vld [vmem:[#allocation14 + $0x130] sm:$0xff]
    %v4165 = vld [vmem:[#allocation14 + $0x138] sm:$0xff]
    %v4166 = vld [vmem:[#allocation14 + $0x140] sm:$0xff]
    %v4167 = vld [vmem:[#allocation14 + $0x148] sm:$0xff]
    %v4168 = vld [vmem:[#allocation14 + $0x150] sm:$0xff]
    %v4169 = vld [vmem:[#allocation14 + $0x158] sm:$0xff]
    %v4170 = vld [vmem:[#allocation14 + $0x160] sm:$0xff]
    %v4171 = vld [vmem:[#allocation14 + $0x168] sm:$0xff]
    %v4172 = vld [vmem:[#allocation14 + $0x170] sm:$0xff]
    %v4173 = vld [vmem:[#allocation14 + $0x178] sm:$0xff]
    %v4174 = vld [vmem:[#allocation14 + $0x180] sm:$0xff]
    %v4175 = vld [vmem:[#allocation14 + $0x188] sm:$0xff]
    %v4176 = vld [vmem:[#allocation14 + $0x190] sm:$0xff]
    %v4177 = vld [vmem:[#allocation14 + $0x198] sm:$0xff]
    %v4178 = vld [vmem:[#allocation14 + $0x1a0] sm:$0xff]
    %v4179 = vld [vmem:[#allocation14 + $0x1a8] sm:$0xff]
    %v4180 = vld [vmem:[#allocation14 + $0x1b0] sm:$0xff]
    %v4181 = vld [vmem:[#allocation14 + $0x1b8] sm:$0xff]
    %v4182 = vld [vmem:[#allocation14 + $0x1c0] sm:$0xff]
    %v4183 = vld [vmem:[#allocation14 + $0x1c8] sm:$0xff]
    %v4184 = vld [vmem:[#allocation14 + $0x1d0] sm:$0xff]
    %v4185 = vld [vmem:[#allocation14 + $0x1d8] sm:$0xff]
    %v4186 = vld [vmem:[#allocation14 + $0x1e0] sm:$0xff]
    %v4187 = vld [vmem:[#allocation14 + $0x1e8] sm:$0xff]
    %v4188 = vld [vmem:[#allocation14 + $0x1f0] sm:$0xff]
    %v4189 = vld [vmem:[#allocation14 + $0x1f8] sm:$0xff]
    %v4190 = vld [vmem:[#allocation14 + $0x200] sm:$0xff]
    %v4191 = vld [vmem:[#allocation14 + $0x208] sm:$0xff]
    %v4192 = vld [vmem:[#allocation14 + $0x210] sm:$0xff]
    %v4193 = vld [vmem:[#allocation14 + $0x218] sm:$0xff]
    %v4194 = vld [vmem:[#allocation14 + $0x220] sm:$0xff]
    %v4195 = vld [vmem:[#allocation14 + $0x228] sm:$0xff]
    %v4196 = vld [vmem:[#allocation14 + $0x230] sm:$0xff]
    %v4197 = vld [vmem:[#allocation14 + $0x238] sm:$0xff]
    %v4198 = vld [vmem:[#allocation14 + $0x240] sm:$0xff]
    %v4199 = vld [vmem:[#allocation14 + $0x248] sm:$0xff]
    %v4200 = vld [vmem:[#allocation14 + $0x250] sm:$0xff]
    %v4201 = vld [vmem:[#allocation14 + $0x258] sm:$0xff]
    %v4202 = vld [vmem:[#allocation14 + $0x260] sm:$0xff]
    %v4203 = vld [vmem:[#allocation14 + $0x268] sm:$0xff]
    %v4204 = vld [vmem:[#allocation14 + $0x270] sm:$0xff]
    %v4205 = vld [vmem:[#allocation14 + $0x278] sm:$0xff]
    %v4206 = vld [vmem:[#allocation14 + $0x280] sm:$0xff]
    %v4207 = vld [vmem:[#allocation14 + $0x288] sm:$0xff]
    %v4208 = vld [vmem:[#allocation14 + $0x290] sm:$0xff]
    %v4209 = vld [vmem:[#allocation14 + $0x298] sm:$0xff]
    %v4210 = vld [vmem:[#allocation14 + $0x2a0] sm:$0xff]
    %v4211 = vld [vmem:[#allocation14 + $0x2a8] sm:$0xff]
    %v4212 = vld [vmem:[#allocation14 + $0x2b0] sm:$0xff]
    %v4213 = vld [vmem:[#allocation14 + $0x2b8] sm:$0xff]
    %v4214 = vld [vmem:[#allocation14 + $0x2c0] sm:$0xff]
    %v4215 = vld [vmem:[#allocation14 + $0x2c8] sm:$0xff]
    %v4216 = vld [vmem:[#allocation14 + $0x2d0] sm:$0xff]
    %v4217 = vld [vmem:[#allocation14 + $0x2d8] sm:$0xff]
    %v4218 = vld [vmem:[#allocation14 + $0x2e0] sm:$0xff]
    %v4219 = vld [vmem:[#allocation14 + $0x2e8] sm:$0xff]
    %v4220 = vld [vmem:[#allocation14 + $0x2f0] sm:$0xff]
    %v4221 = vld [vmem:[#allocation14 + $0x2f8] sm:$0xff]
    %v4222 = vld [vmem:[#allocation14 + $0x300] sm:$0xff]
    %v4223 = vld [vmem:[#allocation14 + $0x308] sm:$0xff]
    %v4224 = vld [vmem:[#allocation14 + $0x310] sm:$0xff]
    %v4225 = vld [vmem:[#allocation14 + $0x318] sm:$0xff]
    %v4226 = vld [vmem:[#allocation14 + $0x320] sm:$0xff]
    %v4227 = vld [vmem:[#allocation14 + $0x328] sm:$0xff]
    %v4228 = vld [vmem:[#allocation14 + $0x330] sm:$0xff]
    %v4229 = vld [vmem:[#allocation14 + $0x338] sm:$0xff]
    %v4230 = vld [vmem:[#allocation14 + $0x340] sm:$0xff]
    %v4231 = vld [vmem:[#allocation14 + $0x348] sm:$0xff]
    %v4232 = vld [vmem:[#allocation14 + $0x350] sm:$0xff]
    %v4233 = vld [vmem:[#allocation14 + $0x358] sm:$0xff]
    %v4234 = vld [vmem:[#allocation14 + $0x360] sm:$0xff]
    %v4235 = vld [vmem:[#allocation14 + $0x368] sm:$0xff]
    %v4236 = vld [vmem:[#allocation14 + $0x370] sm:$0xff]
    %v4237 = vld [vmem:[#allocation14 + $0x378] sm:$0xff]
    %v4238 = vld [vmem:[#allocation14 + $0x380] sm:$0xff]
    %v4239 = vld [vmem:[#allocation14 + $0x388] sm:$0xff]
    %v4240 = vld [vmem:[#allocation14 + $0x390] sm:$0xff]
    %v4241 = vld [vmem:[#allocation14 + $0x398] sm:$0xff]
    %v4242 = vld [vmem:[#allocation14 + $0x3a0] sm:$0xff]
    %v4243 = vld [vmem:[#allocation14 + $0x3a8] sm:$0xff]
    %v4244 = vld [vmem:[#allocation14 + $0x3b0] sm:$0xff]
    %v4245 = vld [vmem:[#allocation14 + $0x3b8] sm:$0xff]
    %v4246 = vld [vmem:[#allocation14 + $0x3c0] sm:$0xff]
    %v4247 = vld [vmem:[#allocation14 + $0x3c8] sm:$0xff]
    %v4248 = vld [vmem:[#allocation14 + $0x3d0] sm:$0xff]
    %v4249 = vld [vmem:[#allocation14 + $0x3d8] sm:$0xff]
    %v4250 = vld [vmem:[#allocation14 + $0x3e0] sm:$0xff]
    %v4251 = vld [vmem:[#allocation14 + $0x3e8] sm:$0xff]
    %v4252 = vld [vmem:[#allocation14 + $0x3f0] sm:$0xff]
    %v4253 = vld [vmem:[#allocation14 + $0x3f8] sm:$0xff]
    %v4254 = vld [vmem:[#allocation14 + $0x400] sm:$0xff]
    %v4255 = vld [vmem:[#allocation14 + $0x408] sm:$0xff]
    %v4256 = vld [vmem:[#allocation14 + $0x410] sm:$0xff]
    %v4257 = vld [vmem:[#allocation14 + $0x418] sm:$0xff]
    %v4258 = vld [vmem:[#allocation14 + $0x420] sm:$0xff]
    %v4259 = vld [vmem:[#allocation14 + $0x428] sm:$0xff]
    %v4260 = vld [vmem:[#allocation14 + $0x430] sm:$0xff]
    %v4261 = vld [vmem:[#allocation14 + $0x438] sm:$0xff]
    %v4262 = vld [vmem:[#allocation14 + $0x440] sm:$0xff]
    %v4263 = vld [vmem:[#allocation14 + $0x448] sm:$0xff]
    %v4264 = vld [vmem:[#allocation14 + $0x450] sm:$0xff]
    %v4265 = vld [vmem:[#allocation14 + $0x458] sm:$0xff]
    %v4266 = vld [vmem:[#allocation14 + $0x460] sm:$0xff]
    %v4267 = vld [vmem:[#allocation14 + $0x468] sm:$0xff]
    %v4268 = vld [vmem:[#allocation14 + $0x470] sm:$0xff]
    %v4269 = vld [vmem:[#allocation14 + $0x478] sm:$0xff]
    %v4270 = vld [vmem:[#allocation14 + $0x480] sm:$0xff]
    %v4271 = vld [vmem:[#allocation14 + $0x488] sm:$0xff]
    %v4272 = vld [vmem:[#allocation14 + $0x490] sm:$0xff]
    %v4273 = vld [vmem:[#allocation14 + $0x498] sm:$0xff]
    %v4274 = vld [vmem:[#allocation14 + $0x4a0] sm:$0xff]
    %v4275 = vld [vmem:[#allocation14 + $0x4a8] sm:$0xff]
    %v4276 = vld [vmem:[#allocation14 + $0x4b0] sm:$0xff]
    %v4277 = vld [vmem:[#allocation14 + $0x4b8] sm:$0xff]
    %v4278 = vld [vmem:[#allocation14 + $0x4c0] sm:$0xff]
    %v4279 = vld [vmem:[#allocation14 + $0x4c8] sm:$0xff]
    %v4280 = vld [vmem:[#allocation14 + $0x4d0] sm:$0xff]
    %v4281 = vld [vmem:[#allocation14 + $0x4d8] sm:$0xff]
    %v4282 = vld [vmem:[#allocation14 + $0x4e0] sm:$0xff]
    %v4283 = vld [vmem:[#allocation14 + $0x4e8] sm:$0xff]
    %v4284 = vld [vmem:[#allocation14 + $0x4f0] sm:$0xff]
    %v4285 = vld [vmem:[#allocation14 + $0x4f8] sm:$0xff]
    %v4286 = vld [vmem:[#allocation14 + $0x500] sm:$0xff]
    %v4287 = vld [vmem:[#allocation14 + $0x508] sm:$0xff]
    %v4288 = vld [vmem:[#allocation14 + $0x510] sm:$0xff]
    %v4289 = vld [vmem:[#allocation14 + $0x518] sm:$0xff]
    %v4290 = vld [vmem:[#allocation14 + $0x520] sm:$0xff]
    %v4291 = vld [vmem:[#allocation14 + $0x528] sm:$0xff]
    %v4292 = vld [vmem:[#allocation14 + $0x530] sm:$0xff]
    %v4293 = vld [vmem:[#allocation14 + $0x538] sm:$0xff]
    %v4294 = vld [vmem:[#allocation15] sm:$0x3]
    %v4296 = vperm.slane %v4294, 0
    %v4297 = vperm.slane %v4294, 1
    %v4300 = vsel %vm542, %v4054, 0
    %v4302 = vsel %vm542, %v4058, 0
    %v4304 = vsel %vm542, %v4062, 0
    %v4306 = vsel %vm542, %v4066, 0
    %v4308 = vsel %vm542, %v4070, 0
    %v4310 = vsel %vm542, %v4074, 0
    %v4312 = vsel %vm542, %v4078, 0
    %4314 = vmatpush.msra.mxu0 %v4156
    %4315 = vmatpush.msra.mxu0 %v4154
    %4316 = vmatpush.msra.mxu0 %v4152
    %4317 = vmatpush.msra.mxu0 %v4150
    %4318 = vmatpush.msra.mxu0 %v4148
    %4319 = vmatpush.msra.mxu0 %v4146
    %4320 = vmatpush.msra.mxu0 %v4144
    %4321 = vmatpush.msra.mxu0 %v4142
    %4322 = vmatpush.msra.mxu0 %v4140
    %4323 = vmatpush.msra.mxu0 %v4138
    %4324 = vmatpush.msra.mxu0 %v4136
    %4325 = vmatpush.msra.mxu0 %v4134
    %4326 = vmatpush.msra.mxu0 %v4132
    %4327 = vmatpush.msra.mxu0 %v4130
    %4328 = vmatpush.msra.mxu0 %v4128
    %4329 = vmatpush.msra.mxu0 %v4126
    %4330 = vmatmul.f32.gmra.mxu0 0.0
    %v4331 = vpop.f32.mrf.mxu0
    %v4332 = vadd.f32 %v4296, %v4331
    %4333 = vmatmul.f32.gmra.mxu0 %v3918
    %v4334 = vpop.f32.mrf.mxu0
    %v4335 = vadd.f32 %v4296, %v4334
    %4336 = vmatmul.f32.gmra.mxu0 0.0
    %v4337 = vpop.f32.mrf.mxu0
    %v4338 = vadd.f32 %v4296, %v4337
    %4339 = vmatmul.f32.gmra.mxu0 %v3940
    %v4340 = vpop.f32.mrf.mxu0
    %v4341 = vadd.f32 %v4296, %v4340
    %4342 = vmatmul.f32.gmra.mxu0 0.0
    %v4343 = vpop.f32.mrf.mxu0
    %v4344 = vadd.f32 %v4296, %v4343
    %4345 = vmatmul.f32.gmra.mxu0 %v3953
    %v4346 = vpop.f32.mrf.mxu0
    %v4347 = vadd.f32 %v4296, %v4346
    %4348 = vmatmul.f32.gmra.mxu0 0.0
    %v4349 = vpop.f32.mrf.mxu0
    %v4350 = vadd.f32 %v4296, %v4349
    %4351 = vmatmul.f32.gmra.mxu0 %v3963
    %v4352 = vpop.f32.mrf.mxu0
    %v4353 = vadd.f32 %v4296, %v4352
    %4354 = vmatmul.f32.gmra.mxu0 0.0
    %v4355 = vpop.f32.mrf.mxu0
    %v4356 = vadd.f32 %v4296, %v4355
    %4357 = vmatmul.f32.gmra.mxu0 %v3925
    %v4358 = vpop.f32.mrf.mxu0
    %v4359 = vadd.f32 %v4296, %v4358
    %4360 = vmatmul.f32.gmra.mxu0 0.0
    %v4361 = vpop.f32.mrf.mxu0
    %v4362 = vadd.f32 %v4296, %v4361
    %4363 = vmatmul.f32.gmra.mxu0 %v3975
    %v4364 = vpop.f32.mrf.mxu0
    %v4365 = vadd.f32 %v4296, %v4364
    %4366 = vmatmul.f32.gmra.mxu0 0.0
    %v4367 = vpop.f32.mrf.mxu0
    %v4368 = vadd.f32 %v4296, %v4367
    %4369 = vmatmul.f32.gmra.mxu0 %v3987
    %v4370 = vpop.f32.mrf.mxu0
    %v4371 = vadd.f32 %v4296, %v4370
    %4372 = vdwg.mxu0
    %4373 = vmatpush.msra.mxu0 %v4188
    %4374 = vmatpush.msra.mxu0 %v4186
    %4375 = vmatpush.msra.mxu0 %v4184
    %4376 = vmatpush.msra.mxu0 %v4182
    %4377 = vmatpush.msra.mxu0 %v4180
    %4378 = vmatpush.msra.mxu0 %v4178
    %4379 = vmatpush.msra.mxu0 %v4176
    %4380 = vmatpush.msra.mxu0 %v4174
    %4381 = vmatpush.msra.mxu0 %v4172
    %4382 = vmatpush.msra.mxu0 %v4170
    %4383 = vmatpush.msra.mxu0 %v4168
    %4384 = vmatpush.msra.mxu0 %v4166
    %4385 = vmatpush.msra.mxu0 %v4164
    %4386 = vmatpush.msra.mxu0 %v4162
    %4387 = vmatpush.msra.mxu0 %v4160
    %4388 = vmatpush.msra.mxu0 %v4158
    %4389 = vmatmul.f32.gmra.mxu0 %v4098
    %v4390 = vpop.f32.mrf.mxu0
    %v4391 = vadd.f32 %v4332, %v4390
    %4392 = vmatmul.f32.gmra.mxu0 %v4099
    %v4393 = vpop.f32.mrf.mxu0
    %v4394 = vadd.f32 %v4335, %v4393
    %4395 = vmatmul.f32.gmra.mxu0 %v4100
    %v4396 = vpop.f32.mrf.mxu0
    %v4397 = vadd.f32 %v4338, %v4396
    %4398 = vmatmul.f32.gmra.mxu0 %v4101
    %v4399 = vpop.f32.mrf.mxu0
    %v4400 = vadd.f32 %v4341, %v4399
    %4401 = vmatmul.f32.gmra.mxu0 %v4102
    %v4402 = vpop.f32.mrf.mxu0
    %v4403 = vadd.f32 %v4344, %v4402
    %4404 = vmatmul.f32.gmra.mxu0 %v4103
    %v4405 = vpop.f32.mrf.mxu0
    %v4406 = vadd.f32 %v4347, %v4405
    %4407 = vmatmul.f32.gmra.mxu0 %v4104
    %v4408 = vpop.f32.mrf.mxu0
    %v4409 = vadd.f32 %v4350, %v4408
    %4410 = vmatmul.f32.gmra.mxu0 %v4105
    %v4411 = vpop.f32.mrf.mxu0
    %v4412 = vadd.f32 %v4353, %v4411
    %4413 = vmatmul.f32.gmra.mxu0 %v4106
    %v4414 = vpop.f32.mrf.mxu0
    %v4415 = vadd.f32 %v4356, %v4414
    %4416 = vmatmul.f32.gmra.mxu0 %v4107
    %v4417 = vpop.f32.mrf.mxu0
    %v4418 = vadd.f32 %v4359, %v4417
    %4419 = vmatmul.f32.gmra.mxu0 %v4108
    %v4420 = vpop.f32.mrf.mxu0
    %v4421 = vadd.f32 %v4362, %v4420
    %4422 = vmatmul.f32.gmra.mxu0 %v4109
    %v4423 = vpop.f32.mrf.mxu0
    %v4424 = vadd.f32 %v4365, %v4423
    %4425 = vmatmul.f32.gmra.mxu0 %v4110
    %v4426 = vpop.f32.mrf.mxu0
    %v4427 = vadd.f32 %v4368, %v4426
    %4428 = vmatmul.f32.gmra.mxu0 %v4111
    %v4429 = vpop.f32.mrf.mxu0
    %v4430 = vadd.f32 %v4371, %v4429
    %4431 = vdwg.mxu0
    %4432 = vmatpush.msra.mxu0 %v4220
    %4433 = vmatpush.msra.mxu0 %v4218
    %4434 = vmatpush.msra.mxu0 %v4216
    %4435 = vmatpush.msra.mxu0 %v4214
    %4436 = vmatpush.msra.mxu0 %v4212
    %4437 = vmatpush.msra.mxu0 %v4210
    %4438 = vmatpush.msra.mxu0 %v4208
    %4439 = vmatpush.msra.mxu0 %v4206
    %4440 = vmatpush.msra.mxu0 %v4204
    %4441 = vmatpush.msra.mxu0 %v4202
    %4442 = vmatpush.msra.mxu0 %v4200
    %4443 = vmatpush.msra.mxu0 %v4198
    %4444 = vmatpush.msra.mxu0 %v4196
    %4445 = vmatpush.msra.mxu0 %v4194
    %4446 = vmatpush.msra.mxu0 %v4192
    %4447 = vmatpush.msra.mxu0 %v4190
    %4448 = vmatmul.f32.gmra.mxu0 %v4024
    %v4449 = vpop.f32.mrf.mxu0
    %v4450 = vadd.f32 %v4391, %v4449
    %4451 = vmatmul.f32.gmra.mxu0 %v3999
    %v4452 = vpop.f32.mrf.mxu0
    %v4453 = vadd.f32 %v4394, %v4452
    %4454 = vmatmul.f32.gmra.mxu0 %v4025
    %v4455 = vpop.f32.mrf.mxu0
    %v4456 = vadd.f32 %v4397, %v4455
    %4457 = vmatmul.f32.gmra.mxu0 %v3999
    %v4458 = vpop.f32.mrf.mxu0
    %v4459 = vadd.f32 %v4400, %v4458
    %4460 = vmatmul.f32.gmra.mxu0 %v4026
    %v4461 = vpop.f32.mrf.mxu0
    %v4462 = vadd.f32 %v4403, %v4461
    %4463 = vmatmul.f32.gmra.mxu0 %v3999
    %v4464 = vpop.f32.mrf.mxu0
    %v4465 = vadd.f32 %v4406, %v4464
    %4466 = vmatmul.f32.gmra.mxu0 %v4027
    %v4467 = vpop.f32.mrf.mxu0
    %v4468 = vadd.f32 %v4409, %v4467
    %4469 = vmatmul.f32.gmra.mxu0 %v3999
    %v4470 = vpop.f32.mrf.mxu0
    %v4471 = vadd.f32 %v4412, %v4470
    %4472 = vmatmul.f32.gmra.mxu0 %v4028
    %v4473 = vpop.f32.mrf.mxu0
    %v4474 = vadd.f32 %v4415, %v4473
    %4475 = vmatmul.f32.gmra.mxu0 %v3999
    %v4476 = vpop.f32.mrf.mxu0
    %v4477 = vadd.f32 %v4418, %v4476
    %4478 = vmatmul.f32.gmra.mxu0 %v4029
    %v4479 = vpop.f32.mrf.mxu0
    %v4480 = vadd.f32 %v4421, %v4479
    %4481 = vmatmul.f32.gmra.mxu0 %v3999
    %v4482 = vpop.f32.mrf.mxu0
    %v4483 = vadd.f32 %v4424, %v4482
    %4484 = vmatmul.f32.gmra.mxu0 %v4030
    %v4485 = vpop.f32.mrf.mxu0
    %v4486 = vadd.f32 %v4427, %v4485
    %4487 = vmatmul.f32.gmra.mxu0 %v3999
    %v4488 = vpop.f32.mrf.mxu0
    %v4489 = vadd.f32 %v4430, %v4488
    %4490 = vdwg.mxu0
    %4491 = vmatpush.msra.mxu0 %v4252
    %4492 = vmatpush.msra.mxu0 %v4250
    %4493 = vmatpush.msra.mxu0 %v4248
    %4494 = vmatpush.msra.mxu0 %v4246
    %4495 = vmatpush.msra.mxu0 %v4244
    %4496 = vmatpush.msra.mxu0 %v4242
    %4497 = vmatpush.msra.mxu0 %v4240
    %4498 = vmatpush.msra.mxu0 %v4238
    %4499 = vmatpush.msra.mxu0 %v4236
    %4500 = vmatpush.msra.mxu0 %v4234
    %4501 = vmatpush.msra.mxu0 %v4232
    %4502 = vmatpush.msra.mxu0 %v4230
    %4503 = vmatpush.msra.mxu0 %v4228
    %4504 = vmatpush.msra.mxu0 %v4226
    %4505 = vmatpush.msra.mxu0 %v4224
    %4506 = vmatpush.msra.mxu0 %v4222
    %4507 = vmatmul.f32.gmra.mxu0 %v4112
    %v4508 = vpop.f32.mrf.mxu0
    %v4509 = vadd.f32 %v4450, %v4508
    %4510 = vmatmul.f32.gmra.mxu0 %v4113
    %v4511 = vpop.f32.mrf.mxu0
    %v4512 = vadd.f32 %v4453, %v4511
    %4513 = vmatmul.f32.gmra.mxu0 %v4114
    %v4514 = vpop.f32.mrf.mxu0
    %v4515 = vadd.f32 %v4456, %v4514
    %4516 = vmatmul.f32.gmra.mxu0 %v4115
    %v4517 = vpop.f32.mrf.mxu0
    %v4518 = vadd.f32 %v4459, %v4517
    %4519 = vmatmul.f32.gmra.mxu0 %v4116
    %v4520 = vpop.f32.mrf.mxu0
    %v4521 = vadd.f32 %v4462, %v4520
    %4522 = vmatmul.f32.gmra.mxu0 %v4117
    %v4523 = vpop.f32.mrf.mxu0
    %v4524 = vadd.f32 %v4465, %v4523
    %4525 = vmatmul.f32.gmra.mxu0 %v4118
    %v4526 = vpop.f32.mrf.mxu0
    %v4527 = vadd.f32 %v4468, %v4526
    %4528 = vmatmul.f32.gmra.mxu0 %v4119
    %v4529 = vpop.f32.mrf.mxu0
    %v4530 = vadd.f32 %v4471, %v4529
    %4531 = vmatmul.f32.gmra.mxu0 %v4120
    %v4532 = vpop.f32.mrf.mxu0
    %v4533 = vadd.f32 %v4474, %v4532
    %4534 = vmatmul.f32.gmra.mxu0 %v4121
    %v4535 = vpop.f32.mrf.mxu0
    %v4536 = vadd.f32 %v4477, %v4535
    %4537 = vmatmul.f32.gmra.mxu0 %v4122
    %v4538 = vpop.f32.mrf.mxu0
    %v4539 = vadd.f32 %v4480, %v4538
    %4540 = vmatmul.f32.gmra.mxu0 %v4123
    %v4541 = vpop.f32.mrf.mxu0
    %v4542 = vadd.f32 %v4483, %v4541
    %4543 = vmatmul.f32.gmra.mxu0 %v4124
    %v4544 = vpop.f32.mrf.mxu0
    %v4545 = vadd.f32 %v4486, %v4544
    %4546 = vmatmul.f32.gmra.mxu0 %v4125
    %v4547 = vpop.f32.mrf.mxu0
    %v4548 = vadd.f32 %v4489, %v4547
    %4549 = vdwg.mxu0
    %4550 = vmatpush.msra.mxu0 %v4284
    %4551 = vmatpush.msra.mxu0 %v4282
    %4552 = vmatpush.msra.mxu0 %v4280
    %4553 = vmatpush.msra.mxu0 %v4278
    %4554 = vmatpush.msra.mxu0 %v4276
    %4555 = vmatpush.msra.mxu0 %v4274
    %4556 = vmatpush.msra.mxu0 %v4272
    %4557 = vmatpush.msra.mxu0 %v4270
    %4558 = vmatpush.msra.mxu0 %v4268
    %4559 = vmatpush.msra.mxu0 %v4266
    %4560 = vmatpush.msra.mxu0 %v4264
    %4561 = vmatpush.msra.mxu0 %v4262
    %4562 = vmatpush.msra.mxu0 %v4260
    %4563 = vmatpush.msra.mxu0 %v4258
    %4564 = vmatpush.msra.mxu0 %v4256
    %4565 = vmatpush.msra.mxu0 %v4254
    %4566 = vmatmul.f32.gmra.mxu0 %v4054
    %v4567 = vpop.f32.mrf.mxu0
    %v4568 = vadd.f32 %v4509, %v4567
    %4569 = vmatmul.f32.gmra.mxu0 %v4079
    %v4570 = vpop.f32.mrf.mxu0
    %v4571 = vadd.f32 %v4512, %v4570
    %4572 = vmatmul.f32.gmra.mxu0 %v4054
    %v4573 = vpop.f32.mrf.mxu0
    %v4574 = vadd.f32 %v4515, %v4573
    %4575 = vmatmul.f32.gmra.mxu0 %v4080
    %v4576 = vpop.f32.mrf.mxu0
    %v4577 = vadd.f32 %v4518, %v4576
    %4578 = vmatmul.f32.gmra.mxu0 %v4054
    %v4579 = vpop.f32.mrf.mxu0
    %v4580 = vadd.f32 %v4521, %v4579
    %4581 = vmatmul.f32.gmra.mxu0 %v4081
    %v4582 = vpop.f32.mrf.mxu0
    %v4583 = vadd.f32 %v4524, %v4582
    %4584 = vmatmul.f32.gmra.mxu0 %v4054
    %v4585 = vpop.f32.mrf.mxu0
    %v4586 = vadd.f32 %v4527, %v4585
    %4587 = vmatmul.f32.gmra.mxu0 %v4082
    %v4588 = vpop.f32.mrf.mxu0
    %v4589 = vadd.f32 %v4530, %v4588
    %4590 = vmatmul.f32.gmra.mxu0 %v4054
    %v4591 = vpop.f32.mrf.mxu0
    %v4592 = vadd.f32 %v4533, %v4591
    %4593 = vmatmul.f32.gmra.mxu0 %v4083
    %v4594 = vpop.f32.mrf.mxu0
    %v4595 = vadd.f32 %v4536, %v4594
    %4596 = vmatmul.f32.gmra.mxu0 %v4054
    %v4597 = vpop.f32.mrf.mxu0
    %v4598 = vadd.f32 %v4539, %v4597
    %4599 = vmatmul.f32.gmra.mxu0 %v4084
    %v4600 = vpop.f32.mrf.mxu0
    %v4601 = vadd.f32 %v4542, %v4600
    %4602 = vmatmul.f32.gmra.mxu0 %v4054
    %v4603 = vpop.f32.mrf.mxu0
    %v4604 = vadd.f32 %v4545, %v4603
    %4605 = vmatmul.f32.gmra.mxu0 %v4054
    %v4606 = vpop.f32.mrf.mxu0
    %v4607 = vadd.f32 %v4548, %v4606
    %4608 = vdwg.mxu0
    %4609 = vmatpush.msra.mxu0 0.0
    %4610 = vmatpush.msra.mxu0 0.0
    %4611 = vmatpush.msra.mxu0 0.0
    %4612 = vmatpush.msra.mxu0 0.0
    %4613 = vmatpush.msra.mxu0 0.0
    %4614 = vmatpush.msra.mxu0 0.0
    %4615 = vmatpush.msra.mxu0 0.0
    %4616 = vmatpush.msra.mxu0 0.0
    %4617 = vmatpush.msra.mxu0 0.0
    %4618 = vmatpush.msra.mxu0 0.0
    %4619 = vmatpush.msra.mxu0 0.0
    %4620 = vmatpush.msra.mxu0 0.0
    %4621 = vmatpush.msra.mxu0 %v4292
    %4622 = vmatpush.msra.mxu0 %v4290
    %4623 = vmatpush.msra.mxu0 %v4288
    %4624 = vmatpush.msra.mxu0 %v4286
    %4625 = vmatmul.f32.gmra.mxu0 %v4300
    %v4626 = vpop.f32.mrf.mxu0
    %v4627 = vadd.f32 %v4568, %v4626
    %4628 = vmatmul.f32.gmra.mxu0 %v4302
    %v4629 = vpop.f32.mrf.mxu0
    %v4630 = vadd.f32 %v4571, %v4629
    %4631 = vmatmul.f32.gmra.mxu0 %v4300
    %v4632 = vpop.f32.mrf.mxu0
    %v4633 = vadd.f32 %v4574, %v4632
    %4634 = vmatmul.f32.gmra.mxu0 %v4304
    %v4635 = vpop.f32.mrf.mxu0
    %v4636 = vadd.f32 %v4577, %v4635
    %4637 = vmatmul.f32.gmra.mxu0 %v4300
    %v4638 = vpop.f32.mrf.mxu0
    %v4639 = vadd.f32 %v4580, %v4638
    %4640 = vmatmul.f32.gmra.mxu0 %v4306
    %v4641 = vpop.f32.mrf.mxu0
    %v4642 = vadd.f32 %v4583, %v4641
    %4643 = vmatmul.f32.gmra.mxu0 %v4300
    %v4644 = vpop.f32.mrf.mxu0
    %v4645 = vadd.f32 %v4586, %v4644
    %4646 = vmatmul.f32.gmra.mxu0 %v4308
    %v4647 = vpop.f32.mrf.mxu0
    %v4648 = vadd.f32 %v4589, %v4647
    %4649 = vmatmul.f32.gmra.mxu0 %v4300
    %v4650 = vpop.f32.mrf.mxu0
    %v4651 = vadd.f32 %v4592, %v4650
    %4652 = vmatmul.f32.gmra.mxu0 %v4310
    %v4653 = vpop.f32.mrf.mxu0
    %v4654 = vadd.f32 %v4595, %v4653
    %4655 = vmatmul.f32.gmra.mxu0 %v4300
    %v4656 = vpop.f32.mrf.mxu0
    %v4657 = vadd.f32 %v4598, %v4656
    %4658 = vmatmul.f32.gmra.mxu0 %v4312
    %v4659 = vpop.f32.mrf.mxu0
    %v4660 = vadd.f32 %v4601, %v4659
    %4661 = vmatmul.f32.gmra.mxu0 %v4300
    %v4662 = vpop.f32.mrf.mxu0
    %v4663 = vadd.f32 %v4604, %v4662
    %4664 = vmatmul.f32.gmra.mxu0 %v4300
    %v4665 = vpop.f32.mrf.mxu0
    %v4666 = vadd.f32 %v4607, %v4665
    %4667 = vdwg.mxu0
    %4668 = vmatpush.msra.mxu0 %v4157
    %4669 = vmatpush.msra.mxu0 %v4155
    %4670 = vmatpush.msra.mxu0 %v4153
    %4671 = vmatpush.msra.mxu0 %v4151
    %4672 = vmatpush.msra.mxu0 %v4149
    %4673 = vmatpush.msra.mxu0 %v4147
    %4674 = vmatpush.msra.mxu0 %v4145
    %4675 = vmatpush.msra.mxu0 %v4143
    %4676 = vmatpush.msra.mxu0 %v4141
    %4677 = vmatpush.msra.mxu0 %v4139
    %4678 = vmatpush.msra.mxu0 %v4137
    %4679 = vmatpush.msra.mxu0 %v4135
    %4680 = vmatpush.msra.mxu0 %v4133
    %4681 = vmatpush.msra.mxu0 %v4131
    %4682 = vmatpush.msra.mxu0 %v4129
    %4683 = vmatpush.msra.mxu0 %v4127
    %4684 = vmatmul.f32.gmra.mxu0 0.0
    %v4685 = vpop.f32.mrf.mxu0
    %v4686 = vadd.f32 %v4297, %v4685
    %4687 = vmatmul.f32.gmra.mxu0 %v3918
    %v4688 = vpop.f32.mrf.mxu0
    %v4689 = vadd.f32 %v4297, %v4688
    %4690 = vmatmul.f32.gmra.mxu0 0.0
    %v4691 = vpop.f32.mrf.mxu0
    %v4692 = vadd.f32 %v4297, %v4691
    %4693 = vmatmul.f32.gmra.mxu0 %v3940
    %v4694 = vpop.f32.mrf.mxu0
    %v4695 = vadd.f32 %v4297, %v4694
    %4696 = vmatmul.f32.gmra.mxu0 0.0
    %v4697 = vpop.f32.mrf.mxu0
    %v4698 = vadd.f32 %v4297, %v4697
    %4699 = vmatmul.f32.gmra.mxu0 %v3953
    %v4700 = vpop.f32.mrf.mxu0
    %v4701 = vadd.f32 %v4297, %v4700
    %4702 = vmatmul.f32.gmra.mxu0 0.0
    %v4703 = vpop.f32.mrf.mxu0
    %v4704 = vadd.f32 %v4297, %v4703
    %4705 = vmatmul.f32.gmra.mxu0 %v3963
    %v4706 = vpop.f32.mrf.mxu0
    %v4707 = vadd.f32 %v4297, %v4706
    %4708 = vmatmul.f32.gmra.mxu0 0.0
    %v4709 = vpop.f32.mrf.mxu0
    %v4710 = vadd.f32 %v4297, %v4709
    %4711 = vmatmul.f32.gmra.mxu0 %v3925
    %v4712 = vpop.f32.mrf.mxu0
    %v4713 = vadd.f32 %v4297, %v4712
    %4714 = vmatmul.f32.gmra.mxu0 0.0
    %v4715 = vpop.f32.mrf.mxu0
    %v4716 = vadd.f32 %v4297, %v4715
    %4717 = vmatmul.f32.gmra.mxu0 %v3975
    %v4718 = vpop.f32.mrf.mxu0
    %v4719 = vadd.f32 %v4297, %v4718
    %4720 = vmatmul.f32.gmra.mxu0 0.0
    %v4721 = vpop.f32.mrf.mxu0
    %v4722 = vadd.f32 %v4297, %v4721
    %4723 = vmatmul.f32.gmra.mxu0 %v3987
    %v4724 = vpop.f32.mrf.mxu0
    %v4725 = vadd.f32 %v4297, %v4724
    %4726 = vdwg.mxu0
    %4727 = vmatpush.msra.mxu0 %v4189
    %4728 = vmatpush.msra.mxu0 %v4187
    %4729 = vmatpush.msra.mxu0 %v4185
    %4730 = vmatpush.msra.mxu0 %v4183
    %4731 = vmatpush.msra.mxu0 %v4181
    %4732 = vmatpush.msra.mxu0 %v4179
    %4733 = vmatpush.msra.mxu0 %v4177
    %4734 = vmatpush.msra.mxu0 %v4175
    %4735 = vmatpush.msra.mxu0 %v4173
    %4736 = vmatpush.msra.mxu0 %v4171
    %4737 = vmatpush.msra.mxu0 %v4169
    %4738 = vmatpush.msra.mxu0 %v4167
    %4739 = vmatpush.msra.mxu0 %v4165
    %4740 = vmatpush.msra.mxu0 %v4163
    %4741 = vmatpush.msra.mxu0 %v4161
    %4742 = vmatpush.msra.mxu0 %v4159
    %4743 = vmatmul.f32.gmra.mxu0 %v4098
    %v4744 = vpop.f32.mrf.mxu0
    %v4745 = vadd.f32 %v4686, %v4744
    %4746 = vmatmul.f32.gmra.mxu0 %v4099
    %v4747 = vpop.f32.mrf.mxu0
    %v4748 = vadd.f32 %v4689, %v4747
    %4749 = vmatmul.f32.gmra.mxu0 %v4100
    %v4750 = vpop.f32.mrf.mxu0
    %v4751 = vadd.f32 %v4692, %v4750
    %4752 = vmatmul.f32.gmra.mxu0 %v4101
    %v4753 = vpop.f32.mrf.mxu0
    %v4754 = vadd.f32 %v4695, %v4753
    %4755 = vmatmul.f32.gmra.mxu0 %v4102
    %v4756 = vpop.f32.mrf.mxu0
    %v4757 = vadd.f32 %v4698, %v4756
    %4758 = vmatmul.f32.gmra.mxu0 %v4103
    %v4759 = vpop.f32.mrf.mxu0
    %v4760 = vadd.f32 %v4701, %v4759
    %4761 = vmatmul.f32.gmra.mxu0 %v4104
    %v4762 = vpop.f32.mrf.mxu0
    %v4763 = vadd.f32 %v4704, %v4762
    %4764 = vmatmul.f32.gmra.mxu0 %v4105
    %v4765 = vpop.f32.mrf.mxu0
    %v4766 = vadd.f32 %v4707, %v4765
    %4767 = vmatmul.f32.gmra.mxu0 %v4106
    %v4768 = vpop.f32.mrf.mxu0
    %v4769 = vadd.f32 %v4710, %v4768
    %4770 = vmatmul.f32.gmra.mxu0 %v4107
    %v4771 = vpop.f32.mrf.mxu0
    %v4772 = vadd.f32 %v4713, %v4771
    %4773 = vmatmul.f32.gmra.mxu0 %v4108
    %v4774 = vpop.f32.mrf.mxu0
    %v4775 = vadd.f32 %v4716, %v4774
    %4776 = vmatmul.f32.gmra.mxu0 %v4109
    %v4777 = vpop.f32.mrf.mxu0
    %v4778 = vadd.f32 %v4719, %v4777
    %4779 = vmatmul.f32.gmra.mxu0 %v4110
    %v4780 = vpop.f32.mrf.mxu0
    %v4781 = vadd.f32 %v4722, %v4780
    %4782 = vmatmul.f32.gmra.mxu0 %v4111
    %v4783 = vpop.f32.mrf.mxu0
    %v4784 = vadd.f32 %v4725, %v4783
    %4785 = vdwg.mxu0
    %4786 = vmatpush.msra.mxu0 %v4221
    %4787 = vmatpush.msra.mxu0 %v4219
    %4788 = vmatpush.msra.mxu0 %v4217
    %4789 = vmatpush.msra.mxu0 %v4215
    %4790 = vmatpush.msra.mxu0 %v4213
    %4791 = vmatpush.msra.mxu0 %v4211
    %4792 = vmatpush.msra.mxu0 %v4209
    %4793 = vmatpush.msra.mxu0 %v4207
    %4794 = vmatpush.msra.mxu0 %v4205
    %4795 = vmatpush.msra.mxu0 %v4203
    %4796 = vmatpush.msra.mxu0 %v4201
    %4797 = vmatpush.msra.mxu0 %v4199
    %4798 = vmatpush.msra.mxu0 %v4197
    %4799 = vmatpush.msra.mxu0 %v4195
    %4800 = vmatpush.msra.mxu0 %v4193
    %4801 = vmatpush.msra.mxu0 %v4191
    %4802 = vmatmul.f32.gmra.mxu0 %v4024
    %v4803 = vpop.f32.mrf.mxu0
    %v4804 = vadd.f32 %v4745, %v4803
    %4805 = vmatmul.f32.gmra.mxu0 %v3999
    %v4806 = vpop.f32.mrf.mxu0
    %v4807 = vadd.f32 %v4748, %v4806
    %4808 = vmatmul.f32.gmra.mxu0 %v4025
    %v4809 = vpop.f32.mrf.mxu0
    %v4810 = vadd.f32 %v4751, %v4809
    %4811 = vmatmul.f32.gmra.mxu0 %v3999
    %v4812 = vpop.f32.mrf.mxu0
    %v4813 = vadd.f32 %v4754, %v4812
    %4814 = vmatmul.f32.gmra.mxu0 %v4026
    %v4815 = vpop.f32.mrf.mxu0
    %v4816 = vadd.f32 %v4757, %v4815
    %4817 = vmatmul.f32.gmra.mxu0 %v3999
    %v4818 = vpop.f32.mrf.mxu0
    %v4819 = vadd.f32 %v4760, %v4818
    %4820 = vmatmul.f32.gmra.mxu0 %v4027
    %v4821 = vpop.f32.mrf.mxu0
    %v4822 = vadd.f32 %v4763, %v4821
    %4823 = vmatmul.f32.gmra.mxu0 %v3999
    %v4824 = vpop.f32.mrf.mxu0
    %v4825 = vadd.f32 %v4766, %v4824
    %4826 = vmatmul.f32.gmra.mxu0 %v4028
    %v4827 = vpop.f32.mrf.mxu0
    %v4828 = vadd.f32 %v4769, %v4827
    %4829 = vmatmul.f32.gmra.mxu0 %v3999
    %v4830 = vpop.f32.mrf.mxu0
    %v4831 = vadd.f32 %v4772, %v4830
    %4832 = vmatmul.f32.gmra.mxu0 %v4029
    %v4833 = vpop.f32.mrf.mxu0
    %v4834 = vadd.f32 %v4775, %v4833
    %4835 = vmatmul.f32.gmra.mxu0 %v3999
    %v4836 = vpop.f32.mrf.mxu0
    %v4837 = vadd.f32 %v4778, %v4836
    %4838 = vmatmul.f32.gmra.mxu0 %v4030
    %v4839 = vpop.f32.mrf.mxu0
    %v4840 = vadd.f32 %v4781, %v4839
    %4841 = vmatmul.f32.gmra.mxu0 %v3999
    %v4842 = vpop.f32.mrf.mxu0
    %v4843 = vadd.f32 %v4784, %v4842
    %4844 = vdwg.mxu0
    %4845 = vmatpush.msra.mxu0 %v4253
    %4846 = vmatpush.msra.mxu0 %v4251
    %4847 = vmatpush.msra.mxu0 %v4249
    %4848 = vmatpush.msra.mxu0 %v4247
    %4849 = vmatpush.msra.mxu0 %v4245
    %4850 = vmatpush.msra.mxu0 %v4243
    %4851 = vmatpush.msra.mxu0 %v4241
    %4852 = vmatpush.msra.mxu0 %v4239
    %4853 = vmatpush.msra.mxu0 %v4237
    %4854 = vmatpush.msra.mxu0 %v4235
    %4855 = vmatpush.msra.mxu0 %v4233
    %4856 = vmatpush.msra.mxu0 %v4231
    %4857 = vmatpush.msra.mxu0 %v4229
    %4858 = vmatpush.msra.mxu0 %v4227
    %4859 = vmatpush.msra.mxu0 %v4225
    %4860 = vmatpush.msra.mxu0 %v4223
    %4861 = vmatmul.f32.gmra.mxu0 %v4112
    %v4862 = vpop.f32.mrf.mxu0
    %v4863 = vadd.f32 %v4804, %v4862
    %4864 = vmatmul.f32.gmra.mxu0 %v4113
    %v4865 = vpop.f32.mrf.mxu0
    %v4866 = vadd.f32 %v4807, %v4865
    %4867 = vmatmul.f32.gmra.mxu0 %v4114
    %v4868 = vpop.f32.mrf.mxu0
    %v4869 = vadd.f32 %v4810, %v4868
    %4870 = vmatmul.f32.gmra.mxu0 %v4115
    %v4871 = vpop.f32.mrf.mxu0
    %v4872 = vadd.f32 %v4813, %v4871
    %4873 = vmatmul.f32.gmra.mxu0 %v4116
    %v4874 = vpop.f32.mrf.mxu0
    %v4875 = vadd.f32 %v4816, %v4874
    %4876 = vmatmul.f32.gmra.mxu0 %v4117
    %v4877 = vpop.f32.mrf.mxu0
    %v4878 = vadd.f32 %v4819, %v4877
    %4879 = vmatmul.f32.gmra.mxu0 %v4118
    %v4880 = vpop.f32.mrf.mxu0
    %v4881 = vadd.f32 %v4822, %v4880
    %4882 = vmatmul.f32.gmra.mxu0 %v4119
    %v4883 = vpop.f32.mrf.mxu0
    %v4884 = vadd.f32 %v4825, %v4883
    %4885 = vmatmul.f32.gmra.mxu0 %v4120
    %v4886 = vpop.f32.mrf.mxu0
    %v4887 = vadd.f32 %v4828, %v4886
    %4888 = vmatmul.f32.gmra.mxu0 %v4121
    %v4889 = vpop.f32.mrf.mxu0
    %v4890 = vadd.f32 %v4831, %v4889
    %4891 = vmatmul.f32.gmra.mxu0 %v4122
    %v4892 = vpop.f32.mrf.mxu0
    %v4893 = vadd.f32 %v4834, %v4892
    %4894 = vmatmul.f32.gmra.mxu0 %v4123
    %v4895 = vpop.f32.mrf.mxu0
    %v4896 = vadd.f32 %v4837, %v4895
    %4897 = vmatmul.f32.gmra.mxu0 %v4124
    %v4898 = vpop.f32.mrf.mxu0
    %v4899 = vadd.f32 %v4840, %v4898
    %4900 = vmatmul.f32.gmra.mxu0 %v4125
    %v4901 = vpop.f32.mrf.mxu0
    %v4902 = vadd.f32 %v4843, %v4901
    %4903 = vdwg.mxu0
    %4904 = vmatpush.msra.mxu0 %v4285
    %4905 = vmatpush.msra.mxu0 %v4283
    %4906 = vmatpush.msra.mxu0 %v4281
    %4907 = vmatpush.msra.mxu0 %v4279
    %4908 = vmatpush.msra.mxu0 %v4277
    %4909 = vmatpush.msra.mxu0 %v4275
    %4910 = vmatpush.msra.mxu0 %v4273
    %4911 = vmatpush.msra.mxu0 %v4271
    %4912 = vmatpush.msra.mxu0 %v4269
    %4913 = vmatpush.msra.mxu0 %v4267
    %4914 = vmatpush.msra.mxu0 %v4265
    %4915 = vmatpush.msra.mxu0 %v4263
    %4916 = vmatpush.msra.mxu0 %v4261
    %4917 = vmatpush.msra.mxu0 %v4259
    %4918 = vmatpush.msra.mxu0 %v4257
    %4919 = vmatpush.msra.mxu0 %v4255
    %4920 = vmatmul.f32.gmra.mxu0 %v4054
    %v4921 = vpop.f32.mrf.mxu0
    %v4922 = vadd.f32 %v4863, %v4921
    %4923 = vmatmul.f32.gmra.mxu0 %v4079
    %v4924 = vpop.f32.mrf.mxu0
    %v4925 = vadd.f32 %v4866, %v4924
    %4926 = vmatmul.f32.gmra.mxu0 %v4054
    %v4927 = vpop.f32.mrf.mxu0
    %v4928 = vadd.f32 %v4869, %v4927
    %4929 = vmatmul.f32.gmra.mxu0 %v4080
    %v4930 = vpop.f32.mrf.mxu0
    %v4931 = vadd.f32 %v4872, %v4930
    %4932 = vmatmul.f32.gmra.mxu0 %v4054
    %v4933 = vpop.f32.mrf.mxu0
    %v4934 = vadd.f32 %v4875, %v4933
    %4935 = vmatmul.f32.gmra.mxu0 %v4081
    %v4936 = vpop.f32.mrf.mxu0
    %v4937 = vadd.f32 %v4878, %v4936
    %4938 = vmatmul.f32.gmra.mxu0 %v4054
    %v4939 = vpop.f32.mrf.mxu0
    %v4940 = vadd.f32 %v4881, %v4939
    %4941 = vmatmul.f32.gmra.mxu0 %v4082
    %v4942 = vpop.f32.mrf.mxu0
    %v4943 = vadd.f32 %v4884, %v4942
    %4944 = vmatmul.f32.gmra.mxu0 %v4054
    %v4945 = vpop.f32.mrf.mxu0
    %v4946 = vadd.f32 %v4887, %v4945
    %4947 = vmatmul.f32.gmra.mxu0 %v4083
    %v4948 = vpop.f32.mrf.mxu0
    %v4949 = vadd.f32 %v4890, %v4948
    %4950 = vmatmul.f32.gmra.mxu0 %v4054
    %v4951 = vpop.f32.mrf.mxu0
    %v4952 = vadd.f32 %v4893, %v4951
    %4953 = vmatmul.f32.gmra.mxu0 %v4084
    %v4954 = vpop.f32.mrf.mxu0
    %v4955 = vadd.f32 %v4896, %v4954
    %4956 = vmatmul.f32.gmra.mxu0 %v4054
    %v4957 = vpop.f32.mrf.mxu0
    %v4958 = vadd.f32 %v4899, %v4957
    %4959 = vmatmul.f32.gmra.mxu0 %v4054
    %v4960 = vpop.f32.mrf.mxu0
    %v4961 = vadd.f32 %v4902, %v4960
    %4962 = vdwg.mxu0
    %4963 = vmatpush.msra.mxu0 0.0
    %4964 = vmatpush.msra.mxu0 0.0
    %4965 = vmatpush.msra.mxu0 0.0
    %4966 = vmatpush.msra.mxu0 0.0
    %4967 = vmatpush.msra.mxu0 0.0
    %4968 = vmatpush.msra.mxu0 0.0
    %4969 = vmatpush.msra.mxu0 0.0
    %4970 = vmatpush.msra.mxu0 0.0
    %4971 = vmatpush.msra.mxu0 0.0
    %4972 = vmatpush.msra.mxu0 0.0
    %4973 = vmatpush.msra.mxu0 0.0
    %4974 = vmatpush.msra.mxu0 0.0
    %4975 = vmatpush.msra.mxu0 %v4293
    %4976 = vmatpush.msra.mxu0 %v4291
    %4977 = vmatpush.msra.mxu0 %v4289
    %4978 = vmatpush.msra.mxu0 %v4287
    %4979 = vmatmul.f32.gmra.mxu0 %v4300
    %v4980 = vpop.f32.mrf.mxu0
    %v4981 = vadd.f32 %v4922, %v4980
    %4982 = vmatmul.f32.gmra.mxu0 %v4302
    %v4983 = vpop.f32.mrf.mxu0
    %v4984 = vadd.f32 %v4925, %v4983
    %4985 = vmatmul.f32.gmra.mxu0 %v4300
    %v4986 = vpop.f32.mrf.mxu0
    %v4987 = vadd.f32 %v4928, %v4986
    %4988 = vmatmul.f32.gmra.mxu0 %v4304
    %v4989 = vpop.f32.mrf.mxu0
    %v4990 = vadd.f32 %v4931, %v4989
    %4991 = vmatmul.f32.gmra.mxu0 %v4300
    %v4992 = vpop.f32.mrf.mxu0
    %v4993 = vadd.f32 %v4934, %v4992
    %4994 = vmatmul.f32.gmra.mxu0 %v4306
    %v4995 = vpop.f32.mrf.mxu0
    %v4996 = vadd.f32 %v4937, %v4995
    %4997 = vmatmul.f32.gmra.mxu0 %v4300
    %v4998 = vpop.f32.mrf.mxu0
    %v4999 = vadd.f32 %v4940, %v4998
    %5000 = vmatmul.f32.gmra.mxu0 %v4308
    %v5001 = vpop.f32.mrf.mxu0
    %v5002 = vadd.f32 %v4943, %v5001
    %5003 = vmatmul.f32.gmra.mxu0 %v4300
    %v5004 = vpop.f32.mrf.mxu0
    %v5005 = vadd.f32 %v4946, %v5004
    %5006 = vmatmul.f32.gmra.mxu0 %v4310
    %v5007 = vpop.f32.mrf.mxu0
    %v5008 = vadd.f32 %v4949, %v5007
    %5009 = vmatmul.f32.gmra.mxu0 %v4300
    %v5010 = vpop.f32.mrf.mxu0
    %v5011 = vadd.f32 %v4952, %v5010
    %5012 = vmatmul.f32.gmra.mxu0 %v4312
    %v5013 = vpop.f32.mrf.mxu0
    %v5014 = vadd.f32 %v4955, %v5013
    %5015 = vmatmul.f32.gmra.mxu0 %v4300
    %v5016 = vpop.f32.mrf.mxu0
    %v5017 = vadd.f32 %v4958, %v5016
    %5018 = vmatmul.f32.gmra.mxu0 %v4300
    %v5019 = vpop.f32.mrf.mxu0
    %v5020 = vadd.f32 %v4961, %v5019
    %5021 = vdwg.mxu0
    %v5022 = vmax.f32 %v4627, 0.0
    %v5023 = vmax.f32 %v4981, 0.0
    %v5024 = vmax.f32 %v4630, 0.0
    %v5025 = vmax.f32 %v4984, 0.0
    %v5026 = vmax.f32 %v4633, 0.0
    %v5027 = vmax.f32 %v4987, 0.0
    %v5028 = vmax.f32 %v4636, 0.0
    %v5029 = vmax.f32 %v4990, 0.0
    %v5030 = vmax.f32 %v4639, 0.0
    %v5031 = vmax.f32 %v4993, 0.0
    %v5032 = vmax.f32 %v4642, 0.0
    %v5033 = vmax.f32 %v4996, 0.0
    %v5034 = vmax.f32 %v4645, 0.0
    %v5035 = vmax.f32 %v4999, 0.0
    %v5036 = vmax.f32 %v4648, 0.0
    %v5037 = vmax.f32 %v5002, 0.0
    %v5038 = vmax.f32 %v4651, 0.0
    %v5039 = vmax.f32 %v5005, 0.0
    %v5040 = vmax.f32 %v4654, 0.0
    %v5041 = vmax.f32 %v5008, 0.0
    %v5042 = vmax.f32 %v4657, 0.0
    %v5043 = vmax.f32 %v5011, 0.0
    %v5044 = vmax.f32 %v4660, 0.0
    %v5045 = vmax.f32 %v5014, 0.0
    %v5046 = vmax.f32 %v4663, 0.0
    %v5047 = vmax.f32 %v5017, 0.0
    %v5048 = vmax.f32 %v4666, 0.0
    %v5049 = vmax.f32 %v5020, 0.0
    %v5050 = vadd.f32 %v5022, %v5024
    %v5051 = vadd.f32 %v5050, %v5026
    %v5052 = vadd.f32 %v5051, %v5028
    %v5053 = vadd.f32 %v5052, %v5030
    %v5054 = vadd.f32 %v5053, %v5032
    %v5055 = vadd.f32 %v5054, %v5034
    %v5056 = vadd.f32 %v5055, %v5036
    %v5057 = vadd.f32 %v5056, %v5038
    %v5058 = vadd.f32 %v5057, %v5040
    %v5059 = vadd.f32 %v5058, %v5042
    %v5060 = vadd.f32 %v5059, %v5044
    %v5061 = vadd.f32 %v5060, %v5046
    %v5062 = vadd.f32 %v5061, %v5048
    %v5063 = vrot.slane %v5062, 4
    %v5064 = vadd.f32 %v5062, %v5063
    %v5065 = vrot.slane %v5064, 2
    %v5066 = vadd.f32 %v5064, %v5065
    %v5067 = vrot.slane %v5066, 1
    %v5068 = vadd.f32 %v5066, %v5067
    %v5069 = vsel %vm3962, %v5023, 0.0
    %v5070 = vsel %vm3962, %v5025, 0.0
    %v5071 = vadd.f32 %v5069, %v5070
    %v5072 = vsel %vm3962, %v5027, 0.0
    %v5073 = vadd.f32 %v5071, %v5072
    %v5074 = vsel %vm3962, %v5029, 0.0
    %v5075 = vadd.f32 %v5073, %v5074
    %v5076 = vsel %vm3962, %v5031, 0.0
    %v5077 = vadd.f32 %v5075, %v5076
    %v5078 = vsel %vm3962, %v5033, 0.0
    %v5079 = vadd.f32 %v5077, %v5078
    %v5080 = vsel %vm3962, %v5035, 0.0
    %v5081 = vadd.f32 %v5079, %v5080
    %v5082 = vsel %vm3962, %v5037, 0.0
    %v5083 = vadd.f32 %v5081, %v5082
    %v5084 = vsel %vm3962, %v5039, 0.0
    %v5085 = vadd.f32 %v5083, %v5084
    %v5086 = vsel %vm3962, %v5041, 0.0
    %v5087 = vadd.f32 %v5085, %v5086
    %v5088 = vsel %vm3962, %v5043, 0.0
    %v5089 = vadd.f32 %v5087, %v5088
    %v5090 = vsel %vm3962, %v5045, 0.0
    %v5091 = vadd.f32 %v5089, %v5090
    %v5092 = vsel %vm3962, %v5047, 0.0
    %v5093 = vadd.f32 %v5091, %v5092
    %v5094 = vsel %vm3962, %v5049, 0.0
    %v5095 = vadd.f32 %v5093, %v5094
    %v5096 = vrot.slane %v5095, 4
    %v5097 = vadd.f32 %v5095, %v5096
    %v5098 = vrot.slane %v5097, 2
    %v5099 = vadd.f32 %v5097, %v5098
    %v5100 = vrot.slane %v5099, 1
    %v5101 = vadd.f32 %v5099, %v5100
    %v5102 = vld [vmem:[%s11] sm:$0xff]
    %v5103 = vld [vmem:[%s11 + $0x8] sm:$0xff]
    %v5104 = vld [vmem:[%s11 + $0x10] sm:$0xff]
    %v5105 = vld [vmem:[%s11 + $0x18] sm:$0xff]
    %v5106 = vld [vmem:[%s11 + $0x20] sm:$0xff]
    %v5107 = vld [vmem:[%s11 + $0x28] sm:$0xff]
    %v5108 = vld [vmem:[%s11 + $0x30] sm:$0xff]
    %v5109 = vld [vmem:[%s11 + $0x38] sm:$0xff]
    %v5110 = vld [vmem:[%s11 + $0x40] sm:$0xff]
    %v5111 = vld [vmem:[%s11 + $0x48] sm:$0xff]
    %v5112 = vld [vmem:[%s11 + $0x50] sm:$0xff]
    %v5113 = vld [vmem:[%s11 + $0x58] sm:$0xff]
    %v5114 = vld [vmem:[%s11 + $0x60] sm:$0xff]
    %v5115 = vld [vmem:[%s11 + $0x68] sm:$0xff]
    %v5116 = vld [vmem:[%s11 + $0x70] sm:$0xff]
    %v5117 = vld [vmem:[%s11 + $0x78] sm:$0xff]
    %v5118 = vld [vmem:[%s11 + $0x80] sm:$0xff]
    %v5119 = vld [vmem:[%s11 + $0x88] sm:$0xff]
    %v5120 = vld [vmem:[%s11 + $0x90] sm:$0xff]
    %v5121 = vld [vmem:[%s11 + $0x98] sm:$0xff]
    %v5122 = vld [vmem:[%s11 + $0xa0] sm:$0xff]
    %v5123 = vld [vmem:[%s11 + $0xa8] sm:$0xff]
    %v5124 = vld [vmem:[%s11 + $0xb0] sm:$0xff]
    %v5125 = vld [vmem:[%s11 + $0xb8] sm:$0xff]
    %v5126 = vld [vmem:[%s11 + $0xc0] sm:$0xff]
    %v5127 = vld [vmem:[%s11 + $0xc8] sm:$0xff]
    %v5128 = vld [vmem:[%s11 + $0xd0] sm:$0xff]
    %v5129 = vld [vmem:[%s11 + $0xd8] sm:$0xff]
    %v5131 = vsel %vm3962, %v5101, 0
    %5133 = vmatpush.msra.mxu0 %v5117
    %5134 = vmatpush.msra.mxu0 %v5116
    %5135 = vmatpush.msra.mxu0 %v5115
    %5136 = vmatpush.msra.mxu0 %v5114
    %5137 = vmatpush.msra.mxu0 %v5113
    %5138 = vmatpush.msra.mxu0 %v5112
    %5139 = vmatpush.msra.mxu0 %v5111
    %5140 = vmatpush.msra.mxu0 %v5110
    %5141 = vmatpush.msra.mxu0 %v5109
    %5142 = vmatpush.msra.mxu0 %v5108
    %5143 = vmatpush.msra.mxu0 %v5107
    %5144 = vmatpush.msra.mxu0 %v5106
    %5145 = vmatpush.msra.mxu0 %v5105
    %5146 = vmatpush.msra.mxu0 %v5104
    %5147 = vmatpush.msra.mxu0 %v5103
    %5148 = vmatpush.msra.mxu0 %v5102
    %5149 = vmatmul.f32.gmra.mxu0 %v5068
    %v5150 = vpop.f32.mrf.mxu0
    %v5151 = vadd.f32 0.0, %v5150
    %5152 = vdwg.mxu0
    %5153 = vmatpush.msra.mxu0 0.0
    %5154 = vmatpush.msra.mxu0 0.0
    %5155 = vmatpush.msra.mxu0 0.0
    %5156 = vmatpush.msra.mxu0 0.0
    %5157 = vmatpush.msra.mxu0 %v5129
    %5158 = vmatpush.msra.mxu0 %v5128
    %5159 = vmatpush.msra.mxu0 %v5127
    %5160 = vmatpush.msra.mxu0 %v5126
    %5161 = vmatpush.msra.mxu0 %v5125
    %5162 = vmatpush.msra.mxu0 %v5124
    %5163 = vmatpush.msra.mxu0 %v5123
    %5164 = vmatpush.msra.mxu0 %v5122
    %5165 = vmatpush.msra.mxu0 %v5121
    %5166 = vmatpush.msra.mxu0 %v5120
    %5167 = vmatpush.msra.mxu0 %v5119
    %5168 = vmatpush.msra.mxu0 %v5118
    %5169 = vmatmul.f32.gmra.mxu0 %v5131
    %v5170 = vpop.f32.mrf.mxu0
    %v5171 = vadd.f32 %v5151, %v5170
    %5172 = vdwg.mxu0
    %v5173 = vrcp.pop 1568.0
    %v5174 = vmul.f32 1568.0, %v5173
    %v5175 = vsub.f32 1.0, %v5174
    %v5176 = vmul.f32 %v5173, %v5175
    %v5177 = vadd.f32 %v5173, %v5176
    %vm5178 = vweird.f32 %v5173
    %v5179 = vsel %vm5178, %v5173, %v5177
    %v5180 = vmul.f32 %v5171, %v5179
    %v5181 = vld [vmem:[#allocation20] sm:$0xff]
    %v5182 = vld [vmem:[#allocation20 + $0x8] sm:$0xff]
    %v5183 = vld [vmem:[#allocation20 + $0x10] sm:$0xff]
    %v5184 = vld [vmem:[#allocation20 + $0x18] sm:$0xff]
    %vm5185 = vcmask 130048
    %v5187 = vsel %vm5185, %v5180, 0
    %5189 = vmatpush.msra.mxu0 0.0
    %5190 = vmatpush.msra.mxu0 0.0
    %5191 = vmatpush.msra.mxu0 0.0
    %5192 = vmatpush.msra.mxu0 0.0
    %5193 = vmatpush.msra.mxu0 0.0
    %5194 = vmatpush.msra.mxu0 0.0
    %5195 = vmatpush.msra.mxu0 0.0
    %5196 = vmatpush.msra.mxu0 0.0
    %5197 = vmatpush.msra.mxu0 0.0
    %5198 = vmatpush.msra.mxu0 0.0
    %5199 = vmatpush.msra.mxu0 0.0
    %5200 = vmatpush.msra.mxu0 0.0
    %5201 = vmatpush.msra.mxu0 0.0
    %5202 = vmatpush.msra.mxu0 0.0
    %5203 = vmatpush.msra.mxu0 %v5183
    %5204 = vmatpush.msra.mxu0 %v5181
    %5205 = vmatmul.f32.gmra.mxu0 %v5187
    %v5206 = vpop.f32.mrf.mxu0
    %v5207 = vadd.f32 0.0, %v5206
    %5208 = vdwg.mxu0
    %5209 = vmatpush.msra.mxu0 0.0
    %5210 = vmatpush.msra.mxu0 0.0
    %5211 = vmatpush.msra.mxu0 0.0
    %5212 = vmatpush.msra.mxu0 0.0
    %5213 = vmatpush.msra.mxu0 0.0
    %5214 = vmatpush.msra.mxu0 0.0
    %5215 = vmatpush.msra.mxu0 0.0
    %5216 = vmatpush.msra.mxu0 0.0
    %5217 = vmatpush.msra.mxu0 0.0
    %5218 = vmatpush.msra.mxu0 0.0
    %5219 = vmatpush.msra.mxu0 0.0
    %5220 = vmatpush.msra.mxu0 0.0
    %5221 = vmatpush.msra.mxu0 0.0
    %5222 = vmatpush.msra.mxu0 0.0
    %5223 = vmatpush.msra.mxu0 %v5184
    %5224 = vmatpush.msra.mxu0 %v5182
    %5225 = vmatmul.f32.gmra.mxu0 %v5187
    %v5226 = vpop.f32.mrf.mxu0
    %v5227 = vadd.f32 0.0, %v5226
    %5228 = vdwg.mxu0
    %v5229 = vperm.slane %v5207, 0
    %v5230 = vperm.slane %v5227, 0
    %v5231 = vsub.f32 %v5022, %v5229
    %v5232 = vsub.f32 %v5023, %v5230
    %v5233 = vsub.f32 %v5024, %v5229
    %v5234 = vsub.f32 %v5025, %v5230
    %v5235 = vsub.f32 %v5026, %v5229
    %v5236 = vsub.f32 %v5027, %v5230
    %v5237 = vsub.f32 %v5028, %v5229
    %v5238 = vsub.f32 %v5029, %v5230
    %v5239 = vsub.f32 %v5030, %v5229
    %v5240 = vsub.f32 %v5031, %v5230
    %v5241 = vsub.f32 %v5032, %v5229
    %v5242 = vsub.f32 %v5033, %v5230
    %v5243 = vsub.f32 %v5034, %v5229
    %v5244 = vsub.f32 %v5035, %v5230
    %v5245 = vsub.f32 %v5036, %v5229
    %v5246 = vsub.f32 %v5037, %v5230
    %v5247 = vsub.f32 %v5038, %v5229
    %v5248 = vsub.f32 %v5039, %v5230
    %v5249 = vsub.f32 %v5040, %v5229
    %v5250 = vsub.f32 %v5041, %v5230
    %v5251 = vsub.f32 %v5042, %v5229
    %v5252 = vsub.f32 %v5043, %v5230
    %v5253 = vsub.f32 %v5044, %v5229
    %v5254 = vsub.f32 %v5045, %v5230
    %v5255 = vsub.f32 %v5046, %v5229
    %v5256 = vsub.f32 %v5047, %v5230
    %v5257 = vsub.f32 %v5048, %v5229
    %v5258 = vsub.f32 %v5049, %v5230
    %v5259 = vmul.f32 %v5231, %v5231
    %v5260 = vmul.f32 %v5232, %v5232
    %v5261 = vmul.f32 %v5233, %v5233
    %v5262 = vmul.f32 %v5234, %v5234
    %v5263 = vmul.f32 %v5235, %v5235
    %v5264 = vmul.f32 %v5236, %v5236
    %v5265 = vmul.f32 %v5237, %v5237
    %v5266 = vmul.f32 %v5238, %v5238
    %v5267 = vmul.f32 %v5239, %v5239
    %v5268 = vmul.f32 %v5240, %v5240
    %v5269 = vmul.f32 %v5241, %v5241
    %v5270 = vmul.f32 %v5242, %v5242
    %v5271 = vmul.f32 %v5243, %v5243
    %v5272 = vmul.f32 %v5244, %v5244
    %v5273 = vmul.f32 %v5245, %v5245
    %v5274 = vmul.f32 %v5246, %v5246
    %v5275 = vmul.f32 %v5247, %v5247
    %v5276 = vmul.f32 %v5248, %v5248
    %v5277 = vmul.f32 %v5249, %v5249
    %v5278 = vmul.f32 %v5250, %v5250
    %v5279 = vmul.f32 %v5251, %v5251
    %v5280 = vmul.f32 %v5252, %v5252
    %v5281 = vmul.f32 %v5253, %v5253
    %v5282 = vmul.f32 %v5254, %v5254
    %v5283 = vmul.f32 %v5255, %v5255
    %v5284 = vmul.f32 %v5256, %v5256
    %v5285 = vmul.f32 %v5257, %v5257
    %v5286 = vmul.f32 %v5258, %v5258
    %v5287 = vadd.f32 %v5259, %v5261
    %v5288 = vadd.f32 %v5287, %v5263
    %v5289 = vadd.f32 %v5288, %v5265
    %v5290 = vadd.f32 %v5289, %v5267
    %v5291 = vadd.f32 %v5290, %v5269
    %v5292 = vadd.f32 %v5291, %v5271
    %v5293 = vadd.f32 %v5292, %v5273
    %v5294 = vadd.f32 %v5293, %v5275
    %v5295 = vadd.f32 %v5294, %v5277
    %v5296 = vadd.f32 %v5295, %v5279
    %v5297 = vadd.f32 %v5296, %v5281
    %v5298 = vadd.f32 %v5297, %v5283
    %v5299 = vadd.f32 %v5298, %v5285
    %v5300 = vrot.slane %v5299, 4
    %v5301 = vadd.f32 %v5299, %v5300
    %v5302 = vrot.slane %v5301, 2
    %v5303 = vadd.f32 %v5301, %v5302
    %v5304 = vrot.slane %v5303, 1
    %v5305 = vadd.f32 %v5303, %v5304
    %v5306 = vsel %vm3962, %v5260, 0.0
    %v5307 = vsel %vm3962, %v5262, 0.0
    %v5308 = vadd.f32 %v5306, %v5307
    %v5309 = vsel %vm3962, %v5264, 0.0
    %v5310 = vadd.f32 %v5308, %v5309
    %v5311 = vsel %vm3962, %v5266, 0.0
    %v5312 = vadd.f32 %v5310, %v5311
    %v5313 = vsel %vm3962, %v5268, 0.0
    %v5314 = vadd.f32 %v5312, %v5313
    %v5315 = vsel %vm3962, %v5270, 0.0
    %v5316 = vadd.f32 %v5314, %v5315
    %v5317 = vsel %vm3962, %v5272, 0.0
    %v5318 = vadd.f32 %v5316, %v5317
    %v5319 = vsel %vm3962, %v5274, 0.0
    %v5320 = vadd.f32 %v5318, %v5319
    %v5321 = vsel %vm3962, %v5276, 0.0
    %v5322 = vadd.f32 %v5320, %v5321
    %v5323 = vsel %vm3962, %v5278, 0.0
    %v5324 = vadd.f32 %v5322, %v5323
    %v5325 = vsel %vm3962, %v5280, 0.0
    %v5326 = vadd.f32 %v5324, %v5325
    %v5327 = vsel %vm3962, %v5282, 0.0
    %v5328 = vadd.f32 %v5326, %v5327
    %v5329 = vsel %vm3962, %v5284, 0.0
    %v5330 = vadd.f32 %v5328, %v5329
    %v5331 = vsel %vm3962, %v5286, 0.0
    %v5332 = vadd.f32 %v5330, %v5331
    %v5333 = vrot.slane %v5332, 4
    %v5334 = vadd.f32 %v5332, %v5333
    %v5335 = vrot.slane %v5334, 2
    %v5336 = vadd.f32 %v5334, %v5335
    %v5337 = vrot.slane %v5336, 1
    %v5338 = vadd.f32 %v5336, %v5337
    %v5340 = vsel %vm3962, %v5338, 0
    %5342 = vmatpush.msra.mxu0 %v5117
    %5343 = vmatpush.msra.mxu0 %v5116
    %5344 = vmatpush.msra.mxu0 %v5115
    %5345 = vmatpush.msra.mxu0 %v5114
    %5346 = vmatpush.msra.mxu0 %v5113
    %5347 = vmatpush.msra.mxu0 %v5112
    %5348 = vmatpush.msra.mxu0 %v5111
    %5349 = vmatpush.msra.mxu0 %v5110
    %5350 = vmatpush.msra.mxu0 %v5109
    %5351 = vmatpush.msra.mxu0 %v5108
    %5352 = vmatpush.msra.mxu0 %v5107
    %5353 = vmatpush.msra.mxu0 %v5106
    %5354 = vmatpush.msra.mxu0 %v5105
    %5355 = vmatpush.msra.mxu0 %v5104
    %5356 = vmatpush.msra.mxu0 %v5103
    %5357 = vmatpush.msra.mxu0 %v5102
    %5358 = vmatmul.f32.gmra.mxu0 %v5305
    %v5359 = vpop.f32.mrf.mxu0
    %v5360 = vadd.f32 0.0, %v5359
    %5361 = vdwg.mxu0
    %5362 = vmatpush.msra.mxu0 0.0
    %5363 = vmatpush.msra.mxu0 0.0
    %5364 = vmatpush.msra.mxu0 0.0
    %5365 = vmatpush.msra.mxu0 0.0
    %5366 = vmatpush.msra.mxu0 %v5129
    %5367 = vmatpush.msra.mxu0 %v5128
    %5368 = vmatpush.msra.mxu0 %v5127
    %5369 = vmatpush.msra.mxu0 %v5126
    %5370 = vmatpush.msra.mxu0 %v5125
    %5371 = vmatpush.msra.mxu0 %v5124
    %5372 = vmatpush.msra.mxu0 %v5123
    %5373 = vmatpush.msra.mxu0 %v5122
    %5374 = vmatpush.msra.mxu0 %v5121
    %5375 = vmatpush.msra.mxu0 %v5120
    %5376 = vmatpush.msra.mxu0 %v5119
    %5377 = vmatpush.msra.mxu0 %v5118
    %5378 = vmatmul.f32.gmra.mxu0 %v5340
    %v5379 = vpop.f32.mrf.mxu0
    %v5380 = vadd.f32 %v5360, %v5379
    %5381 = vdwg.mxu0
    %v5382 = vmul.f32 %v5380, %v5179
    %v5383 = vld [vmem:[#allocation17] sm:$0x1]
    %v5384 = vadd.f32 %v5382, 1e-05
    %v5385 = vrsqrt.pop %v5384
    %v5386 = vmul.f32 %v5385, %v5384
    %v5387 = vmul.f32 %v5386, %v5385
    %v5388 = vmul.f32 0.5, %v5387
    %v5389 = vsub.f32 1.5, %v5388
    %v5390 = vmul.f32 %v5385, %v5389
    %vm5391 = vweird.f32 %v5384
    %vm5392 = vweird.f32 %v5385
    %vm5393 = vmor %vm5391, %vm5392
    %v5394 = vsel %vm5393, %v5385, %v5390
    %v5395 = vmul.f32 %v5383, %v5394
    %v5396 = vld [vmem:[#allocation18] sm:$0x1]
    %v5397 = vmul.f32 %v5180, %v5395
    %v5398 = vsub.f32 %v5396, %v5397
    %v5400 = vsel %vm5185, %v5395, 0
    %5402 = vmatpush.msra.mxu0 0.0
    %5403 = vmatpush.msra.mxu0 0.0
    %5404 = vmatpush.msra.mxu0 0.0
    %5405 = vmatpush.msra.mxu0 0.0
    %5406 = vmatpush.msra.mxu0 0.0
    %5407 = vmatpush.msra.mxu0 0.0
    %5408 = vmatpush.msra.mxu0 0.0
    %5409 = vmatpush.msra.mxu0 0.0
    %5410 = vmatpush.msra.mxu0 0.0
    %5411 = vmatpush.msra.mxu0 0.0
    %5412 = vmatpush.msra.mxu0 0.0
    %5413 = vmatpush.msra.mxu0 0.0
    %5414 = vmatpush.msra.mxu0 0.0
    %5415 = vmatpush.msra.mxu0 0.0
    %5416 = vmatpush.msra.mxu0 %v5183
    %5417 = vmatpush.msra.mxu0 %v5181
    %5418 = vmatmul.f32.gmra.mxu0 %v5400
    %v5419 = vpop.f32.mrf.mxu0
    %v5420 = vadd.f32 0.0, %v5419
    %5421 = vdwg.mxu0
    %5422 = vmatpush.msra.mxu0 0.0
    %5423 = vmatpush.msra.mxu0 0.0
    %5424 = vmatpush.msra.mxu0 0.0
    %5425 = vmatpush.msra.mxu0 0.0
    %5426 = vmatpush.msra.mxu0 0.0
    %5427 = vmatpush.msra.mxu0 0.0
    %5428 = vmatpush.msra.mxu0 0.0
    %5429 = vmatpush.msra.mxu0 0.0
    %5430 = vmatpush.msra.mxu0 0.0
    %5431 = vmatpush.msra.mxu0 0.0
    %5432 = vmatpush.msra.mxu0 0.0
    %5433 = vmatpush.msra.mxu0 0.0
    %5434 = vmatpush.msra.mxu0 0.0
    %5435 = vmatpush.msra.mxu0 0.0
    %5436 = vmatpush.msra.mxu0 %v5184
    %5437 = vmatpush.msra.mxu0 %v5182
    %5438 = vmatmul.f32.gmra.mxu0 %v5400
    %v5439 = vpop.f32.mrf.mxu0
    %v5440 = vadd.f32 0.0, %v5439
    %5441 = vdwg.mxu0
    %v5443 = vsel %vm5185, %v5398, 0
    %5445 = vmatpush.msra.mxu0 0.0
    %5446 = vmatpush.msra.mxu0 0.0
    %5447 = vmatpush.msra.mxu0 0.0
    %5448 = vmatpush.msra.mxu0 0.0
    %5449 = vmatpush.msra.mxu0 0.0
    %5450 = vmatpush.msra.mxu0 0.0
    %5451 = vmatpush.msra.mxu0 0.0
    %5452 = vmatpush.msra.mxu0 0.0
    %5453 = vmatpush.msra.mxu0 0.0
    %5454 = vmatpush.msra.mxu0 0.0
    %5455 = vmatpush.msra.mxu0 0.0
    %5456 = vmatpush.msra.mxu0 0.0
    %5457 = vmatpush.msra.mxu0 0.0
    %5458 = vmatpush.msra.mxu0 0.0
    %5459 = vmatpush.msra.mxu0 %v5183
    %5460 = vmatpush.msra.mxu0 %v5181
    %5461 = vmatmul.f32.gmra.mxu0 %v5443
    %v5462 = vpop.f32.mrf.mxu0
    %v5463 = vadd.f32 0.0, %v5462
    %5464 = vdwg.mxu0
    %5465 = vmatpush.msra.mxu0 0.0
    %5466 = vmatpush.msra.mxu0 0.0
    %5467 = vmatpush.msra.mxu0 0.0
    %5468 = vmatpush.msra.mxu0 0.0
    %5469 = vmatpush.msra.mxu0 0.0
    %5470 = vmatpush.msra.mxu0 0.0
    %5471 = vmatpush.msra.mxu0 0.0
    %5472 = vmatpush.msra.mxu0 0.0
    %5473 = vmatpush.msra.mxu0 0.0
    %5474 = vmatpush.msra.mxu0 0.0
    %5475 = vmatpush.msra.mxu0 0.0
    %5476 = vmatpush.msra.mxu0 0.0
    %5477 = vmatpush.msra.mxu0 0.0
    %5478 = vmatpush.msra.mxu0 0.0
    %5479 = vmatpush.msra.mxu0 %v5184
    %5480 = vmatpush.msra.mxu0 %v5182
    %5481 = vmatmul.f32.gmra.mxu0 %v5443
    %v5482 = vpop.f32.mrf.mxu0
    %v5483 = vadd.f32 0.0, %v5482
    %5484 = vdwg.mxu0
    %v5485 = vperm.slane %v5420, 0
    %v5486 = vperm.slane %v5440, 0
    %v5487 = vmul.f32 %v5022, %v5485
    %v5488 = vmul.f32 %v5023, %v5486
    %v5489 = vmul.f32 %v5024, %v5485
    %v5490 = vmul.f32 %v5025, %v5486
    %v5491 = vmul.f32 %v5026, %v5485
    %v5492 = vmul.f32 %v5027, %v5486
    %v5493 = vmul.f32 %v5028, %v5485
    %v5494 = vmul.f32 %v5029, %v5486
    %v5495 = vmul.f32 %v5030, %v5485
    %v5496 = vmul.f32 %v5031, %v5486
    %v5497 = vmul.f32 %v5032, %v5485
    %v5498 = vmul.f32 %v5033, %v5486
    %v5499 = vmul.f32 %v5034, %v5485
    %v5500 = vmul.f32 %v5035, %v5486
    %v5501 = vmul.f32 %v5036, %v5485
    %v5502 = vmul.f32 %v5037, %v5486
    %v5503 = vmul.f32 %v5038, %v5485
    %v5504 = vmul.f32 %v5039, %v5486
    %v5505 = vmul.f32 %v5040, %v5485
    %v5506 = vmul.f32 %v5041, %v5486
    %v5507 = vmul.f32 %v5042, %v5485
    %v5508 = vmul.f32 %v5043, %v5486
    %v5509 = vmul.f32 %v5044, %v5485
    %v5510 = vmul.f32 %v5045, %v5486
    %v5511 = vmul.f32 %v5046, %v5485
    %v5512 = vmul.f32 %v5047, %v5486
    %v5513 = vmul.f32 %v5048, %v5485
    %v5514 = vmul.f32 %v5049, %v5486
    %v5515 = vperm.slane %v5463, 0
    %v5516 = vperm.slane %v5483, 0
    %v5517 = vadd.f32 %v5487, %v5515
    %v5518 = vadd.f32 %v5488, %v5516
    %v5519 = vadd.f32 %v5489, %v5515
    %v5520 = vadd.f32 %v5490, %v5516
    %v5521 = vadd.f32 %v5491, %v5515
    %v5522 = vadd.f32 %v5492, %v5516
    %v5523 = vadd.f32 %v5493, %v5515
    %v5524 = vadd.f32 %v5494, %v5516
    %v5525 = vadd.f32 %v5495, %v5515
    %v5526 = vadd.f32 %v5496, %v5516
    %v5527 = vadd.f32 %v5497, %v5515
    %v5528 = vadd.f32 %v5498, %v5516
    %v5529 = vadd.f32 %v5499, %v5515
    %v5530 = vadd.f32 %v5500, %v5516
    %v5531 = vadd.f32 %v5501, %v5515
    %v5532 = vadd.f32 %v5502, %v5516
    %v5533 = vadd.f32 %v5503, %v5515
    %v5534 = vadd.f32 %v5504, %v5516
    %v5535 = vadd.f32 %v5505, %v5515
    %v5536 = vadd.f32 %v5506, %v5516
    %v5537 = vadd.f32 %v5507, %v5515
    %v5538 = vadd.f32 %v5508, %v5516
    %v5539 = vadd.f32 %v5509, %v5515
    %v5540 = vadd.f32 %v5510, %v5516
    %v5541 = vadd.f32 %v5511, %v5515
    %v5542 = vadd.f32 %v5512, %v5516
    %v5543 = vadd.f32 %v5513, %v5515
    %v5544 = vadd.f32 %v5514, %v5516
    %5573 = vrot.lane.b32.xlu0 %v5517, 96
    %v5574 = vpop.permute.xlu0 %5573
    %5575 = vrot.lane.b32.xlu0 %v5518, 96
    %v5576 = vpop.permute.xlu0 %5575
    %5577 = vrot.lane.b32.xlu0 %v5519, 96
    %v5578 = vpop.permute.xlu0 %5577
    %5579 = vrot.lane.b32.xlu0 %v5520, 96
    %v5580 = vpop.permute.xlu0 %5579
    %5581 = vrot.lane.b32.xlu0 %v5521, 96
    %v5582 = vpop.permute.xlu0 %5581
    %5583 = vrot.lane.b32.xlu0 %v5522, 96
    %v5584 = vpop.permute.xlu0 %5583
    %5585 = vrot.lane.b32.xlu0 %v5523, 96
    %v5586 = vpop.permute.xlu0 %5585
    %5587 = vrot.lane.b32.xlu0 %v5524, 96
    %v5588 = vpop.permute.xlu0 %5587
    %5589 = vrot.lane.b32.xlu0 %v5525, 96
    %v5590 = vpop.permute.xlu0 %5589
    %5591 = vrot.lane.b32.xlu0 %v5526, 96
    %v5592 = vpop.permute.xlu0 %5591
    %5593 = vrot.lane.b32.xlu0 %v5527, 96
    %v5594 = vpop.permute.xlu0 %5593
    %5595 = vrot.lane.b32.xlu0 %v5528, 96
    %v5596 = vpop.permute.xlu0 %5595
    %5597 = vrot.lane.b32.xlu0 %v5529, 96
    %v5598 = vpop.permute.xlu0 %5597
    %5599 = vrot.lane.b32.xlu0 %v5530, 96
    %v5600 = vpop.permute.xlu0 %5599
    %5601 = vrot.lane.b32.xlu0 %v5531, 96
    %v5602 = vpop.permute.xlu0 %5601
    %5603 = vrot.lane.b32.xlu0 %v5532, 96
    %v5604 = vpop.permute.xlu0 %5603
    %5605 = vrot.lane.b32.xlu0 %v5533, 96
    %v5606 = vpop.permute.xlu0 %5605
    %5607 = vrot.lane.b32.xlu0 %v5534, 96
    %v5608 = vpop.permute.xlu0 %5607
    %5609 = vrot.lane.b32.xlu0 %v5535, 96
    %v5610 = vpop.permute.xlu0 %5609
    %5611 = vrot.lane.b32.xlu0 %v5536, 96
    %v5612 = vpop.permute.xlu0 %5611
    %5613 = vrot.lane.b32.xlu0 %v5537, 96
    %v5614 = vpop.permute.xlu0 %5613
    %5615 = vrot.lane.b32.xlu0 %v5538, 96
    %v5616 = vpop.permute.xlu0 %5615
    %5617 = vrot.lane.b32.xlu0 %v5539, 96
    %v5618 = vpop.permute.xlu0 %5617
    %5619 = vrot.lane.b32.xlu0 %v5540, 96
    %v5620 = vpop.permute.xlu0 %5619
    %5621 = vrot.lane.b32.xlu0 %v5541, 96
    %v5622 = vpop.permute.xlu0 %5621
    %5623 = vrot.lane.b32.xlu0 %v5542, 96
    %v5624 = vpop.permute.xlu0 %5623
    %5625 = vrot.lane.b32.xlu0 %v5543, 96
    %v5626 = vpop.permute.xlu0 %5625
    %5627 = vrot.lane.b32.xlu0 %v5544, 96
    %v5628 = vpop.permute.xlu0 %5627
    %v5629 = vsel %vm3962, %v5574, %v5576
    %v5630 = vsel %vm3962, %v5578, %v5580
    %v5631 = vsel %vm3962, %v5582, %v5584
    %v5632 = vsel %vm3962, %v5586, %v5588
    %v5633 = vsel %vm3962, %v5590, %v5592
    %v5634 = vsel %vm3962, %v5594, %v5596
    %v5635 = vsel %vm3962, %v5598, %v5600
    %v5636 = vsel %vm3962, %v5602, %v5604
    %v5637 = vsel %vm3962, %v5606, %v5608
    %v5638 = vsel %vm3962, %v5610, %v5612
    %v5639 = vsel %vm3962, %v5614, %v5616
    %v5640 = vsel %vm3962, %v5618, %v5620
    %v5641 = vsel %vm3962, %v5622, %v5624
    %v5642 = vsel %vm3962, %v5626, %v5628
    %5685 = vrot.lane.b32.xlu0 %v5519, 64
    %v5686 = vpop.permute.xlu0 %5685
    %5687 = vrot.lane.b32.xlu0 %v5520, 64
    %v5688 = vpop.permute.xlu0 %5687
    %5689 = vrot.lane.b32.xlu0 %v5521, 64
    %v5690 = vpop.permute.xlu0 %5689
    %5691 = vrot.lane.b32.xlu0 %v5522, 64
    %v5692 = vpop.permute.xlu0 %5691
    %5693 = vrot.lane.b32.xlu0 %v5523, 64
    %v5694 = vpop.permute.xlu0 %5693
    %5695 = vrot.lane.b32.xlu0 %v5524, 64
    %v5696 = vpop.permute.xlu0 %5695
    %5697 = vrot.lane.b32.xlu0 %v5525, 64
    %v5698 = vpop.permute.xlu0 %5697
    %5699 = vrot.lane.b32.xlu0 %v5526, 64
    %v5700 = vpop.permute.xlu0 %5699
    %5701 = vrot.lane.b32.xlu0 %v5527, 64
    %v5702 = vpop.permute.xlu0 %5701
    %5703 = vrot.lane.b32.xlu0 %v5528, 64
    %v5704 = vpop.permute.xlu0 %5703
    %5705 = vrot.lane.b32.xlu0 %v5529, 64
    %v5706 = vpop.permute.xlu0 %5705
    %5707 = vrot.lane.b32.xlu0 %v5530, 64
    %v5708 = vpop.permute.xlu0 %5707
    %5709 = vrot.lane.b32.xlu0 %v5531, 64
    %v5710 = vpop.permute.xlu0 %5709
    %5711 = vrot.lane.b32.xlu0 %v5532, 64
    %v5712 = vpop.permute.xlu0 %5711
    %5713 = vrot.lane.b32.xlu0 %v5533, 64
    %v5714 = vpop.permute.xlu0 %5713
    %5715 = vrot.lane.b32.xlu0 %v5534, 64
    %v5716 = vpop.permute.xlu0 %5715
    %5717 = vrot.lane.b32.xlu0 %v5535, 64
    %v5718 = vpop.permute.xlu0 %5717
    %5719 = vrot.lane.b32.xlu0 %v5536, 64
    %v5720 = vpop.permute.xlu0 %5719
    %5721 = vrot.lane.b32.xlu0 %v5537, 64
    %v5722 = vpop.permute.xlu0 %5721
    %5723 = vrot.lane.b32.xlu0 %v5538, 64
    %v5724 = vpop.permute.xlu0 %5723
    %5725 = vrot.lane.b32.xlu0 %v5539, 64
    %v5726 = vpop.permute.xlu0 %5725
    %5727 = vrot.lane.b32.xlu0 %v5540, 64
    %v5728 = vpop.permute.xlu0 %5727
    %5729 = vrot.lane.b32.xlu0 %v5541, 64
    %v5730 = vpop.permute.xlu0 %5729
    %5731 = vrot.lane.b32.xlu0 %v5542, 64
    %v5732 = vpop.permute.xlu0 %5731
    %5733 = vrot.lane.b32.xlu0 %v5543, 64
    %v5734 = vpop.permute.xlu0 %5733
    %5735 = vrot.lane.b32.xlu0 %v5544, 64
    %v5736 = vpop.permute.xlu0 %5735
    %v5737 = vsel %vm3952, %v5686, %v5688
    %v5738 = vsel %vm3952, %v5690, %v5692
    %v5739 = vsel %vm3952, %v5694, %v5696
    %v5740 = vsel %vm3952, %v5698, %v5700
    %v5741 = vsel %vm3952, %v5702, %v5704
    %v5742 = vsel %vm3952, %v5706, %v5708
    %v5743 = vsel %vm3952, %v5710, %v5712
    %v5744 = vsel %vm3952, %v5714, %v5716
    %v5745 = vsel %vm3952, %v5718, %v5720
    %v5746 = vsel %vm3952, %v5722, %v5724
    %v5747 = vsel %vm3952, %v5726, %v5728
    %v5748 = vsel %vm3952, %v5730, %v5732
    %v5749 = vsel %vm3952, %v5734, %v5736
    %v5776 = vsel %vm3962, 0.0, %v5574
    %v5777 = vsel %vm3962, %v5518, %v3999
    %v5778 = vsel %vm3962, 0.0, %v5578
    %v5779 = vsel %vm3962, %v5520, %v3999
    %v5780 = vsel %vm3962, 0.0, %v5582
    %v5781 = vsel %vm3962, %v5522, %v3999
    %v5782 = vsel %vm3962, 0.0, %v5586
    %v5783 = vsel %vm3962, %v5524, %v3999
    %v5784 = vsel %vm3962, 0.0, %v5590
    %v5785 = vsel %vm3962, %v5526, %v3999
    %v5786 = vsel %vm3962, 0.0, %v5594
    %v5787 = vsel %vm3962, %v5528, %v3999
    %v5788 = vsel %vm3962, 0.0, %v5598
    %v5789 = vsel %vm3962, %v5530, %v3999
    %v5790 = vsel %vm3962, 0.0, %v5602
    %v5791 = vsel %vm3962, %v5532, %v3999
    %v5792 = vsel %vm3962, 0.0, %v5606
    %v5793 = vsel %vm3962, %v5534, %v3999
    %v5794 = vsel %vm3962, 0.0, %v5610
    %v5795 = vsel %vm3962, %v5536, %v3999
    %v5796 = vsel %vm3962, 0.0, %v5614
    %v5797 = vsel %vm3962, %v5538, %v3999
    %v5798 = vsel %vm3962, 0.0, %v5618
    %v5799 = vsel %vm3962, %v5540, %v3999
    %v5800 = vsel %vm3962, 0.0, %v5622
    %v5801 = vsel %vm3962, %v5542, %v3999
    %v5802 = vsel %vm3962, 0.0, %v5626
    %v5803 = vsel %vm3962, %v5544, %v3999
    %v5804 = vsel %vm3952, %v5576, %v4054
    %v5805 = vsel %vm3952, %v3999, %v5686
    %v5806 = vsel %vm3952, %v5580, %v4054
    %v5807 = vsel %vm3952, %v3999, %v5690
    %v5808 = vsel %vm3952, %v5584, %v4054
    %v5809 = vsel %vm3952, %v3999, %v5694
    %v5810 = vsel %vm3952, %v5588, %v4054
    %v5811 = vsel %vm3952, %v3999, %v5698
    %v5812 = vsel %vm3952, %v5592, %v4054
    %v5813 = vsel %vm3952, %v3999, %v5702
    %v5814 = vsel %vm3952, %v5596, %v4054
    %v5815 = vsel %vm3952, %v3999, %v5706
    %v5816 = vsel %vm3952, %v5600, %v4054
    %v5817 = vsel %vm3952, %v3999, %v5710
    %v5818 = vsel %vm3952, %v5604, %v4054
    %v5819 = vsel %vm3952, %v3999, %v5714
    %v5820 = vsel %vm3952, %v5608, %v4054
    %v5821 = vsel %vm3952, %v3999, %v5718
    %v5822 = vsel %vm3952, %v5612, %v4054
    %v5823 = vsel %vm3952, %v3999, %v5722
    %v5824 = vsel %vm3952, %v5616, %v4054
    %v5825 = vsel %vm3952, %v3999, %v5726
    %v5826 = vsel %vm3952, %v5620, %v4054
    %v5827 = vsel %vm3952, %v3999, %v5730
    %v5828 = vsel %vm3952, %v5624, %v4054
    %v5829 = vsel %vm3952, %v3999, %v5734
    %v5830 = vsel %vm3952, %v5628, %v4054
    %v5831 = vld [vmem:[#allocation21] sm:$0xff]
    %v5832 = vld [vmem:[#allocation21 + $0x8] sm:$0xff]
    %v5833 = vld [vmem:[#allocation21 + $0x10] sm:$0xff]
    %v5834 = vld [vmem:[#allocation21 + $0x18] sm:$0xff]
    %v5835 = vld [vmem:[#allocation21 + $0x20] sm:$0xff]
    %v5836 = vld [vmem:[#allocation21 + $0x28] sm:$0xff]
    %v5837 = vld [vmem:[#allocation21 + $0x30] sm:$0xff]
    %v5838 = vld [vmem:[#allocation21 + $0x38] sm:$0xff]
    %v5839 = vld [vmem:[#allocation21 + $0x40] sm:$0xff]
    %v5840 = vld [vmem:[#allocation21 + $0x48] sm:$0xff]
    %v5841 = vld [vmem:[#allocation21 + $0x50] sm:$0xff]
    %v5842 = vld [vmem:[#allocation21 + $0x58] sm:$0xff]
    %v5843 = vld [vmem:[#allocation21 + $0x60] sm:$0xff]
    %v5844 = vld [vmem:[#allocation21 + $0x68] sm:$0xff]
    %v5845 = vld [vmem:[#allocation21 + $0x70] sm:$0xff]
    %v5846 = vld [vmem:[#allocation21 + $0x78] sm:$0xff]
    %v5847 = vld [vmem:[#allocation21 + $0x80] sm:$0xff]
    %v5848 = vld [vmem:[#allocation21 + $0x88] sm:$0xff]
    %v5849 = vld [vmem:[#allocation21 + $0x90] sm:$0xff]
    %v5850 = vld [vmem:[#allocation21 + $0x98] sm:$0xff]
    %v5851 = vld [vmem:[#allocation21 + $0xa0] sm:$0xff]
    %v5852 = vld [vmem:[#allocation21 + $0xa8] sm:$0xff]
    %v5853 = vld [vmem:[#allocation21 + $0xb0] sm:$0xff]
    %v5854 = vld [vmem:[#allocation21 + $0xb8] sm:$0xff]
    %v5855 = vld [vmem:[#allocation21 + $0xc0] sm:$0xff]
    %v5856 = vld [vmem:[#allocation21 + $0xc8] sm:$0xff]
    %v5857 = vld [vmem:[#allocation21 + $0xd0] sm:$0xff]
    %v5858 = vld [vmem:[#allocation21 + $0xd8] sm:$0xff]
    %v5859 = vld [vmem:[#allocation21 + $0xe0] sm:$0xff]
    %v5860 = vld [vmem:[#allocation21 + $0xe8] sm:$0xff]
    %v5861 = vld [vmem:[#allocation21 + $0xf0] sm:$0xff]
    %v5862 = vld [vmem:[#allocation21 + $0xf8] sm:$0xff]
    %v5863 = vld [vmem:[#allocation21 + $0x100] sm:$0xff]
    %v5864 = vld [vmem:[#allocation21 + $0x108] sm:$0xff]
    %v5865 = vld [vmem:[#allocation21 + $0x110] sm:$0xff]
    %v5866 = vld [vmem:[#allocation21 + $0x118] sm:$0xff]
    %v5867 = vld [vmem:[#allocation21 + $0x120] sm:$0xff]
    %v5868 = vld [vmem:[#allocation21 + $0x128] sm:$0xff]
    %v5869 = vld [vmem:[#allocation21 + $0x130] sm:$0xff]
    %v5870 = vld [vmem:[#allocation21 + $0x138] sm:$0xff]
    %v5871 = vld [vmem:[#allocation21 + $0x140] sm:$0xff]
    %v5872 = vld [vmem:[#allocation21 + $0x148] sm:$0xff]
    %v5873 = vld [vmem:[#allocation21 + $0x150] sm:$0xff]
    %v5874 = vld [vmem:[#allocation21 + $0x158] sm:$0xff]
    %v5875 = vld [vmem:[#allocation21 + $0x160] sm:$0xff]
    %v5876 = vld [vmem:[#allocation21 + $0x168] sm:$0xff]
    %v5877 = vld [vmem:[#allocation21 + $0x170] sm:$0xff]
    %v5878 = vld [vmem:[#allocation21 + $0x178] sm:$0xff]
    %v5879 = vld [vmem:[#allocation21 + $0x180] sm:$0xff]
    %v5880 = vld [vmem:[#allocation21 + $0x188] sm:$0xff]
    %v5881 = vld [vmem:[#allocation21 + $0x190] sm:$0xff]
    %v5882 = vld [vmem:[#allocation21 + $0x198] sm:$0xff]
    %v5883 = vld [vmem:[#allocation21 + $0x1a0] sm:$0xff]
    %v5884 = vld [vmem:[#allocation21 + $0x1a8] sm:$0xff]
    %v5885 = vld [vmem:[#allocation21 + $0x1b0] sm:$0xff]
    %v5886 = vld [vmem:[#allocation21 + $0x1b8] sm:$0xff]
    %v5887 = vld [vmem:[#allocation21 + $0x1c0] sm:$0xff]
    %v5888 = vld [vmem:[#allocation21 + $0x1c8] sm:$0xff]
    %v5889 = vld [vmem:[#allocation21 + $0x1d0] sm:$0xff]
    %v5890 = vld [vmem:[#allocation21 + $0x1d8] sm:$0xff]
    %v5891 = vld [vmem:[#allocation21 + $0x1e0] sm:$0xff]
    %v5892 = vld [vmem:[#allocation21 + $0x1e8] sm:$0xff]
    %v5893 = vld [vmem:[#allocation21 + $0x1f0] sm:$0xff]
    %v5894 = vld [vmem:[#allocation21 + $0x1f8] sm:$0xff]
    %v5895 = vld [vmem:[#allocation21 + $0x200] sm:$0xff]
    %v5896 = vld [vmem:[#allocation21 + $0x208] sm:$0xff]
    %v5897 = vld [vmem:[#allocation21 + $0x210] sm:$0xff]
    %v5898 = vld [vmem:[#allocation21 + $0x218] sm:$0xff]
    %v5899 = vld [vmem:[#allocation21 + $0x220] sm:$0xff]
    %v5900 = vld [vmem:[#allocation21 + $0x228] sm:$0xff]
    %v5901 = vld [vmem:[#allocation21 + $0x230] sm:$0xff]
    %v5902 = vld [vmem:[#allocation21 + $0x238] sm:$0xff]
    %v5903 = vld [vmem:[#allocation21 + $0x240] sm:$0xff]
    %v5904 = vld [vmem:[#allocation21 + $0x248] sm:$0xff]
    %v5905 = vld [vmem:[#allocation21 + $0x250] sm:$0xff]
    %v5906 = vld [vmem:[#allocation21 + $0x258] sm:$0xff]
    %v5907 = vld [vmem:[#allocation21 + $0x260] sm:$0xff]
    %v5908 = vld [vmem:[#allocation21 + $0x268] sm:$0xff]
    %v5909 = vld [vmem:[#allocation21 + $0x270] sm:$0xff]
    %v5910 = vld [vmem:[#allocation21 + $0x278] sm:$0xff]
    %v5911 = vld [vmem:[#allocation21 + $0x280] sm:$0xff]
    %v5912 = vld [vmem:[#allocation21 + $0x288] sm:$0xff]
    %v5913 = vld [vmem:[#allocation21 + $0x290] sm:$0xff]
    %v5914 = vld [vmem:[#allocation21 + $0x298] sm:$0xff]
    %v5915 = vld [vmem:[#allocation21 + $0x2a0] sm:$0xff]
    %v5916 = vld [vmem:[#allocation21 + $0x2a8] sm:$0xff]
    %v5917 = vld [vmem:[#allocation21 + $0x2b0] sm:$0xff]
    %v5918 = vld [vmem:[#allocation21 + $0x2b8] sm:$0xff]
    %v5919 = vld [vmem:[#allocation21 + $0x2c0] sm:$0xff]
    %v5920 = vld [vmem:[#allocation21 + $0x2c8] sm:$0xff]
    %v5921 = vld [vmem:[#allocation21 + $0x2d0] sm:$0xff]
    %v5922 = vld [vmem:[#allocation21 + $0x2d8] sm:$0xff]
    %v5923 = vld [vmem:[#allocation21 + $0x2e0] sm:$0xff]
    %v5924 = vld [vmem:[#allocation21 + $0x2e8] sm:$0xff]
    %v5925 = vld [vmem:[#allocation21 + $0x2f0] sm:$0xff]
    %v5926 = vld [vmem:[#allocation21 + $0x2f8] sm:$0xff]
    %v5927 = vld [vmem:[#allocation21 + $0x300] sm:$0xff]
    %v5928 = vld [vmem:[#allocation21 + $0x308] sm:$0xff]
    %v5929 = vld [vmem:[#allocation21 + $0x310] sm:$0xff]
    %v5930 = vld [vmem:[#allocation21 + $0x318] sm:$0xff]
    %v5931 = vld [vmem:[#allocation21 + $0x320] sm:$0xff]
    %v5932 = vld [vmem:[#allocation21 + $0x328] sm:$0xff]
    %v5933 = vld [vmem:[#allocation21 + $0x330] sm:$0xff]
    %v5934 = vld [vmem:[#allocation21 + $0x338] sm:$0xff]
    %v5935 = vld [vmem:[#allocation21 + $0x340] sm:$0xff]
    %v5936 = vld [vmem:[#allocation21 + $0x348] sm:$0xff]
    %v5937 = vld [vmem:[#allocation21 + $0x350] sm:$0xff]
    %v5938 = vld [vmem:[#allocation21 + $0x358] sm:$0xff]
    %v5939 = vld [vmem:[#allocation21 + $0x360] sm:$0xff]
    %v5940 = vld [vmem:[#allocation21 + $0x368] sm:$0xff]
    %v5941 = vld [vmem:[#allocation21 + $0x370] sm:$0xff]
    %v5942 = vld [vmem:[#allocation21 + $0x378] sm:$0xff]
    %v5943 = vld [vmem:[#allocation21 + $0x380] sm:$0xff]
    %v5944 = vld [vmem:[#allocation21 + $0x388] sm:$0xff]
    %v5945 = vld [vmem:[#allocation21 + $0x390] sm:$0xff]
    %v5946 = vld [vmem:[#allocation21 + $0x398] sm:$0xff]
    %v5947 = vld [vmem:[#allocation21 + $0x3a0] sm:$0xff]
    %v5948 = vld [vmem:[#allocation21 + $0x3a8] sm:$0xff]
    %v5949 = vld [vmem:[#allocation21 + $0x3b0] sm:$0xff]
    %v5950 = vld [vmem:[#allocation21 + $0x3b8] sm:$0xff]
    %v5951 = vld [vmem:[#allocation21 + $0x3c0] sm:$0xff]
    %v5952 = vld [vmem:[#allocation21 + $0x3c8] sm:$0xff]
    %v5953 = vld [vmem:[#allocation21 + $0x3d0] sm:$0xff]
    %v5954 = vld [vmem:[#allocation21 + $0x3d8] sm:$0xff]
    %v5955 = vld [vmem:[#allocation21 + $0x3e0] sm:$0xff]
    %v5956 = vld [vmem:[#allocation21 + $0x3e8] sm:$0xff]
    %v5957 = vld [vmem:[#allocation21 + $0x3f0] sm:$0xff]
    %v5958 = vld [vmem:[#allocation21 + $0x3f8] sm:$0xff]
    %v5959 = vld [vmem:[#allocation21 + $0x400] sm:$0xff]
    %v5960 = vld [vmem:[#allocation21 + $0x408] sm:$0xff]
    %v5961 = vld [vmem:[#allocation21 + $0x410] sm:$0xff]
    %v5962 = vld [vmem:[#allocation21 + $0x418] sm:$0xff]
    %v5963 = vld [vmem:[#allocation21 + $0x420] sm:$0xff]
    %v5964 = vld [vmem:[#allocation21 + $0x428] sm:$0xff]
    %v5965 = vld [vmem:[#allocation21 + $0x430] sm:$0xff]
    %v5966 = vld [vmem:[#allocation21 + $0x438] sm:$0xff]
    %v5967 = vld [vmem:[#allocation21 + $0x440] sm:$0xff]
    %v5968 = vld [vmem:[#allocation21 + $0x448] sm:$0xff]
    %v5969 = vld [vmem:[#allocation21 + $0x450] sm:$0xff]
    %v5970 = vld [vmem:[#allocation21 + $0x458] sm:$0xff]
    %v5971 = vld [vmem:[#allocation21 + $0x460] sm:$0xff]
    %v5972 = vld [vmem:[#allocation21 + $0x468] sm:$0xff]
    %v5973 = vld [vmem:[#allocation21 + $0x470] sm:$0xff]
    %v5974 = vld [vmem:[#allocation21 + $0x478] sm:$0xff]
    %v5975 = vld [vmem:[#allocation21 + $0x480] sm:$0xff]
    %v5976 = vld [vmem:[#allocation21 + $0x488] sm:$0xff]
    %v5977 = vld [vmem:[#allocation21 + $0x490] sm:$0xff]
    %v5978 = vld [vmem:[#allocation21 + $0x498] sm:$0xff]
    %v5979 = vld [vmem:[#allocation21 + $0x4a0] sm:$0xff]
    %v5980 = vld [vmem:[#allocation21 + $0x4a8] sm:$0xff]
    %v5981 = vld [vmem:[#allocation21 + $0x4b0] sm:$0xff]
    %v5982 = vld [vmem:[#allocation21 + $0x4b8] sm:$0xff]
    %v5983 = vld [vmem:[#allocation21 + $0x4c0] sm:$0xff]
    %v5984 = vld [vmem:[#allocation21 + $0x4c8] sm:$0xff]
    %v5985 = vld [vmem:[#allocation21 + $0x4d0] sm:$0xff]
    %v5986 = vld [vmem:[#allocation21 + $0x4d8] sm:$0xff]
    %v5987 = vld [vmem:[#allocation21 + $0x4e0] sm:$0xff]
    %v5988 = vld [vmem:[#allocation21 + $0x4e8] sm:$0xff]
    %v5989 = vld [vmem:[#allocation21 + $0x4f0] sm:$0xff]
    %v5990 = vld [vmem:[#allocation21 + $0x4f8] sm:$0xff]
    %v5991 = vld [vmem:[#allocation21 + $0x500] sm:$0xff]
    %v5992 = vld [vmem:[#allocation21 + $0x508] sm:$0xff]
    %v5993 = vld [vmem:[#allocation21 + $0x510] sm:$0xff]
    %v5994 = vld [vmem:[#allocation21 + $0x518] sm:$0xff]
    %v5995 = vld [vmem:[#allocation21 + $0x520] sm:$0xff]
    %v5996 = vld [vmem:[#allocation21 + $0x528] sm:$0xff]
    %v5997 = vld [vmem:[#allocation21 + $0x530] sm:$0xff]
    %v5998 = vld [vmem:[#allocation21 + $0x538] sm:$0xff]
    %v5999 = vld [vmem:[#allocation23] sm:$0x3]
    %v6001 = vperm.slane %v5999, 0
    %v6002 = vperm.slane %v5999, 1
    %v6005 = vsel %vm542, %v5688, 0
    %v6007 = vsel %vm542, %v5692, 0
    %v6009 = vsel %vm542, %v5696, 0
    %v6011 = vsel %vm542, %v5700, 0
    %v6013 = vsel %vm542, %v5704, 0
    %v6015 = vsel %vm542, %v5708, 0
    %v6017 = vsel %vm542, %v5712, 0
    %v6019 = vsel %vm542, %v5716, 0
    %v6021 = vsel %vm542, %v5720, 0
    %v6023 = vsel %vm542, %v5724, 0
    %v6025 = vsel %vm542, %v5728, 0
    %v6027 = vsel %vm542, %v5732, 0
    %v6029 = vsel %vm542, %v5736, 0
    %6031 = vmatpush.msra.mxu0 %v5861
    %6032 = vmatpush.msra.mxu0 %v5859
    %6033 = vmatpush.msra.mxu0 %v5857
    %6034 = vmatpush.msra.mxu0 %v5855
    %6035 = vmatpush.msra.mxu0 %v5853
    %6036 = vmatpush.msra.mxu0 %v5851
    %6037 = vmatpush.msra.mxu0 %v5849
    %6038 = vmatpush.msra.mxu0 %v5847
    %6039 = vmatpush.msra.mxu0 %v5845
    %6040 = vmatpush.msra.mxu0 %v5843
    %6041 = vmatpush.msra.mxu0 %v5841
    %6042 = vmatpush.msra.mxu0 %v5839
    %6043 = vmatpush.msra.mxu0 %v5837
    %6044 = vmatpush.msra.mxu0 %v5835
    %6045 = vmatpush.msra.mxu0 %v5833
    %6046 = vmatpush.msra.mxu0 %v5831
    %6047 = vmatmul.f32.gmra.mxu0 0.0
    %v6048 = vpop.f32.mrf.mxu0
    %v6049 = vadd.f32 %v6001, %v6048
    %6050 = vmatmul.f32.gmra.mxu0 %v5517
    %v6051 = vpop.f32.mrf.mxu0
    %v6052 = vadd.f32 %v6001, %v6051
    %6053 = vmatmul.f32.gmra.mxu0 0.0
    %v6054 = vpop.f32.mrf.mxu0
    %v6055 = vadd.f32 %v6001, %v6054
    %6056 = vmatmul.f32.gmra.mxu0 %v5519
    %v6057 = vpop.f32.mrf.mxu0
    %v6058 = vadd.f32 %v6001, %v6057
    %6059 = vmatmul.f32.gmra.mxu0 0.0
    %v6060 = vpop.f32.mrf.mxu0
    %v6061 = vadd.f32 %v6001, %v6060
    %6062 = vmatmul.f32.gmra.mxu0 %v5521
    %v6063 = vpop.f32.mrf.mxu0
    %v6064 = vadd.f32 %v6001, %v6063
    %6065 = vmatmul.f32.gmra.mxu0 0.0
    %v6066 = vpop.f32.mrf.mxu0
    %v6067 = vadd.f32 %v6001, %v6066
    %6068 = vmatmul.f32.gmra.mxu0 %v5523
    %v6069 = vpop.f32.mrf.mxu0
    %v6070 = vadd.f32 %v6001, %v6069
    %6071 = vmatmul.f32.gmra.mxu0 0.0
    %v6072 = vpop.f32.mrf.mxu0
    %v6073 = vadd.f32 %v6001, %v6072
    %6074 = vmatmul.f32.gmra.mxu0 %v5525
    %v6075 = vpop.f32.mrf.mxu0
    %v6076 = vadd.f32 %v6001, %v6075
    %6077 = vmatmul.f32.gmra.mxu0 0.0
    %v6078 = vpop.f32.mrf.mxu0
    %v6079 = vadd.f32 %v6001, %v6078
    %6080 = vmatmul.f32.gmra.mxu0 %v5527
    %v6081 = vpop.f32.mrf.mxu0
    %v6082 = vadd.f32 %v6001, %v6081
    %6083 = vmatmul.f32.gmra.mxu0 0.0
    %v6084 = vpop.f32.mrf.mxu0
    %v6085 = vadd.f32 %v6001, %v6084
    %6086 = vmatmul.f32.gmra.mxu0 %v5529
    %v6087 = vpop.f32.mrf.mxu0
    %v6088 = vadd.f32 %v6001, %v6087
    %6089 = vmatmul.f32.gmra.mxu0 0.0
    %v6090 = vpop.f32.mrf.mxu0
    %v6091 = vadd.f32 %v6001, %v6090
    %6092 = vmatmul.f32.gmra.mxu0 %v5531
    %v6093 = vpop.f32.mrf.mxu0
    %v6094 = vadd.f32 %v6001, %v6093
    %6095 = vmatmul.f32.gmra.mxu0 0.0
    %v6096 = vpop.f32.mrf.mxu0
    %v6097 = vadd.f32 %v6001, %v6096
    %6098 = vmatmul.f32.gmra.mxu0 %v5533
    %v6099 = vpop.f32.mrf.mxu0
    %v6100 = vadd.f32 %v6001, %v6099
    %6101 = vmatmul.f32.gmra.mxu0 0.0
    %v6102 = vpop.f32.mrf.mxu0
    %v6103 = vadd.f32 %v6001, %v6102
    %6104 = vmatmul.f32.gmra.mxu0 %v5535
    %v6105 = vpop.f32.mrf.mxu0
    %v6106 = vadd.f32 %v6001, %v6105
    %6107 = vmatmul.f32.gmra.mxu0 0.0
    %v6108 = vpop.f32.mrf.mxu0
    %v6109 = vadd.f32 %v6001, %v6108
    %6110 = vmatmul.f32.gmra.mxu0 %v5537
    %v6111 = vpop.f32.mrf.mxu0
    %v6112 = vadd.f32 %v6001, %v6111
    %6113 = vmatmul.f32.gmra.mxu0 0.0
    %v6114 = vpop.f32.mrf.mxu0
    %v6115 = vadd.f32 %v6001, %v6114
    %6116 = vmatmul.f32.gmra.mxu0 %v5539
    %v6117 = vpop.f32.mrf.mxu0
    %v6118 = vadd.f32 %v6001, %v6117
    %6119 = vmatmul.f32.gmra.mxu0 0.0
    %v6120 = vpop.f32.mrf.mxu0
    %v6121 = vadd.f32 %v6001, %v6120
    %6122 = vmatmul.f32.gmra.mxu0 %v5541
    %v6123 = vpop.f32.mrf.mxu0
    %v6124 = vadd.f32 %v6001, %v6123
    %6125 = vmatmul.f32.gmra.mxu0 0.0
    %v6126 = vpop.f32.mrf.mxu0
    %v6127 = vadd.f32 %v6001, %v6126
    %6128 = vmatmul.f32.gmra.mxu0 %v5543
    %v6129 = vpop.f32.mrf.mxu0
    %v6130 = vadd.f32 %v6001, %v6129
    %6131 = vdwg.mxu0
    %6132 = vmatpush.msra.mxu0 %v5893
    %6133 = vmatpush.msra.mxu0 %v5891
    %6134 = vmatpush.msra.mxu0 %v5889
    %6135 = vmatpush.msra.mxu0 %v5887
    %6136 = vmatpush.msra.mxu0 %v5885
    %6137 = vmatpush.msra.mxu0 %v5883
    %6138 = vmatpush.msra.mxu0 %v5881
    %6139 = vmatpush.msra.mxu0 %v5879
    %6140 = vmatpush.msra.mxu0 %v5877
    %6141 = vmatpush.msra.mxu0 %v5875
    %6142 = vmatpush.msra.mxu0 %v5873
    %6143 = vmatpush.msra.mxu0 %v5871
    %6144 = vmatpush.msra.mxu0 %v5869
    %6145 = vmatpush.msra.mxu0 %v5867
    %6146 = vmatpush.msra.mxu0 %v5865
    %6147 = vmatpush.msra.mxu0 %v5863
    %6148 = vmatmul.f32.gmra.mxu0 %v5776
    %v6149 = vpop.f32.mrf.mxu0
    %v6150 = vadd.f32 %v6049, %v6149
    %6151 = vmatmul.f32.gmra.mxu0 %v5777
    %v6152 = vpop.f32.mrf.mxu0
    %v6153 = vadd.f32 %v6052, %v6152
    %6154 = vmatmul.f32.gmra.mxu0 %v5778
    %v6155 = vpop.f32.mrf.mxu0
    %v6156 = vadd.f32 %v6055, %v6155
    %6157 = vmatmul.f32.gmra.mxu0 %v5779
    %v6158 = vpop.f32.mrf.mxu0
    %v6159 = vadd.f32 %v6058, %v6158
    %6160 = vmatmul.f32.gmra.mxu0 %v5780
    %v6161 = vpop.f32.mrf.mxu0
    %v6162 = vadd.f32 %v6061, %v6161
    %6163 = vmatmul.f32.gmra.mxu0 %v5781
    %v6164 = vpop.f32.mrf.mxu0
    %v6165 = vadd.f32 %v6064, %v6164
    %6166 = vmatmul.f32.gmra.mxu0 %v5782
    %v6167 = vpop.f32.mrf.mxu0
    %v6168 = vadd.f32 %v6067, %v6167
    %6169 = vmatmul.f32.gmra.mxu0 %v5783
    %v6170 = vpop.f32.mrf.mxu0
    %v6171 = vadd.f32 %v6070, %v6170
    %6172 = vmatmul.f32.gmra.mxu0 %v5784
    %v6173 = vpop.f32.mrf.mxu0
    %v6174 = vadd.f32 %v6073, %v6173
    %6175 = vmatmul.f32.gmra.mxu0 %v5785
    %v6176 = vpop.f32.mrf.mxu0
    %v6177 = vadd.f32 %v6076, %v6176
    %6178 = vmatmul.f32.gmra.mxu0 %v5786
    %v6179 = vpop.f32.mrf.mxu0
    %v6180 = vadd.f32 %v6079, %v6179
    %6181 = vmatmul.f32.gmra.mxu0 %v5787
    %v6182 = vpop.f32.mrf.mxu0
    %v6183 = vadd.f32 %v6082, %v6182
    %6184 = vmatmul.f32.gmra.mxu0 %v5788
    %v6185 = vpop.f32.mrf.mxu0
    %v6186 = vadd.f32 %v6085, %v6185
    %6187 = vmatmul.f32.gmra.mxu0 %v5789
    %v6188 = vpop.f32.mrf.mxu0
    %v6189 = vadd.f32 %v6088, %v6188
    %6190 = vmatmul.f32.gmra.mxu0 %v5790
    %v6191 = vpop.f32.mrf.mxu0
    %v6192 = vadd.f32 %v6091, %v6191
    %6193 = vmatmul.f32.gmra.mxu0 %v5791
    %v6194 = vpop.f32.mrf.mxu0
    %v6195 = vadd.f32 %v6094, %v6194
    %6196 = vmatmul.f32.gmra.mxu0 %v5792
    %v6197 = vpop.f32.mrf.mxu0
    %v6198 = vadd.f32 %v6097, %v6197
    %6199 = vmatmul.f32.gmra.mxu0 %v5793
    %v6200 = vpop.f32.mrf.mxu0
    %v6201 = vadd.f32 %v6100, %v6200
    %6202 = vmatmul.f32.gmra.mxu0 %v5794
    %v6203 = vpop.f32.mrf.mxu0
    %v6204 = vadd.f32 %v6103, %v6203
    %6205 = vmatmul.f32.gmra.mxu0 %v5795
    %v6206 = vpop.f32.mrf.mxu0
    %v6207 = vadd.f32 %v6106, %v6206
    %6208 = vmatmul.f32.gmra.mxu0 %v5796
    %v6209 = vpop.f32.mrf.mxu0
    %v6210 = vadd.f32 %v6109, %v6209
    %6211 = vmatmul.f32.gmra.mxu0 %v5797
    %v6212 = vpop.f32.mrf.mxu0
    %v6213 = vadd.f32 %v6112, %v6212
    %6214 = vmatmul.f32.gmra.mxu0 %v5798
    %v6215 = vpop.f32.mrf.mxu0
    %v6216 = vadd.f32 %v6115, %v6215
    %6217 = vmatmul.f32.gmra.mxu0 %v5799
    %v6218 = vpop.f32.mrf.mxu0
    %v6219 = vadd.f32 %v6118, %v6218
    %6220 = vmatmul.f32.gmra.mxu0 %v5800
    %v6221 = vpop.f32.mrf.mxu0
    %v6222 = vadd.f32 %v6121, %v6221
    %6223 = vmatmul.f32.gmra.mxu0 %v5801
    %v6224 = vpop.f32.mrf.mxu0
    %v6225 = vadd.f32 %v6124, %v6224
    %6226 = vmatmul.f32.gmra.mxu0 %v5802
    %v6227 = vpop.f32.mrf.mxu0
    %v6228 = vadd.f32 %v6127, %v6227
    %6229 = vmatmul.f32.gmra.mxu0 %v5803
    %v6230 = vpop.f32.mrf.mxu0
    %v6231 = vadd.f32 %v6130, %v6230
    %6232 = vdwg.mxu0
    %6233 = vmatpush.msra.mxu0 %v5925
    %6234 = vmatpush.msra.mxu0 %v5923
    %6235 = vmatpush.msra.mxu0 %v5921
    %6236 = vmatpush.msra.mxu0 %v5919
    %6237 = vmatpush.msra.mxu0 %v5917
    %6238 = vmatpush.msra.mxu0 %v5915
    %6239 = vmatpush.msra.mxu0 %v5913
    %6240 = vmatpush.msra.mxu0 %v5911
    %6241 = vmatpush.msra.mxu0 %v5909
    %6242 = vmatpush.msra.mxu0 %v5907
    %6243 = vmatpush.msra.mxu0 %v5905
    %6244 = vmatpush.msra.mxu0 %v5903
    %6245 = vmatpush.msra.mxu0 %v5901
    %6246 = vmatpush.msra.mxu0 %v5899
    %6247 = vmatpush.msra.mxu0 %v5897
    %6248 = vmatpush.msra.mxu0 %v5895
    %6249 = vmatmul.f32.gmra.mxu0 %v5629
    %v6250 = vpop.f32.mrf.mxu0
    %v6251 = vadd.f32 %v6150, %v6250
    %6252 = vmatmul.f32.gmra.mxu0 %v3999
    %v6253 = vpop.f32.mrf.mxu0
    %v6254 = vadd.f32 %v6153, %v6253
    %6255 = vmatmul.f32.gmra.mxu0 %v5630
    %v6256 = vpop.f32.mrf.mxu0
    %v6257 = vadd.f32 %v6156, %v6256
    %6258 = vmatmul.f32.gmra.mxu0 %v3999
    %v6259 = vpop.f32.mrf.mxu0
    %v6260 = vadd.f32 %v6159, %v6259
    %6261 = vmatmul.f32.gmra.mxu0 %v5631
    %v6262 = vpop.f32.mrf.mxu0
    %v6263 = vadd.f32 %v6162, %v6262
    %6264 = vmatmul.f32.gmra.mxu0 %v3999
    %v6265 = vpop.f32.mrf.mxu0
    %v6266 = vadd.f32 %v6165, %v6265
    %6267 = vmatmul.f32.gmra.mxu0 %v5632
    %v6268 = vpop.f32.mrf.mxu0
    %v6269 = vadd.f32 %v6168, %v6268
    %6270 = vmatmul.f32.gmra.mxu0 %v3999
    %v6271 = vpop.f32.mrf.mxu0
    %v6272 = vadd.f32 %v6171, %v6271
    %6273 = vmatmul.f32.gmra.mxu0 %v5633
    %v6274 = vpop.f32.mrf.mxu0
    %v6275 = vadd.f32 %v6174, %v6274
    %6276 = vmatmul.f32.gmra.mxu0 %v3999
    %v6277 = vpop.f32.mrf.mxu0
    %v6278 = vadd.f32 %v6177, %v6277
    %6279 = vmatmul.f32.gmra.mxu0 %v5634
    %v6280 = vpop.f32.mrf.mxu0
    %v6281 = vadd.f32 %v6180, %v6280
    %6282 = vmatmul.f32.gmra.mxu0 %v3999
    %v6283 = vpop.f32.mrf.mxu0
    %v6284 = vadd.f32 %v6183, %v6283
    %6285 = vmatmul.f32.gmra.mxu0 %v5635
    %v6286 = vpop.f32.mrf.mxu0
    %v6287 = vadd.f32 %v6186, %v6286
    %6288 = vmatmul.f32.gmra.mxu0 %v3999
    %v6289 = vpop.f32.mrf.mxu0
    %v6290 = vadd.f32 %v6189, %v6289
    %6291 = vmatmul.f32.gmra.mxu0 %v5636
    %v6292 = vpop.f32.mrf.mxu0
    %v6293 = vadd.f32 %v6192, %v6292
    %6294 = vmatmul.f32.gmra.mxu0 %v3999
    %v6295 = vpop.f32.mrf.mxu0
    %v6296 = vadd.f32 %v6195, %v6295
    %6297 = vmatmul.f32.gmra.mxu0 %v5637
    %v6298 = vpop.f32.mrf.mxu0
    %v6299 = vadd.f32 %v6198, %v6298
    %6300 = vmatmul.f32.gmra.mxu0 %v3999
    %v6301 = vpop.f32.mrf.mxu0
    %v6302 = vadd.f32 %v6201, %v6301
    %6303 = vmatmul.f32.gmra.mxu0 %v5638
    %v6304 = vpop.f32.mrf.mxu0
    %v6305 = vadd.f32 %v6204, %v6304
    %6306 = vmatmul.f32.gmra.mxu0 %v3999
    %v6307 = vpop.f32.mrf.mxu0
    %v6308 = vadd.f32 %v6207, %v6307
    %6309 = vmatmul.f32.gmra.mxu0 %v5639
    %v6310 = vpop.f32.mrf.mxu0
    %v6311 = vadd.f32 %v6210, %v6310
    %6312 = vmatmul.f32.gmra.mxu0 %v3999
    %v6313 = vpop.f32.mrf.mxu0
    %v6314 = vadd.f32 %v6213, %v6313
    %6315 = vmatmul.f32.gmra.mxu0 %v5640
    %v6316 = vpop.f32.mrf.mxu0
    %v6317 = vadd.f32 %v6216, %v6316
    %6318 = vmatmul.f32.gmra.mxu0 %v3999
    %v6319 = vpop.f32.mrf.mxu0
    %v6320 = vadd.f32 %v6219, %v6319
    %6321 = vmatmul.f32.gmra.mxu0 %v5641
    %v6322 = vpop.f32.mrf.mxu0
    %v6323 = vadd.f32 %v6222, %v6322
    %6324 = vmatmul.f32.gmra.mxu0 %v3999
    %v6325 = vpop.f32.mrf.mxu0
    %v6326 = vadd.f32 %v6225, %v6325
    %6327 = vmatmul.f32.gmra.mxu0 %v5642
    %v6328 = vpop.f32.mrf.mxu0
    %v6329 = vadd.f32 %v6228, %v6328
    %6330 = vmatmul.f32.gmra.mxu0 %v3999
    %v6331 = vpop.f32.mrf.mxu0
    %v6332 = vadd.f32 %v6231, %v6331
    %6333 = vdwg.mxu0
    %6334 = vmatpush.msra.mxu0 %v5957
    %6335 = vmatpush.msra.mxu0 %v5955
    %6336 = vmatpush.msra.mxu0 %v5953
    %6337 = vmatpush.msra.mxu0 %v5951
    %6338 = vmatpush.msra.mxu0 %v5949
    %6339 = vmatpush.msra.mxu0 %v5947
    %6340 = vmatpush.msra.mxu0 %v5945
    %6341 = vmatpush.msra.mxu0 %v5943
    %6342 = vmatpush.msra.mxu0 %v5941
    %6343 = vmatpush.msra.mxu0 %v5939
    %6344 = vmatpush.msra.mxu0 %v5937
    %6345 = vmatpush.msra.mxu0 %v5935
    %6346 = vmatpush.msra.mxu0 %v5933
    %6347 = vmatpush.msra.mxu0 %v5931
    %6348 = vmatpush.msra.mxu0 %v5929
    %6349 = vmatpush.msra.mxu0 %v5927
    %6350 = vmatmul.f32.gmra.mxu0 %v5804
    %v6351 = vpop.f32.mrf.mxu0
    %v6352 = vadd.f32 %v6251, %v6351
    %6353 = vmatmul.f32.gmra.mxu0 %v5805
    %v6354 = vpop.f32.mrf.mxu0
    %v6355 = vadd.f32 %v6254, %v6354
    %6356 = vmatmul.f32.gmra.mxu0 %v5806
    %v6357 = vpop.f32.mrf.mxu0
    %v6358 = vadd.f32 %v6257, %v6357
    %6359 = vmatmul.f32.gmra.mxu0 %v5807
    %v6360 = vpop.f32.mrf.mxu0
    %v6361 = vadd.f32 %v6260, %v6360
    %6362 = vmatmul.f32.gmra.mxu0 %v5808
    %v6363 = vpop.f32.mrf.mxu0
    %v6364 = vadd.f32 %v6263, %v6363
    %6365 = vmatmul.f32.gmra.mxu0 %v5809
    %v6366 = vpop.f32.mrf.mxu0
    %v6367 = vadd.f32 %v6266, %v6366
    %6368 = vmatmul.f32.gmra.mxu0 %v5810
    %v6369 = vpop.f32.mrf.mxu0
    %v6370 = vadd.f32 %v6269, %v6369
    %6371 = vmatmul.f32.gmra.mxu0 %v5811
    %v6372 = vpop.f32.mrf.mxu0
    %v6373 = vadd.f32 %v6272, %v6372
    %6374 = vmatmul.f32.gmra.mxu0 %v5812
    %v6375 = vpop.f32.mrf.mxu0
    %v6376 = vadd.f32 %v6275, %v6375
    %6377 = vmatmul.f32.gmra.mxu0 %v5813
    %v6378 = vpop.f32.mrf.mxu0
    %v6379 = vadd.f32 %v6278, %v6378
    %6380 = vmatmul.f32.gmra.mxu0 %v5814
    %v6381 = vpop.f32.mrf.mxu0
    %v6382 = vadd.f32 %v6281, %v6381
    %6383 = vmatmul.f32.gmra.mxu0 %v5815
    %v6384 = vpop.f32.mrf.mxu0
    %v6385 = vadd.f32 %v6284, %v6384
    %6386 = vmatmul.f32.gmra.mxu0 %v5816
    %v6387 = vpop.f32.mrf.mxu0
    %v6388 = vadd.f32 %v6287, %v6387
    %6389 = vmatmul.f32.gmra.mxu0 %v5817
    %v6390 = vpop.f32.mrf.mxu0
    %v6391 = vadd.f32 %v6290, %v6390
    %6392 = vmatmul.f32.gmra.mxu0 %v5818
    %v6393 = vpop.f32.mrf.mxu0
    %v6394 = vadd.f32 %v6293, %v6393
    %6395 = vmatmul.f32.gmra.mxu0 %v5819
    %v6396 = vpop.f32.mrf.mxu0
    %v6397 = vadd.f32 %v6296, %v6396
    %6398 = vmatmul.f32.gmra.mxu0 %v5820
    %v6399 = vpop.f32.mrf.mxu0
    %v6400 = vadd.f32 %v6299, %v6399
    %6401 = vmatmul.f32.gmra.mxu0 %v5821
    %v6402 = vpop.f32.mrf.mxu0
    %v6403 = vadd.f32 %v6302, %v6402
    %6404 = vmatmul.f32.gmra.mxu0 %v5822
    %v6405 = vpop.f32.mrf.mxu0
    %v6406 = vadd.f32 %v6305, %v6405
    %6407 = vmatmul.f32.gmra.mxu0 %v5823
    %v6408 = vpop.f32.mrf.mxu0
    %v6409 = vadd.f32 %v6308, %v6408
    %6410 = vmatmul.f32.gmra.mxu0 %v5824
    %v6411 = vpop.f32.mrf.mxu0
    %v6412 = vadd.f32 %v6311, %v6411
    %6413 = vmatmul.f32.gmra.mxu0 %v5825
    %v6414 = vpop.f32.mrf.mxu0
    %v6415 = vadd.f32 %v6314, %v6414
    %6416 = vmatmul.f32.gmra.mxu0 %v5826
    %v6417 = vpop.f32.mrf.mxu0
    %v6418 = vadd.f32 %v6317, %v6417
    %6419 = vmatmul.f32.gmra.mxu0 %v5827
    %v6420 = vpop.f32.mrf.mxu0
    %v6421 = vadd.f32 %v6320, %v6420
    %6422 = vmatmul.f32.gmra.mxu0 %v5828
    %v6423 = vpop.f32.mrf.mxu0
    %v6424 = vadd.f32 %v6323, %v6423
    %6425 = vmatmul.f32.gmra.mxu0 %v5829
    %v6426 = vpop.f32.mrf.mxu0
    %v6427 = vadd.f32 %v6326, %v6426
    %6428 = vmatmul.f32.gmra.mxu0 %v5830
    %v6429 = vpop.f32.mrf.mxu0
    %v6430 = vadd.f32 %v6329, %v6429
    %6431 = vmatmul.f32.gmra.mxu0 %v4125
    %v6432 = vpop.f32.mrf.mxu0
    %v6433 = vadd.f32 %v6332, %v6432
    %6434 = vdwg.mxu0
    %6435 = vmatpush.msra.mxu0 %v5989
    %6436 = vmatpush.msra.mxu0 %v5987
    %6437 = vmatpush.msra.mxu0 %v5985
    %6438 = vmatpush.msra.mxu0 %v5983
    %6439 = vmatpush.msra.mxu0 %v5981
    %6440 = vmatpush.msra.mxu0 %v5979
    %6441 = vmatpush.msra.mxu0 %v5977
    %6442 = vmatpush.msra.mxu0 %v5975
    %6443 = vmatpush.msra.mxu0 %v5973
    %6444 = vmatpush.msra.mxu0 %v5971
    %6445 = vmatpush.msra.mxu0 %v5969
    %6446 = vmatpush.msra.mxu0 %v5967
    %6447 = vmatpush.msra.mxu0 %v5965
    %6448 = vmatpush.msra.mxu0 %v5963
    %6449 = vmatpush.msra.mxu0 %v5961
    %6450 = vmatpush.msra.mxu0 %v5959
    %6451 = vmatmul.f32.gmra.mxu0 %v4054
    %v6452 = vpop.f32.mrf.mxu0
    %v6453 = vadd.f32 %v6352, %v6452
    %6454 = vmatmul.f32.gmra.mxu0 %v5737
    %v6455 = vpop.f32.mrf.mxu0
    %v6456 = vadd.f32 %v6355, %v6455
    %6457 = vmatmul.f32.gmra.mxu0 %v4054
    %v6458 = vpop.f32.mrf.mxu0
    %v6459 = vadd.f32 %v6358, %v6458
    %6460 = vmatmul.f32.gmra.mxu0 %v5738
    %v6461 = vpop.f32.mrf.mxu0
    %v6462 = vadd.f32 %v6361, %v6461
    %6463 = vmatmul.f32.gmra.mxu0 %v4054
    %v6464 = vpop.f32.mrf.mxu0
    %v6465 = vadd.f32 %v6364, %v6464
    %6466 = vmatmul.f32.gmra.mxu0 %v5739
    %v6467 = vpop.f32.mrf.mxu0
    %v6468 = vadd.f32 %v6367, %v6467
    %6469 = vmatmul.f32.gmra.mxu0 %v4054
    %v6470 = vpop.f32.mrf.mxu0
    %v6471 = vadd.f32 %v6370, %v6470
    %6472 = vmatmul.f32.gmra.mxu0 %v5740
    %v6473 = vpop.f32.mrf.mxu0
    %v6474 = vadd.f32 %v6373, %v6473
    %6475 = vmatmul.f32.gmra.mxu0 %v4054
    %v6476 = vpop.f32.mrf.mxu0
    %v6477 = vadd.f32 %v6376, %v6476
    %6478 = vmatmul.f32.gmra.mxu0 %v5741
    %v6479 = vpop.f32.mrf.mxu0
    %v6480 = vadd.f32 %v6379, %v6479
    %6481 = vmatmul.f32.gmra.mxu0 %v4054
    %v6482 = vpop.f32.mrf.mxu0
    %v6483 = vadd.f32 %v6382, %v6482
    %6484 = vmatmul.f32.gmra.mxu0 %v5742
    %v6485 = vpop.f32.mrf.mxu0
    %v6486 = vadd.f32 %v6385, %v6485
    %6487 = vmatmul.f32.gmra.mxu0 %v4054
    %v6488 = vpop.f32.mrf.mxu0
    %v6489 = vadd.f32 %v6388, %v6488
    %6490 = vmatmul.f32.gmra.mxu0 %v5743
    %v6491 = vpop.f32.mrf.mxu0
    %v6492 = vadd.f32 %v6391, %v6491
    %6493 = vmatmul.f32.gmra.mxu0 %v4054
    %v6494 = vpop.f32.mrf.mxu0
    %v6495 = vadd.f32 %v6394, %v6494
    %6496 = vmatmul.f32.gmra.mxu0 %v5744
    %v6497 = vpop.f32.mrf.mxu0
    %v6498 = vadd.f32 %v6397, %v6497
    %6499 = vmatmul.f32.gmra.mxu0 %v4054
    %v6500 = vpop.f32.mrf.mxu0
    %v6501 = vadd.f32 %v6400, %v6500
    %6502 = vmatmul.f32.gmra.mxu0 %v5745
    %v6503 = vpop.f32.mrf.mxu0
    %v6504 = vadd.f32 %v6403, %v6503
    %6505 = vmatmul.f32.gmra.mxu0 %v4054
    %v6506 = vpop.f32.mrf.mxu0
    %v6507 = vadd.f32 %v6406, %v6506
    %6508 = vmatmul.f32.gmra.mxu0 %v5746
    %v6509 = vpop.f32.mrf.mxu0
    %v6510 = vadd.f32 %v6409, %v6509
    %6511 = vmatmul.f32.gmra.mxu0 %v4054
    %v6512 = vpop.f32.mrf.mxu0
    %v6513 = vadd.f32 %v6412, %v6512
    %6514 = vmatmul.f32.gmra.mxu0 %v5747
    %v6515 = vpop.f32.mrf.mxu0
    %v6516 = vadd.f32 %v6415, %v6515
    %6517 = vmatmul.f32.gmra.mxu0 %v4054
    %v6518 = vpop.f32.mrf.mxu0
    %v6519 = vadd.f32 %v6418, %v6518
    %6520 = vmatmul.f32.gmra.mxu0 %v5748
    %v6521 = vpop.f32.mrf.mxu0
    %v6522 = vadd.f32 %v6421, %v6521
    %6523 = vmatmul.f32.gmra.mxu0 %v4054
    %v6524 = vpop.f32.mrf.mxu0
    %v6525 = vadd.f32 %v6424, %v6524
    %6526 = vmatmul.f32.gmra.mxu0 %v5749
    %v6527 = vpop.f32.mrf.mxu0
    %v6528 = vadd.f32 %v6427, %v6527
    %6529 = vmatmul.f32.gmra.mxu0 %v4054
    %v6530 = vpop.f32.mrf.mxu0
    %v6531 = vadd.f32 %v6430, %v6530
    %6532 = vmatmul.f32.gmra.mxu0 %v4054
    %v6533 = vpop.f32.mrf.mxu0
    %v6534 = vadd.f32 %v6433, %v6533
    %6535 = vdwg.mxu0
    %6536 = vmatpush.msra.mxu0 0.0
    %6537 = vmatpush.msra.mxu0 0.0
    %6538 = vmatpush.msra.mxu0 0.0
    %6539 = vmatpush.msra.mxu0 0.0
    %6540 = vmatpush.msra.mxu0 0.0
    %6541 = vmatpush.msra.mxu0 0.0
    %6542 = vmatpush.msra.mxu0 0.0
    %6543 = vmatpush.msra.mxu0 0.0
    %6544 = vmatpush.msra.mxu0 0.0
    %6545 = vmatpush.msra.mxu0 0.0
    %6546 = vmatpush.msra.mxu0 0.0
    %6547 = vmatpush.msra.mxu0 0.0
    %6548 = vmatpush.msra.mxu0 %v5997
    %6549 = vmatpush.msra.mxu0 %v5995
    %6550 = vmatpush.msra.mxu0 %v5993
    %6551 = vmatpush.msra.mxu0 %v5991
    %6552 = vmatmul.f32.gmra.mxu0 %v4300
    %v6553 = vpop.f32.mrf.mxu0
    %v6554 = vadd.f32 %v6453, %v6553
    %6555 = vmatmul.f32.gmra.mxu0 %v6005
    %v6556 = vpop.f32.mrf.mxu0
    %v6557 = vadd.f32 %v6456, %v6556
    %6558 = vmatmul.f32.gmra.mxu0 %v4300
    %v6559 = vpop.f32.mrf.mxu0
    %v6560 = vadd.f32 %v6459, %v6559
    %6561 = vmatmul.f32.gmra.mxu0 %v6007
    %v6562 = vpop.f32.mrf.mxu0
    %v6563 = vadd.f32 %v6462, %v6562
    %6564 = vmatmul.f32.gmra.mxu0 %v4300
    %v6565 = vpop.f32.mrf.mxu0
    %v6566 = vadd.f32 %v6465, %v6565
    %6567 = vmatmul.f32.gmra.mxu0 %v6009
    %v6568 = vpop.f32.mrf.mxu0
    %v6569 = vadd.f32 %v6468, %v6568
    %6570 = vmatmul.f32.gmra.mxu0 %v4300
    %v6571 = vpop.f32.mrf.mxu0
    %v6572 = vadd.f32 %v6471, %v6571
    %6573 = vmatmul.f32.gmra.mxu0 %v6011
    %v6574 = vpop.f32.mrf.mxu0
    %v6575 = vadd.f32 %v6474, %v6574
    %6576 = vmatmul.f32.gmra.mxu0 %v4300
    %v6577 = vpop.f32.mrf.mxu0
    %v6578 = vadd.f32 %v6477, %v6577
    %6579 = vmatmul.f32.gmra.mxu0 %v6013
    %v6580 = vpop.f32.mrf.mxu0
    %v6581 = vadd.f32 %v6480, %v6580
    %6582 = vmatmul.f32.gmra.mxu0 %v4300
    %v6583 = vpop.f32.mrf.mxu0
    %v6584 = vadd.f32 %v6483, %v6583
    %6585 = vmatmul.f32.gmra.mxu0 %v6015
    %v6586 = vpop.f32.mrf.mxu0
    %v6587 = vadd.f32 %v6486, %v6586
    %6588 = vmatmul.f32.gmra.mxu0 %v4300
    %v6589 = vpop.f32.mrf.mxu0
    %v6590 = vadd.f32 %v6489, %v6589
    %6591 = vmatmul.f32.gmra.mxu0 %v6017
    %v6592 = vpop.f32.mrf.mxu0
    %v6593 = vadd.f32 %v6492, %v6592
    %6594 = vmatmul.f32.gmra.mxu0 %v4300
    %v6595 = vpop.f32.mrf.mxu0
    %v6596 = vadd.f32 %v6495, %v6595
    %6597 = vmatmul.f32.gmra.mxu0 %v6019
    %v6598 = vpop.f32.mrf.mxu0
    %v6599 = vadd.f32 %v6498, %v6598
    %6600 = vmatmul.f32.gmra.mxu0 %v4300
    %v6601 = vpop.f32.mrf.mxu0
    %v6602 = vadd.f32 %v6501, %v6601
    %6603 = vmatmul.f32.gmra.mxu0 %v6021
    %v6604 = vpop.f32.mrf.mxu0
    %v6605 = vadd.f32 %v6504, %v6604
    %6606 = vmatmul.f32.gmra.mxu0 %v4300
    %v6607 = vpop.f32.mrf.mxu0
    %v6608 = vadd.f32 %v6507, %v6607
    %6609 = vmatmul.f32.gmra.mxu0 %v6023
    %v6610 = vpop.f32.mrf.mxu0
    %v6611 = vadd.f32 %v6510, %v6610
    %6612 = vmatmul.f32.gmra.mxu0 %v4300
    %v6613 = vpop.f32.mrf.mxu0
    %v6614 = vadd.f32 %v6513, %v6613
    %6615 = vmatmul.f32.gmra.mxu0 %v6025
    %v6616 = vpop.f32.mrf.mxu0
    %v6617 = vadd.f32 %v6516, %v6616
    %6618 = vmatmul.f32.gmra.mxu0 %v4300
    %v6619 = vpop.f32.mrf.mxu0
    %v6620 = vadd.f32 %v6519, %v6619
    %6621 = vmatmul.f32.gmra.mxu0 %v6027
    %v6622 = vpop.f32.mrf.mxu0
    %v6623 = vadd.f32 %v6522, %v6622
    %6624 = vmatmul.f32.gmra.mxu0 %v4300
    %v6625 = vpop.f32.mrf.mxu0
    %v6626 = vadd.f32 %v6525, %v6625
    %6627 = vmatmul.f32.gmra.mxu0 %v6029
    %v6628 = vpop.f32.mrf.mxu0
    %v6629 = vadd.f32 %v6528, %v6628
    %6630 = vmatmul.f32.gmra.mxu0 %v4300
    %v6631 = vpop.f32.mrf.mxu0
    %v6632 = vadd.f32 %v6531, %v6631
    %6633 = vmatmul.f32.gmra.mxu0 %v4300
    %v6634 = vpop.f32.mrf.mxu0
    %v6635 = vadd.f32 %v6534, %v6634
    %6636 = vdwg.mxu0
    %6637 = vmatpush.msra.mxu0 %v5862
    %6638 = vmatpush.msra.mxu0 %v5860
    %6639 = vmatpush.msra.mxu0 %v5858
    %6640 = vmatpush.msra.mxu0 %v5856
    %6641 = vmatpush.msra.mxu0 %v5854
    %6642 = vmatpush.msra.mxu0 %v5852
    %6643 = vmatpush.msra.mxu0 %v5850
    %6644 = vmatpush.msra.mxu0 %v5848
    %6645 = vmatpush.msra.mxu0 %v5846
    %6646 = vmatpush.msra.mxu0 %v5844
    %6647 = vmatpush.msra.mxu0 %v5842
    %6648 = vmatpush.msra.mxu0 %v5840
    %6649 = vmatpush.msra.mxu0 %v5838
    %6650 = vmatpush.msra.mxu0 %v5836
    %6651 = vmatpush.msra.mxu0 %v5834
    %6652 = vmatpush.msra.mxu0 %v5832
    %6653 = vmatmul.f32.gmra.mxu0 0.0
    %v6654 = vpop.f32.mrf.mxu0
    %v6655 = vadd.f32 %v6002, %v6654
    %6656 = vmatmul.f32.gmra.mxu0 %v5517
    %v6657 = vpop.f32.mrf.mxu0
    %v6658 = vadd.f32 %v6002, %v6657
    %6659 = vmatmul.f32.gmra.mxu0 0.0
    %v6660 = vpop.f32.mrf.mxu0
    %v6661 = vadd.f32 %v6002, %v6660
    %6662 = vmatmul.f32.gmra.mxu0 %v5519
    %v6663 = vpop.f32.mrf.mxu0
    %v6664 = vadd.f32 %v6002, %v6663
    %6665 = vmatmul.f32.gmra.mxu0 0.0
    %v6666 = vpop.f32.mrf.mxu0
    %v6667 = vadd.f32 %v6002, %v6666
    %6668 = vmatmul.f32.gmra.mxu0 %v5521
    %v6669 = vpop.f32.mrf.mxu0
    %v6670 = vadd.f32 %v6002, %v6669
    %6671 = vmatmul.f32.gmra.mxu0 0.0
    %v6672 = vpop.f32.mrf.mxu0
    %v6673 = vadd.f32 %v6002, %v6672
    %6674 = vmatmul.f32.gmra.mxu0 %v5523
    %v6675 = vpop.f32.mrf.mxu0
    %v6676 = vadd.f32 %v6002, %v6675
    %6677 = vmatmul.f32.gmra.mxu0 0.0
    %v6678 = vpop.f32.mrf.mxu0
    %v6679 = vadd.f32 %v6002, %v6678
    %6680 = vmatmul.f32.gmra.mxu0 %v5525
    %v6681 = vpop.f32.mrf.mxu0
    %v6682 = vadd.f32 %v6002, %v6681
    %6683 = vmatmul.f32.gmra.mxu0 0.0
    %v6684 = vpop.f32.mrf.mxu0
    %v6685 = vadd.f32 %v6002, %v6684
    %6686 = vmatmul.f32.gmra.mxu0 %v5527
    %v6687 = vpop.f32.mrf.mxu0
    %v6688 = vadd.f32 %v6002, %v6687
    %6689 = vmatmul.f32.gmra.mxu0 0.0
    %v6690 = vpop.f32.mrf.mxu0
    %v6691 = vadd.f32 %v6002, %v6690
    %6692 = vmatmul.f32.gmra.mxu0 %v5529
    %v6693 = vpop.f32.mrf.mxu0
    %v6694 = vadd.f32 %v6002, %v6693
    %6695 = vmatmul.f32.gmra.mxu0 0.0
    %v6696 = vpop.f32.mrf.mxu0
    %v6697 = vadd.f32 %v6002, %v6696
    %6698 = vmatmul.f32.gmra.mxu0 %v5531
    %v6699 = vpop.f32.mrf.mxu0
    %v6700 = vadd.f32 %v6002, %v6699
    %6701 = vmatmul.f32.gmra.mxu0 0.0
    %v6702 = vpop.f32.mrf.mxu0
    %v6703 = vadd.f32 %v6002, %v6702
    %6704 = vmatmul.f32.gmra.mxu0 %v5533
    %v6705 = vpop.f32.mrf.mxu0
    %v6706 = vadd.f32 %v6002, %v6705
    %6707 = vmatmul.f32.gmra.mxu0 0.0
    %v6708 = vpop.f32.mrf.mxu0
    %v6709 = vadd.f32 %v6002, %v6708
    %6710 = vmatmul.f32.gmra.mxu0 %v5535
    %v6711 = vpop.f32.mrf.mxu0
    %v6712 = vadd.f32 %v6002, %v6711
    %6713 = vmatmul.f32.gmra.mxu0 0.0
    %v6714 = vpop.f32.mrf.mxu0
    %v6715 = vadd.f32 %v6002, %v6714
    %6716 = vmatmul.f32.gmra.mxu0 %v5537
    %v6717 = vpop.f32.mrf.mxu0
    %v6718 = vadd.f32 %v6002, %v6717
    %6719 = vmatmul.f32.gmra.mxu0 0.0
    %v6720 = vpop.f32.mrf.mxu0
    %v6721 = vadd.f32 %v6002, %v6720
    %6722 = vmatmul.f32.gmra.mxu0 %v5539
    %v6723 = vpop.f32.mrf.mxu0
    %v6724 = vadd.f32 %v6002, %v6723
    %6725 = vmatmul.f32.gmra.mxu0 0.0
    %v6726 = vpop.f32.mrf.mxu0
    %v6727 = vadd.f32 %v6002, %v6726
    %6728 = vmatmul.f32.gmra.mxu0 %v5541
    %v6729 = vpop.f32.mrf.mxu0
    %v6730 = vadd.f32 %v6002, %v6729
    %6731 = vmatmul.f32.gmra.mxu0 0.0
    %v6732 = vpop.f32.mrf.mxu0
    %v6733 = vadd.f32 %v6002, %v6732
    %6734 = vmatmul.f32.gmra.mxu0 %v5543
    %v6735 = vpop.f32.mrf.mxu0
    %v6736 = vadd.f32 %v6002, %v6735
    %6737 = vdwg.mxu0
    %6738 = vmatpush.msra.mxu0 %v5894
    %6739 = vmatpush.msra.mxu0 %v5892
    %6740 = vmatpush.msra.mxu0 %v5890
    %6741 = vmatpush.msra.mxu0 %v5888
    %6742 = vmatpush.msra.mxu0 %v5886
    %6743 = vmatpush.msra.mxu0 %v5884
    %6744 = vmatpush.msra.mxu0 %v5882
    %6745 = vmatpush.msra.mxu0 %v5880
    %6746 = vmatpush.msra.mxu0 %v5878
    %6747 = vmatpush.msra.mxu0 %v5876
    %6748 = vmatpush.msra.mxu0 %v5874
    %6749 = vmatpush.msra.mxu0 %v5872
    %6750 = vmatpush.msra.mxu0 %v5870
    %6751 = vmatpush.msra.mxu0 %v5868
    %6752 = vmatpush.msra.mxu0 %v5866
    %6753 = vmatpush.msra.mxu0 %v5864
    %6754 = vmatmul.f32.gmra.mxu0 %v5776
    %v6755 = vpop.f32.mrf.mxu0
    %v6756 = vadd.f32 %v6655, %v6755
    %6757 = vmatmul.f32.gmra.mxu0 %v5777
    %v6758 = vpop.f32.mrf.mxu0
    %v6759 = vadd.f32 %v6658, %v6758
    %6760 = vmatmul.f32.gmra.mxu0 %v5778
    %v6761 = vpop.f32.mrf.mxu0
    %v6762 = vadd.f32 %v6661, %v6761
    %6763 = vmatmul.f32.gmra.mxu0 %v5779
    %v6764 = vpop.f32.mrf.mxu0
    %v6765 = vadd.f32 %v6664, %v6764
    %6766 = vmatmul.f32.gmra.mxu0 %v5780
    %v6767 = vpop.f32.mrf.mxu0
    %v6768 = vadd.f32 %v6667, %v6767
    %6769 = vmatmul.f32.gmra.mxu0 %v5781
    %v6770 = vpop.f32.mrf.mxu0
    %v6771 = vadd.f32 %v6670, %v6770
    %6772 = vmatmul.f32.gmra.mxu0 %v5782
    %v6773 = vpop.f32.mrf.mxu0
    %v6774 = vadd.f32 %v6673, %v6773
    %6775 = vmatmul.f32.gmra.mxu0 %v5783
    %v6776 = vpop.f32.mrf.mxu0
    %v6777 = vadd.f32 %v6676, %v6776
    %6778 = vmatmul.f32.gmra.mxu0 %v5784
    %v6779 = vpop.f32.mrf.mxu0
    %v6780 = vadd.f32 %v6679, %v6779
    %6781 = vmatmul.f32.gmra.mxu0 %v5785
    %v6782 = vpop.f32.mrf.mxu0
    %v6783 = vadd.f32 %v6682, %v6782
    %6784 = vmatmul.f32.gmra.mxu0 %v5786
    %v6785 = vpop.f32.mrf.mxu0
    %v6786 = vadd.f32 %v6685, %v6785
    %6787 = vmatmul.f32.gmra.mxu0 %v5787
    %v6788 = vpop.f32.mrf.mxu0
    %v6789 = vadd.f32 %v6688, %v6788
    %6790 = vmatmul.f32.gmra.mxu0 %v5788
    %v6791 = vpop.f32.mrf.mxu0
    %v6792 = vadd.f32 %v6691, %v6791
    %6793 = vmatmul.f32.gmra.mxu0 %v5789
    %v6794 = vpop.f32.mrf.mxu0
    %v6795 = vadd.f32 %v6694, %v6794
    %6796 = vmatmul.f32.gmra.mxu0 %v5790
    %v6797 = vpop.f32.mrf.mxu0
    %v6798 = vadd.f32 %v6697, %v6797
    %6799 = vmatmul.f32.gmra.mxu0 %v5791
    %v6800 = vpop.f32.mrf.mxu0
    %v6801 = vadd.f32 %v6700, %v6800
    %6802 = vmatmul.f32.gmra.mxu0 %v5792
    %v6803 = vpop.f32.mrf.mxu0
    %v6804 = vadd.f32 %v6703, %v6803
    %6805 = vmatmul.f32.gmra.mxu0 %v5793
    %v6806 = vpop.f32.mrf.mxu0
    %v6807 = vadd.f32 %v6706, %v6806
    %6808 = vmatmul.f32.gmra.mxu0 %v5794
    %v6809 = vpop.f32.mrf.mxu0
    %v6810 = vadd.f32 %v6709, %v6809
    %6811 = vmatmul.f32.gmra.mxu0 %v5795
    %v6812 = vpop.f32.mrf.mxu0
    %v6813 = vadd.f32 %v6712, %v6812
    %6814 = vmatmul.f32.gmra.mxu0 %v5796
    %v6815 = vpop.f32.mrf.mxu0
    %v6816 = vadd.f32 %v6715, %v6815
    %6817 = vmatmul.f32.gmra.mxu0 %v5797
    %v6818 = vpop.f32.mrf.mxu0
    %v6819 = vadd.f32 %v6718, %v6818
    %6820 = vmatmul.f32.gmra.mxu0 %v5798
    %v6821 = vpop.f32.mrf.mxu0
    %v6822 = vadd.f32 %v6721, %v6821
    %6823 = vmatmul.f32.gmra.mxu0 %v5799
    %v6824 = vpop.f32.mrf.mxu0
    %v6825 = vadd.f32 %v6724, %v6824
    %6826 = vmatmul.f32.gmra.mxu0 %v5800
    %v6827 = vpop.f32.mrf.mxu0
    %v6828 = vadd.f32 %v6727, %v6827
    %6829 = vmatmul.f32.gmra.mxu0 %v5801
    %v6830 = vpop.f32.mrf.mxu0
    %v6831 = vadd.f32 %v6730, %v6830
    %6832 = vmatmul.f32.gmra.mxu0 %v5802
    %v6833 = vpop.f32.mrf.mxu0
    %v6834 = vadd.f32 %v6733, %v6833
    %6835 = vmatmul.f32.gmra.mxu0 %v5803
    %v6836 = vpop.f32.mrf.mxu0
    %v6837 = vadd.f32 %v6736, %v6836
    %6838 = vdwg.mxu0
    %6839 = vmatpush.msra.mxu0 %v5926
    %6840 = vmatpush.msra.mxu0 %v5924
    %6841 = vmatpush.msra.mxu0 %v5922
    %6842 = vmatpush.msra.mxu0 %v5920
    %6843 = vmatpush.msra.mxu0 %v5918
    %6844 = vmatpush.msra.mxu0 %v5916
    %6845 = vmatpush.msra.mxu0 %v5914
    %6846 = vmatpush.msra.mxu0 %v5912
    %6847 = vmatpush.msra.mxu0 %v5910
    %6848 = vmatpush.msra.mxu0 %v5908
    %6849 = vmatpush.msra.mxu0 %v5906
    %6850 = vmatpush.msra.mxu0 %v5904
    %6851 = vmatpush.msra.mxu0 %v5902
    %6852 = vmatpush.msra.mxu0 %v5900
    %6853 = vmatpush.msra.mxu0 %v5898
    %6854 = vmatpush.msra.mxu0 %v5896
    %6855 = vmatmul.f32.gmra.mxu0 %v5629
    %v6856 = vpop.f32.mrf.mxu0
    %v6857 = vadd.f32 %v6756, %v6856
    %6858 = vmatmul.f32.gmra.mxu0 %v3999
    %v6859 = vpop.f32.mrf.mxu0
    %v6860 = vadd.f32 %v6759, %v6859
    %6861 = vmatmul.f32.gmra.mxu0 %v5630
    %v6862 = vpop.f32.mrf.mxu0
    %v6863 = vadd.f32 %v6762, %v6862
    %6864 = vmatmul.f32.gmra.mxu0 %v3999
    %v6865 = vpop.f32.mrf.mxu0
    %v6866 = vadd.f32 %v6765, %v6865
    %6867 = vmatmul.f32.gmra.mxu0 %v5631
    %v6868 = vpop.f32.mrf.mxu0
    %v6869 = vadd.f32 %v6768, %v6868
    %6870 = vmatmul.f32.gmra.mxu0 %v3999
    %v6871 = vpop.f32.mrf.mxu0
    %v6872 = vadd.f32 %v6771, %v6871
    %6873 = vmatmul.f32.gmra.mxu0 %v5632
    %v6874 = vpop.f32.mrf.mxu0
    %v6875 = vadd.f32 %v6774, %v6874
    %6876 = vmatmul.f32.gmra.mxu0 %v3999
    %v6877 = vpop.f32.mrf.mxu0
    %v6878 = vadd.f32 %v6777, %v6877
    %6879 = vmatmul.f32.gmra.mxu0 %v5633
    %v6880 = vpop.f32.mrf.mxu0
    %v6881 = vadd.f32 %v6780, %v6880
    %6882 = vmatmul.f32.gmra.mxu0 %v3999
    %v6883 = vpop.f32.mrf.mxu0
    %v6884 = vadd.f32 %v6783, %v6883
    %6885 = vmatmul.f32.gmra.mxu0 %v5634
    %v6886 = vpop.f32.mrf.mxu0
    %v6887 = vadd.f32 %v6786, %v6886
    %6888 = vmatmul.f32.gmra.mxu0 %v3999
    %v6889 = vpop.f32.mrf.mxu0
    %v6890 = vadd.f32 %v6789, %v6889
    %6891 = vmatmul.f32.gmra.mxu0 %v5635
    %v6892 = vpop.f32.mrf.mxu0
    %v6893 = vadd.f32 %v6792, %v6892
    %6894 = vmatmul.f32.gmra.mxu0 %v3999
    %v6895 = vpop.f32.mrf.mxu0
    %v6896 = vadd.f32 %v6795, %v6895
    %6897 = vmatmul.f32.gmra.mxu0 %v5636
    %v6898 = vpop.f32.mrf.mxu0
    %v6899 = vadd.f32 %v6798, %v6898
    %6900 = vmatmul.f32.gmra.mxu0 %v3999
    %v6901 = vpop.f32.mrf.mxu0
    %v6902 = vadd.f32 %v6801, %v6901
    %6903 = vmatmul.f32.gmra.mxu0 %v5637
    %v6904 = vpop.f32.mrf.mxu0
    %v6905 = vadd.f32 %v6804, %v6904
    %6906 = vmatmul.f32.gmra.mxu0 %v3999
    %v6907 = vpop.f32.mrf.mxu0
    %v6908 = vadd.f32 %v6807, %v6907
    %6909 = vmatmul.f32.gmra.mxu0 %v5638
    %v6910 = vpop.f32.mrf.mxu0
    %v6911 = vadd.f32 %v6810, %v6910
    %6912 = vmatmul.f32.gmra.mxu0 %v3999
    %v6913 = vpop.f32.mrf.mxu0
    %v6914 = vadd.f32 %v6813, %v6913
    %6915 = vmatmul.f32.gmra.mxu0 %v5639
    %v6916 = vpop.f32.mrf.mxu0
    %v6917 = vadd.f32 %v6816, %v6916
    %6918 = vmatmul.f32.gmra.mxu0 %v3999
    %v6919 = vpop.f32.mrf.mxu0
    %v6920 = vadd.f32 %v6819, %v6919
    %6921 = vmatmul.f32.gmra.mxu0 %v5640
    %v6922 = vpop.f32.mrf.mxu0
    %v6923 = vadd.f32 %v6822, %v6922
    %6924 = vmatmul.f32.gmra.mxu0 %v3999
    %v6925 = vpop.f32.mrf.mxu0
    %v6926 = vadd.f32 %v6825, %v6925
    %6927 = vmatmul.f32.gmra.mxu0 %v5641
    %v6928 = vpop.f32.mrf.mxu0
    %v6929 = vadd.f32 %v6828, %v6928
    %6930 = vmatmul.f32.gmra.mxu0 %v3999
    %v6931 = vpop.f32.mrf.mxu0
    %v6932 = vadd.f32 %v6831, %v6931
    %6933 = vmatmul.f32.gmra.mxu0 %v5642
    %v6934 = vpop.f32.mrf.mxu0
    %v6935 = vadd.f32 %v6834, %v6934
    %6936 = vmatmul.f32.gmra.mxu0 %v3999
    %v6937 = vpop.f32.mrf.mxu0
    %v6938 = vadd.f32 %v6837, %v6937
    %6939 = vdwg.mxu0
    %6940 = vmatpush.msra.mxu0 %v5958
    %6941 = vmatpush.msra.mxu0 %v5956
    %6942 = vmatpush.msra.mxu0 %v5954
    %6943 = vmatpush.msra.mxu0 %v5952
    %6944 = vmatpush.msra.mxu0 %v5950
    %6945 = vmatpush.msra.mxu0 %v5948
    %6946 = vmatpush.msra.mxu0 %v5946
    %6947 = vmatpush.msra.mxu0 %v5944
    %6948 = vmatpush.msra.mxu0 %v5942
    %6949 = vmatpush.msra.mxu0 %v5940
    %6950 = vmatpush.msra.mxu0 %v5938
    %6951 = vmatpush.msra.mxu0 %v5936
    %6952 = vmatpush.msra.mxu0 %v5934
    %6953 = vmatpush.msra.mxu0 %v5932
    %6954 = vmatpush.msra.mxu0 %v5930
    %6955 = vmatpush.msra.mxu0 %v5928
    %6956 = vmatmul.f32.gmra.mxu0 %v5804
    %v6957 = vpop.f32.mrf.mxu0
    %v6958 = vadd.f32 %v6857, %v6957
    %6959 = vmatmul.f32.gmra.mxu0 %v5805
    %v6960 = vpop.f32.mrf.mxu0
    %v6961 = vadd.f32 %v6860, %v6960
    %6962 = vmatmul.f32.gmra.mxu0 %v5806
    %v6963 = vpop.f32.mrf.mxu0
    %v6964 = vadd.f32 %v6863, %v6963
    %6965 = vmatmul.f32.gmra.mxu0 %v5807
    %v6966 = vpop.f32.mrf.mxu0
    %v6967 = vadd.f32 %v6866, %v6966
    %6968 = vmatmul.f32.gmra.mxu0 %v5808
    %v6969 = vpop.f32.mrf.mxu0
    %v6970 = vadd.f32 %v6869, %v6969
    %6971 = vmatmul.f32.gmra.mxu0 %v5809
    %v6972 = vpop.f32.mrf.mxu0
    %v6973 = vadd.f32 %v6872, %v6972
    %6974 = vmatmul.f32.gmra.mxu0 %v5810
    %v6975 = vpop.f32.mrf.mxu0
    %v6976 = vadd.f32 %v6875, %v6975
    %6977 = vmatmul.f32.gmra.mxu0 %v5811
    %v6978 = vpop.f32.mrf.mxu0
    %v6979 = vadd.f32 %v6878, %v6978
    %6980 = vmatmul.f32.gmra.mxu0 %v5812
    %v6981 = vpop.f32.mrf.mxu0
    %v6982 = vadd.f32 %v6881, %v6981
    %6983 = vmatmul.f32.gmra.mxu0 %v5813
    %v6984 = vpop.f32.mrf.mxu0
    %v6985 = vadd.f32 %v6884, %v6984
    %6986 = vmatmul.f32.gmra.mxu0 %v5814
    %v6987 = vpop.f32.mrf.mxu0
    %v6988 = vadd.f32 %v6887, %v6987
    %6989 = vmatmul.f32.gmra.mxu0 %v5815
    %v6990 = vpop.f32.mrf.mxu0
    %v6991 = vadd.f32 %v6890, %v6990
    %6992 = vmatmul.f32.gmra.mxu0 %v5816
    %v6993 = vpop.f32.mrf.mxu0
    %v6994 = vadd.f32 %v6893, %v6993
    %6995 = vmatmul.f32.gmra.mxu0 %v5817
    %v6996 = vpop.f32.mrf.mxu0
    %v6997 = vadd.f32 %v6896, %v6996
    %6998 = vmatmul.f32.gmra.mxu0 %v5818
    %v6999 = vpop.f32.mrf.mxu0
    %v7000 = vadd.f32 %v6899, %v6999
    %7001 = vmatmul.f32.gmra.mxu0 %v5819
    %v7002 = vpop.f32.mrf.mxu0
    %v7003 = vadd.f32 %v6902, %v7002
    %7004 = vmatmul.f32.gmra.mxu0 %v5820
    %v7005 = vpop.f32.mrf.mxu0
    %v7006 = vadd.f32 %v6905, %v7005
    %7007 = vmatmul.f32.gmra.mxu0 %v5821
    %v7008 = vpop.f32.mrf.mxu0
    %v7009 = vadd.f32 %v6908, %v7008
    %7010 = vmatmul.f32.gmra.mxu0 %v5822
    %v7011 = vpop.f32.mrf.mxu0
    %v7012 = vadd.f32 %v6911, %v7011
    %7013 = vmatmul.f32.gmra.mxu0 %v5823
    %v7014 = vpop.f32.mrf.mxu0
    %v7015 = vadd.f32 %v6914, %v7014
    %7016 = vmatmul.f32.gmra.mxu0 %v5824
    %v7017 = vpop.f32.mrf.mxu0
    %v7018 = vadd.f32 %v6917, %v7017
    %7019 = vmatmul.f32.gmra.mxu0 %v5825
    %v7020 = vpop.f32.mrf.mxu0
    %v7021 = vadd.f32 %v6920, %v7020
    %7022 = vmatmul.f32.gmra.mxu0 %v5826
    %v7023 = vpop.f32.mrf.mxu0
    %v7024 = vadd.f32 %v6923, %v7023
    %7025 = vmatmul.f32.gmra.mxu0 %v5827
    %v7026 = vpop.f32.mrf.mxu0
    %v7027 = vadd.f32 %v6926, %v7026
    %7028 = vmatmul.f32.gmra.mxu0 %v5828
    %v7029 = vpop.f32.mrf.mxu0
    %v7030 = vadd.f32 %v6929, %v7029
    %7031 = vmatmul.f32.gmra.mxu0 %v5829
    %v7032 = vpop.f32.mrf.mxu0
    %v7033 = vadd.f32 %v6932, %v7032
    %7034 = vmatmul.f32.gmra.mxu0 %v5830
    %v7035 = vpop.f32.mrf.mxu0
    %v7036 = vadd.f32 %v6935, %v7035
    %7037 = vmatmul.f32.gmra.mxu0 %v4125
    %v7038 = vpop.f32.mrf.mxu0
    %v7039 = vadd.f32 %v6938, %v7038
    %7040 = vdwg.mxu0
    %7041 = vmatpush.msra.mxu0 %v5990
    %7042 = vmatpush.msra.mxu0 %v5988
    %7043 = vmatpush.msra.mxu0 %v5986
    %7044 = vmatpush.msra.mxu0 %v5984
    %7045 = vmatpush.msra.mxu0 %v5982
    %7046 = vmatpush.msra.mxu0 %v5980
    %7047 = vmatpush.msra.mxu0 %v5978
    %7048 = vmatpush.msra.mxu0 %v5976
    %7049 = vmatpush.msra.mxu0 %v5974
    %7050 = vmatpush.msra.mxu0 %v5972
    %7051 = vmatpush.msra.mxu0 %v5970
    %7052 = vmatpush.msra.mxu0 %v5968
    %7053 = vmatpush.msra.mxu0 %v5966
    %7054 = vmatpush.msra.mxu0 %v5964
    %7055 = vmatpush.msra.mxu0 %v5962
    %7056 = vmatpush.msra.mxu0 %v5960
    %7057 = vmatmul.f32.gmra.mxu0 %v4054
    %v7058 = vpop.f32.mrf.mxu0
    %v7059 = vadd.f32 %v6958, %v7058
    %7060 = vmatmul.f32.gmra.mxu0 %v5737
    %v7061 = vpop.f32.mrf.mxu0
    %v7062 = vadd.f32 %v6961, %v7061
    %7063 = vmatmul.f32.gmra.mxu0 %v4054
    %v7064 = vpop.f32.mrf.mxu0
    %v7065 = vadd.f32 %v6964, %v7064
    %7066 = vmatmul.f32.gmra.mxu0 %v5738
    %v7067 = vpop.f32.mrf.mxu0
    %v7068 = vadd.f32 %v6967, %v7067
    %7069 = vmatmul.f32.gmra.mxu0 %v4054
    %v7070 = vpop.f32.mrf.mxu0
    %v7071 = vadd.f32 %v6970, %v7070
    %7072 = vmatmul.f32.gmra.mxu0 %v5739
    %v7073 = vpop.f32.mrf.mxu0
    %v7074 = vadd.f32 %v6973, %v7073
    %7075 = vmatmul.f32.gmra.mxu0 %v4054
    %v7076 = vpop.f32.mrf.mxu0
    %v7077 = vadd.f32 %v6976, %v7076
    %7078 = vmatmul.f32.gmra.mxu0 %v5740
    %v7079 = vpop.f32.mrf.mxu0
    %v7080 = vadd.f32 %v6979, %v7079
    %7081 = vmatmul.f32.gmra.mxu0 %v4054
    %v7082 = vpop.f32.mrf.mxu0
    %v7083 = vadd.f32 %v6982, %v7082
    %7084 = vmatmul.f32.gmra.mxu0 %v5741
    %v7085 = vpop.f32.mrf.mxu0
    %v7086 = vadd.f32 %v6985, %v7085
    %7087 = vmatmul.f32.gmra.mxu0 %v4054
    %v7088 = vpop.f32.mrf.mxu0
    %v7089 = vadd.f32 %v6988, %v7088
    %7090 = vmatmul.f32.gmra.mxu0 %v5742
    %v7091 = vpop.f32.mrf.mxu0
    %v7092 = vadd.f32 %v6991, %v7091
    %7093 = vmatmul.f32.gmra.mxu0 %v4054
    %v7094 = vpop.f32.mrf.mxu0
    %v7095 = vadd.f32 %v6994, %v7094
    %7096 = vmatmul.f32.gmra.mxu0 %v5743
    %v7097 = vpop.f32.mrf.mxu0
    %v7098 = vadd.f32 %v6997, %v7097
    %7099 = vmatmul.f32.gmra.mxu0 %v4054
    %v7100 = vpop.f32.mrf.mxu0
    %v7101 = vadd.f32 %v7000, %v7100
    %7102 = vmatmul.f32.gmra.mxu0 %v5744
    %v7103 = vpop.f32.mrf.mxu0
    %v7104 = vadd.f32 %v7003, %v7103
    %7105 = vmatmul.f32.gmra.mxu0 %v4054
    %v7106 = vpop.f32.mrf.mxu0
    %v7107 = vadd.f32 %v7006, %v7106
    %7108 = vmatmul.f32.gmra.mxu0 %v5745
    %v7109 = vpop.f32.mrf.mxu0
    %v7110 = vadd.f32 %v7009, %v7109
    %7111 = vmatmul.f32.gmra.mxu0 %v4054
    %v7112 = vpop.f32.mrf.mxu0
    %v7113 = vadd.f32 %v7012, %v7112
    %7114 = vmatmul.f32.gmra.mxu0 %v5746
    %v7115 = vpop.f32.mrf.mxu0
    %v7116 = vadd.f32 %v7015, %v7115
    %7117 = vmatmul.f32.gmra.mxu0 %v4054
    %v7118 = vpop.f32.mrf.mxu0
    %v7119 = vadd.f32 %v7018, %v7118
    %7120 = vmatmul.f32.gmra.mxu0 %v5747
    %v7121 = vpop.f32.mrf.mxu0
    %v7122 = vadd.f32 %v7021, %v7121
    %7123 = vmatmul.f32.gmra.mxu0 %v4054
    %v7124 = vpop.f32.mrf.mxu0
    %v7125 = vadd.f32 %v7024, %v7124
    %7126 = vmatmul.f32.gmra.mxu0 %v5748
    %v7127 = vpop.f32.mrf.mxu0
    %v7128 = vadd.f32 %v7027, %v7127
    %7129 = vmatmul.f32.gmra.mxu0 %v4054
    %v7130 = vpop.f32.mrf.mxu0
    %v7131 = vadd.f32 %v7030, %v7130
    %7132 = vmatmul.f32.gmra.mxu0 %v5749
    %v7133 = vpop.f32.mrf.mxu0
    %v7134 = vadd.f32 %v7033, %v7133
    %7135 = vmatmul.f32.gmra.mxu0 %v4054
    %v7136 = vpop.f32.mrf.mxu0
    %v7137 = vadd.f32 %v7036, %v7136
    %7138 = vmatmul.f32.gmra.mxu0 %v4054
    %v7139 = vpop.f32.mrf.mxu0
    %v7140 = vadd.f32 %v7039, %v7139
    %7141 = vdwg.mxu0
    %7142 = vmatpush.msra.mxu0 0.0
    %7143 = vmatpush.msra.mxu0 0.0
    %7144 = vmatpush.msra.mxu0 0.0
    %7145 = vmatpush.msra.mxu0 0.0
    %7146 = vmatpush.msra.mxu0 0.0
    %7147 = vmatpush.msra.mxu0 0.0
    %7148 = vmatpush.msra.mxu0 0.0
    %7149 = vmatpush.msra.mxu0 0.0
    %7150 = vmatpush.msra.mxu0 0.0
    %7151 = vmatpush.msra.mxu0 0.0
    %7152 = vmatpush.msra.mxu0 0.0
    %7153 = vmatpush.msra.mxu0 0.0
    %7154 = vmatpush.msra.mxu0 %v5998
    %7155 = vmatpush.msra.mxu0 %v5996
    %7156 = vmatpush.msra.mxu0 %v5994
    %7157 = vmatpush.msra.mxu0 %v5992
    %7158 = vmatmul.f32.gmra.mxu0 %v4300
    %v7159 = vpop.f32.mrf.mxu0
    %v7160 = vadd.f32 %v7059, %v7159
    %7161 = vmatmul.f32.gmra.mxu0 %v6005
    %v7162 = vpop.f32.mrf.mxu0
    %v7163 = vadd.f32 %v7062, %v7162
    %7164 = vmatmul.f32.gmra.mxu0 %v4300
    %v7165 = vpop.f32.mrf.mxu0
    %v7166 = vadd.f32 %v7065, %v7165
    %7167 = vmatmul.f32.gmra.mxu0 %v6007
    %v7168 = vpop.f32.mrf.mxu0
    %v7169 = vadd.f32 %v7068, %v7168
    %7170 = vmatmul.f32.gmra.mxu0 %v4300
    %v7171 = vpop.f32.mrf.mxu0
    %v7172 = vadd.f32 %v7071, %v7171
    %7173 = vmatmul.f32.gmra.mxu0 %v6009
    %v7174 = vpop.f32.mrf.mxu0
    %v7175 = vadd.f32 %v7074, %v7174
    %7176 = vmatmul.f32.gmra.mxu0 %v4300
    %v7177 = vpop.f32.mrf.mxu0
    %v7178 = vadd.f32 %v7077, %v7177
    %7179 = vmatmul.f32.gmra.mxu0 %v6011
    %v7180 = vpop.f32.mrf.mxu0
    %v7181 = vadd.f32 %v7080, %v7180
    %7182 = vmatmul.f32.gmra.mxu0 %v4300
    %v7183 = vpop.f32.mrf.mxu0
    %v7184 = vadd.f32 %v7083, %v7183
    %7185 = vmatmul.f32.gmra.mxu0 %v6013
    %v7186 = vpop.f32.mrf.mxu0
    %v7187 = vadd.f32 %v7086, %v7186
    %7188 = vmatmul.f32.gmra.mxu0 %v4300
    %v7189 = vpop.f32.mrf.mxu0
    %v7190 = vadd.f32 %v7089, %v7189
    %7191 = vmatmul.f32.gmra.mxu0 %v6015
    %v7192 = vpop.f32.mrf.mxu0
    %v7193 = vadd.f32 %v7092, %v7192
    %7194 = vmatmul.f32.gmra.mxu0 %v4300
    %v7195 = vpop.f32.mrf.mxu0
    %v7196 = vadd.f32 %v7095, %v7195
    %7197 = vmatmul.f32.gmra.mxu0 %v6017
    %v7198 = vpop.f32.mrf.mxu0
    %v7199 = vadd.f32 %v7098, %v7198
    %7200 = vmatmul.f32.gmra.mxu0 %v4300
    %v7201 = vpop.f32.mrf.mxu0
    %v7202 = vadd.f32 %v7101, %v7201
    %7203 = vmatmul.f32.gmra.mxu0 %v6019
    %v7204 = vpop.f32.mrf.mxu0
    %v7205 = vadd.f32 %v7104, %v7204
    %7206 = vmatmul.f32.gmra.mxu0 %v4300
    %v7207 = vpop.f32.mrf.mxu0
    %v7208 = vadd.f32 %v7107, %v7207
    %7209 = vmatmul.f32.gmra.mxu0 %v6021
    %v7210 = vpop.f32.mrf.mxu0
    %v7211 = vadd.f32 %v7110, %v7210
    %7212 = vmatmul.f32.gmra.mxu0 %v4300
    %v7213 = vpop.f32.mrf.mxu0
    %v7214 = vadd.f32 %v7113, %v7213
    %7215 = vmatmul.f32.gmra.mxu0 %v6023
    %v7216 = vpop.f32.mrf.mxu0
    %v7217 = vadd.f32 %v7116, %v7216
    %7218 = vmatmul.f32.gmra.mxu0 %v4300
    %v7219 = vpop.f32.mrf.mxu0
    %v7220 = vadd.f32 %v7119, %v7219
    %7221 = vmatmul.f32.gmra.mxu0 %v6025
    %v7222 = vpop.f32.mrf.mxu0
    %v7223 = vadd.f32 %v7122, %v7222
    %7224 = vmatmul.f32.gmra.mxu0 %v4300
    %v7225 = vpop.f32.mrf.mxu0
    %v7226 = vadd.f32 %v7125, %v7225
    %7227 = vmatmul.f32.gmra.mxu0 %v6027
    %v7228 = vpop.f32.mrf.mxu0
    %v7229 = vadd.f32 %v7128, %v7228
    %7230 = vmatmul.f32.gmra.mxu0 %v4300
    %v7231 = vpop.f32.mrf.mxu0
    %v7232 = vadd.f32 %v7131, %v7231
    %7233 = vmatmul.f32.gmra.mxu0 %v6029
    %v7234 = vpop.f32.mrf.mxu0
    %v7235 = vadd.f32 %v7134, %v7234
    %7236 = vmatmul.f32.gmra.mxu0 %v4300
    %v7237 = vpop.f32.mrf.mxu0
    %v7238 = vadd.f32 %v7137, %v7237
    %7239 = vmatmul.f32.gmra.mxu0 %v4300
    %v7240 = vpop.f32.mrf.mxu0
    %v7241 = vadd.f32 %v7140, %v7240
    %7242 = vdwg.mxu0
    %v7243 = vmax.f32 %v6554, 0.0
    %v7244 = vmax.f32 %v7160, 0.0
    %v7245 = vmax.f32 %v6557, 0.0
    %v7246 = vmax.f32 %v7163, 0.0
    %v7247 = vmax.f32 %v6560, 0.0
    %v7248 = vmax.f32 %v7166, 0.0
    %v7249 = vmax.f32 %v6563, 0.0
    %v7250 = vmax.f32 %v7169, 0.0
    %v7251 = vmax.f32 %v6566, 0.0
    %v7252 = vmax.f32 %v7172, 0.0
    %v7253 = vmax.f32 %v6569, 0.0
    %v7254 = vmax.f32 %v7175, 0.0
    %v7255 = vmax.f32 %v6572, 0.0
    %v7256 = vmax.f32 %v7178, 0.0
    %v7257 = vmax.f32 %v6575, 0.0
    %v7258 = vmax.f32 %v7181, 0.0
    %v7259 = vmax.f32 %v6578, 0.0
    %v7260 = vmax.f32 %v7184, 0.0
    %v7261 = vmax.f32 %v6581, 0.0
    %v7262 = vmax.f32 %v7187, 0.0
    %v7263 = vmax.f32 %v6584, 0.0
    %v7264 = vmax.f32 %v7190, 0.0
    %v7265 = vmax.f32 %v6587, 0.0
    %v7266 = vmax.f32 %v7193, 0.0
    %v7267 = vmax.f32 %v6590, 0.0
    %v7268 = vmax.f32 %v7196, 0.0
    %v7269 = vmax.f32 %v6593, 0.0
    %v7270 = vmax.f32 %v7199, 0.0
    %v7271 = vmax.f32 %v6596, 0.0
    %v7272 = vmax.f32 %v7202, 0.0
    %v7273 = vmax.f32 %v6599, 0.0
    %v7274 = vmax.f32 %v7205, 0.0
    %v7275 = vmax.f32 %v6602, 0.0
    %v7276 = vmax.f32 %v7208, 0.0
    %v7277 = vmax.f32 %v6605, 0.0
    %v7278 = vmax.f32 %v7211, 0.0
    %v7279 = vmax.f32 %v6608, 0.0
    %v7280 = vmax.f32 %v7214, 0.0
    %v7281 = vmax.f32 %v6611, 0.0
    %v7282 = vmax.f32 %v7217, 0.0
    %v7283 = vmax.f32 %v6614, 0.0
    %v7284 = vmax.f32 %v7220, 0.0
    %v7285 = vmax.f32 %v6617, 0.0
    %v7286 = vmax.f32 %v7223, 0.0
    %v7287 = vmax.f32 %v6620, 0.0
    %v7288 = vmax.f32 %v7226, 0.0
    %v7289 = vmax.f32 %v6623, 0.0
    %v7290 = vmax.f32 %v7229, 0.0
    %v7291 = vmax.f32 %v6626, 0.0
    %v7292 = vmax.f32 %v7232, 0.0
    %v7293 = vmax.f32 %v6629, 0.0
    %v7294 = vmax.f32 %v7235, 0.0
    %v7295 = vmax.f32 %v6632, 0.0
    %v7296 = vmax.f32 %v7238, 0.0
    %v7297 = vmax.f32 %v6635, 0.0
    %v7298 = vmax.f32 %v7241, 0.0
    %v7299 = vadd.f32 %v7243, %v7245
    %v7300 = vadd.f32 %v7299, %v7247
    %v7301 = vadd.f32 %v7300, %v7249
    %v7302 = vadd.f32 %v7301, %v7251
    %v7303 = vadd.f32 %v7302, %v7253
    %v7304 = vadd.f32 %v7303, %v7255
    %v7305 = vadd.f32 %v7304, %v7257
    %v7306 = vadd.f32 %v7305, %v7259
    %v7307 = vadd.f32 %v7306, %v7261
    %v7308 = vadd.f32 %v7307, %v7263
    %v7309 = vadd.f32 %v7308, %v7265
    %v7310 = vadd.f32 %v7309, %v7267
    %v7311 = vadd.f32 %v7310, %v7269
    %v7312 = vadd.f32 %v7311, %v7271
    %v7313 = vadd.f32 %v7312, %v7273
    %v7314 = vadd.f32 %v7313, %v7275
    %v7315 = vadd.f32 %v7314, %v7277
    %v7316 = vadd.f32 %v7315, %v7279
    %v7317 = vadd.f32 %v7316, %v7281
    %v7318 = vadd.f32 %v7317, %v7283
    %v7319 = vadd.f32 %v7318, %v7285
    %v7320 = vadd.f32 %v7319, %v7287
    %v7321 = vadd.f32 %v7320, %v7289
    %v7322 = vadd.f32 %v7321, %v7291
    %v7323 = vadd.f32 %v7322, %v7293
    %v7324 = vadd.f32 %v7323, %v7295
    %v7325 = vadd.f32 %v7324, %v7297
    %v7326 = vrot.slane %v7325, 4
    %v7327 = vadd.f32 %v7325, %v7326
    %v7328 = vrot.slane %v7327, 2
    %v7329 = vadd.f32 %v7327, %v7328
    %v7330 = vrot.slane %v7329, 1
    %v7331 = vadd.f32 %v7329, %v7330
    %v7332 = vsel %vm3962, %v7244, 0.0
    %v7333 = vsel %vm3962, %v7246, 0.0
    %v7334 = vadd.f32 %v7332, %v7333
    %v7335 = vsel %vm3962, %v7248, 0.0
    %v7336 = vadd.f32 %v7334, %v7335
    %v7337 = vsel %vm3962, %v7250, 0.0
    %v7338 = vadd.f32 %v7336, %v7337
    %v7339 = vsel %vm3962, %v7252, 0.0
    %v7340 = vadd.f32 %v7338, %v7339
    %v7341 = vsel %vm3962, %v7254, 0.0
    %v7342 = vadd.f32 %v7340, %v7341
    %v7343 = vsel %vm3962, %v7256, 0.0
    %v7344 = vadd.f32 %v7342, %v7343
    %v7345 = vsel %vm3962, %v7258, 0.0
    %v7346 = vadd.f32 %v7344, %v7345
    %v7347 = vsel %vm3962, %v7260, 0.0
    %v7348 = vadd.f32 %v7346, %v7347
    %v7349 = vsel %vm3962, %v7262, 0.0
    %v7350 = vadd.f32 %v7348, %v7349
    %v7351 = vsel %vm3962, %v7264, 0.0
    %v7352 = vadd.f32 %v7350, %v7351
    %v7353 = vsel %vm3962, %v7266, 0.0
    %v7354 = vadd.f32 %v7352, %v7353
    %v7355 = vsel %vm3962, %v7268, 0.0
    %v7356 = vadd.f32 %v7354, %v7355
    %v7357 = vsel %vm3962, %v7270, 0.0
    %v7358 = vadd.f32 %v7356, %v7357
    %v7359 = vsel %vm3962, %v7272, 0.0
    %v7360 = vadd.f32 %v7358, %v7359
    %v7361 = vsel %vm3962, %v7274, 0.0
    %v7362 = vadd.f32 %v7360, %v7361
    %v7363 = vsel %vm3962, %v7276, 0.0
    %v7364 = vadd.f32 %v7362, %v7363
    %v7365 = vsel %vm3962, %v7278, 0.0
    %v7366 = vadd.f32 %v7364, %v7365
    %v7367 = vsel %vm3962, %v7280, 0.0
    %v7368 = vadd.f32 %v7366, %v7367
    %v7369 = vsel %vm3962, %v7282, 0.0
    %v7370 = vadd.f32 %v7368, %v7369
    %v7371 = vsel %vm3962, %v7284, 0.0
    %v7372 = vadd.f32 %v7370, %v7371
    %v7373 = vsel %vm3962, %v7286, 0.0
    %v7374 = vadd.f32 %v7372, %v7373
    %v7375 = vsel %vm3962, %v7288, 0.0
    %v7376 = vadd.f32 %v7374, %v7375
    %v7377 = vsel %vm3962, %v7290, 0.0
    %v7378 = vadd.f32 %v7376, %v7377
    %v7379 = vsel %vm3962, %v7292, 0.0
    %v7380 = vadd.f32 %v7378, %v7379
    %v7381 = vsel %vm3962, %v7294, 0.0
    %v7382 = vadd.f32 %v7380, %v7381
    %v7383 = vsel %vm3962, %v7296, 0.0
    %v7384 = vadd.f32 %v7382, %v7383
    %v7385 = vsel %vm3962, %v7298, 0.0
    %v7386 = vadd.f32 %v7384, %v7385
    %v7387 = vrot.slane %v7386, 4
    %v7388 = vadd.f32 %v7386, %v7387
    %v7389 = vrot.slane %v7388, 2
    %v7390 = vadd.f32 %v7388, %v7389
    %v7391 = vrot.slane %v7390, 1
    %v7392 = vadd.f32 %v7390, %v7391
    %v7393 = vld [vmem:[%s17] sm:$0xff]
    %v7394 = vld [vmem:[%s17 + $0x8] sm:$0xff]
    %v7395 = vld [vmem:[%s17 + $0x10] sm:$0xff]
    %v7396 = vld [vmem:[%s17 + $0x18] sm:$0xff]
    %v7397 = vld [vmem:[%s17 + $0x20] sm:$0xff]
    %v7398 = vld [vmem:[%s17 + $0x28] sm:$0xff]
    %v7399 = vld [vmem:[%s17 + $0x30] sm:$0xff]
    %v7400 = vld [vmem:[%s17 + $0x38] sm:$0xff]
    %v7401 = vld [vmem:[%s17 + $0x40] sm:$0xff]
    %v7402 = vld [vmem:[%s17 + $0x48] sm:$0xff]
    %v7403 = vld [vmem:[%s17 + $0x50] sm:$0xff]
    %v7404 = vld [vmem:[%s17 + $0x58] sm:$0xff]
    %v7405 = vld [vmem:[%s17 + $0x60] sm:$0xff]
    %v7406 = vld [vmem:[%s17 + $0x68] sm:$0xff]
    %v7407 = vld [vmem:[%s17 + $0x70] sm:$0xff]
    %v7408 = vld [vmem:[%s17 + $0x78] sm:$0xff]
    %v7409 = vld [vmem:[%s17 + $0x80] sm:$0xff]
    %v7410 = vld [vmem:[%s17 + $0x88] sm:$0xff]
    %v7411 = vld [vmem:[%s17 + $0x90] sm:$0xff]
    %v7412 = vld [vmem:[%s17 + $0x98] sm:$0xff]
    %v7413 = vld [vmem:[%s17 + $0xa0] sm:$0xff]
    %v7414 = vld [vmem:[%s17 + $0xa8] sm:$0xff]
    %v7415 = vld [vmem:[%s17 + $0xb0] sm:$0xff]
    %v7416 = vld [vmem:[%s17 + $0xb8] sm:$0xff]
    %v7417 = vld [vmem:[%s17 + $0xc0] sm:$0xff]
    %v7418 = vld [vmem:[%s17 + $0xc8] sm:$0xff]
    %v7419 = vld [vmem:[%s17 + $0xd0] sm:$0xff]
    %v7420 = vld [vmem:[%s17 + $0xd8] sm:$0xff]
    %v7422 = vsel %vm3962, %v7392, 0
    %7424 = vmatpush.msra.mxu0 %v7408
    %7425 = vmatpush.msra.mxu0 %v7407
    %7426 = vmatpush.msra.mxu0 %v7406
    %7427 = vmatpush.msra.mxu0 %v7405
    %7428 = vmatpush.msra.mxu0 %v7404
    %7429 = vmatpush.msra.mxu0 %v7403
    %7430 = vmatpush.msra.mxu0 %v7402
    %7431 = vmatpush.msra.mxu0 %v7401
    %7432 = vmatpush.msra.mxu0 %v7400
    %7433 = vmatpush.msra.mxu0 %v7399
    %7434 = vmatpush.msra.mxu0 %v7398
    %7435 = vmatpush.msra.mxu0 %v7397
    %7436 = vmatpush.msra.mxu0 %v7396
    %7437 = vmatpush.msra.mxu0 %v7395
    %7438 = vmatpush.msra.mxu0 %v7394
    %7439 = vmatpush.msra.mxu0 %v7393
    %7440 = vmatmul.f32.gmra.mxu0 %v7331
    %v7441 = vpop.f32.mrf.mxu0
    %v7442 = vadd.f32 0.0, %v7441
    %7443 = vdwg.mxu0
    %7444 = vmatpush.msra.mxu0 0.0
    %7445 = vmatpush.msra.mxu0 0.0
    %7446 = vmatpush.msra.mxu0 0.0
    %7447 = vmatpush.msra.mxu0 0.0
    %7448 = vmatpush.msra.mxu0 %v7420
    %7449 = vmatpush.msra.mxu0 %v7419
    %7450 = vmatpush.msra.mxu0 %v7418
    %7451 = vmatpush.msra.mxu0 %v7417
    %7452 = vmatpush.msra.mxu0 %v7416
    %7453 = vmatpush.msra.mxu0 %v7415
    %7454 = vmatpush.msra.mxu0 %v7414
    %7455 = vmatpush.msra.mxu0 %v7413
    %7456 = vmatpush.msra.mxu0 %v7412
    %7457 = vmatpush.msra.mxu0 %v7411
    %7458 = vmatpush.msra.mxu0 %v7410
    %7459 = vmatpush.msra.mxu0 %v7409
    %7460 = vmatmul.f32.gmra.mxu0 %v7422
    %v7461 = vpop.f32.mrf.mxu0
    %v7462 = vadd.f32 %v7442, %v7461
    %7463 = vdwg.mxu0
    %v7464 = vrcp.pop 6272.0
    %v7465 = vmul.f32 6272.0, %v7464
    %v7466 = vsub.f32 1.0, %v7465
    %v7467 = vmul.f32 %v7464, %v7466
    %v7468 = vadd.f32 %v7464, %v7467
    %vm7469 = vweird.f32 %v7464
    %v7470 = vsel %vm7469, %v7464, %v7468
    %v7471 = vmul.f32 %v7462, %v7470
    %v7472 = vld [vmem:[#allocation27] sm:$0xff]
    %v7473 = vld [vmem:[#allocation27 + $0x8] sm:$0xff]
    %vm7474 = vcmask 64512
    %v7476 = vsel %vm7474, %v7471, 0
    %7478 = vmatpush.msra.mxu0 0.0
    %7479 = vmatpush.msra.mxu0 0.0
    %7480 = vmatpush.msra.mxu0 0.0
    %7481 = vmatpush.msra.mxu0 0.0
    %7482 = vmatpush.msra.mxu0 0.0
    %7483 = vmatpush.msra.mxu0 0.0
    %7484 = vmatpush.msra.mxu0 0.0
    %7485 = vmatpush.msra.mxu0 0.0
    %7486 = vmatpush.msra.mxu0 0.0
    %7487 = vmatpush.msra.mxu0 0.0
    %7488 = vmatpush.msra.mxu0 0.0
    %7489 = vmatpush.msra.mxu0 0.0
    %7490 = vmatpush.msra.mxu0 0.0
    %7491 = vmatpush.msra.mxu0 0.0
    %7492 = vmatpush.msra.mxu0 0.0
    %7493 = vmatpush.msra.mxu0 %v7472
    %7494 = vmatmul.f32.gmra.mxu0 %v7476
    %v7495 = vpop.f32.mrf.mxu0
    %v7496 = vadd.f32 0.0, %v7495
    %7497 = vdwg.mxu0
    %7498 = vmatpush.msra.mxu0 0.0
    %7499 = vmatpush.msra.mxu0 0.0
    %7500 = vmatpush.msra.mxu0 0.0
    %7501 = vmatpush.msra.mxu0 0.0
    %7502 = vmatpush.msra.mxu0 0.0
    %7503 = vmatpush.msra.mxu0 0.0
    %7504 = vmatpush.msra.mxu0 0.0
    %7505 = vmatpush.msra.mxu0 0.0
    %7506 = vmatpush.msra.mxu0 0.0
    %7507 = vmatpush.msra.mxu0 0.0
    %7508 = vmatpush.msra.mxu0 0.0
    %7509 = vmatpush.msra.mxu0 0.0
    %7510 = vmatpush.msra.mxu0 0.0
    %7511 = vmatpush.msra.mxu0 0.0
    %7512 = vmatpush.msra.mxu0 0.0
    %7513 = vmatpush.msra.mxu0 %v7473
    %7514 = vmatmul.f32.gmra.mxu0 %v7476
    %v7515 = vpop.f32.mrf.mxu0
    %v7516 = vadd.f32 0.0, %v7515
    %7517 = vdwg.mxu0
    %v7518 = vperm.slane %v7496, 0
    %v7519 = vperm.slane %v7516, 0
    %v7520 = vsub.f32 %v7243, %v7518
    %v7521 = vsub.f32 %v7244, %v7519
    %v7522 = vsub.f32 %v7245, %v7518
    %v7523 = vsub.f32 %v7246, %v7519
    %v7524 = vsub.f32 %v7247, %v7518
    %v7525 = vsub.f32 %v7248, %v7519
    %v7526 = vsub.f32 %v7249, %v7518
    %v7527 = vsub.f32 %v7250, %v7519
    %v7528 = vsub.f32 %v7251, %v7518
    %v7529 = vsub.f32 %v7252, %v7519
    %v7530 = vsub.f32 %v7253, %v7518
    %v7531 = vsub.f32 %v7254, %v7519
    %v7532 = vsub.f32 %v7255, %v7518
    %v7533 = vsub.f32 %v7256, %v7519
    %v7534 = vsub.f32 %v7257, %v7518
    %v7535 = vsub.f32 %v7258, %v7519
    %v7536 = vsub.f32 %v7259, %v7518
    %v7537 = vsub.f32 %v7260, %v7519
    %v7538 = vsub.f32 %v7261, %v7518
    %v7539 = vsub.f32 %v7262, %v7519
    %v7540 = vsub.f32 %v7263, %v7518
    %v7541 = vsub.f32 %v7264, %v7519
    %v7542 = vsub.f32 %v7265, %v7518
    %v7543 = vsub.f32 %v7266, %v7519
    %v7544 = vsub.f32 %v7267, %v7518
    %v7545 = vsub.f32 %v7268, %v7519
    %v7546 = vsub.f32 %v7269, %v7518
    %v7547 = vsub.f32 %v7270, %v7519
    %v7548 = vsub.f32 %v7271, %v7518
    %v7549 = vsub.f32 %v7272, %v7519
    %v7550 = vsub.f32 %v7273, %v7518
    %v7551 = vsub.f32 %v7274, %v7519
    %v7552 = vsub.f32 %v7275, %v7518
    %v7553 = vsub.f32 %v7276, %v7519
    %v7554 = vsub.f32 %v7277, %v7518
    %v7555 = vsub.f32 %v7278, %v7519
    %v7556 = vsub.f32 %v7279, %v7518
    %v7557 = vsub.f32 %v7280, %v7519
    %v7558 = vsub.f32 %v7281, %v7518
    %v7559 = vsub.f32 %v7282, %v7519
    %v7560 = vsub.f32 %v7283, %v7518
    %v7561 = vsub.f32 %v7284, %v7519
    %v7562 = vsub.f32 %v7285, %v7518
    %v7563 = vsub.f32 %v7286, %v7519
    %v7564 = vsub.f32 %v7287, %v7518
    %v7565 = vsub.f32 %v7288, %v7519
    %v7566 = vsub.f32 %v7289, %v7518
    %v7567 = vsub.f32 %v7290, %v7519
    %v7568 = vsub.f32 %v7291, %v7518
    %v7569 = vsub.f32 %v7292, %v7519
    %v7570 = vsub.f32 %v7293, %v7518
    %v7571 = vsub.f32 %v7294, %v7519
    %v7572 = vsub.f32 %v7295, %v7518
    %v7573 = vsub.f32 %v7296, %v7519
    %v7574 = vsub.f32 %v7297, %v7518
    %v7575 = vsub.f32 %v7298, %v7519
    %v7576 = vmul.f32 %v7520, %v7520
    %v7577 = vmul.f32 %v7521, %v7521
    %v7578 = vmul.f32 %v7522, %v7522
    %v7579 = vmul.f32 %v7523, %v7523
    %v7580 = vmul.f32 %v7524, %v7524
    %v7581 = vmul.f32 %v7525, %v7525
    %v7582 = vmul.f32 %v7526, %v7526
    %v7583 = vmul.f32 %v7527, %v7527
    %v7584 = vmul.f32 %v7528, %v7528
    %v7585 = vmul.f32 %v7529, %v7529
    %v7586 = vmul.f32 %v7530, %v7530
    %v7587 = vmul.f32 %v7531, %v7531
    %v7588 = vmul.f32 %v7532, %v7532
    %v7589 = vmul.f32 %v7533, %v7533
    %v7590 = vmul.f32 %v7534, %v7534
    %v7591 = vmul.f32 %v7535, %v7535
    %v7592 = vmul.f32 %v7536, %v7536
    %v7593 = vmul.f32 %v7537, %v7537
    %v7594 = vmul.f32 %v7538, %v7538
    %v7595 = vmul.f32 %v7539, %v7539
    %v7596 = vmul.f32 %v7540, %v7540
    %v7597 = vmul.f32 %v7541, %v7541
    %v7598 = vmul.f32 %v7542, %v7542
    %v7599 = vmul.f32 %v7543, %v7543
    %v7600 = vmul.f32 %v7544, %v7544
    %v7601 = vmul.f32 %v7545, %v7545
    %v7602 = vmul.f32 %v7546, %v7546
    %v7603 = vmul.f32 %v7547, %v7547
    %v7604 = vmul.f32 %v7548, %v7548
    %v7605 = vmul.f32 %v7549, %v7549
    %v7606 = vmul.f32 %v7550, %v7550
    %v7607 = vmul.f32 %v7551, %v7551
    %v7608 = vmul.f32 %v7552, %v7552
    %v7609 = vmul.f32 %v7553, %v7553
    %v7610 = vmul.f32 %v7554, %v7554
    %v7611 = vmul.f32 %v7555, %v7555
    %v7612 = vmul.f32 %v7556, %v7556
    %v7613 = vmul.f32 %v7557, %v7557
    %v7614 = vmul.f32 %v7558, %v7558
    %v7615 = vmul.f32 %v7559, %v7559
    %v7616 = vmul.f32 %v7560, %v7560
    %v7617 = vmul.f32 %v7561, %v7561
    %v7618 = vmul.f32 %v7562, %v7562
    %v7619 = vmul.f32 %v7563, %v7563
    %v7620 = vmul.f32 %v7564, %v7564
    %v7621 = vmul.f32 %v7565, %v7565
    %v7622 = vmul.f32 %v7566, %v7566
    %v7623 = vmul.f32 %v7567, %v7567
    %v7624 = vmul.f32 %v7568, %v7568
    %v7625 = vmul.f32 %v7569, %v7569
    %v7626 = vmul.f32 %v7570, %v7570
    %v7627 = vmul.f32 %v7571, %v7571
    %v7628 = vmul.f32 %v7572, %v7572
    %v7629 = vmul.f32 %v7573, %v7573
    %v7630 = vmul.f32 %v7574, %v7574
    %v7631 = vmul.f32 %v7575, %v7575
    %v7632 = vadd.f32 %v7576, %v7578
    %v7633 = vadd.f32 %v7632, %v7580
    %v7634 = vadd.f32 %v7633, %v7582
    %v7635 = vadd.f32 %v7634, %v7584
    %v7636 = vadd.f32 %v7635, %v7586
    %v7637 = vadd.f32 %v7636, %v7588
    %v7638 = vadd.f32 %v7637, %v7590
    %v7639 = vadd.f32 %v7638, %v7592
    %v7640 = vadd.f32 %v7639, %v7594
    %v7641 = vadd.f32 %v7640, %v7596
    %v7642 = vadd.f32 %v7641, %v7598
    %v7643 = vadd.f32 %v7642, %v7600
    %v7644 = vadd.f32 %v7643, %v7602
    %v7645 = vadd.f32 %v7644, %v7604
    %v7646 = vadd.f32 %v7645, %v7606
    %v7647 = vadd.f32 %v7646, %v7608
    %v7648 = vadd.f32 %v7647, %v7610
    %v7649 = vadd.f32 %v7648, %v7612
    %v7650 = vadd.f32 %v7649, %v7614
    %v7651 = vadd.f32 %v7650, %v7616
    %v7652 = vadd.f32 %v7651, %v7618
    %v7653 = vadd.f32 %v7652, %v7620
    %v7654 = vadd.f32 %v7653, %v7622
    %v7655 = vadd.f32 %v7654, %v7624
    %v7656 = vadd.f32 %v7655, %v7626
    %v7657 = vadd.f32 %v7656, %v7628
    %v7658 = vadd.f32 %v7657, %v7630
    %v7659 = vrot.slane %v7658, 4
    %v7660 = vadd.f32 %v7658, %v7659
    %v7661 = vrot.slane %v7660, 2
    %v7662 = vadd.f32 %v7660, %v7661
    %v7663 = vrot.slane %v7662, 1
    %v7664 = vadd.f32 %v7662, %v7663
    %v7665 = vsel %vm3962, %v7577, 0.0
    %v7666 = vsel %vm3962, %v7579, 0.0
    %v7667 = vadd.f32 %v7665, %v7666
    %v7668 = vsel %vm3962, %v7581, 0.0
    %v7669 = vadd.f32 %v7667, %v7668
    %v7670 = vsel %vm3962, %v7583, 0.0
    %v7671 = vadd.f32 %v7669, %v7670
    %v7672 = vsel %vm3962, %v7585, 0.0
    %v7673 = vadd.f32 %v7671, %v7672
    %v7674 = vsel %vm3962, %v7587, 0.0
    %v7675 = vadd.f32 %v7673, %v7674
    %v7676 = vsel %vm3962, %v7589, 0.0
    %v7677 = vadd.f32 %v7675, %v7676
    %v7678 = vsel %vm3962, %v7591, 0.0
    %v7679 = vadd.f32 %v7677, %v7678
    %v7680 = vsel %vm3962, %v7593, 0.0
    %v7681 = vadd.f32 %v7679, %v7680
    %v7682 = vsel %vm3962, %v7595, 0.0
    %v7683 = vadd.f32 %v7681, %v7682
    %v7684 = vsel %vm3962, %v7597, 0.0
    %v7685 = vadd.f32 %v7683, %v7684
    %v7686 = vsel %vm3962, %v7599, 0.0
    %v7687 = vadd.f32 %v7685, %v7686
    %v7688 = vsel %vm3962, %v7601, 0.0
    %v7689 = vadd.f32 %v7687, %v7688
    %v7690 = vsel %vm3962, %v7603, 0.0
    %v7691 = vadd.f32 %v7689, %v7690
    %v7692 = vsel %vm3962, %v7605, 0.0
    %v7693 = vadd.f32 %v7691, %v7692
    %v7694 = vsel %vm3962, %v7607, 0.0
    %v7695 = vadd.f32 %v7693, %v7694
    %v7696 = vsel %vm3962, %v7609, 0.0
    %v7697 = vadd.f32 %v7695, %v7696
    %v7698 = vsel %vm3962, %v7611, 0.0
    %v7699 = vadd.f32 %v7697, %v7698
    %v7700 = vsel %vm3962, %v7613, 0.0
    %v7701 = vadd.f32 %v7699, %v7700
    %v7702 = vsel %vm3962, %v7615, 0.0
    %v7703 = vadd.f32 %v7701, %v7702
    %v7704 = vsel %vm3962, %v7617, 0.0
    %v7705 = vadd.f32 %v7703, %v7704
    %v7706 = vsel %vm3962, %v7619, 0.0
    %v7707 = vadd.f32 %v7705, %v7706
    %v7708 = vsel %vm3962, %v7621, 0.0
    %v7709 = vadd.f32 %v7707, %v7708
    %v7710 = vsel %vm3962, %v7623, 0.0
    %v7711 = vadd.f32 %v7709, %v7710
    %v7712 = vsel %vm3962, %v7625, 0.0
    %v7713 = vadd.f32 %v7711, %v7712
    %v7714 = vsel %vm3962, %v7627, 0.0
    %v7715 = vadd.f32 %v7713, %v7714
    %v7716 = vsel %vm3962, %v7629, 0.0
    %v7717 = vadd.f32 %v7715, %v7716
    %v7718 = vsel %vm3962, %v7631, 0.0
    %v7719 = vadd.f32 %v7717, %v7718
    %v7720 = vrot.slane %v7719, 4
    %v7721 = vadd.f32 %v7719, %v7720
    %v7722 = vrot.slane %v7721, 2
    %v7723 = vadd.f32 %v7721, %v7722
    %v7724 = vrot.slane %v7723, 1
    %v7725 = vadd.f32 %v7723, %v7724
    %v7727 = vsel %vm3962, %v7725, 0
    %7729 = vmatpush.msra.mxu0 %v7408
    %7730 = vmatpush.msra.mxu0 %v7407
    %7731 = vmatpush.msra.mxu0 %v7406
    %7732 = vmatpush.msra.mxu0 %v7405
    %7733 = vmatpush.msra.mxu0 %v7404
    %7734 = vmatpush.msra.mxu0 %v7403
    %7735 = vmatpush.msra.mxu0 %v7402
    %7736 = vmatpush.msra.mxu0 %v7401
    %7737 = vmatpush.msra.mxu0 %v7400
    %7738 = vmatpush.msra.mxu0 %v7399
    %7739 = vmatpush.msra.mxu0 %v7398
    %7740 = vmatpush.msra.mxu0 %v7397
    %7741 = vmatpush.msra.mxu0 %v7396
    %7742 = vmatpush.msra.mxu0 %v7395
    %7743 = vmatpush.msra.mxu0 %v7394
    %7744 = vmatpush.msra.mxu0 %v7393
    %7745 = vmatmul.f32.gmra.mxu0 %v7664
    %v7746 = vpop.f32.mrf.mxu0
    %v7747 = vadd.f32 0.0, %v7746
    %7748 = vdwg.mxu0
    %7749 = vmatpush.msra.mxu0 0.0
    %7750 = vmatpush.msra.mxu0 0.0
    %7751 = vmatpush.msra.mxu0 0.0
    %7752 = vmatpush.msra.mxu0 0.0
    %7753 = vmatpush.msra.mxu0 %v7420
    %7754 = vmatpush.msra.mxu0 %v7419
    %7755 = vmatpush.msra.mxu0 %v7418
    %7756 = vmatpush.msra.mxu0 %v7417
    %7757 = vmatpush.msra.mxu0 %v7416
    %7758 = vmatpush.msra.mxu0 %v7415
    %7759 = vmatpush.msra.mxu0 %v7414
    %7760 = vmatpush.msra.mxu0 %v7413
    %7761 = vmatpush.msra.mxu0 %v7412
    %7762 = vmatpush.msra.mxu0 %v7411
    %7763 = vmatpush.msra.mxu0 %v7410
    %7764 = vmatpush.msra.mxu0 %v7409
    %7765 = vmatmul.f32.gmra.mxu0 %v7727
    %v7766 = vpop.f32.mrf.mxu0
    %v7767 = vadd.f32 %v7747, %v7766
    %7768 = vdwg.mxu0
    %v7769 = vmul.f32 %v7767, %v7470
    %v7770 = vld [vmem:[#allocation24] sm:$0x1]
    %v7771 = vadd.f32 %v7769, 1e-05
    %v7772 = vrsqrt.pop %v7771
    %v7773 = vmul.f32 %v7772, %v7771
    %v7774 = vmul.f32 %v7773, %v7772
    %v7775 = vmul.f32 0.5, %v7774
    %v7776 = vsub.f32 1.5, %v7775
    %v7777 = vmul.f32 %v7772, %v7776
    %vm7778 = vweird.f32 %v7771
    %vm7779 = vweird.f32 %v7772
    %vm7780 = vmor %vm7778, %vm7779
    %v7781 = vsel %vm7780, %v7772, %v7777
    %v7782 = vmul.f32 %v7770, %v7781
    %v7783 = vld [vmem:[#allocation26] sm:$0x1]
    %v7784 = vmul.f32 %v7471, %v7782
    %v7785 = vsub.f32 %v7783, %v7784
    %v7787 = vsel %vm7474, %v7782, 0
    %7789 = vmatpush.msra.mxu0 0.0
    %7790 = vmatpush.msra.mxu0 0.0
    %7791 = vmatpush.msra.mxu0 0.0
    %7792 = vmatpush.msra.mxu0 0.0
    %7793 = vmatpush.msra.mxu0 0.0
    %7794 = vmatpush.msra.mxu0 0.0
    %7795 = vmatpush.msra.mxu0 0.0
    %7796 = vmatpush.msra.mxu0 0.0
    %7797 = vmatpush.msra.mxu0 0.0
    %7798 = vmatpush.msra.mxu0 0.0
    %7799 = vmatpush.msra.mxu0 0.0
    %7800 = vmatpush.msra.mxu0 0.0
    %7801 = vmatpush.msra.mxu0 0.0
    %7802 = vmatpush.msra.mxu0 0.0
    %7803 = vmatpush.msra.mxu0 0.0
    %7804 = vmatpush.msra.mxu0 %v7472
    %7805 = vmatmul.f32.gmra.mxu0 %v7787
    %v7806 = vpop.f32.mrf.mxu0
    %v7807 = vadd.f32 0.0, %v7806
    %7808 = vdwg.mxu0
    %7809 = vmatpush.msra.mxu0 0.0
    %7810 = vmatpush.msra.mxu0 0.0
    %7811 = vmatpush.msra.mxu0 0.0
    %7812 = vmatpush.msra.mxu0 0.0
    %7813 = vmatpush.msra.mxu0 0.0
    %7814 = vmatpush.msra.mxu0 0.0
    %7815 = vmatpush.msra.mxu0 0.0
    %7816 = vmatpush.msra.mxu0 0.0
    %7817 = vmatpush.msra.mxu0 0.0
    %7818 = vmatpush.msra.mxu0 0.0
    %7819 = vmatpush.msra.mxu0 0.0
    %7820 = vmatpush.msra.mxu0 0.0
    %7821 = vmatpush.msra.mxu0 0.0
    %7822 = vmatpush.msra.mxu0 0.0
    %7823 = vmatpush.msra.mxu0 0.0
    %7824 = vmatpush.msra.mxu0 %v7473
    %7825 = vmatmul.f32.gmra.mxu0 %v7787
    %v7826 = vpop.f32.mrf.mxu0
    %v7827 = vadd.f32 0.0, %v7826
    %7828 = vdwg.mxu0
    %v7830 = vsel %vm7474, %v7785, 0
    %7832 = vmatpush.msra.mxu0 0.0
    %7833 = vmatpush.msra.mxu0 0.0
    %7834 = vmatpush.msra.mxu0 0.0
    %7835 = vmatpush.msra.mxu0 0.0
    %7836 = vmatpush.msra.mxu0 0.0
    %7837 = vmatpush.msra.mxu0 0.0
    %7838 = vmatpush.msra.mxu0 0.0
    %7839 = vmatpush.msra.mxu0 0.0
    %7840 = vmatpush.msra.mxu0 0.0
    %7841 = vmatpush.msra.mxu0 0.0
    %7842 = vmatpush.msra.mxu0 0.0
    %7843 = vmatpush.msra.mxu0 0.0
    %7844 = vmatpush.msra.mxu0 0.0
    %7845 = vmatpush.msra.mxu0 0.0
    %7846 = vmatpush.msra.mxu0 0.0
    %7847 = vmatpush.msra.mxu0 %v7472
    %7848 = vmatmul.f32.gmra.mxu0 %v7830
    %v7849 = vpop.f32.mrf.mxu0
    %v7850 = vadd.f32 0.0, %v7849
    %7851 = vdwg.mxu0
    %7852 = vmatpush.msra.mxu0 0.0
    %7853 = vmatpush.msra.mxu0 0.0
    %7854 = vmatpush.msra.mxu0 0.0
    %7855 = vmatpush.msra.mxu0 0.0
    %7856 = vmatpush.msra.mxu0 0.0
    %7857 = vmatpush.msra.mxu0 0.0
    %7858 = vmatpush.msra.mxu0 0.0
    %7859 = vmatpush.msra.mxu0 0.0
    %7860 = vmatpush.msra.mxu0 0.0
    %7861 = vmatpush.msra.mxu0 0.0
    %7862 = vmatpush.msra.mxu0 0.0
    %7863 = vmatpush.msra.mxu0 0.0
    %7864 = vmatpush.msra.mxu0 0.0
    %7865 = vmatpush.msra.mxu0 0.0
    %7866 = vmatpush.msra.mxu0 0.0
    %7867 = vmatpush.msra.mxu0 %v7473
    %7868 = vmatmul.f32.gmra.mxu0 %v7830
    %v7869 = vpop.f32.mrf.mxu0
    %v7870 = vadd.f32 0.0, %v7869
    %7871 = vdwg.mxu0
    %v7872 = vperm.slane %v7807, 0
    %v7873 = vperm.slane %v7827, 0
    %v7874 = vmul.f32 %v7243, %v7872
    %v7875 = vmul.f32 %v7244, %v7873
    %v7876 = vmul.f32 %v7245, %v7872
    %v7877 = vmul.f32 %v7246, %v7873
    %v7878 = vmul.f32 %v7247, %v7872
    %v7879 = vmul.f32 %v7248, %v7873
    %v7880 = vmul.f32 %v7249, %v7872
    %v7881 = vmul.f32 %v7250, %v7873
    %v7882 = vmul.f32 %v7251, %v7872
    %v7883 = vmul.f32 %v7252, %v7873
    %v7884 = vmul.f32 %v7253, %v7872
    %v7885 = vmul.f32 %v7254, %v7873
    %v7886 = vmul.f32 %v7255, %v7872
    %v7887 = vmul.f32 %v7256, %v7873
    %v7888 = vmul.f32 %v7257, %v7872
    %v7889 = vmul.f32 %v7258, %v7873
    %v7890 = vmul.f32 %v7259, %v7872
    %v7891 = vmul.f32 %v7260, %v7873
    %v7892 = vmul.f32 %v7261, %v7872
    %v7893 = vmul.f32 %v7262, %v7873
    %v7894 = vmul.f32 %v7263, %v7872
    %v7895 = vmul.f32 %v7264, %v7873
    %v7896 = vmul.f32 %v7265, %v7872
    %v7897 = vmul.f32 %v7266, %v7873
    %v7898 = vmul.f32 %v7267, %v7872
    %v7899 = vmul.f32 %v7268, %v7873
    %v7900 = vmul.f32 %v7269, %v7872
    %v7901 = vmul.f32 %v7270, %v7873
    %v7902 = vmul.f32 %v7271, %v7872
    %v7903 = vmul.f32 %v7272, %v7873
    %v7904 = vmul.f32 %v7273, %v7872
    %v7905 = vmul.f32 %v7274, %v7873
    %v7906 = vmul.f32 %v7275, %v7872
    %v7907 = vmul.f32 %v7276, %v7873
    %v7908 = vmul.f32 %v7277, %v7872
    %v7909 = vmul.f32 %v7278, %v7873
    %v7910 = vmul.f32 %v7279, %v7872
    %v7911 = vmul.f32 %v7280, %v7873
    %v7912 = vmul.f32 %v7281, %v7872
    %v7913 = vmul.f32 %v7282, %v7873
    %v7914 = vmul.f32 %v7283, %v7872
    %v7915 = vmul.f32 %v7284, %v7873
    %v7916 = vmul.f32 %v7285, %v7872
    %v7917 = vmul.f32 %v7286, %v7873
    %v7918 = vmul.f32 %v7287, %v7872
    %v7919 = vmul.f32 %v7288, %v7873
    %v7920 = vmul.f32 %v7289, %v7872
    %v7921 = vmul.f32 %v7290, %v7873
    %v7922 = vmul.f32 %v7291, %v7872
    %v7923 = vmul.f32 %v7292, %v7873
    %v7924 = vmul.f32 %v7293, %v7872
    %v7925 = vmul.f32 %v7294, %v7873
    %v7926 = vmul.f32 %v7295, %v7872
    %v7927 = vmul.f32 %v7296, %v7873
    %v7928 = vmul.f32 %v7297, %v7872
    %v7929 = vmul.f32 %v7298, %v7873
    %v7930 = vperm.slane %v7850, 0
    %v7931 = vperm.slane %v7870, 0
    %v7932 = vadd.f32 %v7874, %v7930
    %v7933 = vadd.f32 %v7875, %v7931
    %v7934 = vadd.f32 %v7876, %v7930
    %v7935 = vadd.f32 %v7877, %v7931
    %v7936 = vadd.f32 %v7878, %v7930
    %v7937 = vadd.f32 %v7879, %v7931
    %v7938 = vadd.f32 %v7880, %v7930
    %v7939 = vadd.f32 %v7881, %v7931
    %v7940 = vadd.f32 %v7882, %v7930
    %v7941 = vadd.f32 %v7883, %v7931
    %v7942 = vadd.f32 %v7884, %v7930
    %v7943 = vadd.f32 %v7885, %v7931
    %v7944 = vadd.f32 %v7886, %v7930
    %v7945 = vadd.f32 %v7887, %v7931
    %v7946 = vadd.f32 %v7888, %v7930
    %v7947 = vadd.f32 %v7889, %v7931
    %v7948 = vadd.f32 %v7890, %v7930
    %v7949 = vadd.f32 %v7891, %v7931
    %v7950 = vadd.f32 %v7892, %v7930
    %v7951 = vadd.f32 %v7893, %v7931
    %v7952 = vadd.f32 %v7894, %v7930
    %v7953 = vadd.f32 %v7895, %v7931
    %v7954 = vadd.f32 %v7896, %v7930
    %v7955 = vadd.f32 %v7897, %v7931
    %v7956 = vadd.f32 %v7898, %v7930
    %v7957 = vadd.f32 %v7899, %v7931
    %v7958 = vadd.f32 %v7900, %v7930
    %v7959 = vadd.f32 %v7901, %v7931
    %v7960 = vadd.f32 %v7902, %v7930
    %v7961 = vadd.f32 %v7903, %v7931
    %v7962 = vadd.f32 %v7904, %v7930
    %v7963 = vadd.f32 %v7905, %v7931
    %v7964 = vadd.f32 %v7906, %v7930
    %v7965 = vadd.f32 %v7907, %v7931
    %v7966 = vadd.f32 %v7908, %v7930
    %v7967 = vadd.f32 %v7909, %v7931
    %v7968 = vadd.f32 %v7910, %v7930
    %v7969 = vadd.f32 %v7911, %v7931
    %v7970 = vadd.f32 %v7912, %v7930
    %v7971 = vadd.f32 %v7913, %v7931
    %v7972 = vadd.f32 %v7914, %v7930
    %v7973 = vadd.f32 %v7915, %v7931
    %v7974 = vadd.f32 %v7916, %v7930
    %v7975 = vadd.f32 %v7917, %v7931
    %v7976 = vadd.f32 %v7918, %v7930
    %v7977 = vadd.f32 %v7919, %v7931
    %v7978 = vadd.f32 %v7920, %v7930
    %v7979 = vadd.f32 %v7921, %v7931
    %v7980 = vadd.f32 %v7922, %v7930
    %v7981 = vadd.f32 %v7923, %v7931
    %v7982 = vadd.f32 %v7924, %v7930
    %v7983 = vadd.f32 %v7925, %v7931
    %v7984 = vadd.f32 %v7926, %v7930
    %v7985 = vadd.f32 %v7927, %v7931
    %v7986 = vadd.f32 %v7928, %v7930
    %v7987 = vadd.f32 %v7929, %v7931
    %8044 = vrot.lane.b32.xlu0 %v7932, 96
    %v8045 = vpop.permute.xlu0 %8044
    %8046 = vrot.lane.b32.xlu0 %v7933, 96
    %v8047 = vpop.permute.xlu0 %8046
    %8048 = vrot.lane.b32.xlu0 %v7934, 96
    %v8049 = vpop.permute.xlu0 %8048
    %8050 = vrot.lane.b32.xlu0 %v7935, 96
    %v8051 = vpop.permute.xlu0 %8050
    %8052 = vrot.lane.b32.xlu0 %v7936, 96
    %v8053 = vpop.permute.xlu0 %8052
    %8054 = vrot.lane.b32.xlu0 %v7937, 96
    %v8055 = vpop.permute.xlu0 %8054
    %8056 = vrot.lane.b32.xlu0 %v7938, 96
    %v8057 = vpop.permute.xlu0 %8056
    %8058 = vrot.lane.b32.xlu0 %v7939, 96
    %v8059 = vpop.permute.xlu0 %8058
    %8060 = vrot.lane.b32.xlu0 %v7940, 96
    %v8061 = vpop.permute.xlu0 %8060
    %8062 = vrot.lane.b32.xlu0 %v7941, 96
    %v8063 = vpop.permute.xlu0 %8062
    %8064 = vrot.lane.b32.xlu0 %v7942, 96
    %v8065 = vpop.permute.xlu0 %8064
    %8066 = vrot.lane.b32.xlu0 %v7943, 96
    %v8067 = vpop.permute.xlu0 %8066
    %8068 = vrot.lane.b32.xlu0 %v7944, 96
    %v8069 = vpop.permute.xlu0 %8068
    %8070 = vrot.lane.b32.xlu0 %v7945, 96
    %v8071 = vpop.permute.xlu0 %8070
    %8072 = vrot.lane.b32.xlu0 %v7946, 96
    %v8073 = vpop.permute.xlu0 %8072
    %8074 = vrot.lane.b32.xlu0 %v7947, 96
    %v8075 = vpop.permute.xlu0 %8074
    %8076 = vrot.lane.b32.xlu0 %v7948, 96
    %v8077 = vpop.permute.xlu0 %8076
    %8078 = vrot.lane.b32.xlu0 %v7949, 96
    %v8079 = vpop.permute.xlu0 %8078
    %8080 = vrot.lane.b32.xlu0 %v7950, 96
    %v8081 = vpop.permute.xlu0 %8080
    %8082 = vrot.lane.b32.xlu0 %v7951, 96
    %v8083 = vpop.permute.xlu0 %8082
    %8084 = vrot.lane.b32.xlu0 %v7952, 96
    %v8085 = vpop.permute.xlu0 %8084
    %8086 = vrot.lane.b32.xlu0 %v7953, 96
    %v8087 = vpop.permute.xlu0 %8086
    %8088 = vrot.lane.b32.xlu0 %v7954, 96
    %v8089 = vpop.permute.xlu0 %8088
    %8090 = vrot.lane.b32.xlu0 %v7955, 96
    %v8091 = vpop.permute.xlu0 %8090
    %8092 = vrot.lane.b32.xlu0 %v7956, 96
    %v8093 = vpop.permute.xlu0 %8092
    %8094 = vrot.lane.b32.xlu0 %v7957, 96
    %v8095 = vpop.permute.xlu0 %8094
    %8096 = vrot.lane.b32.xlu0 %v7958, 96
    %v8097 = vpop.permute.xlu0 %8096
    %8098 = vrot.lane.b32.xlu0 %v7959, 96
    %v8099 = vpop.permute.xlu0 %8098
    %8100 = vrot.lane.b32.xlu0 %v7960, 96
    %v8101 = vpop.permute.xlu0 %8100
    %8102 = vrot.lane.b32.xlu0 %v7961, 96
    %v8103 = vpop.permute.xlu0 %8102
    %8104 = vrot.lane.b32.xlu0 %v7962, 96
    %v8105 = vpop.permute.xlu0 %8104
    %8106 = vrot.lane.b32.xlu0 %v7963, 96
    %v8107 = vpop.permute.xlu0 %8106
    %8108 = vrot.lane.b32.xlu0 %v7964, 96
    %v8109 = vpop.permute.xlu0 %8108
    %8110 = vrot.lane.b32.xlu0 %v7965, 96
    %v8111 = vpop.permute.xlu0 %8110
    %8112 = vrot.lane.b32.xlu0 %v7966, 96
    %v8113 = vpop.permute.xlu0 %8112
    %8114 = vrot.lane.b32.xlu0 %v7967, 96
    %v8115 = vpop.permute.xlu0 %8114
    %8116 = vrot.lane.b32.xlu0 %v7968, 96
    %v8117 = vpop.permute.xlu0 %8116
    %8118 = vrot.lane.b32.xlu0 %v7969, 96
    %v8119 = vpop.permute.xlu0 %8118
    %8120 = vrot.lane.b32.xlu0 %v7970, 96
    %v8121 = vpop.permute.xlu0 %8120
    %8122 = vrot.lane.b32.xlu0 %v7971, 96
    %v8123 = vpop.permute.xlu0 %8122
    %8124 = vrot.lane.b32.xlu0 %v7972, 96
    %v8125 = vpop.permute.xlu0 %8124
    %8126 = vrot.lane.b32.xlu0 %v7973, 96
    %v8127 = vpop.permute.xlu0 %8126
    %8128 = vrot.lane.b32.xlu0 %v7974, 96
    %v8129 = vpop.permute.xlu0 %8128
    %8130 = vrot.lane.b32.xlu0 %v7975, 96
    %v8131 = vpop.permute.xlu0 %8130
    %8132 = vrot.lane.b32.xlu0 %v7976, 96
    %v8133 = vpop.permute.xlu0 %8132
    %8134 = vrot.lane.b32.xlu0 %v7977, 96
    %v8135 = vpop.permute.xlu0 %8134
    %8136 = vrot.lane.b32.xlu0 %v7978, 96
    %v8137 = vpop.permute.xlu0 %8136
    %8138 = vrot.lane.b32.xlu0 %v7979, 96
    %v8139 = vpop.permute.xlu0 %8138
    %8140 = vrot.lane.b32.xlu0 %v7980, 96
    %v8141 = vpop.permute.xlu0 %8140
    %8142 = vrot.lane.b32.xlu0 %v7981, 96
    %v8143 = vpop.permute.xlu0 %8142
    %8144 = vrot.lane.b32.xlu0 %v7982, 96
    %v8145 = vpop.permute.xlu0 %8144
    %8146 = vrot.lane.b32.xlu0 %v7983, 96
    %v8147 = vpop.permute.xlu0 %8146
    %8148 = vrot.lane.b32.xlu0 %v7984, 96
    %v8149 = vpop.permute.xlu0 %8148
    %8150 = vrot.lane.b32.xlu0 %v7985, 96
    %v8151 = vpop.permute.xlu0 %8150
    %8152 = vrot.lane.b32.xlu0 %v7986, 96
    %v8153 = vpop.permute.xlu0 %8152
    %8154 = vrot.lane.b32.xlu0 %v7987, 96
    %v8155 = vpop.permute.xlu0 %8154
    %v8156 = vsel %vm3962, %v8045, %v8047
    %v8157 = vsel %vm3962, %v8049, %v8051
    %v8158 = vsel %vm3962, %v8053, %v8055
    %v8159 = vsel %vm3962, %v8057, %v8059
    %v8160 = vsel %vm3962, %v8061, %v8063
    %v8161 = vsel %vm3962, %v8065, %v8067
    %v8162 = vsel %vm3962, %v8069, %v8071
    %v8163 = vsel %vm3962, %v8073, %v8075
    %v8164 = vsel %vm3962, %v8077, %v8079
    %v8165 = vsel %vm3962, %v8081, %v8083
    %v8166 = vsel %vm3962, %v8085, %v8087
    %v8167 = vsel %vm3962, %v8089, %v8091
    %v8168 = vsel %vm3962, %v8093, %v8095
    %v8169 = vsel %vm3962, %v8097, %v8099
    %v8170 = vsel %vm3962, %v8101, %v8103
    %v8171 = vsel %vm3962, %v8105, %v8107
    %v8172 = vsel %vm3962, %v8109, %v8111
    %v8173 = vsel %vm3962, %v8113, %v8115
    %v8174 = vsel %vm3962, %v8117, %v8119
    %v8175 = vsel %vm3962, %v8121, %v8123
    %v8176 = vsel %vm3962, %v8125, %v8127
    %v8177 = vsel %vm3962, %v8129, %v8131
    %v8178 = vsel %vm3962, %v8133, %v8135
    %v8179 = vsel %vm3962, %v8137, %v8139
    %v8180 = vsel %vm3962, %v8141, %v8143
    %v8181 = vsel %vm3962, %v8145, %v8147
    %v8182 = vsel %vm3962, %v8149, %v8151
    %v8183 = vsel %vm3962, %v8153, %v8155
    %8268 = vrot.lane.b32.xlu0 %v7934, 64
    %v8269 = vpop.permute.xlu0 %8268
    %8270 = vrot.lane.b32.xlu0 %v7935, 64
    %v8271 = vpop.permute.xlu0 %8270
    %8272 = vrot.lane.b32.xlu0 %v7936, 64
    %v8273 = vpop.permute.xlu0 %8272
    %8274 = vrot.lane.b32.xlu0 %v7937, 64
    %v8275 = vpop.permute.xlu0 %8274
    %8276 = vrot.lane.b32.xlu0 %v7938, 64
    %v8277 = vpop.permute.xlu0 %8276
    %8278 = vrot.lane.b32.xlu0 %v7939, 64
    %v8279 = vpop.permute.xlu0 %8278
    %8280 = vrot.lane.b32.xlu0 %v7940, 64
    %v8281 = vpop.permute.xlu0 %8280
    %8282 = vrot.lane.b32.xlu0 %v7941, 64
    %v8283 = vpop.permute.xlu0 %8282
    %8284 = vrot.lane.b32.xlu0 %v7942, 64
    %v8285 = vpop.permute.xlu0 %8284
    %8286 = vrot.lane.b32.xlu0 %v7943, 64
    %v8287 = vpop.permute.xlu0 %8286
    %8288 = vrot.lane.b32.xlu0 %v7944, 64
    %v8289 = vpop.permute.xlu0 %8288
    %8290 = vrot.lane.b32.xlu0 %v7945, 64
    %v8291 = vpop.permute.xlu0 %8290
    %8292 = vrot.lane.b32.xlu0 %v7946, 64
    %v8293 = vpop.permute.xlu0 %8292
    %8294 = vrot.lane.b32.xlu0 %v7947, 64
    %v8295 = vpop.permute.xlu0 %8294
    %8296 = vrot.lane.b32.xlu0 %v7948, 64
    %v8297 = vpop.permute.xlu0 %8296
    %8298 = vrot.lane.b32.xlu0 %v7949, 64
    %v8299 = vpop.permute.xlu0 %8298
    %8300 = vrot.lane.b32.xlu0 %v7950, 64
    %v8301 = vpop.permute.xlu0 %8300
    %8302 = vrot.lane.b32.xlu0 %v7951, 64
    %v8303 = vpop.permute.xlu0 %8302
    %8304 = vrot.lane.b32.xlu0 %v7952, 64
    %v8305 = vpop.permute.xlu0 %8304
    %8306 = vrot.lane.b32.xlu0 %v7953, 64
    %v8307 = vpop.permute.xlu0 %8306
    %8308 = vrot.lane.b32.xlu0 %v7954, 64
    %v8309 = vpop.permute.xlu0 %8308
    %8310 = vrot.lane.b32.xlu0 %v7955, 64
    %v8311 = vpop.permute.xlu0 %8310
    %8312 = vrot.lane.b32.xlu0 %v7956, 64
    %v8313 = vpop.permute.xlu0 %8312
    %8314 = vrot.lane.b32.xlu0 %v7957, 64
    %v8315 = vpop.permute.xlu0 %8314
    %8316 = vrot.lane.b32.xlu0 %v7958, 64
    %v8317 = vpop.permute.xlu0 %8316
    %8318 = vrot.lane.b32.xlu0 %v7959, 64
    %v8319 = vpop.permute.xlu0 %8318
    %8320 = vrot.lane.b32.xlu0 %v7960, 64
    %v8321 = vpop.permute.xlu0 %8320
    %8322 = vrot.lane.b32.xlu0 %v7961, 64
    %v8323 = vpop.permute.xlu0 %8322
    %8324 = vrot.lane.b32.xlu0 %v7962, 64
    %v8325 = vpop.permute.xlu0 %8324
    %8326 = vrot.lane.b32.xlu0 %v7963, 64
    %v8327 = vpop.permute.xlu0 %8326
    %8328 = vrot.lane.b32.xlu0 %v7964, 64
    %v8329 = vpop.permute.xlu0 %8328
    %8330 = vrot.lane.b32.xlu0 %v7965, 64
    %v8331 = vpop.permute.xlu0 %8330
    %8332 = vrot.lane.b32.xlu0 %v7966, 64
    %v8333 = vpop.permute.xlu0 %8332
    %8334 = vrot.lane.b32.xlu0 %v7967, 64
    %v8335 = vpop.permute.xlu0 %8334
    %8336 = vrot.lane.b32.xlu0 %v7968, 64
    %v8337 = vpop.permute.xlu0 %8336
    %8338 = vrot.lane.b32.xlu0 %v7969, 64
    %v8339 = vpop.permute.xlu0 %8338
    %8340 = vrot.lane.b32.xlu0 %v7970, 64
    %v8341 = vpop.permute.xlu0 %8340
    %8342 = vrot.lane.b32.xlu0 %v7971, 64
    %v8343 = vpop.permute.xlu0 %8342
    %8344 = vrot.lane.b32.xlu0 %v7972, 64
    %v8345 = vpop.permute.xlu0 %8344
    %8346 = vrot.lane.b32.xlu0 %v7973, 64
    %v8347 = vpop.permute.xlu0 %8346
    %8348 = vrot.lane.b32.xlu0 %v7974, 64
    %v8349 = vpop.permute.xlu0 %8348
    %8350 = vrot.lane.b32.xlu0 %v7975, 64
    %v8351 = vpop.permute.xlu0 %8350
    %8352 = vrot.lane.b32.xlu0 %v7976, 64
    %v8353 = vpop.permute.xlu0 %8352
    %8354 = vrot.lane.b32.xlu0 %v7977, 64
    %v8355 = vpop.permute.xlu0 %8354
    %8356 = vrot.lane.b32.xlu0 %v7978, 64
    %v8357 = vpop.permute.xlu0 %8356
    %8358 = vrot.lane.b32.xlu0 %v7979, 64
    %v8359 = vpop.permute.xlu0 %8358
    %8360 = vrot.lane.b32.xlu0 %v7980, 64
    %v8361 = vpop.permute.xlu0 %8360
    %8362 = vrot.lane.b32.xlu0 %v7981, 64
    %v8363 = vpop.permute.xlu0 %8362
    %8364 = vrot.lane.b32.xlu0 %v7982, 64
    %v8365 = vpop.permute.xlu0 %8364
    %8366 = vrot.lane.b32.xlu0 %v7983, 64
    %v8367 = vpop.permute.xlu0 %8366
    %8368 = vrot.lane.b32.xlu0 %v7984, 64
    %v8369 = vpop.permute.xlu0 %8368
    %8370 = vrot.lane.b32.xlu0 %v7985, 64
    %v8371 = vpop.permute.xlu0 %8370
    %8372 = vrot.lane.b32.xlu0 %v7986, 64
    %v8373 = vpop.permute.xlu0 %8372
    %8374 = vrot.lane.b32.xlu0 %v7987, 64
    %v8375 = vpop.permute.xlu0 %8374
    %v8376 = vsel %vm3952, %v8269, %v8271
    %v8377 = vsel %vm3952, %v8273, %v8275
    %v8378 = vsel %vm3952, %v8277, %v8279
    %v8379 = vsel %vm3952, %v8281, %v8283
    %v8380 = vsel %vm3952, %v8285, %v8287
    %v8381 = vsel %vm3952, %v8289, %v8291
    %v8382 = vsel %vm3952, %v8293, %v8295
    %v8383 = vsel %vm3952, %v8297, %v8299
    %v8384 = vsel %vm3952, %v8301, %v8303
    %v8385 = vsel %vm3952, %v8305, %v8307
    %v8386 = vsel %vm3952, %v8309, %v8311
    %v8387 = vsel %vm3952, %v8313, %v8315
    %v8388 = vsel %vm3952, %v8317, %v8319
    %v8389 = vsel %vm3952, %v8321, %v8323
    %v8390 = vsel %vm3952, %v8325, %v8327
    %v8391 = vsel %vm3952, %v8329, %v8331
    %v8392 = vsel %vm3952, %v8333, %v8335
    %v8393 = vsel %vm3952, %v8337, %v8339
    %v8394 = vsel %vm3952, %v8341, %v8343
    %v8395 = vsel %vm3952, %v8345, %v8347
    %v8396 = vsel %vm3952, %v8349, %v8351
    %v8397 = vsel %vm3952, %v8353, %v8355
    %v8398 = vsel %vm3952, %v8357, %v8359
    %v8399 = vsel %vm3952, %v8361, %v8363
    %v8400 = vsel %vm3952, %v8365, %v8367
    %v8401 = vsel %vm3952, %v8369, %v8371
    %v8402 = vsel %vm3952, %v8373, %v8375
    %v8457 = vsel %vm3962, 0.0, %v8045
    %v8458 = vsel %vm3962, %v7933, %v8049
    %v8459 = vsel %vm3962, %v7935, %v8053
    %v8460 = vsel %vm3962, %v7937, %v8057
    %v8461 = vsel %vm3962, %v7939, %v8061
    %v8462 = vsel %vm3962, %v7941, %v8065
    %v8463 = vsel %vm3962, %v7943, %v8069
    %v8464 = vsel %vm3962, %v7945, %v8073
    %v8465 = vsel %vm3962, %v7947, %v8077
    %v8466 = vsel %vm3962, %v7949, %v8081
    %v8467 = vsel %vm3962, %v7951, %v8085
    %v8468 = vsel %vm3962, %v7953, %v8089
    %v8469 = vsel %vm3962, %v7955, %v8093
    %v8470 = vsel %vm3962, %v7957, %v8097
    %v8471 = vsel %vm3962, %v7959, %v8101
    %v8472 = vsel %vm3962, %v7961, %v8105
    %v8473 = vsel %vm3962, %v7963, %v8109
    %v8474 = vsel %vm3962, %v7965, %v8113
    %v8475 = vsel %vm3962, %v7967, %v8117
    %v8476 = vsel %vm3962, %v7969, %v8121
    %v8477 = vsel %vm3962, %v7971, %v8125
    %v8478 = vsel %vm3962, %v7973, %v8129
    %v8479 = vsel %vm3962, %v7975, %v8133
    %v8480 = vsel %vm3962, %v7977, %v8137
    %v8481 = vsel %vm3962, %v7979, %v8141
    %v8482 = vsel %vm3962, %v7981, %v8145
    %v8483 = vsel %vm3962, %v7983, %v8149
    %v8484 = vsel %vm3962, %v7985, %v8153
    %v8485 = vsel %vm3952, %v8047, %v8269
    %v8486 = vsel %vm3952, %v8051, %v8273
    %v8487 = vsel %vm3952, %v8055, %v8277
    %v8488 = vsel %vm3952, %v8059, %v8281
    %v8489 = vsel %vm3952, %v8063, %v8285
    %v8490 = vsel %vm3952, %v8067, %v8289
    %v8491 = vsel %vm3952, %v8071, %v8293
    %v8492 = vsel %vm3952, %v8075, %v8297
    %v8493 = vsel %vm3952, %v8079, %v8301
    %v8494 = vsel %vm3952, %v8083, %v8305
    %v8495 = vsel %vm3952, %v8087, %v8309
    %v8496 = vsel %vm3952, %v8091, %v8313
    %v8497 = vsel %vm3952, %v8095, %v8317
    %v8498 = vsel %vm3952, %v8099, %v8321
    %v8499 = vsel %vm3952, %v8103, %v8325
    %v8500 = vsel %vm3952, %v8107, %v8329
    %v8501 = vsel %vm3952, %v8111, %v8333
    %v8502 = vsel %vm3952, %v8115, %v8337
    %v8503 = vsel %vm3952, %v8119, %v8341
    %v8504 = vsel %vm3952, %v8123, %v8345
    %v8505 = vsel %vm3952, %v8127, %v8349
    %v8506 = vsel %vm3952, %v8131, %v8353
    %v8507 = vsel %vm3952, %v8135, %v8357
    %v8508 = vsel %vm3952, %v8139, %v8361
    %v8509 = vsel %vm3952, %v8143, %v8365
    %v8510 = vsel %vm3952, %v8147, %v8369
    %v8511 = vsel %vm3952, %v8151, %v8373
    %v8512 = vsel %vm3952, %v8155, %v4054
    %v8513 = vld [vmem:[%s19] sm:$0xff]
    %v8514 = vld [vmem:[%s19 + $0x8] sm:$0xff]
    %v8515 = vld [vmem:[%s19 + $0x10] sm:$0xff]
    %v8516 = vld [vmem:[%s19 + $0x18] sm:$0xff]
    %v8517 = vld [vmem:[%s19 + $0x20] sm:$0xff]
    %v8518 = vld [vmem:[%s19 + $0x28] sm:$0xff]
    %v8519 = vld [vmem:[%s19 + $0x30] sm:$0xff]
    %v8520 = vld [vmem:[%s19 + $0x38] sm:$0xff]
    %v8521 = vld [vmem:[%s19 + $0x40] sm:$0xff]
    %v8522 = vld [vmem:[%s19 + $0x48] sm:$0xff]
    %v8523 = vld [vmem:[%s19 + $0x50] sm:$0xff]
    %v8524 = vld [vmem:[%s19 + $0x58] sm:$0xff]
    %v8525 = vld [vmem:[%s19 + $0x60] sm:$0xff]
    %v8526 = vld [vmem:[%s19 + $0x68] sm:$0xff]
    %v8527 = vld [vmem:[%s19 + $0x70] sm:$0xff]
    %v8528 = vld [vmem:[%s19 + $0x78] sm:$0xff]
    %v8529 = vld [vmem:[%s19 + $0x80] sm:$0xff]
    %v8530 = vld [vmem:[%s19 + $0x88] sm:$0xff]
    %v8531 = vld [vmem:[%s19 + $0x90] sm:$0xff]
    %v8532 = vld [vmem:[%s19 + $0x98] sm:$0xff]
    %v8533 = vld [vmem:[%s19 + $0xa0] sm:$0xff]
    %v8534 = vld [vmem:[%s19 + $0xa8] sm:$0xff]
    %v8535 = vld [vmem:[%s19 + $0xb0] sm:$0xff]
    %v8536 = vld [vmem:[%s19 + $0xb8] sm:$0xff]
    %v8537 = vld [vmem:[%s19 + $0xc0] sm:$0xff]
    %v8538 = vld [vmem:[%s19 + $0xc8] sm:$0xff]
    %v8539 = vld [vmem:[%s19 + $0xd0] sm:$0xff]
    %v8540 = vld [vmem:[%s19 + $0xd8] sm:$0xff]
    %v8541 = vld [vmem:[%s19 + $0xe0] sm:$0xff]
    %v8542 = vld [vmem:[%s19 + $0xe8] sm:$0xff]
    %v8543 = vld [vmem:[%s19 + $0xf0] sm:$0xff]
    %v8544 = vld [vmem:[%s19 + $0xf8] sm:$0xff]
    %v8545 = vld [vmem:[%s19 + $0x100] sm:$0xff]
    %v8546 = vld [vmem:[%s19 + $0x108] sm:$0xff]
    %v8547 = vld [vmem:[%s19 + $0x110] sm:$0xff]
    %v8548 = vld [vmem:[%s19 + $0x118] sm:$0xff]
    %v8549 = vld [vmem:[%s19 + $0x120] sm:$0xff]
    %v8550 = vld [vmem:[%s19 + $0x128] sm:$0xff]
    %v8551 = vld [vmem:[%s19 + $0x130] sm:$0xff]
    %v8552 = vld [vmem:[%s19 + $0x138] sm:$0xff]
    %v8553 = vld [vmem:[%s19 + $0x140] sm:$0xff]
    %v8554 = vld [vmem:[%s19 + $0x148] sm:$0xff]
    %v8555 = vld [vmem:[%s19 + $0x150] sm:$0xff]
    %v8556 = vld [vmem:[%s19 + $0x158] sm:$0xff]
    %v8557 = vld [vmem:[%s19 + $0x160] sm:$0xff]
    %v8558 = vld [vmem:[%s19 + $0x168] sm:$0xff]
    %v8559 = vld [vmem:[%s19 + $0x170] sm:$0xff]
    %v8560 = vld [vmem:[%s19 + $0x178] sm:$0xff]
    %v8561 = vld [vmem:[%s19 + $0x180] sm:$0xff]
    %v8562 = vld [vmem:[%s19 + $0x188] sm:$0xff]
    %v8563 = vld [vmem:[%s19 + $0x190] sm:$0xff]
    %v8564 = vld [vmem:[%s19 + $0x198] sm:$0xff]
    %v8565 = vld [vmem:[%s19 + $0x1a0] sm:$0xff]
    %v8566 = vld [vmem:[%s19 + $0x1a8] sm:$0xff]
    %v8567 = vld [vmem:[%s19 + $0x1b0] sm:$0xff]
    %v8568 = vld [vmem:[%s19 + $0x1b8] sm:$0xff]
    %v8569 = vld [vmem:[%s19 + $0x1c0] sm:$0xff]
    %v8570 = vld [vmem:[%s19 + $0x1c8] sm:$0xff]
    %v8571 = vld [vmem:[%s19 + $0x1d0] sm:$0xff]
    %v8572 = vld [vmem:[%s19 + $0x1d8] sm:$0xff]
    %v8573 = vld [vmem:[%s19 + $0x1e0] sm:$0xff]
    %v8574 = vld [vmem:[%s19 + $0x1e8] sm:$0xff]
    %v8575 = vld [vmem:[%s19 + $0x1f0] sm:$0xff]
    %v8576 = vld [vmem:[%s19 + $0x1f8] sm:$0xff]
    %v8577 = vld [vmem:[%s19 + $0x200] sm:$0xff]
    %v8578 = vld [vmem:[%s19 + $0x208] sm:$0xff]
    %v8579 = vld [vmem:[%s19 + $0x210] sm:$0xff]
    %v8580 = vld [vmem:[%s19 + $0x218] sm:$0xff]
    %v8581 = vld [vmem:[%s19 + $0x220] sm:$0xff]
    %v8582 = vld [vmem:[%s19 + $0x228] sm:$0xff]
    %v8583 = vld [vmem:[%s19 + $0x230] sm:$0xff]
    %v8584 = vld [vmem:[%s19 + $0x238] sm:$0xff]
    %v8585 = vld [vmem:[%s19 + $0x240] sm:$0xff]
    %v8586 = vld [vmem:[%s19 + $0x248] sm:$0xff]
    %v8587 = vld [vmem:[%s19 + $0x250] sm:$0xff]
    %v8588 = vld [vmem:[%s19 + $0x258] sm:$0xff]
    %v8589 = vld [vmem:[%s19 + $0x260] sm:$0xff]
    %v8590 = vld [vmem:[%s19 + $0x268] sm:$0xff]
    %v8591 = vld [vmem:[%s19 + $0x270] sm:$0xff]
    %v8592 = vld [vmem:[%s19 + $0x278] sm:$0xff]
    %v8593 = vld [vmem:[%s19 + $0x280] sm:$0xff]
    %v8594 = vld [vmem:[%s19 + $0x288] sm:$0xff]
    %v8595 = vld [vmem:[%s19 + $0x290] sm:$0xff]
    %v8596 = vld [vmem:[%s19 + $0x298] sm:$0xff]
    %v8597 = vld [vmem:[#allocation29] sm:$0x1]
    %v8599 = vperm.slane %v8597, 0
    %v8601 = vsel %vm542, %v8271, 0
    %v8603 = vsel %vm542, %v8275, 0
    %v8605 = vsel %vm542, %v8279, 0
    %v8607 = vsel %vm542, %v8283, 0
    %v8609 = vsel %vm542, %v8287, 0
    %v8611 = vsel %vm542, %v8291, 0
    %v8613 = vsel %vm542, %v8295, 0
    %v8615 = vsel %vm542, %v8299, 0
    %v8617 = vsel %vm542, %v8303, 0
    %v8619 = vsel %vm542, %v8307, 0
    %v8621 = vsel %vm542, %v8311, 0
    %v8623 = vsel %vm542, %v8315, 0
    %v8625 = vsel %vm542, %v8319, 0
    %v8627 = vsel %vm542, %v8323, 0
    %v8629 = vsel %vm542, %v8327, 0
    %v8631 = vsel %vm542, %v8331, 0
    %v8633 = vsel %vm542, %v8335, 0
    %v8635 = vsel %vm542, %v8339, 0
    %v8637 = vsel %vm542, %v8343, 0
    %v8639 = vsel %vm542, %v8347, 0
    %v8641 = vsel %vm542, %v8351, 0
    %v8643 = vsel %vm542, %v8355, 0
    %v8645 = vsel %vm542, %v8359, 0
    %v8647 = vsel %vm542, %v8363, 0
    %v8649 = vsel %vm542, %v8367, 0
    %v8651 = vsel %vm542, %v8371, 0
    %v8653 = vsel %vm542, %v8375, 0
    %8655 = vmatpush.msra.mxu0 %v8528
    %8656 = vmatpush.msra.mxu0 %v8527
    %8657 = vmatpush.msra.mxu0 %v8526
    %8658 = vmatpush.msra.mxu0 %v8525
    %8659 = vmatpush.msra.mxu0 %v8524
    %8660 = vmatpush.msra.mxu0 %v8523
    %8661 = vmatpush.msra.mxu0 %v8522
    %8662 = vmatpush.msra.mxu0 %v8521
    %8663 = vmatpush.msra.mxu0 %v8520
    %8664 = vmatpush.msra.mxu0 %v8519
    %8665 = vmatpush.msra.mxu0 %v8518
    %8666 = vmatpush.msra.mxu0 %v8517
    %8667 = vmatpush.msra.mxu0 %v8516
    %8668 = vmatpush.msra.mxu0 %v8515
    %8669 = vmatpush.msra.mxu0 %v8514
    %8670 = vmatpush.msra.mxu0 %v8513
    %8671 = vmatmul.f32.gmra.mxu0 0.0
    %v8672 = vpop.f32.mrf.mxu0
    %v8673 = vadd.f32 %v8599, %v8672
    %8674 = vmatmul.f32.gmra.mxu0 %v7932
    %v8675 = vpop.f32.mrf.mxu0
    %v8676 = vadd.f32 %v8599, %v8675
    %8677 = vmatmul.f32.gmra.mxu0 %v7934
    %v8678 = vpop.f32.mrf.mxu0
    %v8679 = vadd.f32 %v8599, %v8678
    %8680 = vmatmul.f32.gmra.mxu0 %v7936
    %v8681 = vpop.f32.mrf.mxu0
    %v8682 = vadd.f32 %v8599, %v8681
    %8683 = vmatmul.f32.gmra.mxu0 %v7938
    %v8684 = vpop.f32.mrf.mxu0
    %v8685 = vadd.f32 %v8599, %v8684
    %8686 = vmatmul.f32.gmra.mxu0 %v7940
    %v8687 = vpop.f32.mrf.mxu0
    %v8688 = vadd.f32 %v8599, %v8687
    %8689 = vmatmul.f32.gmra.mxu0 %v7942
    %v8690 = vpop.f32.mrf.mxu0
    %v8691 = vadd.f32 %v8599, %v8690
    %8692 = vmatmul.f32.gmra.mxu0 %v7944
    %v8693 = vpop.f32.mrf.mxu0
    %v8694 = vadd.f32 %v8599, %v8693
    %8695 = vmatmul.f32.gmra.mxu0 %v7946
    %v8696 = vpop.f32.mrf.mxu0
    %v8697 = vadd.f32 %v8599, %v8696
    %8698 = vmatmul.f32.gmra.mxu0 %v7948
    %v8699 = vpop.f32.mrf.mxu0
    %v8700 = vadd.f32 %v8599, %v8699
    %8701 = vmatmul.f32.gmra.mxu0 %v7950
    %v8702 = vpop.f32.mrf.mxu0
    %v8703 = vadd.f32 %v8599, %v8702
    %8704 = vmatmul.f32.gmra.mxu0 %v7952
    %v8705 = vpop.f32.mrf.mxu0
    %v8706 = vadd.f32 %v8599, %v8705
    %8707 = vmatmul.f32.gmra.mxu0 %v7954
    %v8708 = vpop.f32.mrf.mxu0
    %v8709 = vadd.f32 %v8599, %v8708
    %8710 = vmatmul.f32.gmra.mxu0 %v7956
    %v8711 = vpop.f32.mrf.mxu0
    %v8712 = vadd.f32 %v8599, %v8711
    %8713 = vmatmul.f32.gmra.mxu0 %v7958
    %v8714 = vpop.f32.mrf.mxu0
    %v8715 = vadd.f32 %v8599, %v8714
    %8716 = vmatmul.f32.gmra.mxu0 %v7960
    %v8717 = vpop.f32.mrf.mxu0
    %v8718 = vadd.f32 %v8599, %v8717
    %8719 = vmatmul.f32.gmra.mxu0 %v7962
    %v8720 = vpop.f32.mrf.mxu0
    %v8721 = vadd.f32 %v8599, %v8720
    %8722 = vmatmul.f32.gmra.mxu0 %v7964
    %v8723 = vpop.f32.mrf.mxu0
    %v8724 = vadd.f32 %v8599, %v8723
    %8725 = vmatmul.f32.gmra.mxu0 %v7966
    %v8726 = vpop.f32.mrf.mxu0
    %v8727 = vadd.f32 %v8599, %v8726
    %8728 = vmatmul.f32.gmra.mxu0 %v7968
    %v8729 = vpop.f32.mrf.mxu0
    %v8730 = vadd.f32 %v8599, %v8729
    %8731 = vmatmul.f32.gmra.mxu0 %v7970
    %v8732 = vpop.f32.mrf.mxu0
    %v8733 = vadd.f32 %v8599, %v8732
    %8734 = vmatmul.f32.gmra.mxu0 %v7972
    %v8735 = vpop.f32.mrf.mxu0
    %v8736 = vadd.f32 %v8599, %v8735
    %8737 = vmatmul.f32.gmra.mxu0 %v7974
    %v8738 = vpop.f32.mrf.mxu0
    %v8739 = vadd.f32 %v8599, %v8738
    %8740 = vmatmul.f32.gmra.mxu0 %v7976
    %v8741 = vpop.f32.mrf.mxu0
    %v8742 = vadd.f32 %v8599, %v8741
    %8743 = vmatmul.f32.gmra.mxu0 %v7978
    %v8744 = vpop.f32.mrf.mxu0
    %v8745 = vadd.f32 %v8599, %v8744
    %8746 = vmatmul.f32.gmra.mxu0 %v7980
    %v8747 = vpop.f32.mrf.mxu0
    %v8748 = vadd.f32 %v8599, %v8747
    %8749 = vmatmul.f32.gmra.mxu0 %v7982
    %v8750 = vpop.f32.mrf.mxu0
    %v8751 = vadd.f32 %v8599, %v8750
    %8752 = vmatmul.f32.gmra.mxu0 %v7984
    %v8753 = vpop.f32.mrf.mxu0
    %v8754 = vadd.f32 %v8599, %v8753
    %8755 = vdwg.mxu0
    %8756 = vmatpush.msra.mxu0 %v8544
    %8757 = vmatpush.msra.mxu0 %v8543
    %8758 = vmatpush.msra.mxu0 %v8542
    %8759 = vmatpush.msra.mxu0 %v8541
    %8760 = vmatpush.msra.mxu0 %v8540
    %8761 = vmatpush.msra.mxu0 %v8539
    %8762 = vmatpush.msra.mxu0 %v8538
    %8763 = vmatpush.msra.mxu0 %v8537
    %8764 = vmatpush.msra.mxu0 %v8536
    %8765 = vmatpush.msra.mxu0 %v8535
    %8766 = vmatpush.msra.mxu0 %v8534
    %8767 = vmatpush.msra.mxu0 %v8533
    %8768 = vmatpush.msra.mxu0 %v8532
    %8769 = vmatpush.msra.mxu0 %v8531
    %8770 = vmatpush.msra.mxu0 %v8530
    %8771 = vmatpush.msra.mxu0 %v8529
    %8772 = vmatmul.f32.gmra.mxu0 %v8457
    %v8773 = vpop.f32.mrf.mxu0
    %v8774 = vadd.f32 %v8673, %v8773
    %8775 = vmatmul.f32.gmra.mxu0 %v8458
    %v8776 = vpop.f32.mrf.mxu0
    %v8777 = vadd.f32 %v8676, %v8776
    %8778 = vmatmul.f32.gmra.mxu0 %v8459
    %v8779 = vpop.f32.mrf.mxu0
    %v8780 = vadd.f32 %v8679, %v8779
    %8781 = vmatmul.f32.gmra.mxu0 %v8460
    %v8782 = vpop.f32.mrf.mxu0
    %v8783 = vadd.f32 %v8682, %v8782
    %8784 = vmatmul.f32.gmra.mxu0 %v8461
    %v8785 = vpop.f32.mrf.mxu0
    %v8786 = vadd.f32 %v8685, %v8785
    %8787 = vmatmul.f32.gmra.mxu0 %v8462
    %v8788 = vpop.f32.mrf.mxu0
    %v8789 = vadd.f32 %v8688, %v8788
    %8790 = vmatmul.f32.gmra.mxu0 %v8463
    %v8791 = vpop.f32.mrf.mxu0
    %v8792 = vadd.f32 %v8691, %v8791
    %8793 = vmatmul.f32.gmra.mxu0 %v8464
    %v8794 = vpop.f32.mrf.mxu0
    %v8795 = vadd.f32 %v8694, %v8794
    %8796 = vmatmul.f32.gmra.mxu0 %v8465
    %v8797 = vpop.f32.mrf.mxu0
    %v8798 = vadd.f32 %v8697, %v8797
    %8799 = vmatmul.f32.gmra.mxu0 %v8466
    %v8800 = vpop.f32.mrf.mxu0
    %v8801 = vadd.f32 %v8700, %v8800
    %8802 = vmatmul.f32.gmra.mxu0 %v8467
    %v8803 = vpop.f32.mrf.mxu0
    %v8804 = vadd.f32 %v8703, %v8803
    %8805 = vmatmul.f32.gmra.mxu0 %v8468
    %v8806 = vpop.f32.mrf.mxu0
    %v8807 = vadd.f32 %v8706, %v8806
    %8808 = vmatmul.f32.gmra.mxu0 %v8469
    %v8809 = vpop.f32.mrf.mxu0
    %v8810 = vadd.f32 %v8709, %v8809
    %8811 = vmatmul.f32.gmra.mxu0 %v8470
    %v8812 = vpop.f32.mrf.mxu0
    %v8813 = vadd.f32 %v8712, %v8812
    %8814 = vmatmul.f32.gmra.mxu0 %v8471
    %v8815 = vpop.f32.mrf.mxu0
    %v8816 = vadd.f32 %v8715, %v8815
    %8817 = vmatmul.f32.gmra.mxu0 %v8472
    %v8818 = vpop.f32.mrf.mxu0
    %v8819 = vadd.f32 %v8718, %v8818
    %8820 = vmatmul.f32.gmra.mxu0 %v8473
    %v8821 = vpop.f32.mrf.mxu0
    %v8822 = vadd.f32 %v8721, %v8821
    %8823 = vmatmul.f32.gmra.mxu0 %v8474
    %v8824 = vpop.f32.mrf.mxu0
    %v8825 = vadd.f32 %v8724, %v8824
    %8826 = vmatmul.f32.gmra.mxu0 %v8475
    %v8827 = vpop.f32.mrf.mxu0
    %v8828 = vadd.f32 %v8727, %v8827
    %8829 = vmatmul.f32.gmra.mxu0 %v8476
    %v8830 = vpop.f32.mrf.mxu0
    %v8831 = vadd.f32 %v8730, %v8830
    %8832 = vmatmul.f32.gmra.mxu0 %v8477
    %v8833 = vpop.f32.mrf.mxu0
    %v8834 = vadd.f32 %v8733, %v8833
    %8835 = vmatmul.f32.gmra.mxu0 %v8478
    %v8836 = vpop.f32.mrf.mxu0
    %v8837 = vadd.f32 %v8736, %v8836
    %8838 = vmatmul.f32.gmra.mxu0 %v8479
    %v8839 = vpop.f32.mrf.mxu0
    %v8840 = vadd.f32 %v8739, %v8839
    %8841 = vmatmul.f32.gmra.mxu0 %v8480
    %v8842 = vpop.f32.mrf.mxu0
    %v8843 = vadd.f32 %v8742, %v8842
    %8844 = vmatmul.f32.gmra.mxu0 %v8481
    %v8845 = vpop.f32.mrf.mxu0
    %v8846 = vadd.f32 %v8745, %v8845
    %8847 = vmatmul.f32.gmra.mxu0 %v8482
    %v8848 = vpop.f32.mrf.mxu0
    %v8849 = vadd.f32 %v8748, %v8848
    %8850 = vmatmul.f32.gmra.mxu0 %v8483
    %v8851 = vpop.f32.mrf.mxu0
    %v8852 = vadd.f32 %v8751, %v8851
    %8853 = vmatmul.f32.gmra.mxu0 %v8484
    %v8854 = vpop.f32.mrf.mxu0
    %v8855 = vadd.f32 %v8754, %v8854
    %8856 = vdwg.mxu0
    %8857 = vmatpush.msra.mxu0 %v8560
    %8858 = vmatpush.msra.mxu0 %v8559
    %8859 = vmatpush.msra.mxu0 %v8558
    %8860 = vmatpush.msra.mxu0 %v8557
    %8861 = vmatpush.msra.mxu0 %v8556
    %8862 = vmatpush.msra.mxu0 %v8555
    %8863 = vmatpush.msra.mxu0 %v8554
    %8864 = vmatpush.msra.mxu0 %v8553
    %8865 = vmatpush.msra.mxu0 %v8552
    %8866 = vmatpush.msra.mxu0 %v8551
    %8867 = vmatpush.msra.mxu0 %v8550
    %8868 = vmatpush.msra.mxu0 %v8549
    %8869 = vmatpush.msra.mxu0 %v8548
    %8870 = vmatpush.msra.mxu0 %v8547
    %8871 = vmatpush.msra.mxu0 %v8546
    %8872 = vmatpush.msra.mxu0 %v8545
    %8873 = vmatmul.f32.gmra.mxu0 %v8156
    %v8874 = vpop.f32.mrf.mxu0
    %v8875 = vadd.f32 %v8774, %v8874
    %8876 = vmatmul.f32.gmra.mxu0 %v8157
    %v8877 = vpop.f32.mrf.mxu0
    %v8878 = vadd.f32 %v8777, %v8877
    %8879 = vmatmul.f32.gmra.mxu0 %v8158
    %v8880 = vpop.f32.mrf.mxu0
    %v8881 = vadd.f32 %v8780, %v8880
    %8882 = vmatmul.f32.gmra.mxu0 %v8159
    %v8883 = vpop.f32.mrf.mxu0
    %v8884 = vadd.f32 %v8783, %v8883
    %8885 = vmatmul.f32.gmra.mxu0 %v8160
    %v8886 = vpop.f32.mrf.mxu0
    %v8887 = vadd.f32 %v8786, %v8886
    %8888 = vmatmul.f32.gmra.mxu0 %v8161
    %v8889 = vpop.f32.mrf.mxu0
    %v8890 = vadd.f32 %v8789, %v8889
    %8891 = vmatmul.f32.gmra.mxu0 %v8162
    %v8892 = vpop.f32.mrf.mxu0
    %v8893 = vadd.f32 %v8792, %v8892
    %8894 = vmatmul.f32.gmra.mxu0 %v8163
    %v8895 = vpop.f32.mrf.mxu0
    %v8896 = vadd.f32 %v8795, %v8895
    %8897 = vmatmul.f32.gmra.mxu0 %v8164
    %v8898 = vpop.f32.mrf.mxu0
    %v8899 = vadd.f32 %v8798, %v8898
    %8900 = vmatmul.f32.gmra.mxu0 %v8165
    %v8901 = vpop.f32.mrf.mxu0
    %v8902 = vadd.f32 %v8801, %v8901
    %8903 = vmatmul.f32.gmra.mxu0 %v8166
    %v8904 = vpop.f32.mrf.mxu0
    %v8905 = vadd.f32 %v8804, %v8904
    %8906 = vmatmul.f32.gmra.mxu0 %v8167
    %v8907 = vpop.f32.mrf.mxu0
    %v8908 = vadd.f32 %v8807, %v8907
    %8909 = vmatmul.f32.gmra.mxu0 %v8168
    %v8910 = vpop.f32.mrf.mxu0
    %v8911 = vadd.f32 %v8810, %v8910
    %8912 = vmatmul.f32.gmra.mxu0 %v8169
    %v8913 = vpop.f32.mrf.mxu0
    %v8914 = vadd.f32 %v8813, %v8913
    %8915 = vmatmul.f32.gmra.mxu0 %v8170
    %v8916 = vpop.f32.mrf.mxu0
    %v8917 = vadd.f32 %v8816, %v8916
    %8918 = vmatmul.f32.gmra.mxu0 %v8171
    %v8919 = vpop.f32.mrf.mxu0
    %v8920 = vadd.f32 %v8819, %v8919
    %8921 = vmatmul.f32.gmra.mxu0 %v8172
    %v8922 = vpop.f32.mrf.mxu0
    %v8923 = vadd.f32 %v8822, %v8922
    %8924 = vmatmul.f32.gmra.mxu0 %v8173
    %v8925 = vpop.f32.mrf.mxu0
    %v8926 = vadd.f32 %v8825, %v8925
    %8927 = vmatmul.f32.gmra.mxu0 %v8174
    %v8928 = vpop.f32.mrf.mxu0
    %v8929 = vadd.f32 %v8828, %v8928
    %8930 = vmatmul.f32.gmra.mxu0 %v8175
    %v8931 = vpop.f32.mrf.mxu0
    %v8932 = vadd.f32 %v8831, %v8931
    %8933 = vmatmul.f32.gmra.mxu0 %v8176
    %v8934 = vpop.f32.mrf.mxu0
    %v8935 = vadd.f32 %v8834, %v8934
    %8936 = vmatmul.f32.gmra.mxu0 %v8177
    %v8937 = vpop.f32.mrf.mxu0
    %v8938 = vadd.f32 %v8837, %v8937
    %8939 = vmatmul.f32.gmra.mxu0 %v8178
    %v8940 = vpop.f32.mrf.mxu0
    %v8941 = vadd.f32 %v8840, %v8940
    %8942 = vmatmul.f32.gmra.mxu0 %v8179
    %v8943 = vpop.f32.mrf.mxu0
    %v8944 = vadd.f32 %v8843, %v8943
    %8945 = vmatmul.f32.gmra.mxu0 %v8180
    %v8946 = vpop.f32.mrf.mxu0
    %v8947 = vadd.f32 %v8846, %v8946
    %8948 = vmatmul.f32.gmra.mxu0 %v8181
    %v8949 = vpop.f32.mrf.mxu0
    %v8950 = vadd.f32 %v8849, %v8949
    %8951 = vmatmul.f32.gmra.mxu0 %v8182
    %v8952 = vpop.f32.mrf.mxu0
    %v8953 = vadd.f32 %v8852, %v8952
    %8954 = vmatmul.f32.gmra.mxu0 %v8183
    %v8955 = vpop.f32.mrf.mxu0
    %v8956 = vadd.f32 %v8855, %v8955
    %8957 = vdwg.mxu0
    %8958 = vmatpush.msra.mxu0 %v8576
    %8959 = vmatpush.msra.mxu0 %v8575
    %8960 = vmatpush.msra.mxu0 %v8574
    %8961 = vmatpush.msra.mxu0 %v8573
    %8962 = vmatpush.msra.mxu0 %v8572
    %8963 = vmatpush.msra.mxu0 %v8571
    %8964 = vmatpush.msra.mxu0 %v8570
    %8965 = vmatpush.msra.mxu0 %v8569
    %8966 = vmatpush.msra.mxu0 %v8568
    %8967 = vmatpush.msra.mxu0 %v8567
    %8968 = vmatpush.msra.mxu0 %v8566
    %8969 = vmatpush.msra.mxu0 %v8565
    %8970 = vmatpush.msra.mxu0 %v8564
    %8971 = vmatpush.msra.mxu0 %v8563
    %8972 = vmatpush.msra.mxu0 %v8562
    %8973 = vmatpush.msra.mxu0 %v8561
    %8974 = vmatmul.f32.gmra.mxu0 %v8485
    %v8975 = vpop.f32.mrf.mxu0
    %v8976 = vadd.f32 %v8875, %v8975
    %8977 = vmatmul.f32.gmra.mxu0 %v8486
    %v8978 = vpop.f32.mrf.mxu0
    %v8979 = vadd.f32 %v8878, %v8978
    %8980 = vmatmul.f32.gmra.mxu0 %v8487
    %v8981 = vpop.f32.mrf.mxu0
    %v8982 = vadd.f32 %v8881, %v8981
    %8983 = vmatmul.f32.gmra.mxu0 %v8488
    %v8984 = vpop.f32.mrf.mxu0
    %v8985 = vadd.f32 %v8884, %v8984
    %8986 = vmatmul.f32.gmra.mxu0 %v8489
    %v8987 = vpop.f32.mrf.mxu0
    %v8988 = vadd.f32 %v8887, %v8987
    %8989 = vmatmul.f32.gmra.mxu0 %v8490
    %v8990 = vpop.f32.mrf.mxu0
    %v8991 = vadd.f32 %v8890, %v8990
    %8992 = vmatmul.f32.gmra.mxu0 %v8491
    %v8993 = vpop.f32.mrf.mxu0
    %v8994 = vadd.f32 %v8893, %v8993
    %8995 = vmatmul.f32.gmra.mxu0 %v8492
    %v8996 = vpop.f32.mrf.mxu0
    %v8997 = vadd.f32 %v8896, %v8996
    %8998 = vmatmul.f32.gmra.mxu0 %v8493
    %v8999 = vpop.f32.mrf.mxu0
    %v9000 = vadd.f32 %v8899, %v8999
    %9001 = vmatmul.f32.gmra.mxu0 %v8494
    %v9002 = vpop.f32.mrf.mxu0
    %v9003 = vadd.f32 %v8902, %v9002
    %9004 = vmatmul.f32.gmra.mxu0 %v8495
    %v9005 = vpop.f32.mrf.mxu0
    %v9006 = vadd.f32 %v8905, %v9005
    %9007 = vmatmul.f32.gmra.mxu0 %v8496
    %v9008 = vpop.f32.mrf.mxu0
    %v9009 = vadd.f32 %v8908, %v9008
    %9010 = vmatmul.f32.gmra.mxu0 %v8497
    %v9011 = vpop.f32.mrf.mxu0
    %v9012 = vadd.f32 %v8911, %v9011
    %9013 = vmatmul.f32.gmra.mxu0 %v8498
    %v9014 = vpop.f32.mrf.mxu0
    %v9015 = vadd.f32 %v8914, %v9014
    %9016 = vmatmul.f32.gmra.mxu0 %v8499
    %v9017 = vpop.f32.mrf.mxu0
    %v9018 = vadd.f32 %v8917, %v9017
    %9019 = vmatmul.f32.gmra.mxu0 %v8500
    %v9020 = vpop.f32.mrf.mxu0
    %v9021 = vadd.f32 %v8920, %v9020
    %9022 = vmatmul.f32.gmra.mxu0 %v8501
    %v9023 = vpop.f32.mrf.mxu0
    %v9024 = vadd.f32 %v8923, %v9023
    %9025 = vmatmul.f32.gmra.mxu0 %v8502
    %v9026 = vpop.f32.mrf.mxu0
    %v9027 = vadd.f32 %v8926, %v9026
    %9028 = vmatmul.f32.gmra.mxu0 %v8503
    %v9029 = vpop.f32.mrf.mxu0
    %v9030 = vadd.f32 %v8929, %v9029
    %9031 = vmatmul.f32.gmra.mxu0 %v8504
    %v9032 = vpop.f32.mrf.mxu0
    %v9033 = vadd.f32 %v8932, %v9032
    %9034 = vmatmul.f32.gmra.mxu0 %v8505
    %v9035 = vpop.f32.mrf.mxu0
    %v9036 = vadd.f32 %v8935, %v9035
    %9037 = vmatmul.f32.gmra.mxu0 %v8506
    %v9038 = vpop.f32.mrf.mxu0
    %v9039 = vadd.f32 %v8938, %v9038
    %9040 = vmatmul.f32.gmra.mxu0 %v8507
    %v9041 = vpop.f32.mrf.mxu0
    %v9042 = vadd.f32 %v8941, %v9041
    %9043 = vmatmul.f32.gmra.mxu0 %v8508
    %v9044 = vpop.f32.mrf.mxu0
    %v9045 = vadd.f32 %v8944, %v9044
    %9046 = vmatmul.f32.gmra.mxu0 %v8509
    %v9047 = vpop.f32.mrf.mxu0
    %v9048 = vadd.f32 %v8947, %v9047
    %9049 = vmatmul.f32.gmra.mxu0 %v8510
    %v9050 = vpop.f32.mrf.mxu0
    %v9051 = vadd.f32 %v8950, %v9050
    %9052 = vmatmul.f32.gmra.mxu0 %v8511
    %v9053 = vpop.f32.mrf.mxu0
    %v9054 = vadd.f32 %v8953, %v9053
    %9055 = vmatmul.f32.gmra.mxu0 %v8512
    %v9056 = vpop.f32.mrf.mxu0
    %v9057 = vadd.f32 %v8956, %v9056
    %9058 = vdwg.mxu0
    %9059 = vmatpush.msra.mxu0 %v8592
    %9060 = vmatpush.msra.mxu0 %v8591
    %9061 = vmatpush.msra.mxu0 %v8590
    %9062 = vmatpush.msra.mxu0 %v8589
    %9063 = vmatpush.msra.mxu0 %v8588
    %9064 = vmatpush.msra.mxu0 %v8587
    %9065 = vmatpush.msra.mxu0 %v8586
    %9066 = vmatpush.msra.mxu0 %v8585
    %9067 = vmatpush.msra.mxu0 %v8584
    %9068 = vmatpush.msra.mxu0 %v8583
    %9069 = vmatpush.msra.mxu0 %v8582
    %9070 = vmatpush.msra.mxu0 %v8581
    %9071 = vmatpush.msra.mxu0 %v8580
    %9072 = vmatpush.msra.mxu0 %v8579
    %9073 = vmatpush.msra.mxu0 %v8578
    %9074 = vmatpush.msra.mxu0 %v8577
    %9075 = vmatmul.f32.gmra.mxu0 %v8376
    %v9076 = vpop.f32.mrf.mxu0
    %v9077 = vadd.f32 %v8976, %v9076
    %9078 = vmatmul.f32.gmra.mxu0 %v8377
    %v9079 = vpop.f32.mrf.mxu0
    %v9080 = vadd.f32 %v8979, %v9079
    %9081 = vmatmul.f32.gmra.mxu0 %v8378
    %v9082 = vpop.f32.mrf.mxu0
    %v9083 = vadd.f32 %v8982, %v9082
    %9084 = vmatmul.f32.gmra.mxu0 %v8379
    %v9085 = vpop.f32.mrf.mxu0
    %v9086 = vadd.f32 %v8985, %v9085
    %9087 = vmatmul.f32.gmra.mxu0 %v8380
    %v9088 = vpop.f32.mrf.mxu0
    %v9089 = vadd.f32 %v8988, %v9088
    %9090 = vmatmul.f32.gmra.mxu0 %v8381
    %v9091 = vpop.f32.mrf.mxu0
    %v9092 = vadd.f32 %v8991, %v9091
    %9093 = vmatmul.f32.gmra.mxu0 %v8382
    %v9094 = vpop.f32.mrf.mxu0
    %v9095 = vadd.f32 %v8994, %v9094
    %9096 = vmatmul.f32.gmra.mxu0 %v8383
    %v9097 = vpop.f32.mrf.mxu0
    %v9098 = vadd.f32 %v8997, %v9097
    %9099 = vmatmul.f32.gmra.mxu0 %v8384
    %v9100 = vpop.f32.mrf.mxu0
    %v9101 = vadd.f32 %v9000, %v9100
    %9102 = vmatmul.f32.gmra.mxu0 %v8385
    %v9103 = vpop.f32.mrf.mxu0
    %v9104 = vadd.f32 %v9003, %v9103
    %9105 = vmatmul.f32.gmra.mxu0 %v8386
    %v9106 = vpop.f32.mrf.mxu0
    %v9107 = vadd.f32 %v9006, %v9106
    %9108 = vmatmul.f32.gmra.mxu0 %v8387
    %v9109 = vpop.f32.mrf.mxu0
    %v9110 = vadd.f32 %v9009, %v9109
    %9111 = vmatmul.f32.gmra.mxu0 %v8388
    %v9112 = vpop.f32.mrf.mxu0
    %v9113 = vadd.f32 %v9012, %v9112
    %9114 = vmatmul.f32.gmra.mxu0 %v8389
    %v9115 = vpop.f32.mrf.mxu0
    %v9116 = vadd.f32 %v9015, %v9115
    %9117 = vmatmul.f32.gmra.mxu0 %v8390
    %v9118 = vpop.f32.mrf.mxu0
    %v9119 = vadd.f32 %v9018, %v9118
    %9120 = vmatmul.f32.gmra.mxu0 %v8391
    %v9121 = vpop.f32.mrf.mxu0
    %v9122 = vadd.f32 %v9021, %v9121
    %9123 = vmatmul.f32.gmra.mxu0 %v8392
    %v9124 = vpop.f32.mrf.mxu0
    %v9125 = vadd.f32 %v9024, %v9124
    %9126 = vmatmul.f32.gmra.mxu0 %v8393
    %v9127 = vpop.f32.mrf.mxu0
    %v9128 = vadd.f32 %v9027, %v9127
    %9129 = vmatmul.f32.gmra.mxu0 %v8394
    %v9130 = vpop.f32.mrf.mxu0
    %v9131 = vadd.f32 %v9030, %v9130
    %9132 = vmatmul.f32.gmra.mxu0 %v8395
    %v9133 = vpop.f32.mrf.mxu0
    %v9134 = vadd.f32 %v9033, %v9133
    %9135 = vmatmul.f32.gmra.mxu0 %v8396
    %v9136 = vpop.f32.mrf.mxu0
    %v9137 = vadd.f32 %v9036, %v9136
    %9138 = vmatmul.f32.gmra.mxu0 %v8397
    %v9139 = vpop.f32.mrf.mxu0
    %v9140 = vadd.f32 %v9039, %v9139
    %9141 = vmatmul.f32.gmra.mxu0 %v8398
    %v9142 = vpop.f32.mrf.mxu0
    %v9143 = vadd.f32 %v9042, %v9142
    %9144 = vmatmul.f32.gmra.mxu0 %v8399
    %v9145 = vpop.f32.mrf.mxu0
    %v9146 = vadd.f32 %v9045, %v9145
    %9147 = vmatmul.f32.gmra.mxu0 %v8400
    %v9148 = vpop.f32.mrf.mxu0
    %v9149 = vadd.f32 %v9048, %v9148
    %9150 = vmatmul.f32.gmra.mxu0 %v8401
    %v9151 = vpop.f32.mrf.mxu0
    %v9152 = vadd.f32 %v9051, %v9151
    %9153 = vmatmul.f32.gmra.mxu0 %v8402
    %v9154 = vpop.f32.mrf.mxu0
    %v9155 = vadd.f32 %v9054, %v9154
    %9156 = vmatmul.f32.gmra.mxu0 %v4054
    %v9157 = vpop.f32.mrf.mxu0
    %v9158 = vadd.f32 %v9057, %v9157
    %9159 = vdwg.mxu0
    %9160 = vmatpush.msra.mxu0 0.0
    %9161 = vmatpush.msra.mxu0 0.0
    %9162 = vmatpush.msra.mxu0 0.0
    %9163 = vmatpush.msra.mxu0 0.0
    %9164 = vmatpush.msra.mxu0 0.0
    %9165 = vmatpush.msra.mxu0 0.0
    %9166 = vmatpush.msra.mxu0 0.0
    %9167 = vmatpush.msra.mxu0 0.0
    %9168 = vmatpush.msra.mxu0 0.0
    %9169 = vmatpush.msra.mxu0 0.0
    %9170 = vmatpush.msra.mxu0 0.0
    %9171 = vmatpush.msra.mxu0 0.0
    %9172 = vmatpush.msra.mxu0 %v8596
    %9173 = vmatpush.msra.mxu0 %v8595
    %9174 = vmatpush.msra.mxu0 %v8594
    %9175 = vmatpush.msra.mxu0 %v8593
    %9176 = vmatmul.f32.gmra.mxu0 %v8601
    %v9177 = vpop.f32.mrf.mxu0
    %v9178 = vadd.f32 %v9077, %v9177
    %9179 = vmatmul.f32.gmra.mxu0 %v8603
    %v9180 = vpop.f32.mrf.mxu0
    %v9181 = vadd.f32 %v9080, %v9180
    %9182 = vmatmul.f32.gmra.mxu0 %v8605
    %v9183 = vpop.f32.mrf.mxu0
    %v9184 = vadd.f32 %v9083, %v9183
    %9185 = vmatmul.f32.gmra.mxu0 %v8607
    %v9186 = vpop.f32.mrf.mxu0
    %v9187 = vadd.f32 %v9086, %v9186
    %9188 = vmatmul.f32.gmra.mxu0 %v8609
    %v9189 = vpop.f32.mrf.mxu0
    %v9190 = vadd.f32 %v9089, %v9189
    %9191 = vmatmul.f32.gmra.mxu0 %v8611
    %v9192 = vpop.f32.mrf.mxu0
    %v9193 = vadd.f32 %v9092, %v9192
    %9194 = vmatmul.f32.gmra.mxu0 %v8613
    %v9195 = vpop.f32.mrf.mxu0
    %v9196 = vadd.f32 %v9095, %v9195
    %9197 = vmatmul.f32.gmra.mxu0 %v8615
    %v9198 = vpop.f32.mrf.mxu0
    %v9199 = vadd.f32 %v9098, %v9198
    %9200 = vmatmul.f32.gmra.mxu0 %v8617
    %v9201 = vpop.f32.mrf.mxu0
    %v9202 = vadd.f32 %v9101, %v9201
    %9203 = vmatmul.f32.gmra.mxu0 %v8619
    %v9204 = vpop.f32.mrf.mxu0
    %v9205 = vadd.f32 %v9104, %v9204
    %9206 = vmatmul.f32.gmra.mxu0 %v8621
    %v9207 = vpop.f32.mrf.mxu0
    %v9208 = vadd.f32 %v9107, %v9207
    %9209 = vmatmul.f32.gmra.mxu0 %v8623
    %v9210 = vpop.f32.mrf.mxu0
    %v9211 = vadd.f32 %v9110, %v9210
    %9212 = vmatmul.f32.gmra.mxu0 %v8625
    %v9213 = vpop.f32.mrf.mxu0
    %v9214 = vadd.f32 %v9113, %v9213
    %9215 = vmatmul.f32.gmra.mxu0 %v8627
    %v9216 = vpop.f32.mrf.mxu0
    %v9217 = vadd.f32 %v9116, %v9216
    %9218 = vmatmul.f32.gmra.mxu0 %v8629
    %v9219 = vpop.f32.mrf.mxu0
    %v9220 = vadd.f32 %v9119, %v9219
    %9221 = vmatmul.f32.gmra.mxu0 %v8631
    %v9222 = vpop.f32.mrf.mxu0
    %v9223 = vadd.f32 %v9122, %v9222
    %9224 = vmatmul.f32.gmra.mxu0 %v8633
    %v9225 = vpop.f32.mrf.mxu0
    %v9226 = vadd.f32 %v9125, %v9225
    %9227 = vmatmul.f32.gmra.mxu0 %v8635
    %v9228 = vpop.f32.mrf.mxu0
    %v9229 = vadd.f32 %v9128, %v9228
    %9230 = vmatmul.f32.gmra.mxu0 %v8637
    %v9231 = vpop.f32.mrf.mxu0
    %v9232 = vadd.f32 %v9131, %v9231
    %9233 = vmatmul.f32.gmra.mxu0 %v8639
    %v9234 = vpop.f32.mrf.mxu0
    %v9235 = vadd.f32 %v9134, %v9234
    %9236 = vmatmul.f32.gmra.mxu0 %v8641
    %v9237 = vpop.f32.mrf.mxu0
    %v9238 = vadd.f32 %v9137, %v9237
    %9239 = vmatmul.f32.gmra.mxu0 %v8643
    %v9240 = vpop.f32.mrf.mxu0
    %v9241 = vadd.f32 %v9140, %v9240
    %9242 = vmatmul.f32.gmra.mxu0 %v8645
    %v9243 = vpop.f32.mrf.mxu0
    %v9244 = vadd.f32 %v9143, %v9243
    %9245 = vmatmul.f32.gmra.mxu0 %v8647
    %v9246 = vpop.f32.mrf.mxu0
    %v9247 = vadd.f32 %v9146, %v9246
    %9248 = vmatmul.f32.gmra.mxu0 %v8649
    %v9249 = vpop.f32.mrf.mxu0
    %v9250 = vadd.f32 %v9149, %v9249
    %9251 = vmatmul.f32.gmra.mxu0 %v8651
    %v9252 = vpop.f32.mrf.mxu0
    %v9253 = vadd.f32 %v9152, %v9252
    %9254 = vmatmul.f32.gmra.mxu0 %v8653
    %v9255 = vpop.f32.mrf.mxu0
    %v9256 = vadd.f32 %v9155, %v9255
    %9257 = vmatmul.f32.gmra.mxu0 %v4300
    %v9258 = vpop.f32.mrf.mxu0
    %v9259 = vadd.f32 %v9158, %v9258
    %9260 = vdwg.mxu0
    %9262 = vrot.lane.b32.xlu0 %v9181, 28
    %v9263 = vpop.permute.xlu0 %9262
    %9266 = vrot.lane.b32.xlu0 %v9184, 56
    %v9267 = vpop.permute.xlu0 %9266
    %9270 = vrot.lane.b32.xlu0 %v9187, 84
    %v9271 = vpop.permute.xlu0 %9270
    %9274 = vrot.lane.b32.xlu0 %v9190, 112
    %v9275 = vpop.permute.xlu0 %9274
    %9278 = vrot.lane.b32.xlu0 %v9193, 12
    %v9279 = vpop.permute.xlu0 %9278
    %9282 = vrot.lane.b32.xlu0 %v9196, 40
    %v9283 = vpop.permute.xlu0 %9282
    %9286 = vrot.lane.b32.xlu0 %v9199, 68
    %v9287 = vpop.permute.xlu0 %9286
    %9290 = vrot.lane.b32.xlu0 %v9202, 96
    %v9291 = vpop.permute.xlu0 %9290
    %9294 = vrot.lane.b32.xlu0 %v9205, 124
    %v9295 = vpop.permute.xlu0 %9294
    %9298 = vrot.lane.b32.xlu0 %v9208, 24
    %v9299 = vpop.permute.xlu0 %9298
    %9302 = vrot.lane.b32.xlu0 %v9211, 52
    %v9303 = vpop.permute.xlu0 %9302
    %9306 = vrot.lane.b32.xlu0 %v9214, 80
    %v9307 = vpop.permute.xlu0 %9306
    %9310 = vrot.lane.b32.xlu0 %v9217, 108
    %v9311 = vpop.permute.xlu0 %9310
    %9314 = vrot.lane.b32.xlu0 %v9220, 8
    %v9315 = vpop.permute.xlu0 %9314
    %9318 = vrot.lane.b32.xlu0 %v9223, 36
    %v9319 = vpop.permute.xlu0 %9318
    %vm9321 = vcmask 228352
    %v9322 = vsel %vm9321, %v9178, %v9263
    %vm9323 = vcmask 457728
    %v9324 = vsel %vm9323, %v9322, %v9267
    %vm9325 = vcmask 687104
    %v9326 = vsel %vm9325, %v9324, %v9271
    %vm9327 = vcmask 916480
    %v9328 = vsel %vm9327, %v9326, %v9275
    %vm9329 = vcmask 97280
    %v9330 = vsel %vm9329, %v9275, %v9279
    %vm9331 = vcmask 326656
    %v9332 = vsel %vm9331, %v9330, %v9283
    %vm9333 = vcmask 556032
    %v9334 = vsel %vm9333, %v9332, %v9287
    %v9335 = vsel %vm3962, %v9334, %v9291
    %vm9336 = vcmask 1014784
    %v9337 = vsel %vm9336, %v9335, %v9295
    %vm9338 = vcmask 195584
    %v9339 = vsel %vm9338, %v9295, %v9299
    %vm9340 = vcmask 424960
    %v9341 = vsel %vm9340, %v9339, %v9303
    %vm9342 = vcmask 654336
    %v9343 = vsel %vm9342, %v9341, %v9307
    %vm9344 = vcmask 883712
    %v9345 = vsel %vm9344, %v9343, %v9311
    %v9346 = vsel %vm7474, %v9311, %v9315
    %vm9347 = vcmask 293888
    %v9348 = vsel %vm9347, %v9346, %v9319
    %9350 = vrot.lane.b32.xlu0 %v9229, 28
    %v9351 = vpop.permute.xlu0 %9350
    %9354 = vrot.lane.b32.xlu0 %v9232, 56
    %v9355 = vpop.permute.xlu0 %9354
    %9358 = vrot.lane.b32.xlu0 %v9235, 84
    %v9359 = vpop.permute.xlu0 %9358
    %9362 = vrot.lane.b32.xlu0 %v9238, 112
    %v9363 = vpop.permute.xlu0 %9362
    %9366 = vrot.lane.b32.xlu0 %v9241, 12
    %v9367 = vpop.permute.xlu0 %9366
    %9370 = vrot.lane.b32.xlu0 %v9244, 40
    %v9371 = vpop.permute.xlu0 %9370
    %9374 = vrot.lane.b32.xlu0 %v9247, 68
    %v9375 = vpop.permute.xlu0 %9374
    %9378 = vrot.lane.b32.xlu0 %v9250, 96
    %v9379 = vpop.permute.xlu0 %9378
    %9382 = vrot.lane.b32.xlu0 %v9253, 124
    %v9383 = vpop.permute.xlu0 %9382
    %9386 = vrot.lane.b32.xlu0 %v9256, 24
    %v9387 = vpop.permute.xlu0 %9386
    %9390 = vrot.lane.b32.xlu0 %v9259, 52
    %v9391 = vpop.permute.xlu0 %9390
    %v9393 = vsel %vm9321, %v9226, %v9351
    %v9394 = vsel %vm9323, %v9393, %v9355
    %v9395 = vsel %vm9325, %v9394, %v9359
    %v9396 = vsel %vm9327, %v9395, %v9363
    %v9397 = vsel %vm9329, %v9363, %v9367
    %v9398 = vsel %vm9331, %v9397, %v9371
    %v9399 = vsel %vm9333, %v9398, %v9375
    %v9400 = vsel %vm3962, %v9399, %v9379
    %v9401 = vsel %vm9336, %v9400, %v9383
    %v9402 = vsel %vm9338, %v9383, %v9387
    %v9403 = vsel %vm9340, %v9402, %v9391
    %9407 = vrot.lane.b32.xlu0 %v9396, 64
    %v9408 = vpop.permute.xlu0 %9407
    %9409 = vrot.lane.b32.xlu0 %v9401, 64
    %v9410 = vpop.permute.xlu0 %9409
    %9411 = vrot.lane.b32.xlu0 %v9403, 64
    %v9412 = vpop.permute.xlu0 %9411
    %v9413 = vsel %vm3952, %v9408, %v9410
    %v9414 = vsel %vm3952, %v9410, %v9412
    %v9419 = vsel %vm3952, %v9348, %v9408
    %v9420 = vadd.f32 %v9328, %v9337
    %v9421 = vadd.f32 %v9420, %v9345
    %v9422 = vadd.f32 %v9421, %v9419
    %v9423 = vadd.f32 %v9422, %v9413
    %v9424 = vadd.f32 %v9423, %v9414
    %v9425 = vsel %vm5185, %v9412, 0.0
    %v9426 = vadd.f32 %v9424, %v9425
    %9427 = vadd.xlane.f32.xlu0 %v9426
    %v9428 = vpop.xlane.xlu0 %9427
    %v9429 = vrot.slane %v9428, 4
    %v9430 = vadd.f32 %v9428, %v9429
    %v9431 = vrot.slane %v9430, 2
    %v9432 = vadd.f32 %v9430, %v9431
    %v9433 = vrot.slane %v9432, 1
    %v9434 = vadd.f32 %v9432, %v9433
    %v9435 = vmul.f32 %v9434, %v7470
    %v9436 = vsub.f32 %v9328, %v9435
    %v9437 = vsub.f32 %v9337, %v9435
    %v9438 = vsub.f32 %v9345, %v9435
    %v9439 = vsub.f32 %v9419, %v9435
    %v9440 = vsub.f32 %v9413, %v9435
    %v9441 = vsub.f32 %v9414, %v9435
    %v9442 = vsub.f32 %v9412, %v9435
    %v9443 = vmul.f32 %v9436, %v9436
    %v9444 = vmul.f32 %v9437, %v9437
    %v9445 = vmul.f32 %v9438, %v9438
    %v9446 = vmul.f32 %v9439, %v9439
    %v9447 = vmul.f32 %v9440, %v9440
    %v9448 = vmul.f32 %v9441, %v9441
    %v9449 = vmul.f32 %v9442, %v9442
    %v9450 = vadd.f32 %v9443, %v9444
    %v9451 = vadd.f32 %v9450, %v9445
    %v9452 = vadd.f32 %v9451, %v9446
    %v9453 = vadd.f32 %v9452, %v9447
    %v9454 = vadd.f32 %v9453, %v9448
    %v9455 = vsel %vm5185, %v9449, 0.0
    %v9456 = vadd.f32 %v9454, %v9455
    %9457 = vadd.xlane.f32.xlu0 %v9456
    %v9458 = vpop.xlane.xlu0 %9457
    %v9459 = vrot.slane %v9458, 4
    %v9460 = vadd.f32 %v9458, %v9459
    %v9461 = vrot.slane %v9460, 2
    %v9462 = vadd.f32 %v9460, %v9461
    %v9463 = vrot.slane %v9462, 1
    %v9464 = vadd.f32 %v9462, %v9463
    %v9465 = vmul.f32 %v9464, %v7470
    %v9466 = vld [vmem:[#allocation2] sm:$0x1]
    %v9467 = vadd.f32 %v9465, 1e-05
    %v9468 = vrsqrt.pop %v9467
    %v9469 = vmul.f32 %v9468, %v9467
    %v9470 = vmul.f32 %v9469, %v9468
    %v9471 = vmul.f32 0.5, %v9470
    %v9472 = vsub.f32 1.5, %v9471
    %v9473 = vmul.f32 %v9468, %v9472
    %vm9474 = vweird.f32 %v9467
    %vm9475 = vweird.f32 %v9468
    %vm9476 = vmor %vm9474, %vm9475
    %v9477 = vsel %vm9476, %v9468, %v9473
    %v9478 = vmul.f32 %v9466, %v9477
    %v9480 = vperm.slane %v9478, 0
    %9481 = vset.pattern.permute.xlu0 0
    %9482 = vperm.xlu0 %9481, %v9480
    %v9483 = vpop.permute.xlu0 %9482
    %v9485 = vmul.f32 %v9436, %v9483
    %v9486 = vmul.f32 %v9437, %v9483
    %v9487 = vmul.f32 %v9438, %v9483
    %v9488 = vmul.f32 %v9439, %v9483
    %v9489 = vmul.f32 %v9440, %v9483
    %v9490 = vmul.f32 %v9441, %v9483
    %v9491 = vmul.f32 %v9442, %v9483
    %v9492 = vld [vmem:[#allocation3] sm:$0x1]
    %v9494 = vperm.slane %v9492, 0
    %9495 = vset.pattern.permute.xlu0 0
    %9496 = vperm.xlu0 %9495, %v9494
    %v9497 = vpop.permute.xlu0 %9496
    %v9499 = vadd.f32 %v9485, %v9497
    %v9500 = vadd.f32 %v9486, %v9497
    %v9501 = vadd.f32 %v9487, %v9497
    %v9502 = vadd.f32 %v9488, %v9497
    %v9503 = vadd.f32 %v9489, %v9497
    %v9504 = vadd.f32 %v9490, %v9497
    %v9505 = vadd.f32 %v9491, %v9497
    %v9506 = vxor.u32 %v9499, 2147483648
    %v9507 = vxor.u32 %v9500, 2147483648
    %v9508 = vxor.u32 %v9501, 2147483648
    %v9509 = vxor.u32 %v9502, 2147483648
    %v9510 = vxor.u32 %v9503, 2147483648
    %v9511 = vxor.u32 %v9504, 2147483648
    %v9512 = vxor.u32 %v9505, 2147483648
    %v9513 = vmul.f32 %v9506, 1.442695
    %v9514 = vpow.pop %v9513
    %v9515 = vmul.f32 %v9507, 1.442695
    %v9516 = vpow.pop %v9515
    %v9517 = vmul.f32 %v9508, 1.442695
    %v9518 = vpow.pop %v9517
    %v9519 = vmul.f32 %v9509, 1.442695
    %v9520 = vpow.pop %v9519
    %v9521 = vmul.f32 %v9510, 1.442695
    %v9522 = vpow.pop %v9521
    %v9523 = vmul.f32 %v9511, 1.442695
    %v9524 = vpow.pop %v9523
    %v9525 = vmul.f32 %v9512, 1.442695
    %v9526 = vpow.pop %v9525
    %v9527 = vadd.f32 %v9514, 1.0
    %v9528 = vadd.f32 %v9516, 1.0
    %v9529 = vadd.f32 %v9518, 1.0
    %v9530 = vadd.f32 %v9520, 1.0
    %v9531 = vadd.f32 %v9522, 1.0
    %v9532 = vadd.f32 %v9524, 1.0
    %v9533 = vadd.f32 %v9526, 1.0
    %v9534 = vrcp.pop %v9527
    %v9535 = vmul.f32 %v9527, %v9534
    %v9536 = vsub.f32 1.0, %v9535
    %v9537 = vmul.f32 %v9534, %v9536
    %v9538 = vadd.f32 %v9534, %v9537
    %vm9539 = vweird.f32 %v9527
    %vm9540 = vweird.f32 %v9534
    %vm9541 = vmor %vm9539, %vm9540
    %v9542 = vsel %vm9541, %v9534, %v9538
    %v9543 = vand.u32 2147483647, %v9527
    %vm9544 = vcmp.eq.f32.partialorder %v9543, 8.507059e+37
    %v9545 = vand.u32 %v9527, 2147483648
    %v9546 = vor.u32 1.1754944e-38, %v9545
    %v9547 = vsel %vm9544, %v9546, %v9542
    %v9548 = vmul.f32 1.0, %v9547
    %v9549 = vrcp.pop %v9528
    %v9550 = vmul.f32 %v9528, %v9549
    %v9551 = vsub.f32 1.0, %v9550
    %v9552 = vmul.f32 %v9549, %v9551
    %v9553 = vadd.f32 %v9549, %v9552
    %vm9554 = vweird.f32 %v9528
    %vm9555 = vweird.f32 %v9549
    %vm9556 = vmor %vm9554, %vm9555
    %v9557 = vsel %vm9556, %v9549, %v9553
    %v9558 = vand.u32 2147483647, %v9528
    %vm9559 = vcmp.eq.f32.partialorder %v9558, 8.507059e+37
    %v9560 = vand.u32 %v9528, 2147483648
    %v9561 = vor.u32 1.1754944e-38, %v9560
    %v9562 = vsel %vm9559, %v9561, %v9557
    %v9563 = vmul.f32 1.0, %v9562
    %v9564 = vrcp.pop %v9529
    %v9565 = vmul.f32 %v9529, %v9564
    %v9566 = vsub.f32 1.0, %v9565
    %v9567 = vmul.f32 %v9564, %v9566
    %v9568 = vadd.f32 %v9564, %v9567
    %vm9569 = vweird.f32 %v9529
    %vm9570 = vweird.f32 %v9564
    %vm9571 = vmor %vm9569, %vm9570
    %v9572 = vsel %vm9571, %v9564, %v9568
    %v9573 = vand.u32 2147483647, %v9529
    %vm9574 = vcmp.eq.f32.partialorder %v9573, 8.507059e+37
    %v9575 = vand.u32 %v9529, 2147483648
    %v9576 = vor.u32 1.1754944e-38, %v9575
    %v9577 = vsel %vm9574, %v9576, %v9572
    %v9578 = vmul.f32 1.0, %v9577
    %v9579 = vrcp.pop %v9530
    %v9580 = vmul.f32 %v9530, %v9579
    %v9581 = vsub.f32 1.0, %v9580
    %v9582 = vmul.f32 %v9579, %v9581
    %v9583 = vadd.f32 %v9579, %v9582
    %vm9584 = vweird.f32 %v9530
    %vm9585 = vweird.f32 %v9579
    %vm9586 = vmor %vm9584, %vm9585
    %v9587 = vsel %vm9586, %v9579, %v9583
    %v9588 = vand.u32 2147483647, %v9530
    %vm9589 = vcmp.eq.f32.partialorder %v9588, 8.507059e+37
    %v9590 = vand.u32 %v9530, 2147483648
    %v9591 = vor.u32 1.1754944e-38, %v9590
    %v9592 = vsel %vm9589, %v9591, %v9587
    %v9593 = vmul.f32 1.0, %v9592
    %v9594 = vrcp.pop %v9531
    %v9595 = vmul.f32 %v9531, %v9594
    %v9596 = vsub.f32 1.0, %v9595
    %v9597 = vmul.f32 %v9594, %v9596
    %v9598 = vadd.f32 %v9594, %v9597
    %vm9599 = vweird.f32 %v9531
    %vm9600 = vweird.f32 %v9594
    %vm9601 = vmor %vm9599, %vm9600
    %v9602 = vsel %vm9601, %v9594, %v9598
    %v9603 = vand.u32 2147483647, %v9531
    %vm9604 = vcmp.eq.f32.partialorder %v9603, 8.507059e+37
    %v9605 = vand.u32 %v9531, 2147483648
    %v9606 = vor.u32 1.1754944e-38, %v9605
    %v9607 = vsel %vm9604, %v9606, %v9602
    %v9608 = vmul.f32 1.0, %v9607
    %v9609 = vrcp.pop %v9532
    %v9610 = vmul.f32 %v9532, %v9609
    %v9611 = vsub.f32 1.0, %v9610
    %v9612 = vmul.f32 %v9609, %v9611
    %v9613 = vadd.f32 %v9609, %v9612
    %vm9614 = vweird.f32 %v9532
    %vm9615 = vweird.f32 %v9609
    %vm9616 = vmor %vm9614, %vm9615
    %v9617 = vsel %vm9616, %v9609, %v9613
    %v9618 = vand.u32 2147483647, %v9532
    %vm9619 = vcmp.eq.f32.partialorder %v9618, 8.507059e+37
    %v9620 = vand.u32 %v9532, 2147483648
    %v9621 = vor.u32 1.1754944e-38, %v9620
    %v9622 = vsel %vm9619, %v9621, %v9617
    %v9623 = vmul.f32 1.0, %v9622
    %v9624 = vrcp.pop %v9533
    %v9625 = vmul.f32 %v9533, %v9624
    %v9626 = vsub.f32 1.0, %v9625
    %v9627 = vmul.f32 %v9624, %v9626
    %v9628 = vadd.f32 %v9624, %v9627
    %vm9629 = vweird.f32 %v9533
    %vm9630 = vweird.f32 %v9624
    %vm9631 = vmor %vm9629, %vm9630
    %v9632 = vsel %vm9631, %v9624, %v9628
    %v9633 = vand.u32 2147483647, %v9533
    %vm9634 = vcmp.eq.f32.partialorder %v9633, 8.507059e+37
    %v9635 = vand.u32 %v9533, 2147483648
    %v9636 = vor.u32 1.1754944e-38, %v9635
    %v9637 = vsel %vm9634, %v9636, %v9632
    %v9638 = vmul.f32 1.0, %v9637
    %9639 = vst [vmem:[%s23] sm:$0xff] %v9548
    %9640 = vst [vmem:[%s23 + $0x8] sm:$0xff] %v9563
    %9641 = vst [vmem:[%s23 + $0x10] sm:$0xff] %v9578
    %9642 = vst [vmem:[%s23 + $0x18] sm:$0xff] %v9593
    %9643 = vst [vmem:[%s23 + $0x20] sm:$0xff] %v9608
    %9644 = vst [vmem:[%s23 + $0x28] sm:$0xff] %v9623
    %9645 = vst.msk [vmem:[%s23 + $0x30] sm:$0xff] %vm5185, %v9638
    // Predicated region
    $region162: #{decoder_forward.1} parent=1 // pred_check
      _
    $region163: #{decoder_forward.1} parent=1 // pred_check_branch
      %9647 = sbr.rel (0) target = $region165
    $region164: #{decoder_forward.1} parent=1 // pred_region
      _
    $region165: #{decoder_forward.1} parent=1 // pred_fallthru
      _
    // Predicated region
    $region166: #{decoder_forward.1} parent=1 // pred_check
      _
    $region167: #{decoder_forward.1} parent=1 // pred_check_branch
      %9649 = sbr.rel (0) target = $region169
    $region168: #{decoder_forward.1} parent=1 // pred_region
      _
    $region169: #{decoder_forward.1} parent=1 // pred_fallthru
      _
    %9650 = vsyncpa [#allocation5], 1
    %9651 = vsyncpa [#allocation7], 1
    %9652 = vsyncpa [#allocation10], 1
    %9653 = vsyncpa [#allocation13], 1
    %9654 = vsyncpa [#allocation16], 1
    %9655 = vsyncpa [#allocation19], 1
    %9656 = vsyncpa [#allocation22], 1
    %9657 = vsyncpa [#allocation25], 1
    %9658 = vsyncpa [#allocation28], 1

</llo_original>
